<compile_context>
chip_gen: v5e
topology: v5e:2x2
jax: 0.10.0
libtpu: 0.0.40
codegen_flags: <defaults>
</compile_context>

<pallas_src>
import functools
import itertools
import math

import jax
import jax.numpy as jnp
import numpy as np
from jax.experimental import pallas as pl
from jax.experimental.pallas import tpu as pltpu

# ------------------------------------------------------------------ constants
H_FEAT = 15            # raw feature rows
HP = 16                # padded feature rows (lane-friendly)
W_TIME = 30            # time steps
WP = 32                # padded time steps (sublane-friendly)
HIDDEN = 30            # GRU hidden size
STRIDE1, T1 = 10, W_TIME // 10     # Inception1: window 10 -> 3 windows
STRIDE2, T2 = 3, W_TIME // 3       # Inception2: window 3  -> 10 windows
FC1_NUM = 2 * HIDDEN
FC2_NUM = 32
BN_EPS = 1e-5

PAIRS = list(itertools.combinations(range(H_FEAT), 2))      # 105 pairs
P_PAIRS = len(PAIRS)
PP = 128                                                    # padded pair count
GRU_IN = 3 * P_PAIRS + 4 * H_FEAT                           # 375 = nn.GRU(375,30,2)
assert GRU_IN == 375
FEAT_K = 3 * PP + 4 * HP                                    # 448 fused feature width

# eval-mode BatchNorm2d(1) with default running stats: y = x / sqrt(1 + eps)
BN_SCALE = 1.0 / math.sqrt(1.0 + BN_EPS)

# Set to jnp.bfloat16 on v6e/v7x to avoid the ~3x f32 MXU multi-pass cost
# (operand-only cast; accumulation + all elementwise math stay f32).  Default
# keeps exact float32 reference numerics.
MATMUL_DTYPE = jnp.float32


# ------------------------------------------------------- constant matrix glue
def _build_selection():
    """One-hot pair selection: sel[h, p] picks feature PAIRS[p][0], sel[h, PP+p] PAIRS[p][1]."""
    sel = np.zeros((HP, 2 * PP), np.float32)
    for p, (i, j) in enumerate(PAIRS):
        sel[i, p] = 1.0
        sel[j, PP + p] = 1.0
    return sel


def _build_branch_consts(stride, batch):
    """Block-diagonal, prescaled window matrices (whole batch in one matmul).

    Output rows are t-major (row = t*batch + b) so every GRU step reads a
    contiguous [batch, :] slab of the precomputed layer-0 preactivations.
    """
    n_win = W_TIME // stride
    rows, cols = n_win * batch, batch * WP
    wind = np.zeros((cols, rows), np.float32)   # broadcast window stat back to time
    wsm = np.zeros((rows, cols), np.float32)    # mean / mul   (prescaled 1/s)
    wsv = np.zeros((rows, cols), np.float32)    # var / cov    (prescaled 1/(s-1))
    wdec = np.zeros((rows, cols), np.float32)   # ts_decaylinear weights
    dw = np.arange(1, stride + 1, dtype=np.float32)
    dw /= dw.sum()
    for t in range(n_win):
        for b in range(batch):
            r = t * batch + b
            c0 = b * WP + t * stride
            wind[c0:c0 + stride, r] = 1.0
            wsm[r, c0:c0 + stride] = 1.0 / stride
            wsv[r, c0:c0 + stride] = 1.0 / (stride - 1.0)
            wdec[r, c0:c0 + stride] = dw
    return [wind, wsm, wsv, wdec]


# --------------------------------------------------------------- fused kernel
def _alphanet_kernel(
        x_ref, selT_ref,
        wind1_ref, wsm1_ref, wsv1_ref, wdec1_ref,
        wind2_ref, wsm2_ref, wsv2_ref, wdec2_ref,
        g1_w0_ref, g1_b0_ref, g1_bhn0_ref, g1_whh0_ref,
        g1_wih1_ref, g1_whh1_ref, g1_b1_ref, g1_bhn1_ref,
        g2_w0_ref, g2_b0_ref, g2_bhn0_ref, g2_whh0_ref,
        g2_wih1_ref, g2_whh1_ref, g2_b1_ref, g2_bhn1_ref,
        w1a_ref, w1b_ref, fb1_ref, w2_ref, fb2_ref,
        out_ref, *, batch):
    """Whole AlphaNet forward for one batch tile.  x_ref: [batch*WP, HP]."""
    f32 = jnp.float32
    H = HIDDEN

    def dot(a, b):
        if MATMUL_DTYPE != jnp.float32:          # optional bf16 operands (v6e/v7x)
            a = a.astype(MATMUL_DTYPE)
            b = b.astype(MATMUL_DTYPE)
        return jnp.dot(a, b, preferred_element_type=f32)

    X = x_ref[...]                               # [B*WP, HP]  time on sublanes
    selT = selT_ref[...]                         # [HP, 2*PP]

    # ---- batched feature extraction + fused GRU layer-0 input projection -----
    def branch_features(wind, wsm, wsv, wdec, w0, bias0):
        mean_f = dot(wsm, X)                                  # ts_mean   [T*B, HP]
        meanexp = dot(wind, mean_f)                           # back to   [B*WP, HP]
        dx = X - meanexp
        var_f = dot(wsv, dx * dx)                             # unbiased var
        std_f = jnp.sqrt(jnp.maximum(var_f, 0.0))             # ts_std
        dec_f = dot(wdec, X)                                  # ts_decaylinear
        zsc_f = mean_f * pl.reciprocal(std_f + 0.01)          # ts_zcore
        xij = dot(X, selT)                                    # pair gather as matmul
        dxij = dot(dx, selT)
        cov = dot(wsv, dxij[:, :PP] * dxij[:, PP:])           # ts_cov4d  [T*B, PP]
        mul = dot(wsm, xij[:, :PP] * xij[:, PP:])             # ts_mul
        stdij = dot(std_f, selT)
        corr = cov * pl.reciprocal(stdij[:, :PP] * stdij[:, PP:] + 0.01)  # ts_corr4d
        # one fused [T*B, 448] @ [448, 3H] projection; BatchNorm scale, the
        # (s-1)/s corr factor and the r/z hidden biases are folded into w0/bias0.
        feat = jnp.concatenate([cov, corr, mul, dec_f, std_f, mean_f, zsc_f], axis=1)
        return dot(feat, w0) + bias0                          # [T*B, 3H] (r|z|n)

    # ---- GRU steps (PyTorch gate order r, z, n; gates at lane offsets 0/30/60)
    def gru_l0_step(h, gi_t, whh, bhn):
        ghh = dot(h, whh)                                     # [B, 3H]
        r = jax.nn.sigmoid(gi_t[:, 0:H] + ghh[:, 0:H])
        z = jax.nn.sigmoid(gi_t[:, H:2 * H] + ghh[:, H:2 * H])
        n = jnp.tanh(gi_t[:, 2 * H:] + r * (ghh[:, 2 * H:] + bhn))
        return (1.0 - z) * n + z * h

    def gru_l1_step(x_in, h, wih, whh, bias, bhn):
        a = dot(x_in, wih) + bias                             # input path  [B, 3H]
        b = dot(h, whh)                                       # hidden path [B, 3H]
        r = jax.nn.sigmoid(a[:, 0:H] + b[:, 0:H])
        z = jax.nn.sigmoid(a[:, H:2 * H] + b[:, H:2 * H])
        n = jnp.tanh(a[:, 2 * H:] + r * (b[:, 2 * H:] + bhn))
        return (1.0 - z) * n + z * h

    gi1 = branch_features(wind1_ref[...], wsm1_ref[...], wsv1_ref[...],
                          wdec1_ref[...], g1_w0_ref[...], g1_b0_ref[...])
    gi2 = branch_features(wind2_ref[...], wsm2_ref[...], wsv2_ref[...],
                          wdec2_ref[...], g2_w0_ref[...], g2_b0_ref[...])

    g1_whh0, g1_bhn0 = g1_whh0_ref[...], g1_bhn0_ref[...]
    g1_wih1, g1_whh1 = g1_wih1_ref[...], g1_whh1_ref[...]
    g1_b1, g1_bhn1 = g1_b1_ref[...], g1_bhn1_ref[...]
    g2_whh0, g2_bhn0 = g2_whh0_ref[...], g2_bhn0_ref[...]
    g2_wih1, g2_whh1 = g2_wih1_ref[...], g2_whh1_ref[...]
    g2_b1, g2_bhn1 = g2_b1_ref[...], g2_bhn1_ref[...]

    # ---- interleaved 2-layer GRU recurrences (branch 2 drives the loop; the
    # shorter branch-1 chain rides along so the scheduler sees independent ILP).
    zero_h = jnp.zeros((batch, H), f32)
    h0a = h1a = zero_h                                        # branch 1 (stride 10)
    h0b = h1b = zero_h                                        # branch 2 (stride 3)
    for t in range(T2):                                       # T2=10 >= T1=3, static
        h0b = gru_l0_step(h0b, gi2[t * batch:(t + 1) * batch], g2_whh0, g2_bhn0)
        h1b = gru_l1_step(h0b, h1b, g2_wih1, g2_whh1, g2_b1, g2_bhn1)
        if t < T1:
            h0a = gru_l0_step(h0a, gi1[t * batch:(t + 1) * batch], g1_whh0, g1_bhn0)
            h1a = gru_l1_step(h0a, h1a, g1_wih1, g1_whh1, g1_b1, g1_bhn1)

    # ---- MLP head: cat([h1a, h1b]) @ fc1.T == h1a @ w1a + h1b @ w1b
    # (bcGRU eval-mode scale folded into w1a/w1b at pack time).
    hid = jnp.maximum(dot(h1a, w1a_ref[...]) + dot(h1b, w1b_ref[...]) + fb1_ref[...],
                      0.0)
    # TODO(synk): training-mode Dropout skipped (eval-mode identity).
    out_ref[0] = dot(hid, w2_ref[...]) + fb2_ref[...]


# --------------------------------------------------------------- forward glue
def _num_batch_blocks(batch):
    """v7x has 2 TensorCores -> split the batch; v5e/v6e keep one grid step so
    the serial GRU latency chain is not run twice."""
    try:
        kind = jax.devices()[0].device_kind.lower()
    except Exception:
        kind = ""
    if "v7" in kind and batch >= 2 and batch % 2 == 0:
        return 2
    return 1


def alphanet_forward(packed, data, num_batch_blocks=None):
    """data: [B, 1, 15, 30] (NCHW) -> [B, 1]."""
    x = data[:, 0]                                             # [B, 15, 30]
    B = x.shape[0]
    if num_batch_blocks is None:
        num_batch_blocks = _num_batch_blocks(B)
    assert B % num_batch_blocks == 0
    bt = B // num_batch_blocks                                 # batch tile per grid step

    # layout plumbing only (outside the kernel): pad to (16, 32), put time on
    # sublanes / features on lanes, stack the batch on sublanes -> [B*WP, HP]
    xp = jnp.pad(x, ((0, 0), (0, HP - H_FEAT), (0, WP - W_TIME)))
    x2d = jnp.transpose(xp, (0, 2, 1)).reshape(B * WP, HP)

    consts1 = [jnp.asarray(c) for c in _build_branch_consts(STRIDE1, bt)]
    consts2 = [jnp.asarray(c) for c in _build_branch_consts(STRIDE2, bt)]
    selT = jnp.asarray(_build_selection())

    ins = [x2d, selT, *consts1, *consts2,
           *packed["gru1"], *packed["gru2"], *packed["mlp"]]

    def _full(a):
        nd = a.ndim
        return pl.BlockSpec(a.shape, lambda i, _nd=nd: (0,) * _nd)

    in_specs = [pl.BlockSpec((bt * WP, HP), lambda i: (i, 0))]
    in_specs += [_full(a) for a in ins[1:]]

    out = pl.pallas_call(
        functools.partial(_alphanet_kernel, batch=bt),
        grid=(num_batch_blocks,),
        in_specs=in_specs,
        out_specs=pl.BlockSpec((1, bt, 1), lambda i: (i, 0, 0)),
        out_shape=jax.ShapeDtypeStruct((num_batch_blocks, bt, 1), jnp.float32),
        compiler_params=pltpu.CompilerParams(
            dimension_semantics=("parallel",)),
    )(*ins)
    return out.reshape(B, 1)


# -------------------------------------------------------------- param packing
def _pack_gru_branch(l0, l1, stride):
    """PyTorch-layout GRU params -> fused kernel layout.

    Layer-0 input weights are regrouped along the reference torch.cat order
    (cov 0:105, corr 105:210, dec 210:225, std 225:240, mean 240:255,
    zsc 255:270, mul 270:375) into one [448, 3H] matrix with BN_SCALE (and the
    (s-1)/s corr factor) folded into the rows.  r/z hidden biases are folded
    into the input bias; only the n-gate hidden bias stays separate.
    """
    corr_fct = (stride - 1.0) / stride
    wih0 = l0["wih"]                                           # [3H, 375]
    blocks = [
        (wih0[:, 0:105],   PP, BN_SCALE),                      # ts_cov4d
        (wih0[:, 105:210], PP, BN_SCALE * corr_fct),           # ts_corr4d
        (wih0[:, 270:375], PP, BN_SCALE),                      # ts_mul
        (wih0[:, 210:225], HP, BN_SCALE),                      # ts_decaylinear
        (wih0[:, 225:240], HP, BN_SCALE),                      # ts_std
        (wih0[:, 240:255], HP, BN_SCALE),                      # ts_mean
        (wih0[:, 255:270], HP, BN_SCALE),                      # ts_zcore
    ]
    parts = []
    for w, pad_to, scale in blocks:
        wt = (w * scale).T                                     # [k, 3H]
        parts.append(jnp.pad(wt, ((0, pad_to - wt.shape[0]), (0, 0))))
    w0 = jnp.concatenate(parts, axis=0)                        # [448, 3H]
    assert w0.shape == (FEAT_K, 3 * HIDDEN)

    def fold_rz(bih, bhh):                                     # fold r/z hidden biases
        return (bih + jnp.concatenate(
            [bhh[:2 * HIDDEN], jnp.zeros((HIDDEN,), jnp.float32)])
                ).reshape(1, 3 * HIDDEN)

    return [w0,
            fold_rz(l0["bih"], l0["bhh"]),
            l0["bhh"][2 * HIDDEN:].reshape(1, HIDDEN),         # layer-0 n-gate hidden bias
            l0["whh"].T,                                       # [H, 3H]
            l1["wih"].T,                                       # [H, 3H]
            l1["whh"].T,                                       # [H, 3H]
            fold_rz(l1["bih"], l1["bhh"]),
            l1["bhh"][2 * HIDDEN:].reshape(1, HIDDEN)]


def _pack_mlp(params):
    w1t = params["fc1_w"].T * BN_SCALE                         # bcGRU eval scale folded
    return [w1t[:HIDDEN], w1t[HIDDEN:], params["fc1_b"].reshape(1, FC2_NUM),
            params["fc2_w"].T, params["fc2_b"].reshape(1, 1)]


def pack_params(params):
    return {
        "gru1": _pack_gru_branch(params["gru1_l0"], params["gru1_l1"], STRIDE1),
        "gru2": _pack_gru_branch(params["gru2_l0"], params["gru2_l1"], STRIDE2),
        "mlp": _pack_mlp(params),
    }


# ------------------------------------------------------------------------ init
def init_params(key):
    """PyTorch-equivalent initialization (nn.GRU / xavier / trunc_normal)."""
    def gru_layer(k, in_dim):
        bound = 1.0 / math.sqrt(HIDDEN)
        ks = jax.random.split(k, 4)
        u = lambda kk, shape: jax.random.uniform(kk, shape, minval=-bound, maxval=bound,
                                                 dtype=jnp.float32)
        return {"wih": u(ks[0], (3 * HIDDEN, in_dim)), "whh": u(ks[1], (3 * HIDDEN, HIDDEN)),
                "bih": u(ks[2], (3 * HIDDEN,)), "bhh": u(ks[3], (3 * HIDDEN,))}

    keys = jax.random.split(key, 8)
    xav = math.sqrt(6.0 / (FC1_NUM + FC2_NUM))
    return {
        "gru1_l0": gru_layer(keys[0], GRU_IN), "gru1_l1": gru_layer(keys[1], HIDDEN),
        "gru2_l0": gru_layer(keys[2], GRU_IN), "gru2_l1": gru_layer(keys[3], HIDDEN),
        "fc1_w": jax.random.uniform(keys[4], (FC2_NUM, FC1_NUM), minval=-xav, maxval=xav,
                                    dtype=jnp.float32),
        "fc1_b": 1e-6 * jax.random.normal(keys[5], (FC2_NUM,), dtype=jnp.float32),
        "fc2_w": jax.random.truncated_normal(keys[6], -2.0, 2.0, (1, FC2_NUM),
                                             dtype=jnp.float32),
        "fc2_b": 1e-6 * jax.random.normal(keys[7], (1,), dtype=jnp.float32),
    }


# ------------------------------------------------------------------------ main
if __name__ == "__main__":
    key = jax.random.PRNGKey(0)
    k_data, k_param = jax.random.split(key)

    B = 8
    data = jax.random.normal(k_data, (B, 1, H_FEAT, W_TIME), dtype=jnp.float32)
    params = init_params(k_param)
    packed = pack_params(params)       # one-time weight re-layout (outside the hot path)

    fwd = jax.jit(alphanet_forward)
    out = jax.block_until_ready(fwd(packed, data))

    assert out.shape == (B, 1), out.shape
    assert out.dtype == jnp.float32
    assert bool(jnp.all(jnp.isfinite(out)))
    print("KERNEL_OK")
</pallas_src>

<mosaic_0001>
module attributes {stable_mosaic.version = 11 : i64} {
  func.func @_alphanet_kernel(%arg0: i32, %arg1: memref<256x16xf32, #tpu.memory_space<vmem>>, %arg2: memref<16x256xf32, #tpu.memory_space<vmem>>, %arg3: memref<256x24xf32, #tpu.memory_space<vmem>>, %arg4: memref<24x256xf32, #tpu.memory_space<vmem>>, %arg5: memref<24x256xf32, #tpu.memory_space<vmem>>, %arg6: memref<24x256xf32, #tpu.memory_space<vmem>>, %arg7: memref<256x80xf32, #tpu.memory_space<vmem>>, %arg8: memref<80x256xf32, #tpu.memory_space<vmem>>, %arg9: memref<80x256xf32, #tpu.memory_space<vmem>>, %arg10: memref<80x256xf32, #tpu.memory_space<vmem>>, %arg11: memref<448x90xf32, #tpu.memory_space<vmem>>, %arg12: memref<1x90xf32, #tpu.memory_space<vmem>>, %arg13: memref<1x30xf32, #tpu.memory_space<vmem>>, %arg14: memref<30x90xf32, #tpu.memory_space<vmem>>, %arg15: memref<30x90xf32, #tpu.memory_space<vmem>>, %arg16: memref<30x90xf32, #tpu.memory_space<vmem>>, %arg17: memref<1x90xf32, #tpu.memory_space<vmem>>, %arg18: memref<1x30xf32, #tpu.memory_space<vmem>>, %arg19: memref<448x90xf32, #tpu.memory_space<vmem>>, %arg20: memref<1x90xf32, #tpu.memory_space<vmem>>, %arg21: memref<1x30xf32, #tpu.memory_space<vmem>>, %arg22: memref<30x90xf32, #tpu.memory_space<vmem>>, %arg23: memref<30x90xf32, #tpu.memory_space<vmem>>, %arg24: memref<30x90xf32, #tpu.memory_space<vmem>>, %arg25: memref<1x90xf32, #tpu.memory_space<vmem>>, %arg26: memref<1x30xf32, #tpu.memory_space<vmem>>, %arg27: memref<30x32xf32, #tpu.memory_space<vmem>>, %arg28: memref<30x32xf32, #tpu.memory_space<vmem>>, %arg29: memref<1x32xf32, #tpu.memory_space<vmem>>, %arg30: memref<32x1xf32, #tpu.memory_space<vmem>>, %arg31: memref<1x1xf32, #tpu.memory_space<vmem>>, %arg32: memref<1x8x1xf32, #tpu.memory_space<vmem>>) attributes {dimension_semantics = [#tpu.dimension_semantics<parallel>], iteration_bounds = array<i64: 1>, scalar_prefetch = 0 : i64, scratch_operands = 0 : i64, tpu.core_type = #tpu.core_type<tc>, window_params = [{transform_indices = @transform_0, window_bounds = array<i64: 256, 16>}, {pipeline_mode = #tpu.pipeline_mode<synchronous>, transform_indices = @transform_1, window_bounds = array<i64: 16, 256>}, {pipeline_mode = #tpu.pipeline_mode<synchronous>, transform_indices = @transform_2, window_bounds = array<i64: 256, 24>}, {pipeline_mode = #tpu.pipeline_mode<synchronous>, transform_indices = @transform_3, window_bounds = array<i64: 24, 256>}, {pipeline_mode = #tpu.pipeline_mode<synchronous>, transform_indices = @transform_4, window_bounds = array<i64: 24, 256>}, {pipeline_mode = #tpu.pipeline_mode<synchronous>, transform_indices = @transform_5, window_bounds = array<i64: 24, 256>}, {pipeline_mode = #tpu.pipeline_mode<synchronous>, transform_indices = @transform_6, window_bounds = array<i64: 256, 80>}, {pipeline_mode = #tpu.pipeline_mode<synchronous>, transform_indices = @transform_7, window_bounds = array<i64: 80, 256>}, {pipeline_mode = #tpu.pipeline_mode<synchronous>, transform_indices = @transform_8, window_bounds = array<i64: 80, 256>}, {pipeline_mode = #tpu.pipeline_mode<synchronous>, transform_indices = @transform_9, window_bounds = array<i64: 80, 256>}, {pipeline_mode = #tpu.pipeline_mode<synchronous>, transform_indices = @transform_10, window_bounds = array<i64: 448, 90>}, {pipeline_mode = #tpu.pipeline_mode<synchronous>, transform_indices = @transform_11, window_bounds = array<i64: 1, 90>}, {pipeline_mode = #tpu.pipeline_mode<synchronous>, transform_indices = @transform_12, window_bounds = array<i64: 1, 30>}, {pipeline_mode = #tpu.pipeline_mode<synchronous>, transform_indices = @transform_13, window_bounds = array<i64: 30, 90>}, {pipeline_mode = #tpu.pipeline_mode<synchronous>, transform_indices = @transform_14, window_bounds = array<i64: 30, 90>}, {pipeline_mode = #tpu.pipeline_mode<synchronous>, transform_indices = @transform_15, window_bounds = array<i64: 30, 90>}, {pipeline_mode = #tpu.pipeline_mode<synchronous>, transform_indices = @transform_16, window_bounds = array<i64: 1, 90>}, {pipeline_mode = #tpu.pipeline_mode<synchronous>, transform_indices = @transform_17, window_bounds = array<i64: 1, 30>}, {pipeline_mode = #tpu.pipeline_mode<synchronous>, transform_indices = @transform_18, window_bounds = array<i64: 448, 90>}, {pipeline_mode = #tpu.pipeline_mode<synchronous>, transform_indices = @transform_19, window_bounds = array<i64: 1, 90>}, {pipeline_mode = #tpu.pipeline_mode<synchronous>, transform_indices = @transform_20, window_bounds = array<i64: 1, 30>}, {pipeline_mode = #tpu.pipeline_mode<synchronous>, transform_indices = @transform_21, window_bounds = array<i64: 30, 90>}, {pipeline_mode = #tpu.pipeline_mode<synchronous>, transform_indices = @transform_22, window_bounds = array<i64: 30, 90>}, {pipeline_mode = #tpu.pipeline_mode<synchronous>, transform_indices = @transform_23, window_bounds = array<i64: 30, 90>}, {pipeline_mode = #tpu.pipeline_mode<synchronous>, transform_indices = @transform_24, window_bounds = array<i64: 1, 90>}, {pipeline_mode = #tpu.pipeline_mode<synchronous>, transform_indices = @transform_25, window_bounds = array<i64: 1, 30>}, {pipeline_mode = #tpu.pipeline_mode<synchronous>, transform_indices = @transform_26, window_bounds = array<i64: 30, 32>}, {pipeline_mode = #tpu.pipeline_mode<synchronous>, transform_indices = @transform_27, window_bounds = array<i64: 30, 32>}, {pipeline_mode = #tpu.pipeline_mode<synchronous>, transform_indices = @transform_28, window_bounds = array<i64: 1, 32>}, {pipeline_mode = #tpu.pipeline_mode<synchronous>, transform_indices = @transform_29, window_bounds = array<i64: 32, 1>}, {pipeline_mode = #tpu.pipeline_mode<synchronous>, transform_indices = @transform_30, window_bounds = array<i64: 1, 1>}, {transform_indices = @transform_31, window_bounds = array<i64: 1, 8, 1>}]} {
    %c0 = arith.constant 0 : index
    %c0_0 = arith.constant 0 : index
    %0 = vector.load %arg1[%c0, %c0_0] : memref<256x16xf32, #tpu.memory_space<vmem>>, vector<256x16xf32>
    %c0_1 = arith.constant 0 : index
    %c0_2 = arith.constant 0 : index
    %1 = vector.load %arg2[%c0_1, %c0_2] : memref<16x256xf32, #tpu.memory_space<vmem>>, vector<16x256xf32>
    %c0_3 = arith.constant 0 : index
    %c0_4 = arith.constant 0 : index
    %2 = vector.load %arg3[%c0_3, %c0_4] : memref<256x24xf32, #tpu.memory_space<vmem>>, vector<256x24xf32>
    %c0_5 = arith.constant 0 : index
    %c0_6 = arith.constant 0 : index
    %3 = vector.load %arg4[%c0_5, %c0_6] : memref<24x256xf32, #tpu.memory_space<vmem>>, vector<24x256xf32>
    %c0_7 = arith.constant 0 : index
    %c0_8 = arith.constant 0 : index
    %4 = vector.load %arg5[%c0_7, %c0_8] : memref<24x256xf32, #tpu.memory_space<vmem>>, vector<24x256xf32>
    %c0_9 = arith.constant 0 : index
    %c0_10 = arith.constant 0 : index
    %5 = vector.load %arg6[%c0_9, %c0_10] : memref<24x256xf32, #tpu.memory_space<vmem>>, vector<24x256xf32>
    %c0_11 = arith.constant 0 : index
    %c0_12 = arith.constant 0 : index
    %6 = vector.load %arg11[%c0_11, %c0_12] : memref<448x90xf32, #tpu.memory_space<vmem>>, vector<448x90xf32>
    %c0_13 = arith.constant 0 : index
    %c0_14 = arith.constant 0 : index
    %7 = vector.load %arg12[%c0_13, %c0_14] : memref<1x90xf32, #tpu.memory_space<vmem>>, vector<1x90xf32>
    %cst = arith.constant dense<0.000000e+00> : vector<24x16xf32>
    %8 = tpu.matmul %3, %0, %cst {dimension_numbers = #tpu.dot_dimension_numbers<[1], [0], [0], [1], [0, 0, 1, 1], [], []>} : vector<24x256xf32>, vector<256x16xf32>, vector<24x16xf32> -> vector<24x16xf32>
    %cst_15 = arith.constant dense<0.000000e+00> : vector<256x16xf32>
    %9 = tpu.matmul %2, %8, %cst_15 {dimension_numbers = #tpu.dot_dimension_numbers<[1], [0], [0], [1], [0, 0, 1, 1], [], []>} : vector<256x24xf32>, vector<24x16xf32>, vector<256x16xf32> -> vector<256x16xf32>
    %10 = arith.subf %0, %9 : vector<256x16xf32>
    %11 = arith.mulf %10, %10 : vector<256x16xf32>
    %cst_16 = arith.constant dense<0.000000e+00> : vector<24x16xf32>
    %12 = tpu.matmul %4, %11, %cst_16 {dimension_numbers = #tpu.dot_dimension_numbers<[1], [0], [0], [1], [0, 0, 1, 1], [], []>} : vector<24x256xf32>, vector<256x16xf32>, vector<24x16xf32> -> vector<24x16xf32>
    %cst_17 = arith.constant 0.000000e+00 : f32
    %13 = vector.broadcast %cst_17 : f32 to vector<24x16xf32>
    %14 = arith.maximumf %12, %13 : vector<24x16xf32>
    %15 = math.sqrt %14 : vector<24x16xf32>
    %cst_18 = arith.constant dense<0.000000e+00> : vector<24x16xf32>
    %16 = tpu.matmul %5, %0, %cst_18 {dimension_numbers = #tpu.dot_dimension_numbers<[1], [0], [0], [1], [0, 0, 1, 1], [], []>} : vector<24x256xf32>, vector<256x16xf32>, vector<24x16xf32> -> vector<24x16xf32>
    %cst_19 = arith.constant 0.00999999977 : f32
    %17 = vector.broadcast %cst_19 : f32 to vector<24x16xf32>
    %18 = arith.addf %15, %17 : vector<24x16xf32>
    %19 = tpu.reciprocal %18 : vector<24x16xf32> -> vector<24x16xf32>
    %20 = arith.mulf %8, %19 : vector<24x16xf32>
    %cst_20 = arith.constant dense<0.000000e+00> : vector<256x256xf32>
    %21 = tpu.matmul %0, %1, %cst_20 {dimension_numbers = #tpu.dot_dimension_numbers<[1], [0], [0], [1], [0, 0, 1, 1], [], []>} : vector<256x16xf32>, vector<16x256xf32>, vector<256x256xf32> -> vector<256x256xf32>
    %cst_21 = arith.constant dense<0.000000e+00> : vector<256x256xf32>
    %22 = tpu.matmul %10, %1, %cst_21 {dimension_numbers = #tpu.dot_dimension_numbers<[1], [0], [0], [1], [0, 0, 1, 1], [], []>} : vector<256x16xf32>, vector<16x256xf32>, vector<256x256xf32> -> vector<256x256xf32>
    %23 = vector.extract_strided_slice %22 {offsets = [0, 0], sizes = [256, 128], strides = [1, 1]} : vector<256x256xf32> to vector<256x128xf32>
    %24 = vector.extract_strided_slice %22 {offsets = [0, 128], sizes = [256, 128], strides = [1, 1]} : vector<256x256xf32> to vector<256x128xf32>
    %25 = arith.mulf %23, %24 : vector<256x128xf32>
    %cst_22 = arith.constant dense<0.000000e+00> : vector<24x128xf32>
    %26 = tpu.matmul %4, %25, %cst_22 {dimension_numbers = #tpu.dot_dimension_numbers<[1], [0], [0], [1], [0, 0, 1, 1], [], []>} : vector<24x256xf32>, vector<256x128xf32>, vector<24x128xf32> -> vector<24x128xf32>
    %27 = vector.extract_strided_slice %21 {offsets = [0, 0], sizes = [256, 128], strides = [1, 1]} : vector<256x256xf32> to vector<256x128xf32>
    %28 = vector.extract_strided_slice %21 {offsets = [0, 128], sizes = [256, 128], strides = [1, 1]} : vector<256x256xf32> to vector<256x128xf32>
    %29 = arith.mulf %27, %28 : vector<256x128xf32>
    %cst_23 = arith.constant dense<0.000000e+00> : vector<24x128xf32>
    %30 = tpu.matmul %3, %29, %cst_23 {dimension_numbers = #tpu.dot_dimension_numbers<[1], [0], [0], [1], [0, 0, 1, 1], [], []>} : vector<24x256xf32>, vector<256x128xf32>, vector<24x128xf32> -> vector<24x128xf32>
    %cst_24 = arith.constant dense<0.000000e+00> : vector<24x256xf32>
    %31 = tpu.matmul %15, %1, %cst_24 {dimension_numbers = #tpu.dot_dimension_numbers<[1], [0], [0], [1], [0, 0, 1, 1], [], []>} : vector<24x16xf32>, vector<16x256xf32>, vector<24x256xf32> -> vector<24x256xf32>
    %32 = vector.extract_strided_slice %31 {offsets = [0, 0], sizes = [24, 128], strides = [1, 1]} : vector<24x256xf32> to vector<24x128xf32>
    %33 = vector.extract_strided_slice %31 {offsets = [0, 128], sizes = [24, 128], strides = [1, 1]} : vector<24x256xf32> to vector<24x128xf32>
    %34 = arith.mulf %32, %33 : vector<24x128xf32>
    %cst_25 = arith.constant 0.00999999977 : f32
    %35 = vector.broadcast %cst_25 : f32 to vector<24x128xf32>
    %36 = arith.addf %34, %35 : vector<24x128xf32>
    %37 = tpu.reciprocal %36 : vector<24x128xf32> -> vector<24x128xf32>
    %38 = arith.mulf %26, %37 : vector<24x128xf32>
    %39 = tpu.concatenate %26, %38, %30, %16, %15, %8, %20 in 1 : vector<24x128xf32>, vector<24x128xf32>, vector<24x128xf32>, vector<24x16xf32>, vector<24x16xf32>, vector<24x16xf32>, vector<24x16xf32> -> vector<24x448xf32>
    %cst_26 = arith.constant dense<0.000000e+00> : vector<24x90xf32>
    %40 = tpu.matmul %39, %6, %cst_26 {dimension_numbers = #tpu.dot_dimension_numbers<[1], [0], [0], [1], [0, 0, 1, 1], [], []>} : vector<24x448xf32>, vector<448x90xf32>, vector<24x90xf32> -> vector<24x90xf32>
    %41 = vector.broadcast %7 : vector<1x90xf32> to vector<24x90xf32>
    %42 = arith.addf %40, %41 : vector<24x90xf32>
    %c0_27 = arith.constant 0 : index
    %c0_28 = arith.constant 0 : index
    %43 = vector.load %arg7[%c0_27, %c0_28] : memref<256x80xf32, #tpu.memory_space<vmem>>, vector<256x80xf32>
    %c0_29 = arith.constant 0 : index
    %c0_30 = arith.constant 0 : index
    %44 = vector.load %arg8[%c0_29, %c0_30] : memref<80x256xf32, #tpu.memory_space<vmem>>, vector<80x256xf32>
    %c0_31 = arith.constant 0 : index
    %c0_32 = arith.constant 0 : index
    %45 = vector.load %arg9[%c0_31, %c0_32] : memref<80x256xf32, #tpu.memory_space<vmem>>, vector<80x256xf32>
    %c0_33 = arith.constant 0 : index
    %c0_34 = arith.constant 0 : index
    %46 = vector.load %arg10[%c0_33, %c0_34] : memref<80x256xf32, #tpu.memory_space<vmem>>, vector<80x256xf32>
    %c0_35 = arith.constant 0 : index
    %c0_36 = arith.constant 0 : index
    %47 = vector.load %arg19[%c0_35, %c0_36] : memref<448x90xf32, #tpu.memory_space<vmem>>, vector<448x90xf32>
    %c0_37 = arith.constant 0 : index
    %c0_38 = arith.constant 0 : index
    %48 = vector.load %arg20[%c0_37, %c0_38] : memref<1x90xf32, #tpu.memory_space<vmem>>, vector<1x90xf32>
    %cst_39 = arith.constant dense<0.000000e+00> : vector<80x16xf32>
    %49 = tpu.matmul %44, %0, %cst_39 {dimension_numbers = #tpu.dot_dimension_numbers<[1], [0], [0], [1], [0, 0, 1, 1], [], []>} : vector<80x256xf32>, vector<256x16xf32>, vector<80x16xf32> -> vector<80x16xf32>
    %cst_40 = arith.constant dense<0.000000e+00> : vector<256x16xf32>
    %50 = tpu.matmul %43, %49, %cst_40 {dimension_numbers = #tpu.dot_dimension_numbers<[1], [0], [0], [1], [0, 0, 1, 1], [], []>} : vector<256x80xf32>, vector<80x16xf32>, vector<256x16xf32> -> vector<256x16xf32>
    %51 = arith.subf %0, %50 : vector<256x16xf32>
    %52 = arith.mulf %51, %51 : vector<256x16xf32>
    %cst_41 = arith.constant dense<0.000000e+00> : vector<80x16xf32>
    %53 = tpu.matmul %45, %52, %cst_41 {dimension_numbers = #tpu.dot_dimension_numbers<[1], [0], [0], [1], [0, 0, 1, 1], [], []>} : vector<80x256xf32>, vector<256x16xf32>, vector<80x16xf32> -> vector<80x16xf32>
    %cst_42 = arith.constant 0.000000e+00 : f32
    %54 = vector.broadcast %cst_42 : f32 to vector<80x16xf32>
    %55 = arith.maximumf %53, %54 : vector<80x16xf32>
    %56 = math.sqrt %55 : vector<80x16xf32>
    %cst_43 = arith.constant dense<0.000000e+00> : vector<80x16xf32>
    %57 = tpu.matmul %46, %0, %cst_43 {dimension_numbers = #tpu.dot_dimension_numbers<[1], [0], [0], [1], [0, 0, 1, 1], [], []>} : vector<80x256xf32>, vector<256x16xf32>, vector<80x16xf32> -> vector<80x16xf32>
    %cst_44 = arith.constant 0.00999999977 : f32
    %58 = vector.broadcast %cst_44 : f32 to vector<80x16xf32>
    %59 = arith.addf %56, %58 : vector<80x16xf32>
    %60 = tpu.reciprocal %59 : vector<80x16xf32> -> vector<80x16xf32>
    %61 = arith.mulf %49, %60 : vector<80x16xf32>
    %cst_45 = arith.constant dense<0.000000e+00> : vector<256x256xf32>
    %62 = tpu.matmul %0, %1, %cst_45 {dimension_numbers = #tpu.dot_dimension_numbers<[1], [0], [0], [1], [0, 0, 1, 1], [], []>} : vector<256x16xf32>, vector<16x256xf32>, vector<256x256xf32> -> vector<256x256xf32>
    %cst_46 = arith.constant dense<0.000000e+00> : vector<256x256xf32>
    %63 = tpu.matmul %51, %1, %cst_46 {dimension_numbers = #tpu.dot_dimension_numbers<[1], [0], [0], [1], [0, 0, 1, 1], [], []>} : vector<256x16xf32>, vector<16x256xf32>, vector<256x256xf32> -> vector<256x256xf32>
    %64 = vector.extract_strided_slice %63 {offsets = [0, 0], sizes = [256, 128], strides = [1, 1]} : vector<256x256xf32> to vector<256x128xf32>
    %65 = vector.extract_strided_slice %63 {offsets = [0, 128], sizes = [256, 128], strides = [1, 1]} : vector<256x256xf32> to vector<256x128xf32>
    %66 = arith.mulf %64, %65 : vector<256x128xf32>
    %cst_47 = arith.constant dense<0.000000e+00> : vector<80x128xf32>
    %67 = tpu.matmul %45, %66, %cst_47 {dimension_numbers = #tpu.dot_dimension_numbers<[1], [0], [0], [1], [0, 0, 1, 1], [], []>} : vector<80x256xf32>, vector<256x128xf32>, vector<80x128xf32> -> vector<80x128xf32>
    %68 = vector.extract_strided_slice %62 {offsets = [0, 0], sizes = [256, 128], strides = [1, 1]} : vector<256x256xf32> to vector<256x128xf32>
    %69 = vector.extract_strided_slice %62 {offsets = [0, 128], sizes = [256, 128], strides = [1, 1]} : vector<256x256xf32> to vector<256x128xf32>
    %70 = arith.mulf %68, %69 : vector<256x128xf32>
    %cst_48 = arith.constant dense<0.000000e+00> : vector<80x128xf32>
    %71 = tpu.matmul %44, %70, %cst_48 {dimension_numbers = #tpu.dot_dimension_numbers<[1], [0], [0], [1], [0, 0, 1, 1], [], []>} : vector<80x256xf32>, vector<256x128xf32>, vector<80x128xf32> -> vector<80x128xf32>
    %cst_49 = arith.constant dense<0.000000e+00> : vector<80x256xf32>
    %72 = tpu.matmul %56, %1, %cst_49 {dimension_numbers = #tpu.dot_dimension_numbers<[1], [0], [0], [1], [0, 0, 1, 1], [], []>} : vector<80x16xf32>, vector<16x256xf32>, vector<80x256xf32> -> vector<80x256xf32>
    %73 = vector.extract_strided_slice %72 {offsets = [0, 0], sizes = [80, 128], strides = [1, 1]} : vector<80x256xf32> to vector<80x128xf32>
    %74 = vector.extract_strided_slice %72 {offsets = [0, 128], sizes = [80, 128], strides = [1, 1]} : vector<80x256xf32> to vector<80x128xf32>
    %75 = arith.mulf %73, %74 : vector<80x128xf32>
    %cst_50 = arith.constant 0.00999999977 : f32
    %76 = vector.broadcast %cst_50 : f32 to vector<80x128xf32>
    %77 = arith.addf %75, %76 : vector<80x128xf32>
    %78 = tpu.reciprocal %77 : vector<80x128xf32> -> vector<80x128xf32>
    %79 = arith.mulf %67, %78 : vector<80x128xf32>
    %80 = tpu.concatenate %67, %79, %71, %57, %56, %49, %61 in 1 : vector<80x128xf32>, vector<80x128xf32>, vector<80x128xf32>, vector<80x16xf32>, vector<80x16xf32>, vector<80x16xf32>, vector<80x16xf32> -> vector<80x448xf32>
    %cst_51 = arith.constant dense<0.000000e+00> : vector<80x90xf32>
    %81 = tpu.matmul %80, %47, %cst_51 {dimension_numbers = #tpu.dot_dimension_numbers<[1], [0], [0], [1], [0, 0, 1, 1], [], []>} : vector<80x448xf32>, vector<448x90xf32>, vector<80x90xf32> -> vector<80x90xf32>
    %82 = vector.broadcast %48 : vector<1x90xf32> to vector<80x90xf32>
    %83 = arith.addf %81, %82 : vector<80x90xf32>
    %c0_52 = arith.constant 0 : index
    %c0_53 = arith.constant 0 : index
    %84 = vector.load %arg14[%c0_52, %c0_53] : memref<30x90xf32, #tpu.memory_space<vmem>>, vector<30x90xf32>
    %c0_54 = arith.constant 0 : index
    %c0_55 = arith.constant 0 : index
    %85 = vector.load %arg13[%c0_54, %c0_55] : memref<1x30xf32, #tpu.memory_space<vmem>>, vector<1x30xf32>
    %c0_56 = arith.constant 0 : index
    %c0_57 = arith.constant 0 : index
    %86 = vector.load %arg15[%c0_56, %c0_57] : memref<30x90xf32, #tpu.memory_space<vmem>>, vector<30x90xf32>
    %c0_58 = arith.constant 0 : index
    %c0_59 = arith.constant 0 : index
    %87 = vector.load %arg16[%c0_58, %c0_59] : memref<30x90xf32, #tpu.memory_space<vmem>>, vector<30x90xf32>
    %c0_60 = arith.constant 0 : index
    %c0_61 = arith.constant 0 : index
    %88 = vector.load %arg17[%c0_60, %c0_61] : memref<1x90xf32, #tpu.memory_space<vmem>>, vector<1x90xf32>
    %c0_62 = arith.constant 0 : index
    %c0_63 = arith.constant 0 : index
    %89 = vector.load %arg18[%c0_62, %c0_63] : memref<1x30xf32, #tpu.memory_space<vmem>>, vector<1x30xf32>
    %c0_64 = arith.constant 0 : index
    %c0_65 = arith.constant 0 : index
    %90 = vector.load %arg22[%c0_64, %c0_65] : memref<30x90xf32, #tpu.memory_space<vmem>>, vector<30x90xf32>
    %c0_66 = arith.constant 0 : index
    %c0_67 = arith.constant 0 : index
    %91 = vector.load %arg21[%c0_66, %c0_67] : memref<1x30xf32, #tpu.memory_space<vmem>>, vector<1x30xf32>
    %c0_68 = arith.constant 0 : index
    %c0_69 = arith.constant 0 : index
    %92 = vector.load %arg23[%c0_68, %c0_69] : memref<30x90xf32, #tpu.memory_space<vmem>>, vector<30x90xf32>
    %c0_70 = arith.constant 0 : index
    %c0_71 = arith.constant 0 : index
    %93 = vector.load %arg24[%c0_70, %c0_71] : memref<30x90xf32, #tpu.memory_space<vmem>>, vector<30x90xf32>
    %c0_72 = arith.constant 0 : index
    %c0_73 = arith.constant 0 : index
    %94 = vector.load %arg25[%c0_72, %c0_73] : memref<1x90xf32, #tpu.memory_space<vmem>>, vector<1x90xf32>
    %c0_74 = arith.constant 0 : index
    %c0_75 = arith.constant 0 : index
    %95 = vector.load %arg26[%c0_74, %c0_75] : memref<1x30xf32, #tpu.memory_space<vmem>>, vector<1x30xf32>
    %cst_76 = arith.constant 0.000000e+00 : f32
    %96 = vector.broadcast %cst_76 : f32 to vector<8x30xf32>
    %97 = vector.extract_strided_slice %83 {offsets = [0, 0], sizes = [8, 90], strides = [1, 1]} : vector<80x90xf32> to vector<8x90xf32>
    %cst_77 = arith.constant dense<0.000000e+00> : vector<8x90xf32>
    %98 = tpu.matmul %96, %90, %cst_77 {dimension_numbers = #tpu.dot_dimension_numbers<[1], [0], [0], [1], [0, 0, 1, 1], [], []>} : vector<8x30xf32>, vector<30x90xf32>, vector<8x90xf32> -> vector<8x90xf32>
    %99 = vector.extract_strided_slice %97 {offsets = [0, 0], sizes = [8, 30], strides = [1, 1]} : vector<8x90xf32> to vector<8x30xf32>
    %100 = vector.extract_strided_slice %98 {offsets = [0, 0], sizes = [8, 30], strides = [1, 1]} : vector<8x90xf32> to vector<8x30xf32>
    %101 = arith.addf %99, %100 : vector<8x30xf32>
    %102 = arith.negf %101 : vector<8x30xf32>
    %103 = math.exp %102 : vector<8x30xf32>
    %cst_78 = arith.constant 1.000000e+00 : f32
    %104 = vector.broadcast %cst_78 : f32 to vector<8x30xf32>
    %105 = arith.addf %104, %103 : vector<8x30xf32>
    %106 = arith.divf %104, %105 : vector<8x30xf32>
    %107 = vector.extract_strided_slice %97 {offsets = [0, 30], sizes = [8, 30], strides = [1, 1]} : vector<8x90xf32> to vector<8x30xf32>
    %108 = vector.extract_strided_slice %98 {offsets = [0, 30], sizes = [8, 30], strides = [1, 1]} : vector<8x90xf32> to vector<8x30xf32>
    %109 = arith.addf %107, %108 : vector<8x30xf32>
    %110 = arith.negf %109 : vector<8x30xf32>
    %111 = math.exp %110 : vector<8x30xf32>
    %cst_79 = arith.constant 1.000000e+00 : f32
    %112 = vector.broadcast %cst_79 : f32 to vector<8x30xf32>
    %113 = arith.addf %112, %111 : vector<8x30xf32>
    %114 = arith.divf %112, %113 : vector<8x30xf32>
    %115 = vector.extract_strided_slice %97 {offsets = [0, 60], sizes = [8, 30], strides = [1, 1]} : vector<8x90xf32> to vector<8x30xf32>
    %116 = vector.extract_strided_slice %98 {offsets = [0, 60], sizes = [8, 30], strides = [1, 1]} : vector<8x90xf32> to vector<8x30xf32>
    %117 = vector.broadcast %91 : vector<1x30xf32> to vector<8x30xf32>
    %118 = arith.addf %116, %117 : vector<8x30xf32>
    %119 = arith.mulf %106, %118 : vector<8x30xf32>
    %120 = arith.addf %115, %119 : vector<8x30xf32>
    %121 = math.tanh %120 : vector<8x30xf32>
    %cst_80 = arith.constant 1.000000e+00 : f32
    %122 = vector.broadcast %cst_80 : f32 to vector<8x30xf32>
    %123 = arith.subf %122, %114 : vector<8x30xf32>
    %124 = arith.mulf %123, %121 : vector<8x30xf32>
    %125 = arith.mulf %114, %96 : vector<8x30xf32>
    %126 = arith.addf %124, %125 : vector<8x30xf32>
    %cst_81 = arith.constant dense<0.000000e+00> : vector<8x90xf32>
    %127 = tpu.matmul %126, %92, %cst_81 {dimension_numbers = #tpu.dot_dimension_numbers<[1], [0], [0], [1], [0, 0, 1, 1], [], []>} : vector<8x30xf32>, vector<30x90xf32>, vector<8x90xf32> -> vector<8x90xf32>
    %128 = vector.broadcast %94 : vector<1x90xf32> to vector<8x90xf32>
    %129 = arith.addf %127, %128 : vector<8x90xf32>
    %cst_82 = arith.constant dense<0.000000e+00> : vector<8x90xf32>
    %130 = tpu.matmul %96, %93, %cst_82 {dimension_numbers = #tpu.dot_dimension_numbers<[1], [0], [0], [1], [0, 0, 1, 1], [], []>} : vector<8x30xf32>, vector<30x90xf32>, vector<8x90xf32> -> vector<8x90xf32>
    %131 = vector.extract_strided_slice %129 {offsets = [0, 0], sizes = [8, 30], strides = [1, 1]} : vector<8x90xf32> to vector<8x30xf32>
    %132 = vector.extract_strided_slice %130 {offsets = [0, 0], sizes = [8, 30], strides = [1, 1]} : vector<8x90xf32> to vector<8x30xf32>
    %133 = arith.addf %131, %132 : vector<8x30xf32>
    %134 = arith.negf %133 : vector<8x30xf32>
    %135 = math.exp %134 : vector<8x30xf32>
    %cst_83 = arith.constant 1.000000e+00 : f32
    %136 = vector.broadcast %cst_83 : f32 to vector<8x30xf32>
    %137 = arith.addf %136, %135 : vector<8x30xf32>
    %138 = arith.divf %136, %137 : vector<8x30xf32>
    %139 = vector.extract_strided_slice %129 {offsets = [0, 30], sizes = [8, 30], strides = [1, 1]} : vector<8x90xf32> to vector<8x30xf32>
    %140 = vector.extract_strided_slice %130 {offsets = [0, 30], sizes = [8, 30], strides = [1, 1]} : vector<8x90xf32> to vector<8x30xf32>
    %141 = arith.addf %139, %140 : vector<8x30xf32>
    %142 = arith.negf %141 : vector<8x30xf32>
    %143 = math.exp %142 : vector<8x30xf32>
    %cst_84 = arith.constant 1.000000e+00 : f32
    %144 = vector.broadcast %cst_84 : f32 to vector<8x30xf32>
    %145 = arith.addf %144, %143 : vector<8x30xf32>
    %146 = arith.divf %144, %145 : vector<8x30xf32>
    %147 = vector.extract_strided_slice %129 {offsets = [0, 60], sizes = [8, 30], strides = [1, 1]} : vector<8x90xf32> to vector<8x30xf32>
    %148 = vector.extract_strided_slice %130 {offsets = [0, 60], sizes = [8, 30], strides = [1, 1]} : vector<8x90xf32> to vector<8x30xf32>
    %149 = vector.broadcast %95 : vector<1x30xf32> to vector<8x30xf32>
    %150 = arith.addf %148, %149 : vector<8x30xf32>
    %151 = arith.mulf %138, %150 : vector<8x30xf32>
    %152 = arith.addf %147, %151 : vector<8x30xf32>
    %153 = math.tanh %152 : vector<8x30xf32>
    %cst_85 = arith.constant 1.000000e+00 : f32
    %154 = vector.broadcast %cst_85 : f32 to vector<8x30xf32>
    %155 = arith.subf %154, %146 : vector<8x30xf32>
    %156 = arith.mulf %155, %153 : vector<8x30xf32>
    %157 = arith.mulf %146, %96 : vector<8x30xf32>
    %158 = arith.addf %156, %157 : vector<8x30xf32>
    %159 = vector.extract_strided_slice %42 {offsets = [0, 0], sizes = [8, 90], strides = [1, 1]} : vector<24x90xf32> to vector<8x90xf32>
    %cst_86 = arith.constant dense<0.000000e+00> : vector<8x90xf32>
    %160 = tpu.matmul %96, %84, %cst_86 {dimension_numbers = #tpu.dot_dimension_numbers<[1], [0], [0], [1], [0, 0, 1, 1], [], []>} : vector<8x30xf32>, vector<30x90xf32>, vector<8x90xf32> -> vector<8x90xf32>
    %161 = vector.extract_strided_slice %159 {offsets = [0, 0], sizes = [8, 30], strides = [1, 1]} : vector<8x90xf32> to vector<8x30xf32>
    %162 = vector.extract_strided_slice %160 {offsets = [0, 0], sizes = [8, 30], strides = [1, 1]} : vector<8x90xf32> to vector<8x30xf32>
    %163 = arith.addf %161, %162 : vector<8x30xf32>
    %164 = arith.negf %163 : vector<8x30xf32>
    %165 = math.exp %164 : vector<8x30xf32>
    %cst_87 = arith.constant 1.000000e+00 : f32
    %166 = vector.broadcast %cst_87 : f32 to vector<8x30xf32>
    %167 = arith.addf %166, %165 : vector<8x30xf32>
    %168 = arith.divf %166, %167 : vector<8x30xf32>
    %169 = vector.extract_strided_slice %159 {offsets = [0, 30], sizes = [8, 30], strides = [1, 1]} : vector<8x90xf32> to vector<8x30xf32>
    %170 = vector.extract_strided_slice %160 {offsets = [0, 30], sizes = [8, 30], strides = [1, 1]} : vector<8x90xf32> to vector<8x30xf32>
    %171 = arith.addf %169, %170 : vector<8x30xf32>
    %172 = arith.negf %171 : vector<8x30xf32>
    %173 = math.exp %172 : vector<8x30xf32>
    %cst_88 = arith.constant 1.000000e+00 : f32
    %174 = vector.broadcast %cst_88 : f32 to vector<8x30xf32>
    %175 = arith.addf %174, %173 : vector<8x30xf32>
    %176 = arith.divf %174, %175 : vector<8x30xf32>
    %177 = vector.extract_strided_slice %159 {offsets = [0, 60], sizes = [8, 30], strides = [1, 1]} : vector<8x90xf32> to vector<8x30xf32>
    %178 = vector.extract_strided_slice %160 {offsets = [0, 60], sizes = [8, 30], strides = [1, 1]} : vector<8x90xf32> to vector<8x30xf32>
    %179 = vector.broadcast %85 : vector<1x30xf32> to vector<8x30xf32>
    %180 = arith.addf %178, %179 : vector<8x30xf32>
    %181 = arith.mulf %168, %180 : vector<8x30xf32>
    %182 = arith.addf %177, %181 : vector<8x30xf32>
    %183 = math.tanh %182 : vector<8x30xf32>
    %cst_89 = arith.constant 1.000000e+00 : f32
    %184 = vector.broadcast %cst_89 : f32 to vector<8x30xf32>
    %185 = arith.subf %184, %176 : vector<8x30xf32>
    %186 = arith.mulf %185, %183 : vector<8x30xf32>
    %187 = arith.mulf %176, %96 : vector<8x30xf32>
    %188 = arith.addf %186, %187 : vector<8x30xf32>
    %cst_90 = arith.constant dense<0.000000e+00> : vector<8x90xf32>
    %189 = tpu.matmul %188, %86, %cst_90 {dimension_numbers = #tpu.dot_dimension_numbers<[1], [0], [0], [1], [0, 0, 1, 1], [], []>} : vector<8x30xf32>, vector<30x90xf32>, vector<8x90xf32> -> vector<8x90xf32>
    %190 = vector.broadcast %88 : vector<1x90xf32> to vector<8x90xf32>
    %191 = arith.addf %189, %190 : vector<8x90xf32>
    %cst_91 = arith.constant dense<0.000000e+00> : vector<8x90xf32>
    %192 = tpu.matmul %96, %87, %cst_91 {dimension_numbers = #tpu.dot_dimension_numbers<[1], [0], [0], [1], [0, 0, 1, 1], [], []>} : vector<8x30xf32>, vector<30x90xf32>, vector<8x90xf32> -> vector<8x90xf32>
    %193 = vector.extract_strided_slice %191 {offsets = [0, 0], sizes = [8, 30], strides = [1, 1]} : vector<8x90xf32> to vector<8x30xf32>
    %194 = vector.extract_strided_slice %192 {offsets = [0, 0], sizes = [8, 30], strides = [1, 1]} : vector<8x90xf32> to vector<8x30xf32>
    %195 = arith.addf %193, %194 : vector<8x30xf32>
    %196 = arith.negf %195 : vector<8x30xf32>
    %197 = math.exp %196 : vector<8x30xf32>
    %cst_92 = arith.constant 1.000000e+00 : f32
    %198 = vector.broadcast %cst_92 : f32 to vector<8x30xf32>
    %199 = arith.addf %198, %197 : vector<8x30xf32>
    %200 = arith.divf %198, %199 : vector<8x30xf32>
    %201 = vector.extract_strided_slice %191 {offsets = [0, 30], sizes = [8, 30], strides = [1, 1]} : vector<8x90xf32> to vector<8x30xf32>
    %202 = vector.extract_strided_slice %192 {offsets = [0, 30], sizes = [8, 30], strides = [1, 1]} : vector<8x90xf32> to vector<8x30xf32>
    %203 = arith.addf %201, %202 : vector<8x30xf32>
    %204 = arith.negf %203 : vector<8x30xf32>
    %205 = math.exp %204 : vector<8x30xf32>
    %cst_93 = arith.constant 1.000000e+00 : f32
    %206 = vector.broadcast %cst_93 : f32 to vector<8x30xf32>
    %207 = arith.addf %206, %205 : vector<8x30xf32>
    %208 = arith.divf %206, %207 : vector<8x30xf32>
    %209 = vector.extract_strided_slice %191 {offsets = [0, 60], sizes = [8, 30], strides = [1, 1]} : vector<8x90xf32> to vector<8x30xf32>
    %210 = vector.extract_strided_slice %192 {offsets = [0, 60], sizes = [8, 30], strides = [1, 1]} : vector<8x90xf32> to vector<8x30xf32>
    %211 = vector.broadcast %89 : vector<1x30xf32> to vector<8x30xf32>
    %212 = arith.addf %210, %211 : vector<8x30xf32>
    %213 = arith.mulf %200, %212 : vector<8x30xf32>
    %214 = arith.addf %209, %213 : vector<8x30xf32>
    %215 = math.tanh %214 : vector<8x30xf32>
    %cst_94 = arith.constant 1.000000e+00 : f32
    %216 = vector.broadcast %cst_94 : f32 to vector<8x30xf32>
    %217 = arith.subf %216, %208 : vector<8x30xf32>
    %218 = arith.mulf %217, %215 : vector<8x30xf32>
    %219 = arith.mulf %208, %96 : vector<8x30xf32>
    %220 = arith.addf %218, %219 : vector<8x30xf32>
    %221 = vector.extract_strided_slice %83 {offsets = [8, 0], sizes = [8, 90], strides = [1, 1]} : vector<80x90xf32> to vector<8x90xf32>
    %cst_95 = arith.constant dense<0.000000e+00> : vector<8x90xf32>
    %222 = tpu.matmul %126, %90, %cst_95 {dimension_numbers = #tpu.dot_dimension_numbers<[1], [0], [0], [1], [0, 0, 1, 1], [], []>} : vector<8x30xf32>, vector<30x90xf32>, vector<8x90xf32> -> vector<8x90xf32>
    %223 = vector.extract_strided_slice %221 {offsets = [0, 0], sizes = [8, 30], strides = [1, 1]} : vector<8x90xf32> to vector<8x30xf32>
    %224 = vector.extract_strided_slice %222 {offsets = [0, 0], sizes = [8, 30], strides = [1, 1]} : vector<8x90xf32> to vector<8x30xf32>
    %225 = arith.addf %223, %224 : vector<8x30xf32>
    %226 = arith.negf %225 : vector<8x30xf32>
    %227 = math.exp %226 : vector<8x30xf32>
    %cst_96 = arith.constant 1.000000e+00 : f32
    %228 = vector.broadcast %cst_96 : f32 to vector<8x30xf32>
    %229 = arith.addf %228, %227 : vector<8x30xf32>
    %230 = arith.divf %228, %229 : vector<8x30xf32>
    %231 = vector.extract_strided_slice %221 {offsets = [0, 30], sizes = [8, 30], strides = [1, 1]} : vector<8x90xf32> to vector<8x30xf32>
    %232 = vector.extract_strided_slice %222 {offsets = [0, 30], sizes = [8, 30], strides = [1, 1]} : vector<8x90xf32> to vector<8x30xf32>
    %233 = arith.addf %231, %232 : vector<8x30xf32>
    %234 = arith.negf %233 : vector<8x30xf32>
    %235 = math.exp %234 : vector<8x30xf32>
    %cst_97 = arith.constant 1.000000e+00 : f32
    %236 = vector.broadcast %cst_97 : f32 to vector<8x30xf32>
    %237 = arith.addf %236, %235 : vector<8x30xf32>
    %238 = arith.divf %236, %237 : vector<8x30xf32>
    %239 = vector.extract_strided_slice %221 {offsets = [0, 60], sizes = [8, 30], strides = [1, 1]} : vector<8x90xf32> to vector<8x30xf32>
    %240 = vector.extract_strided_slice %222 {offsets = [0, 60], sizes = [8, 30], strides = [1, 1]} : vector<8x90xf32> to vector<8x30xf32>
    %241 = vector.broadcast %91 : vector<1x30xf32> to vector<8x30xf32>
    %242 = arith.addf %240, %241 : vector<8x30xf32>
    %243 = arith.mulf %230, %242 : vector<8x30xf32>
    %244 = arith.addf %239, %243 : vector<8x30xf32>
    %245 = math.tanh %244 : vector<8x30xf32>
    %cst_98 = arith.constant 1.000000e+00 : f32
    %246 = vector.broadcast %cst_98 : f32 to vector<8x30xf32>
    %247 = arith.subf %246, %238 : vector<8x30xf32>
    %248 = arith.mulf %247, %245 : vector<8x30xf32>
    %249 = arith.mulf %238, %126 : vector<8x30xf32>
    %250 = arith.addf %248, %249 : vector<8x30xf32>
    %cst_99 = arith.constant dense<0.000000e+00> : vector<8x90xf32>
    %251 = tpu.matmul %250, %92, %cst_99 {dimension_numbers = #tpu.dot_dimension_numbers<[1], [0], [0], [1], [0, 0, 1, 1], [], []>} : vector<8x30xf32>, vector<30x90xf32>, vector<8x90xf32> -> vector<8x90xf32>
    %252 = vector.broadcast %94 : vector<1x90xf32> to vector<8x90xf32>
    %253 = arith.addf %251, %252 : vector<8x90xf32>
    %cst_100 = arith.constant dense<0.000000e+00> : vector<8x90xf32>
    %254 = tpu.matmul %158, %93, %cst_100 {dimension_numbers = #tpu.dot_dimension_numbers<[1], [0], [0], [1], [0, 0, 1, 1], [], []>} : vector<8x30xf32>, vector<30x90xf32>, vector<8x90xf32> -> vector<8x90xf32>
    %255 = vector.extract_strided_slice %253 {offsets = [0, 0], sizes = [8, 30], strides = [1, 1]} : vector<8x90xf32> to vector<8x30xf32>
    %256 = vector.extract_strided_slice %254 {offsets = [0, 0], sizes = [8, 30], strides = [1, 1]} : vector<8x90xf32> to vector<8x30xf32>
    %257 = arith.addf %255, %256 : vector<8x30xf32>
    %258 = arith.negf %257 : vector<8x30xf32>
    %259 = math.exp %258 : vector<8x30xf32>
    %cst_101 = arith.constant 1.000000e+00 : f32
    %260 = vector.broadcast %cst_101 : f32 to vector<8x30xf32>
    %261 = arith.addf %260, %259 : vector<8x30xf32>
    %262 = arith.divf %260, %261 : vector<8x30xf32>
    %263 = vector.extract_strided_slice %253 {offsets = [0, 30], sizes = [8, 30], strides = [1, 1]} : vector<8x90xf32> to vector<8x30xf32>
    %264 = vector.extract_strided_slice %254 {offsets = [0, 30], sizes = [8, 30], strides = [1, 1]} : vector<8x90xf32> to vector<8x30xf32>
    %265 = arith.addf %263, %264 : vector<8x30xf32>
    %266 = arith.negf %265 : vector<8x30xf32>
    %267 = math.exp %266 : vector<8x30xf32>
    %cst_102 = arith.constant 1.000000e+00 : f32
    %268 = vector.broadcast %cst_102 : f32 to vector<8x30xf32>
    %269 = arith.addf %268, %267 : vector<8x30xf32>
    %270 = arith.divf %268, %269 : vector<8x30xf32>
    %271 = vector.extract_strided_slice %253 {offsets = [0, 60], sizes = [8, 30], strides = [1, 1]} : vector<8x90xf32> to vector<8x30xf32>
    %272 = vector.extract_strided_slice %254 {offsets = [0, 60], sizes = [8, 30], strides = [1, 1]} : vector<8x90xf32> to vector<8x30xf32>
    %273 = vector.broadcast %95 : vector<1x30xf32> to vector<8x30xf32>
    %274 = arith.addf %272, %273 : vector<8x30xf32>
    %275 = arith.mulf %262, %274 : vector<8x30xf32>
    %276 = arith.addf %271, %275 : vector<8x30xf32>
    %277 = math.tanh %276 : vector<8x30xf32>
    %cst_103 = arith.constant 1.000000e+00 : f32
    %278 = vector.broadcast %cst_103 : f32 to vector<8x30xf32>
    %279 = arith.subf %278, %270 : vector<8x30xf32>
    %280 = arith.mulf %279, %277 : vector<8x30xf32>
    %281 = arith.mulf %270, %158 : vector<8x30xf32>
    %282 = arith.addf %280, %281 : vector<8x30xf32>
    %283 = vector.extract_strided_slice %42 {offsets = [8, 0], sizes = [8, 90], strides = [1, 1]} : vector<24x90xf32> to vector<8x90xf32>
    %cst_104 = arith.constant dense<0.000000e+00> : vector<8x90xf32>
    %284 = tpu.matmul %188, %84, %cst_104 {dimension_numbers = #tpu.dot_dimension_numbers<[1], [0], [0], [1], [0, 0, 1, 1], [], []>} : vector<8x30xf32>, vector<30x90xf32>, vector<8x90xf32> -> vector<8x90xf32>
    %285 = vector.extract_strided_slice %283 {offsets = [0, 0], sizes = [8, 30], strides = [1, 1]} : vector<8x90xf32> to vector<8x30xf32>
    %286 = vector.extract_strided_slice %284 {offsets = [0, 0], sizes = [8, 30], strides = [1, 1]} : vector<8x90xf32> to vector<8x30xf32>
    %287 = arith.addf %285, %286 : vector<8x30xf32>
    %288 = arith.negf %287 : vector<8x30xf32>
    %289 = math.exp %288 : vector<8x30xf32>
    %cst_105 = arith.constant 1.000000e+00 : f32
    %290 = vector.broadcast %cst_105 : f32 to vector<8x30xf32>
    %291 = arith.addf %290, %289 : vector<8x30xf32>
    %292 = arith.divf %290, %291 : vector<8x30xf32>
    %293 = vector.extract_strided_slice %283 {offsets = [0, 30], sizes = [8, 30], strides = [1, 1]} : vector<8x90xf32> to vector<8x30xf32>
    %294 = vector.extract_strided_slice %284 {offsets = [0, 30], sizes = [8, 30], strides = [1, 1]} : vector<8x90xf32> to vector<8x30xf32>
    %295 = arith.addf %293, %294 : vector<8x30xf32>
    %296 = arith.negf %295 : vector<8x30xf32>
    %297 = math.exp %296 : vector<8x30xf32>
    %cst_106 = arith.constant 1.000000e+00 : f32
    %298 = vector.broadcast %cst_106 : f32 to vector<8x30xf32>
    %299 = arith.addf %298, %297 : vector<8x30xf32>
    %300 = arith.divf %298, %299 : vector<8x30xf32>
    %301 = vector.extract_strided_slice %283 {offsets = [0, 60], sizes = [8, 30], strides = [1, 1]} : vector<8x90xf32> to vector<8x30xf32>
    %302 = vector.extract_strided_slice %284 {offsets = [0, 60], sizes = [8, 30], strides = [1, 1]} : vector<8x90xf32> to vector<8x30xf32>
    %303 = vector.broadcast %85 : vector<1x30xf32> to vector<8x30xf32>
    %304 = arith.addf %302, %303 : vector<8x30xf32>
    %305 = arith.mulf %292, %304 : vector<8x30xf32>
    %306 = arith.addf %301, %305 : vector<8x30xf32>
    %307 = math.tanh %306 : vector<8x30xf32>
    %cst_107 = arith.constant 1.000000e+00 : f32
    %308 = vector.broadcast %cst_107 : f32 to vector<8x30xf32>
    %309 = arith.subf %308, %300 : vector<8x30xf32>
    %310 = arith.mulf %309, %307 : vector<8x30xf32>
    %311 = arith.mulf %300, %188 : vector<8x30xf32>
    %312 = arith.addf %310, %311 : vector<8x30xf32>
    %cst_108 = arith.constant dense<0.000000e+00> : vector<8x90xf32>
    %313 = tpu.matmul %312, %86, %cst_108 {dimension_numbers = #tpu.dot_dimension_numbers<[1], [0], [0], [1], [0, 0, 1, 1], [], []>} : vector<8x30xf32>, vector<30x90xf32>, vector<8x90xf32> -> vector<8x90xf32>
    %314 = vector.broadcast %88 : vector<1x90xf32> to vector<8x90xf32>
    %315 = arith.addf %313, %314 : vector<8x90xf32>
    %cst_109 = arith.constant dense<0.000000e+00> : vector<8x90xf32>
    %316 = tpu.matmul %220, %87, %cst_109 {dimension_numbers = #tpu.dot_dimension_numbers<[1], [0], [0], [1], [0, 0, 1, 1], [], []>} : vector<8x30xf32>, vector<30x90xf32>, vector<8x90xf32> -> vector<8x90xf32>
    %317 = vector.extract_strided_slice %315 {offsets = [0, 0], sizes = [8, 30], strides = [1, 1]} : vector<8x90xf32> to vector<8x30xf32>
    %318 = vector.extract_strided_slice %316 {offsets = [0, 0], sizes = [8, 30], strides = [1, 1]} : vector<8x90xf32> to vector<8x30xf32>
    %319 = arith.addf %317, %318 : vector<8x30xf32>
    %320 = arith.negf %319 : vector<8x30xf32>
    %321 = math.exp %320 : vector<8x30xf32>
    %cst_110 = arith.constant 1.000000e+00 : f32
    %322 = vector.broadcast %cst_110 : f32 to vector<8x30xf32>
    %323 = arith.addf %322, %321 : vector<8x30xf32>
    %324 = arith.divf %322, %323 : vector<8x30xf32>
    %325 = vector.extract_strided_slice %315 {offsets = [0, 30], sizes = [8, 30], strides = [1, 1]} : vector<8x90xf32> to vector<8x30xf32>
    %326 = vector.extract_strided_slice %316 {offsets = [0, 30], sizes = [8, 30], strides = [1, 1]} : vector<8x90xf32> to vector<8x30xf32>
    %327 = arith.addf %325, %326 : vector<8x30xf32>
    %328 = arith.negf %327 : vector<8x30xf32>
    %329 = math.exp %328 : vector<8x30xf32>
    %cst_111 = arith.constant 1.000000e+00 : f32
    %330 = vector.broadcast %cst_111 : f32 to vector<8x30xf32>
    %331 = arith.addf %330, %329 : vector<8x30xf32>
    %332 = arith.divf %330, %331 : vector<8x30xf32>
    %333 = vector.extract_strided_slice %315 {offsets = [0, 60], sizes = [8, 30], strides = [1, 1]} : vector<8x90xf32> to vector<8x30xf32>
    %334 = vector.extract_strided_slice %316 {offsets = [0, 60], sizes = [8, 30], strides = [1, 1]} : vector<8x90xf32> to vector<8x30xf32>
    %335 = vector.broadcast %89 : vector<1x30xf32> to vector<8x30xf32>
    %336 = arith.addf %334, %335 : vector<8x30xf32>
    %337 = arith.mulf %324, %336 : vector<8x30xf32>
    %338 = arith.addf %333, %337 : vector<8x30xf32>
    %339 = math.tanh %338 : vector<8x30xf32>
    %cst_112 = arith.constant 1.000000e+00 : f32
    %340 = vector.broadcast %cst_112 : f32 to vector<8x30xf32>
    %341 = arith.subf %340, %332 : vector<8x30xf32>
    %342 = arith.mulf %341, %339 : vector<8x30xf32>
    %343 = arith.mulf %332, %220 : vector<8x30xf32>
    %344 = arith.addf %342, %343 : vector<8x30xf32>
    %345 = vector.extract_strided_slice %83 {offsets = [16, 0], sizes = [8, 90], strides = [1, 1]} : vector<80x90xf32> to vector<8x90xf32>
    %cst_113 = arith.constant dense<0.000000e+00> : vector<8x90xf32>
    %346 = tpu.matmul %250, %90, %cst_113 {dimension_numbers = #tpu.dot_dimension_numbers<[1], [0], [0], [1], [0, 0, 1, 1], [], []>} : vector<8x30xf32>, vector<30x90xf32>, vector<8x90xf32> -> vector<8x90xf32>
    %347 = vector.extract_strided_slice %345 {offsets = [0, 0], sizes = [8, 30], strides = [1, 1]} : vector<8x90xf32> to vector<8x30xf32>
    %348 = vector.extract_strided_slice %346 {offsets = [0, 0], sizes = [8, 30], strides = [1, 1]} : vector<8x90xf32> to vector<8x30xf32>
    %349 = arith.addf %347, %348 : vector<8x30xf32>
    %350 = arith.negf %349 : vector<8x30xf32>
    %351 = math.exp %350 : vector<8x30xf32>
    %cst_114 = arith.constant 1.000000e+00 : f32
    %352 = vector.broadcast %cst_114 : f32 to vector<8x30xf32>
    %353 = arith.addf %352, %351 : vector<8x30xf32>
    %354 = arith.divf %352, %353 : vector<8x30xf32>
    %355 = vector.extract_strided_slice %345 {offsets = [0, 30], sizes = [8, 30], strides = [1, 1]} : vector<8x90xf32> to vector<8x30xf32>
    %356 = vector.extract_strided_slice %346 {offsets = [0, 30], sizes = [8, 30], strides = [1, 1]} : vector<8x90xf32> to vector<8x30xf32>
    %357 = arith.addf %355, %356 : vector<8x30xf32>
    %358 = arith.negf %357 : vector<8x30xf32>
    %359 = math.exp %358 : vector<8x30xf32>
    %cst_115 = arith.constant 1.000000e+00 : f32
    %360 = vector.broadcast %cst_115 : f32 to vector<8x30xf32>
    %361 = arith.addf %360, %359 : vector<8x30xf32>
    %362 = arith.divf %360, %361 : vector<8x30xf32>
    %363 = vector.extract_strided_slice %345 {offsets = [0, 60], sizes = [8, 30], strides = [1, 1]} : vector<8x90xf32> to vector<8x30xf32>
    %364 = vector.extract_strided_slice %346 {offsets = [0, 60], sizes = [8, 30], strides = [1, 1]} : vector<8x90xf32> to vector<8x30xf32>
    %365 = vector.broadcast %91 : vector<1x30xf32> to vector<8x30xf32>
    %366 = arith.addf %364, %365 : vector<8x30xf32>
    %367 = arith.mulf %354, %366 : vector<8x30xf32>
    %368 = arith.addf %363, %367 : vector<8x30xf32>
    %369 = math.tanh %368 : vector<8x30xf32>
    %cst_116 = arith.constant 1.000000e+00 : f32
    %370 = vector.broadcast %cst_116 : f32 to vector<8x30xf32>
    %371 = arith.subf %370, %362 : vector<8x30xf32>
    %372 = arith.mulf %371, %369 : vector<8x30xf32>
    %373 = arith.mulf %362, %250 : vector<8x30xf32>
    %374 = arith.addf %372, %373 : vector<8x30xf32>
    %cst_117 = arith.constant dense<0.000000e+00> : vector<8x90xf32>
    %375 = tpu.matmul %374, %92, %cst_117 {dimension_numbers = #tpu.dot_dimension_numbers<[1], [0], [0], [1], [0, 0, 1, 1], [], []>} : vector<8x30xf32>, vector<30x90xf32>, vector<8x90xf32> -> vector<8x90xf32>
    %376 = vector.broadcast %94 : vector<1x90xf32> to vector<8x90xf32>
    %377 = arith.addf %375, %376 : vector<8x90xf32>
    %cst_118 = arith.constant dense<0.000000e+00> : vector<8x90xf32>
    %378 = tpu.matmul %282, %93, %cst_118 {dimension_numbers = #tpu.dot_dimension_numbers<[1], [0], [0], [1], [0, 0, 1, 1], [], []>} : vector<8x30xf32>, vector<30x90xf32>, vector<8x90xf32> -> vector<8x90xf32>
    %379 = vector.extract_strided_slice %377 {offsets = [0, 0], sizes = [8, 30], strides = [1, 1]} : vector<8x90xf32> to vector<8x30xf32>
    %380 = vector.extract_strided_slice %378 {offsets = [0, 0], sizes = [8, 30], strides = [1, 1]} : vector<8x90xf32> to vector<8x30xf32>
    %381 = arith.addf %379, %380 : vector<8x30xf32>
    %382 = arith.negf %381 : vector<8x30xf32>
    %383 = math.exp %382 : vector<8x30xf32>
    %cst_119 = arith.constant 1.000000e+00 : f32
    %384 = vector.broadcast %cst_119 : f32 to vector<8x30xf32>
    %385 = arith.addf %384, %383 : vector<8x30xf32>
    %386 = arith.divf %384, %385 : vector<8x30xf32>
    %387 = vector.extract_strided_slice %377 {offsets = [0, 30], sizes = [8, 30], strides = [1, 1]} : vector<8x90xf32> to vector<8x30xf32>
    %388 = vector.extract_strided_slice %378 {offsets = [0, 30], sizes = [8, 30], strides = [1, 1]} : vector<8x90xf32> to vector<8x30xf32>
    %389 = arith.addf %387, %388 : vector<8x30xf32>
    %390 = arith.negf %389 : vector<8x30xf32>
    %391 = math.exp %390 : vector<8x30xf32>
    %cst_120 = arith.constant 1.000000e+00 : f32
    %392 = vector.broadcast %cst_120 : f32 to vector<8x30xf32>
    %393 = arith.addf %392, %391 : vector<8x30xf32>
    %394 = arith.divf %392, %393 : vector<8x30xf32>
    %395 = vector.extract_strided_slice %377 {offsets = [0, 60], sizes = [8, 30], strides = [1, 1]} : vector<8x90xf32> to vector<8x30xf32>
    %396 = vector.extract_strided_slice %378 {offsets = [0, 60], sizes = [8, 30], strides = [1, 1]} : vector<8x90xf32> to vector<8x30xf32>
    %397 = vector.broadcast %95 : vector<1x30xf32> to vector<8x30xf32>
    %398 = arith.addf %396, %397 : vector<8x30xf32>
    %399 = arith.mulf %386, %398 : vector<8x30xf32>
    %400 = arith.addf %395, %399 : vector<8x30xf32>
    %401 = math.tanh %400 : vector<8x30xf32>
    %cst_121 = arith.constant 1.000000e+00 : f32
    %402 = vector.broadcast %cst_121 : f32 to vector<8x30xf32>
    %403 = arith.subf %402, %394 : vector<8x30xf32>
    %404 = arith.mulf %403, %401 : vector<8x30xf32>
    %405 = arith.mulf %394, %282 : vector<8x30xf32>
    %406 = arith.addf %404, %405 : vector<8x30xf32>
    %407 = vector.extract_strided_slice %42 {offsets = [16, 0], sizes = [8, 90], strides = [1, 1]} : vector<24x90xf32> to vector<8x90xf32>
    %cst_122 = arith.constant dense<0.000000e+00> : vector<8x90xf32>
    %408 = tpu.matmul %312, %84, %cst_122 {dimension_numbers = #tpu.dot_dimension_numbers<[1], [0], [0], [1], [0, 0, 1, 1], [], []>} : vector<8x30xf32>, vector<30x90xf32>, vector<8x90xf32> -> vector<8x90xf32>
    %409 = vector.extract_strided_slice %407 {offsets = [0, 0], sizes = [8, 30], strides = [1, 1]} : vector<8x90xf32> to vector<8x30xf32>
    %410 = vector.extract_strided_slice %408 {offsets = [0, 0], sizes = [8, 30], strides = [1, 1]} : vector<8x90xf32> to vector<8x30xf32>
    %411 = arith.addf %409, %410 : vector<8x30xf32>
    %412 = arith.negf %411 : vector<8x30xf32>
    %413 = math.exp %412 : vector<8x30xf32>
    %cst_123 = arith.constant 1.000000e+00 : f32
    %414 = vector.broadcast %cst_123 : f32 to vector<8x30xf32>
    %415 = arith.addf %414, %413 : vector<8x30xf32>
    %416 = arith.divf %414, %415 : vector<8x30xf32>
    %417 = vector.extract_strided_slice %407 {offsets = [0, 30], sizes = [8, 30], strides = [1, 1]} : vector<8x90xf32> to vector<8x30xf32>
    %418 = vector.extract_strided_slice %408 {offsets = [0, 30], sizes = [8, 30], strides = [1, 1]} : vector<8x90xf32> to vector<8x30xf32>
    %419 = arith.addf %417, %418 : vector<8x30xf32>
    %420 = arith.negf %419 : vector<8x30xf32>
    %421 = math.exp %420 : vector<8x30xf32>
    %cst_124 = arith.constant 1.000000e+00 : f32
    %422 = vector.broadcast %cst_124 : f32 to vector<8x30xf32>
    %423 = arith.addf %422, %421 : vector<8x30xf32>
    %424 = arith.divf %422, %423 : vector<8x30xf32>
    %425 = vector.extract_strided_slice %407 {offsets = [0, 60], sizes = [8, 30], strides = [1, 1]} : vector<8x90xf32> to vector<8x30xf32>
    %426 = vector.extract_strided_slice %408 {offsets = [0, 60], sizes = [8, 30], strides = [1, 1]} : vector<8x90xf32> to vector<8x30xf32>
    %427 = vector.broadcast %85 : vector<1x30xf32> to vector<8x30xf32>
    %428 = arith.addf %426, %427 : vector<8x30xf32>
    %429 = arith.mulf %416, %428 : vector<8x30xf32>
    %430 = arith.addf %425, %429 : vector<8x30xf32>
    %431 = math.tanh %430 : vector<8x30xf32>
    %cst_125 = arith.constant 1.000000e+00 : f32
    %432 = vector.broadcast %cst_125 : f32 to vector<8x30xf32>
    %433 = arith.subf %432, %424 : vector<8x30xf32>
    %434 = arith.mulf %433, %431 : vector<8x30xf32>
    %435 = arith.mulf %424, %312 : vector<8x30xf32>
    %436 = arith.addf %434, %435 : vector<8x30xf32>
    %cst_126 = arith.constant dense<0.000000e+00> : vector<8x90xf32>
    %437 = tpu.matmul %436, %86, %cst_126 {dimension_numbers = #tpu.dot_dimension_numbers<[1], [0], [0], [1], [0, 0, 1, 1], [], []>} : vector<8x30xf32>, vector<30x90xf32>, vector<8x90xf32> -> vector<8x90xf32>
    %438 = vector.broadcast %88 : vector<1x90xf32> to vector<8x90xf32>
    %439 = arith.addf %437, %438 : vector<8x90xf32>
    %cst_127 = arith.constant dense<0.000000e+00> : vector<8x90xf32>
    %440 = tpu.matmul %344, %87, %cst_127 {dimension_numbers = #tpu.dot_dimension_numbers<[1], [0], [0], [1], [0, 0, 1, 1], [], []>} : vector<8x30xf32>, vector<30x90xf32>, vector<8x90xf32> -> vector<8x90xf32>
    %441 = vector.extract_strided_slice %439 {offsets = [0, 0], sizes = [8, 30], strides = [1, 1]} : vector<8x90xf32> to vector<8x30xf32>
    %442 = vector.extract_strided_slice %440 {offsets = [0, 0], sizes = [8, 30], strides = [1, 1]} : vector<8x90xf32> to vector<8x30xf32>
    %443 = arith.addf %441, %442 : vector<8x30xf32>
    %444 = arith.negf %443 : vector<8x30xf32>
    %445 = math.exp %444 : vector<8x30xf32>
    %cst_128 = arith.constant 1.000000e+00 : f32
    %446 = vector.broadcast %cst_128 : f32 to vector<8x30xf32>
    %447 = arith.addf %446, %445 : vector<8x30xf32>
    %448 = arith.divf %446, %447 : vector<8x30xf32>
    %449 = vector.extract_strided_slice %439 {offsets = [0, 30], sizes = [8, 30], strides = [1, 1]} : vector<8x90xf32> to vector<8x30xf32>
    %450 = vector.extract_strided_slice %440 {offsets = [0, 30], sizes = [8, 30], strides = [1, 1]} : vector<8x90xf32> to vector<8x30xf32>
    %451 = arith.addf %449, %450 : vector<8x30xf32>
    %452 = arith.negf %451 : vector<8x30xf32>
    %453 = math.exp %452 : vector<8x30xf32>
    %cst_129 = arith.constant 1.000000e+00 : f32
    %454 = vector.broadcast %cst_129 : f32 to vector<8x30xf32>
    %455 = arith.addf %454, %453 : vector<8x30xf32>
    %456 = arith.divf %454, %455 : vector<8x30xf32>
    %457 = vector.extract_strided_slice %439 {offsets = [0, 60], sizes = [8, 30], strides = [1, 1]} : vector<8x90xf32> to vector<8x30xf32>
    %458 = vector.extract_strided_slice %440 {offsets = [0, 60], sizes = [8, 30], strides = [1, 1]} : vector<8x90xf32> to vector<8x30xf32>
    %459 = vector.broadcast %89 : vector<1x30xf32> to vector<8x30xf32>
    %460 = arith.addf %458, %459 : vector<8x30xf32>
    %461 = arith.mulf %448, %460 : vector<8x30xf32>
    %462 = arith.addf %457, %461 : vector<8x30xf32>
    %463 = math.tanh %462 : vector<8x30xf32>
    %cst_130 = arith.constant 1.000000e+00 : f32
    %464 = vector.broadcast %cst_130 : f32 to vector<8x30xf32>
    %465 = arith.subf %464, %456 : vector<8x30xf32>
    %466 = arith.mulf %465, %463 : vector<8x30xf32>
    %467 = arith.mulf %456, %344 : vector<8x30xf32>
    %468 = arith.addf %466, %467 : vector<8x30xf32>
    %469 = vector.extract_strided_slice %83 {offsets = [24, 0], sizes = [8, 90], strides = [1, 1]} : vector<80x90xf32> to vector<8x90xf32>
    %cst_131 = arith.constant dense<0.000000e+00> : vector<8x90xf32>
    %470 = tpu.matmul %374, %90, %cst_131 {dimension_numbers = #tpu.dot_dimension_numbers<[1], [0], [0], [1], [0, 0, 1, 1], [], []>} : vector<8x30xf32>, vector<30x90xf32>, vector<8x90xf32> -> vector<8x90xf32>
    %471 = vector.extract_strided_slice %469 {offsets = [0, 0], sizes = [8, 30], strides = [1, 1]} : vector<8x90xf32> to vector<8x30xf32>
    %472 = vector.extract_strided_slice %470 {offsets = [0, 0], sizes = [8, 30], strides = [1, 1]} : vector<8x90xf32> to vector<8x30xf32>
    %473 = arith.addf %471, %472 : vector<8x30xf32>
    %474 = arith.negf %473 : vector<8x30xf32>
    %475 = math.exp %474 : vector<8x30xf32>
    %cst_132 = arith.constant 1.000000e+00 : f32
    %476 = vector.broadcast %cst_132 : f32 to vector<8x30xf32>
    %477 = arith.addf %476, %475 : vector<8x30xf32>
    %478 = arith.divf %476, %477 : vector<8x30xf32>
    %479 = vector.extract_strided_slice %469 {offsets = [0, 30], sizes = [8, 30], strides = [1, 1]} : vector<8x90xf32> to vector<8x30xf32>
    %480 = vector.extract_strided_slice %470 {offsets = [0, 30], sizes = [8, 30], strides = [1, 1]} : vector<8x90xf32> to vector<8x30xf32>
    %481 = arith.addf %479, %480 : vector<8x30xf32>
    %482 = arith.negf %481 : vector<8x30xf32>
    %483 = math.exp %482 : vector<8x30xf32>
    %cst_133 = arith.constant 1.000000e+00 : f32
    %484 = vector.broadcast %cst_133 : f32 to vector<8x30xf32>
    %485 = arith.addf %484, %483 : vector<8x30xf32>
    %486 = arith.divf %484, %485 : vector<8x30xf32>
    %487 = vector.extract_strided_slice %469 {offsets = [0, 60], sizes = [8, 30], strides = [1, 1]} : vector<8x90xf32> to vector<8x30xf32>
    %488 = vector.extract_strided_slice %470 {offsets = [0, 60], sizes = [8, 30], strides = [1, 1]} : vector<8x90xf32> to vector<8x30xf32>
    %489 = vector.broadcast %91 : vector<1x30xf32> to vector<8x30xf32>
    %490 = arith.addf %488, %489 : vector<8x30xf32>
    %491 = arith.mulf %478, %490 : vector<8x30xf32>
    %492 = arith.addf %487, %491 : vector<8x30xf32>
    %493 = math.tanh %492 : vector<8x30xf32>
    %cst_134 = arith.constant 1.000000e+00 : f32
    %494 = vector.broadcast %cst_134 : f32 to vector<8x30xf32>
    %495 = arith.subf %494, %486 : vector<8x30xf32>
    %496 = arith.mulf %495, %493 : vector<8x30xf32>
    %497 = arith.mulf %486, %374 : vector<8x30xf32>
    %498 = arith.addf %496, %497 : vector<8x30xf32>
    %cst_135 = arith.constant dense<0.000000e+00> : vector<8x90xf32>
    %499 = tpu.matmul %498, %92, %cst_135 {dimension_numbers = #tpu.dot_dimension_numbers<[1], [0], [0], [1], [0, 0, 1, 1], [], []>} : vector<8x30xf32>, vector<30x90xf32>, vector<8x90xf32> -> vector<8x90xf32>
    %500 = vector.broadcast %94 : vector<1x90xf32> to vector<8x90xf32>
    %501 = arith.addf %499, %500 : vector<8x90xf32>
    %cst_136 = arith.constant dense<0.000000e+00> : vector<8x90xf32>
    %502 = tpu.matmul %406, %93, %cst_136 {dimension_numbers = #tpu.dot_dimension_numbers<[1], [0], [0], [1], [0, 0, 1, 1], [], []>} : vector<8x30xf32>, vector<30x90xf32>, vector<8x90xf32> -> vector<8x90xf32>
    %503 = vector.extract_strided_slice %501 {offsets = [0, 0], sizes = [8, 30], strides = [1, 1]} : vector<8x90xf32> to vector<8x30xf32>
    %504 = vector.extract_strided_slice %502 {offsets = [0, 0], sizes = [8, 30], strides = [1, 1]} : vector<8x90xf32> to vector<8x30xf32>
    %505 = arith.addf %503, %504 : vector<8x30xf32>
    %506 = arith.negf %505 : vector<8x30xf32>
    %507 = math.exp %506 : vector<8x30xf32>
    %cst_137 = arith.constant 1.000000e+00 : f32
    %508 = vector.broadcast %cst_137 : f32 to vector<8x30xf32>
    %509 = arith.addf %508, %507 : vector<8x30xf32>
    %510 = arith.divf %508, %509 : vector<8x30xf32>
    %511 = vector.extract_strided_slice %501 {offsets = [0, 30], sizes = [8, 30], strides = [1, 1]} : vector<8x90xf32> to vector<8x30xf32>
    %512 = vector.extract_strided_slice %502 {offsets = [0, 30], sizes = [8, 30], strides = [1, 1]} : vector<8x90xf32> to vector<8x30xf32>
    %513 = arith.addf %511, %512 : vector<8x30xf32>
    %514 = arith.negf %513 : vector<8x30xf32>
    %515 = math.exp %514 : vector<8x30xf32>
    %cst_138 = arith.constant 1.000000e+00 : f32
    %516 = vector.broadcast %cst_138 : f32 to vector<8x30xf32>
    %517 = arith.addf %516, %515 : vector<8x30xf32>
    %518 = arith.divf %516, %517 : vector<8x30xf32>
    %519 = vector.extract_strided_slice %501 {offsets = [0, 60], sizes = [8, 30], strides = [1, 1]} : vector<8x90xf32> to vector<8x30xf32>
    %520 = vector.extract_strided_slice %502 {offsets = [0, 60], sizes = [8, 30], strides = [1, 1]} : vector<8x90xf32> to vector<8x30xf32>
    %521 = vector.broadcast %95 : vector<1x30xf32> to vector<8x30xf32>
    %522 = arith.addf %520, %521 : vector<8x30xf32>
    %523 = arith.mulf %510, %522 : vector<8x30xf32>
    %524 = arith.addf %519, %523 : vector<8x30xf32>
    %525 = math.tanh %524 : vector<8x30xf32>
    %cst_139 = arith.constant 1.000000e+00 : f32
    %526 = vector.broadcast %cst_139 : f32 to vector<8x30xf32>
    %527 = arith.subf %526, %518 : vector<8x30xf32>
    %528 = arith.mulf %527, %525 : vector<8x30xf32>
    %529 = arith.mulf %518, %406 : vector<8x30xf32>
    %530 = arith.addf %528, %529 : vector<8x30xf32>
    %531 = vector.extract_strided_slice %83 {offsets = [32, 0], sizes = [8, 90], strides = [1, 1]} : vector<80x90xf32> to vector<8x90xf32>
    %cst_140 = arith.constant dense<0.000000e+00> : vector<8x90xf32>
    %532 = tpu.matmul %498, %90, %cst_140 {dimension_numbers = #tpu.dot_dimension_numbers<[1], [0], [0], [1], [0, 0, 1, 1], [], []>} : vector<8x30xf32>, vector<30x90xf32>, vector<8x90xf32> -> vector<8x90xf32>
    %533 = vector.extract_strided_slice %531 {offsets = [0, 0], sizes = [8, 30], strides = [1, 1]} : vector<8x90xf32> to vector<8x30xf32>
    %534 = vector.extract_strided_slice %532 {offsets = [0, 0], sizes = [8, 30], strides = [1, 1]} : vector<8x90xf32> to vector<8x30xf32>
    %535 = arith.addf %533, %534 : vector<8x30xf32>
    %536 = arith.negf %535 : vector<8x30xf32>
    %537 = math.exp %536 : vector<8x30xf32>
    %cst_141 = arith.constant 1.000000e+00 : f32
    %538 = vector.broadcast %cst_141 : f32 to vector<8x30xf32>
    %539 = arith.addf %538, %537 : vector<8x30xf32>
    %540 = arith.divf %538, %539 : vector<8x30xf32>
    %541 = vector.extract_strided_slice %531 {offsets = [0, 30], sizes = [8, 30], strides = [1, 1]} : vector<8x90xf32> to vector<8x30xf32>
    %542 = vector.extract_strided_slice %532 {offsets = [0, 30], sizes = [8, 30], strides = [1, 1]} : vector<8x90xf32> to vector<8x30xf32>
    %543 = arith.addf %541, %542 : vector<8x30xf32>
    %544 = arith.negf %543 : vector<8x30xf32>
    %545 = math.exp %544 : vector<8x30xf32>
    %cst_142 = arith.constant 1.000000e+00 : f32
    %546 = vector.broadcast %cst_142 : f32 to vector<8x30xf32>
    %547 = arith.addf %546, %545 : vector<8x30xf32>
    %548 = arith.divf %546, %547 : vector<8x30xf32>
    %549 = vector.extract_strided_slice %531 {offsets = [0, 60], sizes = [8, 30], strides = [1, 1]} : vector<8x90xf32> to vector<8x30xf32>
    %550 = vector.extract_strided_slice %532 {offsets = [0, 60], sizes = [8, 30], strides = [1, 1]} : vector<8x90xf32> to vector<8x30xf32>
    %551 = vector.broadcast %91 : vector<1x30xf32> to vector<8x30xf32>
    %552 = arith.addf %550, %551 : vector<8x30xf32>
    %553 = arith.mulf %540, %552 : vector<8x30xf32>
    %554 = arith.addf %549, %553 : vector<8x30xf32>
    %555 = math.tanh %554 : vector<8x30xf32>
    %cst_143 = arith.constant 1.000000e+00 : f32
    %556 = vector.broadcast %cst_143 : f32 to vector<8x30xf32>
    %557 = arith.subf %556, %548 : vector<8x30xf32>
    %558 = arith.mulf %557, %555 : vector<8x30xf32>
    %559 = arith.mulf %548, %498 : vector<8x30xf32>
    %560 = arith.addf %558, %559 : vector<8x30xf32>
    %cst_144 = arith.constant dense<0.000000e+00> : vector<8x90xf32>
    %561 = tpu.matmul %560, %92, %cst_144 {dimension_numbers = #tpu.dot_dimension_numbers<[1], [0], [0], [1], [0, 0, 1, 1], [], []>} : vector<8x30xf32>, vector<30x90xf32>, vector<8x90xf32> -> vector<8x90xf32>
    %562 = vector.broadcast %94 : vector<1x90xf32> to vector<8x90xf32>
    %563 = arith.addf %561, %562 : vector<8x90xf32>
    %cst_145 = arith.constant dense<0.000000e+00> : vector<8x90xf32>
    %564 = tpu.matmul %530, %93, %cst_145 {dimension_numbers = #tpu.dot_dimension_numbers<[1], [0], [0], [1], [0, 0, 1, 1], [], []>} : vector<8x30xf32>, vector<30x90xf32>, vector<8x90xf32> -> vector<8x90xf32>
    %565 = vector.extract_strided_slice %563 {offsets = [0, 0], sizes = [8, 30], strides = [1, 1]} : vector<8x90xf32> to vector<8x30xf32>
    %566 = vector.extract_strided_slice %564 {offsets = [0, 0], sizes = [8, 30], strides = [1, 1]} : vector<8x90xf32> to vector<8x30xf32>
    %567 = arith.addf %565, %566 : vector<8x30xf32>
    %568 = arith.negf %567 : vector<8x30xf32>
    %569 = math.exp %568 : vector<8x30xf32>
    %cst_146 = arith.constant 1.000000e+00 : f32
    %570 = vector.broadcast %cst_146 : f32 to vector<8x30xf32>
    %571 = arith.addf %570, %569 : vector<8x30xf32>
    %572 = arith.divf %570, %571 : vector<8x30xf32>
    %573 = vector.extract_strided_slice %563 {offsets = [0, 30], sizes = [8, 30], strides = [1, 1]} : vector<8x90xf32> to vector<8x30xf32>
    %574 = vector.extract_strided_slice %564 {offsets = [0, 30], sizes = [8, 30], strides = [1, 1]} : vector<8x90xf32> to vector<8x30xf32>
    %575 = arith.addf %573, %574 : vector<8x30xf32>
    %576 = arith.negf %575 : vector<8x30xf32>
    %577 = math.exp %576 : vector<8x30xf32>
    %cst_147 = arith.constant 1.000000e+00 : f32
    %578 = vector.broadcast %cst_147 : f32 to vector<8x30xf32>
    %579 = arith.addf %578, %577 : vector<8x30xf32>
    %580 = arith.divf %578, %579 : vector<8x30xf32>
    %581 = vector.extract_strided_slice %563 {offsets = [0, 60], sizes = [8, 30], strides = [1, 1]} : vector<8x90xf32> to vector<8x30xf32>
    %582 = vector.extract_strided_slice %564 {offsets = [0, 60], sizes = [8, 30], strides = [1, 1]} : vector<8x90xf32> to vector<8x30xf32>
    %583 = vector.broadcast %95 : vector<1x30xf32> to vector<8x30xf32>
    %584 = arith.addf %582, %583 : vector<8x30xf32>
    %585 = arith.mulf %572, %584 : vector<8x30xf32>
    %586 = arith.addf %581, %585 : vector<8x30xf32>
    %587 = math.tanh %586 : vector<8x30xf32>
    %cst_148 = arith.constant 1.000000e+00 : f32
    %588 = vector.broadcast %cst_148 : f32 to vector<8x30xf32>
    %589 = arith.subf %588, %580 : vector<8x30xf32>
    %590 = arith.mulf %589, %587 : vector<8x30xf32>
    %591 = arith.mulf %580, %530 : vector<8x30xf32>
    %592 = arith.addf %590, %591 : vector<8x30xf32>
    %593 = vector.extract_strided_slice %83 {offsets = [40, 0], sizes = [8, 90], strides = [1, 1]} : vector<80x90xf32> to vector<8x90xf32>
    %cst_149 = arith.constant dense<0.000000e+00> : vector<8x90xf32>
    %594 = tpu.matmul %560, %90, %cst_149 {dimension_numbers = #tpu.dot_dimension_numbers<[1], [0], [0], [1], [0, 0, 1, 1], [], []>} : vector<8x30xf32>, vector<30x90xf32>, vector<8x90xf32> -> vector<8x90xf32>
    %595 = vector.extract_strided_slice %593 {offsets = [0, 0], sizes = [8, 30], strides = [1, 1]} : vector<8x90xf32> to vector<8x30xf32>
    %596 = vector.extract_strided_slice %594 {offsets = [0, 0], sizes = [8, 30], strides = [1, 1]} : vector<8x90xf32> to vector<8x30xf32>
    %597 = arith.addf %595, %596 : vector<8x30xf32>
    %598 = arith.negf %597 : vector<8x30xf32>
    %599 = math.exp %598 : vector<8x30xf32>
    %cst_150 = arith.constant 1.000000e+00 : f32
    %600 = vector.broadcast %cst_150 : f32 to vector<8x30xf32>
    %601 = arith.addf %600, %599 : vector<8x30xf32>
    %602 = arith.divf %600, %601 : vector<8x30xf32>
    %603 = vector.extract_strided_slice %593 {offsets = [0, 30], sizes = [8, 30], strides = [1, 1]} : vector<8x90xf32> to vector<8x30xf32>
    %604 = vector.extract_strided_slice %594 {offsets = [0, 30], sizes = [8, 30], strides = [1, 1]} : vector<8x90xf32> to vector<8x30xf32>
    %605 = arith.addf %603, %604 : vector<8x30xf32>
    %606 = arith.negf %605 : vector<8x30xf32>
    %607 = math.exp %606 : vector<8x30xf32>
    %cst_151 = arith.constant 1.000000e+00 : f32
    %608 = vector.broadcast %cst_151 : f32 to vector<8x30xf32>
    %609 = arith.addf %608, %607 : vector<8x30xf32>
    %610 = arith.divf %608, %609 : vector<8x30xf32>
    %611 = vector.extract_strided_slice %593 {offsets = [0, 60], sizes = [8, 30], strides = [1, 1]} : vector<8x90xf32> to vector<8x30xf32>
    %612 = vector.extract_strided_slice %594 {offsets = [0, 60], sizes = [8, 30], strides = [1, 1]} : vector<8x90xf32> to vector<8x30xf32>
    %613 = vector.broadcast %91 : vector<1x30xf32> to vector<8x30xf32>
    %614 = arith.addf %612, %613 : vector<8x30xf32>
    %615 = arith.mulf %602, %614 : vector<8x30xf32>
    %616 = arith.addf %611, %615 : vector<8x30xf32>
    %617 = math.tanh %616 : vector<8x30xf32>
    %cst_152 = arith.constant 1.000000e+00 : f32
    %618 = vector.broadcast %cst_152 : f32 to vector<8x30xf32>
    %619 = arith.subf %618, %610 : vector<8x30xf32>
    %620 = arith.mulf %619, %617 : vector<8x30xf32>
    %621 = arith.mulf %610, %560 : vector<8x30xf32>
    %622 = arith.addf %620, %621 : vector<8x30xf32>
    %cst_153 = arith.constant dense<0.000000e+00> : vector<8x90xf32>
    %623 = tpu.matmul %622, %92, %cst_153 {dimension_numbers = #tpu.dot_dimension_numbers<[1], [0], [0], [1], [0, 0, 1, 1], [], []>} : vector<8x30xf32>, vector<30x90xf32>, vector<8x90xf32> -> vector<8x90xf32>
    %624 = vector.broadcast %94 : vector<1x90xf32> to vector<8x90xf32>
    %625 = arith.addf %623, %624 : vector<8x90xf32>
    %cst_154 = arith.constant dense<0.000000e+00> : vector<8x90xf32>
    %626 = tpu.matmul %592, %93, %cst_154 {dimension_numbers = #tpu.dot_dimension_numbers<[1], [0], [0], [1], [0, 0, 1, 1], [], []>} : vector<8x30xf32>, vector<30x90xf32>, vector<8x90xf32> -> vector<8x90xf32>
    %627 = vector.extract_strided_slice %625 {offsets = [0, 0], sizes = [8, 30], strides = [1, 1]} : vector<8x90xf32> to vector<8x30xf32>
    %628 = vector.extract_strided_slice %626 {offsets = [0, 0], sizes = [8, 30], strides = [1, 1]} : vector<8x90xf32> to vector<8x30xf32>
    %629 = arith.addf %627, %628 : vector<8x30xf32>
    %630 = arith.negf %629 : vector<8x30xf32>
    %631 = math.exp %630 : vector<8x30xf32>
    %cst_155 = arith.constant 1.000000e+00 : f32
    %632 = vector.broadcast %cst_155 : f32 to vector<8x30xf32>
    %633 = arith.addf %632, %631 : vector<8x30xf32>
    %634 = arith.divf %632, %633 : vector<8x30xf32>
    %635 = vector.extract_strided_slice %625 {offsets = [0, 30], sizes = [8, 30], strides = [1, 1]} : vector<8x90xf32> to vector<8x30xf32>
    %636 = vector.extract_strided_slice %626 {offsets = [0, 30], sizes = [8, 30], strides = [1, 1]} : vector<8x90xf32> to vector<8x30xf32>
    %637 = arith.addf %635, %636 : vector<8x30xf32>
    %638 = arith.negf %637 : vector<8x30xf32>
    %639 = math.exp %638 : vector<8x30xf32>
    %cst_156 = arith.constant 1.000000e+00 : f32
    %640 = vector.broadcast %cst_156 : f32 to vector<8x30xf32>
    %641 = arith.addf %640, %639 : vector<8x30xf32>
    %642 = arith.divf %640, %641 : vector<8x30xf32>
    %643 = vector.extract_strided_slice %625 {offsets = [0, 60], sizes = [8, 30], strides = [1, 1]} : vector<8x90xf32> to vector<8x30xf32>
    %644 = vector.extract_strided_slice %626 {offsets = [0, 60], sizes = [8, 30], strides = [1, 1]} : vector<8x90xf32> to vector<8x30xf32>
    %645 = vector.broadcast %95 : vector<1x30xf32> to vector<8x30xf32>
    %646 = arith.addf %644, %645 : vector<8x30xf32>
    %647 = arith.mulf %634, %646 : vector<8x30xf32>
    %648 = arith.addf %643, %647 : vector<8x30xf32>
    %649 = math.tanh %648 : vector<8x30xf32>
    %cst_157 = arith.constant 1.000000e+00 : f32
    %650 = vector.broadcast %cst_157 : f32 to vector<8x30xf32>
    %651 = arith.subf %650, %642 : vector<8x30xf32>
    %652 = arith.mulf %651, %649 : vector<8x30xf32>
    %653 = arith.mulf %642, %592 : vector<8x30xf32>
    %654 = arith.addf %652, %653 : vector<8x30xf32>
    %655 = vector.extract_strided_slice %83 {offsets = [48, 0], sizes = [8, 90], strides = [1, 1]} : vector<80x90xf32> to vector<8x90xf32>
    %cst_158 = arith.constant dense<0.000000e+00> : vector<8x90xf32>
    %656 = tpu.matmul %622, %90, %cst_158 {dimension_numbers = #tpu.dot_dimension_numbers<[1], [0], [0], [1], [0, 0, 1, 1], [], []>} : vector<8x30xf32>, vector<30x90xf32>, vector<8x90xf32> -> vector<8x90xf32>
    %657 = vector.extract_strided_slice %655 {offsets = [0, 0], sizes = [8, 30], strides = [1, 1]} : vector<8x90xf32> to vector<8x30xf32>
    %658 = vector.extract_strided_slice %656 {offsets = [0, 0], sizes = [8, 30], strides = [1, 1]} : vector<8x90xf32> to vector<8x30xf32>
    %659 = arith.addf %657, %658 : vector<8x30xf32>
    %660 = arith.negf %659 : vector<8x30xf32>
    %661 = math.exp %660 : vector<8x30xf32>
    %cst_159 = arith.constant 1.000000e+00 : f32
    %662 = vector.broadcast %cst_159 : f32 to vector<8x30xf32>
    %663 = arith.addf %662, %661 : vector<8x30xf32>
    %664 = arith.divf %662, %663 : vector<8x30xf32>
    %665 = vector.extract_strided_slice %655 {offsets = [0, 30], sizes = [8, 30], strides = [1, 1]} : vector<8x90xf32> to vector<8x30xf32>
    %666 = vector.extract_strided_slice %656 {offsets = [0, 30], sizes = [8, 30], strides = [1, 1]} : vector<8x90xf32> to vector<8x30xf32>
    %667 = arith.addf %665, %666 : vector<8x30xf32>
    %668 = arith.negf %667 : vector<8x30xf32>
    %669 = math.exp %668 : vector<8x30xf32>
    %cst_160 = arith.constant 1.000000e+00 : f32
    %670 = vector.broadcast %cst_160 : f32 to vector<8x30xf32>
    %671 = arith.addf %670, %669 : vector<8x30xf32>
    %672 = arith.divf %670, %671 : vector<8x30xf32>
    %673 = vector.extract_strided_slice %655 {offsets = [0, 60], sizes = [8, 30], strides = [1, 1]} : vector<8x90xf32> to vector<8x30xf32>
    %674 = vector.extract_strided_slice %656 {offsets = [0, 60], sizes = [8, 30], strides = [1, 1]} : vector<8x90xf32> to vector<8x30xf32>
    %675 = vector.broadcast %91 : vector<1x30xf32> to vector<8x30xf32>
    %676 = arith.addf %674, %675 : vector<8x30xf32>
    %677 = arith.mulf %664, %676 : vector<8x30xf32>
    %678 = arith.addf %673, %677 : vector<8x30xf32>
    %679 = math.tanh %678 : vector<8x30xf32>
    %cst_161 = arith.constant 1.000000e+00 : f32
    %680 = vector.broadcast %cst_161 : f32 to vector<8x30xf32>
    %681 = arith.subf %680, %672 : vector<8x30xf32>
    %682 = arith.mulf %681, %679 : vector<8x30xf32>
    %683 = arith.mulf %672, %622 : vector<8x30xf32>
    %684 = arith.addf %682, %683 : vector<8x30xf32>
    %cst_162 = arith.constant dense<0.000000e+00> : vector<8x90xf32>
    %685 = tpu.matmul %684, %92, %cst_162 {dimension_numbers = #tpu.dot_dimension_numbers<[1], [0], [0], [1], [0, 0, 1, 1], [], []>} : vector<8x30xf32>, vector<30x90xf32>, vector<8x90xf32> -> vector<8x90xf32>
    %686 = vector.broadcast %94 : vector<1x90xf32> to vector<8x90xf32>
    %687 = arith.addf %685, %686 : vector<8x90xf32>
    %cst_163 = arith.constant dense<0.000000e+00> : vector<8x90xf32>
    %688 = tpu.matmul %654, %93, %cst_163 {dimension_numbers = #tpu.dot_dimension_numbers<[1], [0], [0], [1], [0, 0, 1, 1], [], []>} : vector<8x30xf32>, vector<30x90xf32>, vector<8x90xf32> -> vector<8x90xf32>
    %689 = vector.extract_strided_slice %687 {offsets = [0, 0], sizes = [8, 30], strides = [1, 1]} : vector<8x90xf32> to vector<8x30xf32>
    %690 = vector.extract_strided_slice %688 {offsets = [0, 0], sizes = [8, 30], strides = [1, 1]} : vector<8x90xf32> to vector<8x30xf32>
    %691 = arith.addf %689, %690 : vector<8x30xf32>
    %692 = arith.negf %691 : vector<8x30xf32>
    %693 = math.exp %692 : vector<8x30xf32>
    %cst_164 = arith.constant 1.000000e+00 : f32
    %694 = vector.broadcast %cst_164 : f32 to vector<8x30xf32>
    %695 = arith.addf %694, %693 : vector<8x30xf32>
    %696 = arith.divf %694, %695 : vector<8x30xf32>
    %697 = vector.extract_strided_slice %687 {offsets = [0, 30], sizes = [8, 30], strides = [1, 1]} : vector<8x90xf32> to vector<8x30xf32>
    %698 = vector.extract_strided_slice %688 {offsets = [0, 30], sizes = [8, 30], strides = [1, 1]} : vector<8x90xf32> to vector<8x30xf32>
    %699 = arith.addf %697, %698 : vector<8x30xf32>
    %700 = arith.negf %699 : vector<8x30xf32>
    %701 = math.exp %700 : vector<8x30xf32>
    %cst_165 = arith.constant 1.000000e+00 : f32
    %702 = vector.broadcast %cst_165 : f32 to vector<8x30xf32>
    %703 = arith.addf %702, %701 : vector<8x30xf32>
    %704 = arith.divf %702, %703 : vector<8x30xf32>
    %705 = vector.extract_strided_slice %687 {offsets = [0, 60], sizes = [8, 30], strides = [1, 1]} : vector<8x90xf32> to vector<8x30xf32>
    %706 = vector.extract_strided_slice %688 {offsets = [0, 60], sizes = [8, 30], strides = [1, 1]} : vector<8x90xf32> to vector<8x30xf32>
    %707 = vector.broadcast %95 : vector<1x30xf32> to vector<8x30xf32>
    %708 = arith.addf %706, %707 : vector<8x30xf32>
    %709 = arith.mulf %696, %708 : vector<8x30xf32>
    %710 = arith.addf %705, %709 : vector<8x30xf32>
    %711 = math.tanh %710 : vector<8x30xf32>
    %cst_166 = arith.constant 1.000000e+00 : f32
    %712 = vector.broadcast %cst_166 : f32 to vector<8x30xf32>
    %713 = arith.subf %712, %704 : vector<8x30xf32>
    %714 = arith.mulf %713, %711 : vector<8x30xf32>
    %715 = arith.mulf %704, %654 : vector<8x30xf32>
    %716 = arith.addf %714, %715 : vector<8x30xf32>
    %717 = vector.extract_strided_slice %83 {offsets = [56, 0], sizes = [8, 90], strides = [1, 1]} : vector<80x90xf32> to vector<8x90xf32>
    %cst_167 = arith.constant dense<0.000000e+00> : vector<8x90xf32>
    %718 = tpu.matmul %684, %90, %cst_167 {dimension_numbers = #tpu.dot_dimension_numbers<[1], [0], [0], [1], [0, 0, 1, 1], [], []>} : vector<8x30xf32>, vector<30x90xf32>, vector<8x90xf32> -> vector<8x90xf32>
    %719 = vector.extract_strided_slice %717 {offsets = [0, 0], sizes = [8, 30], strides = [1, 1]} : vector<8x90xf32> to vector<8x30xf32>
    %720 = vector.extract_strided_slice %718 {offsets = [0, 0], sizes = [8, 30], strides = [1, 1]} : vector<8x90xf32> to vector<8x30xf32>
    %721 = arith.addf %719, %720 : vector<8x30xf32>
    %722 = arith.negf %721 : vector<8x30xf32>
    %723 = math.exp %722 : vector<8x30xf32>
    %cst_168 = arith.constant 1.000000e+00 : f32
    %724 = vector.broadcast %cst_168 : f32 to vector<8x30xf32>
    %725 = arith.addf %724, %723 : vector<8x30xf32>
    %726 = arith.divf %724, %725 : vector<8x30xf32>
    %727 = vector.extract_strided_slice %717 {offsets = [0, 30], sizes = [8, 30], strides = [1, 1]} : vector<8x90xf32> to vector<8x30xf32>
    %728 = vector.extract_strided_slice %718 {offsets = [0, 30], sizes = [8, 30], strides = [1, 1]} : vector<8x90xf32> to vector<8x30xf32>
    %729 = arith.addf %727, %728 : vector<8x30xf32>
    %730 = arith.negf %729 : vector<8x30xf32>
    %731 = math.exp %730 : vector<8x30xf32>
    %cst_169 = arith.constant 1.000000e+00 : f32
    %732 = vector.broadcast %cst_169 : f32 to vector<8x30xf32>
    %733 = arith.addf %732, %731 : vector<8x30xf32>
    %734 = arith.divf %732, %733 : vector<8x30xf32>
    %735 = vector.extract_strided_slice %717 {offsets = [0, 60], sizes = [8, 30], strides = [1, 1]} : vector<8x90xf32> to vector<8x30xf32>
    %736 = vector.extract_strided_slice %718 {offsets = [0, 60], sizes = [8, 30], strides = [1, 1]} : vector<8x90xf32> to vector<8x30xf32>
    %737 = vector.broadcast %91 : vector<1x30xf32> to vector<8x30xf32>
    %738 = arith.addf %736, %737 : vector<8x30xf32>
    %739 = arith.mulf %726, %738 : vector<8x30xf32>
    %740 = arith.addf %735, %739 : vector<8x30xf32>
    %741 = math.tanh %740 : vector<8x30xf32>
    %cst_170 = arith.constant 1.000000e+00 : f32
    %742 = vector.broadcast %cst_170 : f32 to vector<8x30xf32>
    %743 = arith.subf %742, %734 : vector<8x30xf32>
    %744 = arith.mulf %743, %741 : vector<8x30xf32>
    %745 = arith.mulf %734, %684 : vector<8x30xf32>
    %746 = arith.addf %744, %745 : vector<8x30xf32>
    %cst_171 = arith.constant dense<0.000000e+00> : vector<8x90xf32>
    %747 = tpu.matmul %746, %92, %cst_171 {dimension_numbers = #tpu.dot_dimension_numbers<[1], [0], [0], [1], [0, 0, 1, 1], [], []>} : vector<8x30xf32>, vector<30x90xf32>, vector<8x90xf32> -> vector<8x90xf32>
    %748 = vector.broadcast %94 : vector<1x90xf32> to vector<8x90xf32>
    %749 = arith.addf %747, %748 : vector<8x90xf32>
    %cst_172 = arith.constant dense<0.000000e+00> : vector<8x90xf32>
    %750 = tpu.matmul %716, %93, %cst_172 {dimension_numbers = #tpu.dot_dimension_numbers<[1], [0], [0], [1], [0, 0, 1, 1], [], []>} : vector<8x30xf32>, vector<30x90xf32>, vector<8x90xf32> -> vector<8x90xf32>
    %751 = vector.extract_strided_slice %749 {offsets = [0, 0], sizes = [8, 30], strides = [1, 1]} : vector<8x90xf32> to vector<8x30xf32>
    %752 = vector.extract_strided_slice %750 {offsets = [0, 0], sizes = [8, 30], strides = [1, 1]} : vector<8x90xf32> to vector<8x30xf32>
    %753 = arith.addf %751, %752 : vector<8x30xf32>
    %754 = arith.negf %753 : vector<8x30xf32>
    %755 = math.exp %754 : vector<8x30xf32>
    %cst_173 = arith.constant 1.000000e+00 : f32
    %756 = vector.broadcast %cst_173 : f32 to vector<8x30xf32>
    %757 = arith.addf %756, %755 : vector<8x30xf32>
    %758 = arith.divf %756, %757 : vector<8x30xf32>
    %759 = vector.extract_strided_slice %749 {offsets = [0, 30], sizes = [8, 30], strides = [1, 1]} : vector<8x90xf32> to vector<8x30xf32>
    %760 = vector.extract_strided_slice %750 {offsets = [0, 30], sizes = [8, 30], strides = [1, 1]} : vector<8x90xf32> to vector<8x30xf32>
    %761 = arith.addf %759, %760 : vector<8x30xf32>
    %762 = arith.negf %761 : vector<8x30xf32>
    %763 = math.exp %762 : vector<8x30xf32>
    %cst_174 = arith.constant 1.000000e+00 : f32
    %764 = vector.broadcast %cst_174 : f32 to vector<8x30xf32>
    %765 = arith.addf %764, %763 : vector<8x30xf32>
    %766 = arith.divf %764, %765 : vector<8x30xf32>
    %767 = vector.extract_strided_slice %749 {offsets = [0, 60], sizes = [8, 30], strides = [1, 1]} : vector<8x90xf32> to vector<8x30xf32>
    %768 = vector.extract_strided_slice %750 {offsets = [0, 60], sizes = [8, 30], strides = [1, 1]} : vector<8x90xf32> to vector<8x30xf32>
    %769 = vector.broadcast %95 : vector<1x30xf32> to vector<8x30xf32>
    %770 = arith.addf %768, %769 : vector<8x30xf32>
    %771 = arith.mulf %758, %770 : vector<8x30xf32>
    %772 = arith.addf %767, %771 : vector<8x30xf32>
    %773 = math.tanh %772 : vector<8x30xf32>
    %cst_175 = arith.constant 1.000000e+00 : f32
    %774 = vector.broadcast %cst_175 : f32 to vector<8x30xf32>
    %775 = arith.subf %774, %766 : vector<8x30xf32>
    %776 = arith.mulf %775, %773 : vector<8x30xf32>
    %777 = arith.mulf %766, %716 : vector<8x30xf32>
    %778 = arith.addf %776, %777 : vector<8x30xf32>
    %779 = vector.extract_strided_slice %83 {offsets = [64, 0], sizes = [8, 90], strides = [1, 1]} : vector<80x90xf32> to vector<8x90xf32>
    %cst_176 = arith.constant dense<0.000000e+00> : vector<8x90xf32>
    %780 = tpu.matmul %746, %90, %cst_176 {dimension_numbers = #tpu.dot_dimension_numbers<[1], [0], [0], [1], [0, 0, 1, 1], [], []>} : vector<8x30xf32>, vector<30x90xf32>, vector<8x90xf32> -> vector<8x90xf32>
    %781 = vector.extract_strided_slice %779 {offsets = [0, 0], sizes = [8, 30], strides = [1, 1]} : vector<8x90xf32> to vector<8x30xf32>
    %782 = vector.extract_strided_slice %780 {offsets = [0, 0], sizes = [8, 30], strides = [1, 1]} : vector<8x90xf32> to vector<8x30xf32>
    %783 = arith.addf %781, %782 : vector<8x30xf32>
    %784 = arith.negf %783 : vector<8x30xf32>
    %785 = math.exp %784 : vector<8x30xf32>
    %cst_177 = arith.constant 1.000000e+00 : f32
    %786 = vector.broadcast %cst_177 : f32 to vector<8x30xf32>
    %787 = arith.addf %786, %785 : vector<8x30xf32>
    %788 = arith.divf %786, %787 : vector<8x30xf32>
    %789 = vector.extract_strided_slice %779 {offsets = [0, 30], sizes = [8, 30], strides = [1, 1]} : vector<8x90xf32> to vector<8x30xf32>
    %790 = vector.extract_strided_slice %780 {offsets = [0, 30], sizes = [8, 30], strides = [1, 1]} : vector<8x90xf32> to vector<8x30xf32>
    %791 = arith.addf %789, %790 : vector<8x30xf32>
    %792 = arith.negf %791 : vector<8x30xf32>
    %793 = math.exp %792 : vector<8x30xf32>
    %cst_178 = arith.constant 1.000000e+00 : f32
    %794 = vector.broadcast %cst_178 : f32 to vector<8x30xf32>
    %795 = arith.addf %794, %793 : vector<8x30xf32>
    %796 = arith.divf %794, %795 : vector<8x30xf32>
    %797 = vector.extract_strided_slice %779 {offsets = [0, 60], sizes = [8, 30], strides = [1, 1]} : vector<8x90xf32> to vector<8x30xf32>
    %798 = vector.extract_strided_slice %780 {offsets = [0, 60], sizes = [8, 30], strides = [1, 1]} : vector<8x90xf32> to vector<8x30xf32>
    %799 = vector.broadcast %91 : vector<1x30xf32> to vector<8x30xf32>
    %800 = arith.addf %798, %799 : vector<8x30xf32>
    %801 = arith.mulf %788, %800 : vector<8x30xf32>
    %802 = arith.addf %797, %801 : vector<8x30xf32>
    %803 = math.tanh %802 : vector<8x30xf32>
    %cst_179 = arith.constant 1.000000e+00 : f32
    %804 = vector.broadcast %cst_179 : f32 to vector<8x30xf32>
    %805 = arith.subf %804, %796 : vector<8x30xf32>
    %806 = arith.mulf %805, %803 : vector<8x30xf32>
    %807 = arith.mulf %796, %746 : vector<8x30xf32>
    %808 = arith.addf %806, %807 : vector<8x30xf32>
    %cst_180 = arith.constant dense<0.000000e+00> : vector<8x90xf32>
    %809 = tpu.matmul %808, %92, %cst_180 {dimension_numbers = #tpu.dot_dimension_numbers<[1], [0], [0], [1], [0, 0, 1, 1], [], []>} : vector<8x30xf32>, vector<30x90xf32>, vector<8x90xf32> -> vector<8x90xf32>
    %810 = vector.broadcast %94 : vector<1x90xf32> to vector<8x90xf32>
    %811 = arith.addf %809, %810 : vector<8x90xf32>
    %cst_181 = arith.constant dense<0.000000e+00> : vector<8x90xf32>
    %812 = tpu.matmul %778, %93, %cst_181 {dimension_numbers = #tpu.dot_dimension_numbers<[1], [0], [0], [1], [0, 0, 1, 1], [], []>} : vector<8x30xf32>, vector<30x90xf32>, vector<8x90xf32> -> vector<8x90xf32>
    %813 = vector.extract_strided_slice %811 {offsets = [0, 0], sizes = [8, 30], strides = [1, 1]} : vector<8x90xf32> to vector<8x30xf32>
    %814 = vector.extract_strided_slice %812 {offsets = [0, 0], sizes = [8, 30], strides = [1, 1]} : vector<8x90xf32> to vector<8x30xf32>
    %815 = arith.addf %813, %814 : vector<8x30xf32>
    %816 = arith.negf %815 : vector<8x30xf32>
    %817 = math.exp %816 : vector<8x30xf32>
    %cst_182 = arith.constant 1.000000e+00 : f32
    %818 = vector.broadcast %cst_182 : f32 to vector<8x30xf32>
    %819 = arith.addf %818, %817 : vector<8x30xf32>
    %820 = arith.divf %818, %819 : vector<8x30xf32>
    %821 = vector.extract_strided_slice %811 {offsets = [0, 30], sizes = [8, 30], strides = [1, 1]} : vector<8x90xf32> to vector<8x30xf32>
    %822 = vector.extract_strided_slice %812 {offsets = [0, 30], sizes = [8, 30], strides = [1, 1]} : vector<8x90xf32> to vector<8x30xf32>
    %823 = arith.addf %821, %822 : vector<8x30xf32>
    %824 = arith.negf %823 : vector<8x30xf32>
    %825 = math.exp %824 : vector<8x30xf32>
    %cst_183 = arith.constant 1.000000e+00 : f32
    %826 = vector.broadcast %cst_183 : f32 to vector<8x30xf32>
    %827 = arith.addf %826, %825 : vector<8x30xf32>
    %828 = arith.divf %826, %827 : vector<8x30xf32>
    %829 = vector.extract_strided_slice %811 {offsets = [0, 60], sizes = [8, 30], strides = [1, 1]} : vector<8x90xf32> to vector<8x30xf32>
    %830 = vector.extract_strided_slice %812 {offsets = [0, 60], sizes = [8, 30], strides = [1, 1]} : vector<8x90xf32> to vector<8x30xf32>
    %831 = vector.broadcast %95 : vector<1x30xf32> to vector<8x30xf32>
    %832 = arith.addf %830, %831 : vector<8x30xf32>
    %833 = arith.mulf %820, %832 : vector<8x30xf32>
    %834 = arith.addf %829, %833 : vector<8x30xf32>
    %835 = math.tanh %834 : vector<8x30xf32>
    %cst_184 = arith.constant 1.000000e+00 : f32
    %836 = vector.broadcast %cst_184 : f32 to vector<8x30xf32>
    %837 = arith.subf %836, %828 : vector<8x30xf32>
    %838 = arith.mulf %837, %835 : vector<8x30xf32>
    %839 = arith.mulf %828, %778 : vector<8x30xf32>
    %840 = arith.addf %838, %839 : vector<8x30xf32>
    %841 = vector.extract_strided_slice %83 {offsets = [72, 0], sizes = [8, 90], strides = [1, 1]} : vector<80x90xf32> to vector<8x90xf32>
    %cst_185 = arith.constant dense<0.000000e+00> : vector<8x90xf32>
    %842 = tpu.matmul %808, %90, %cst_185 {dimension_numbers = #tpu.dot_dimension_numbers<[1], [0], [0], [1], [0, 0, 1, 1], [], []>} : vector<8x30xf32>, vector<30x90xf32>, vector<8x90xf32> -> vector<8x90xf32>
    %843 = vector.extract_strided_slice %841 {offsets = [0, 0], sizes = [8, 30], strides = [1, 1]} : vector<8x90xf32> to vector<8x30xf32>
    %844 = vector.extract_strided_slice %842 {offsets = [0, 0], sizes = [8, 30], strides = [1, 1]} : vector<8x90xf32> to vector<8x30xf32>
    %845 = arith.addf %843, %844 : vector<8x30xf32>
    %846 = arith.negf %845 : vector<8x30xf32>
    %847 = math.exp %846 : vector<8x30xf32>
    %cst_186 = arith.constant 1.000000e+00 : f32
    %848 = vector.broadcast %cst_186 : f32 to vector<8x30xf32>
    %849 = arith.addf %848, %847 : vector<8x30xf32>
    %850 = arith.divf %848, %849 : vector<8x30xf32>
    %851 = vector.extract_strided_slice %841 {offsets = [0, 30], sizes = [8, 30], strides = [1, 1]} : vector<8x90xf32> to vector<8x30xf32>
    %852 = vector.extract_strided_slice %842 {offsets = [0, 30], sizes = [8, 30], strides = [1, 1]} : vector<8x90xf32> to vector<8x30xf32>
    %853 = arith.addf %851, %852 : vector<8x30xf32>
    %854 = arith.negf %853 : vector<8x30xf32>
    %855 = math.exp %854 : vector<8x30xf32>
    %cst_187 = arith.constant 1.000000e+00 : f32
    %856 = vector.broadcast %cst_187 : f32 to vector<8x30xf32>
    %857 = arith.addf %856, %855 : vector<8x30xf32>
    %858 = arith.divf %856, %857 : vector<8x30xf32>
    %859 = vector.extract_strided_slice %841 {offsets = [0, 60], sizes = [8, 30], strides = [1, 1]} : vector<8x90xf32> to vector<8x30xf32>
    %860 = vector.extract_strided_slice %842 {offsets = [0, 60], sizes = [8, 30], strides = [1, 1]} : vector<8x90xf32> to vector<8x30xf32>
    %861 = vector.broadcast %91 : vector<1x30xf32> to vector<8x30xf32>
    %862 = arith.addf %860, %861 : vector<8x30xf32>
    %863 = arith.mulf %850, %862 : vector<8x30xf32>
    %864 = arith.addf %859, %863 : vector<8x30xf32>
    %865 = math.tanh %864 : vector<8x30xf32>
    %cst_188 = arith.constant 1.000000e+00 : f32
    %866 = vector.broadcast %cst_188 : f32 to vector<8x30xf32>
    %867 = arith.subf %866, %858 : vector<8x30xf32>
    %868 = arith.mulf %867, %865 : vector<8x30xf32>
    %869 = arith.mulf %858, %808 : vector<8x30xf32>
    %870 = arith.addf %868, %869 : vector<8x30xf32>
    %cst_189 = arith.constant dense<0.000000e+00> : vector<8x90xf32>
    %871 = tpu.matmul %870, %92, %cst_189 {dimension_numbers = #tpu.dot_dimension_numbers<[1], [0], [0], [1], [0, 0, 1, 1], [], []>} : vector<8x30xf32>, vector<30x90xf32>, vector<8x90xf32> -> vector<8x90xf32>
    %872 = vector.broadcast %94 : vector<1x90xf32> to vector<8x90xf32>
    %873 = arith.addf %871, %872 : vector<8x90xf32>
    %cst_190 = arith.constant dense<0.000000e+00> : vector<8x90xf32>
    %874 = tpu.matmul %840, %93, %cst_190 {dimension_numbers = #tpu.dot_dimension_numbers<[1], [0], [0], [1], [0, 0, 1, 1], [], []>} : vector<8x30xf32>, vector<30x90xf32>, vector<8x90xf32> -> vector<8x90xf32>
    %875 = vector.extract_strided_slice %873 {offsets = [0, 0], sizes = [8, 30], strides = [1, 1]} : vector<8x90xf32> to vector<8x30xf32>
    %876 = vector.extract_strided_slice %874 {offsets = [0, 0], sizes = [8, 30], strides = [1, 1]} : vector<8x90xf32> to vector<8x30xf32>
    %877 = arith.addf %875, %876 : vector<8x30xf32>
    %878 = arith.negf %877 : vector<8x30xf32>
    %879 = math.exp %878 : vector<8x30xf32>
    %cst_191 = arith.constant 1.000000e+00 : f32
    %880 = vector.broadcast %cst_191 : f32 to vector<8x30xf32>
    %881 = arith.addf %880, %879 : vector<8x30xf32>
    %882 = arith.divf %880, %881 : vector<8x30xf32>
    %883 = vector.extract_strided_slice %873 {offsets = [0, 30], sizes = [8, 30], strides = [1, 1]} : vector<8x90xf32> to vector<8x30xf32>
    %884 = vector.extract_strided_slice %874 {offsets = [0, 30], sizes = [8, 30], strides = [1, 1]} : vector<8x90xf32> to vector<8x30xf32>
    %885 = arith.addf %883, %884 : vector<8x30xf32>
    %886 = arith.negf %885 : vector<8x30xf32>
    %887 = math.exp %886 : vector<8x30xf32>
    %cst_192 = arith.constant 1.000000e+00 : f32
    %888 = vector.broadcast %cst_192 : f32 to vector<8x30xf32>
    %889 = arith.addf %888, %887 : vector<8x30xf32>
    %890 = arith.divf %888, %889 : vector<8x30xf32>
    %891 = vector.extract_strided_slice %873 {offsets = [0, 60], sizes = [8, 30], strides = [1, 1]} : vector<8x90xf32> to vector<8x30xf32>
    %892 = vector.extract_strided_slice %874 {offsets = [0, 60], sizes = [8, 30], strides = [1, 1]} : vector<8x90xf32> to vector<8x30xf32>
    %893 = vector.broadcast %95 : vector<1x30xf32> to vector<8x30xf32>
    %894 = arith.addf %892, %893 : vector<8x30xf32>
    %895 = arith.mulf %882, %894 : vector<8x30xf32>
    %896 = arith.addf %891, %895 : vector<8x30xf32>
    %897 = math.tanh %896 : vector<8x30xf32>
    %cst_193 = arith.constant 1.000000e+00 : f32
    %898 = vector.broadcast %cst_193 : f32 to vector<8x30xf32>
    %899 = arith.subf %898, %890 : vector<8x30xf32>
    %900 = arith.mulf %899, %897 : vector<8x30xf32>
    %901 = arith.mulf %890, %840 : vector<8x30xf32>
    %902 = arith.addf %900, %901 : vector<8x30xf32>
    %c0_194 = arith.constant 0 : index
    %c0_195 = arith.constant 0 : index
    %903 = vector.load %arg27[%c0_194, %c0_195] : memref<30x32xf32, #tpu.memory_space<vmem>>, vector<30x32xf32>
    %cst_196 = arith.constant dense<0.000000e+00> : vector<8x32xf32>
    %904 = tpu.matmul %468, %903, %cst_196 {dimension_numbers = #tpu.dot_dimension_numbers<[1], [0], [0], [1], [0, 0, 1, 1], [], []>} : vector<8x30xf32>, vector<30x32xf32>, vector<8x32xf32> -> vector<8x32xf32>
    %c0_197 = arith.constant 0 : index
    %c0_198 = arith.constant 0 : index
    %905 = vector.load %arg28[%c0_197, %c0_198] : memref<30x32xf32, #tpu.memory_space<vmem>>, vector<30x32xf32>
    %cst_199 = arith.constant dense<0.000000e+00> : vector<8x32xf32>
    %906 = tpu.matmul %902, %905, %cst_199 {dimension_numbers = #tpu.dot_dimension_numbers<[1], [0], [0], [1], [0, 0, 1, 1], [], []>} : vector<8x30xf32>, vector<30x32xf32>, vector<8x32xf32> -> vector<8x32xf32>
    %907 = arith.addf %904, %906 : vector<8x32xf32>
    %c0_200 = arith.constant 0 : index
    %c0_201 = arith.constant 0 : index
    %908 = vector.load %arg29[%c0_200, %c0_201] : memref<1x32xf32, #tpu.memory_space<vmem>>, vector<1x32xf32>
    %909 = vector.broadcast %908 : vector<1x32xf32> to vector<8x32xf32>
    %910 = arith.addf %907, %909 : vector<8x32xf32>
    %cst_202 = arith.constant 0.000000e+00 : f32
    %911 = vector.broadcast %cst_202 : f32 to vector<8x32xf32>
    %912 = arith.maximumf %910, %911 : vector<8x32xf32>
    %c0_203 = arith.constant 0 : index
    %c0_204 = arith.constant 0 : index
    %913 = vector.load %arg30[%c0_203, %c0_204] : memref<32x1xf32, #tpu.memory_space<vmem>>, vector<32x1xf32>
    %cst_205 = arith.constant dense<0.000000e+00> : vector<8x1xf32>
    %914 = tpu.matmul %912, %913, %cst_205 {dimension_numbers = #tpu.dot_dimension_numbers<[1], [0], [0], [1], [0, 0, 1, 1], [], []>} : vector<8x32xf32>, vector<32x1xf32>, vector<8x1xf32> -> vector<8x1xf32>
    %c0_206 = arith.constant 0 : index
    %c0_207 = arith.constant 0 : index
    %915 = vector.load %arg31[%c0_206, %c0_207] : memref<1x1xf32, #tpu.memory_space<vmem>>, vector<1x1xf32>
    %916 = vector.broadcast %915 : vector<1x1xf32> to vector<8x1xf32>
    %917 = arith.addf %914, %916 : vector<8x1xf32>
    %c0_208 = arith.constant 0 : index
    %c0_209 = arith.constant 0 : index
    %c0_210 = arith.constant 0 : index
    %918 = vector.load %arg32[%c0_208, %c0_209, %c0_210] : memref<1x8x1xf32, #tpu.memory_space<vmem>>, vector<1x8x1xf32>
    %919 = vector.shape_cast %918 : vector<1x8x1xf32> to vector<8x1xf32>
    %920 = vector.shape_cast %917 : vector<8x1xf32> to vector<1x8x1xf32>
    tpu.vector_store %arg32[%c0_208, %c0_209, %c0_210], %920 {strides = array<i32>} : memref<1x8x1xf32, #tpu.memory_space<vmem>>, vector<1x8x1xf32>,
    return
  }
  func.func @transform_0(%arg0: i32) -> (i32, i32) {
    %c0_i32 = arith.constant 0 : i32
    %c0_i32_0 = arith.constant 0 : i32
    return %arg0, %c0_i32 : i32, i32
  }
  func.func @transform_1(%arg0: i32) -> (i32, i32) {
    %c0_i32 = arith.constant 0 : i32
    %c0_i32_0 = arith.constant 0 : i32
    %c0_i32_1 = arith.constant 0 : i32
    return %c0_i32, %c0_i32_0 : i32, i32
  }
  func.func @transform_2(%arg0: i32) -> (i32, i32) {
    %c0_i32 = arith.constant 0 : i32
    %c0_i32_0 = arith.constant 0 : i32
    %c0_i32_1 = arith.constant 0 : i32
    return %c0_i32, %c0_i32_0 : i32, i32
  }
  func.func @transform_3(%arg0: i32) -> (i32, i32) {
    %c0_i32 = arith.constant 0 : i32
    %c0_i32_0 = arith.constant 0 : i32
    %c0_i32_1 = arith.constant 0 : i32
    return %c0_i32, %c0_i32_0 : i32, i32
  }
  func.func @transform_4(%arg0: i32) -> (i32, i32) {
    %c0_i32 = arith.constant 0 : i32
    %c0_i32_0 = arith.constant 0 : i32
    %c0_i32_1 = arith.constant 0 : i32
    return %c0_i32, %c0_i32_0 : i32, i32
  }
  func.func @transform_5(%arg0: i32) -> (i32, i32) {
    %c0_i32 = arith.constant 0 : i32
    %c0_i32_0 = arith.constant 0 : i32
    %c0_i32_1 = arith.constant 0 : i32
    return %c0_i32, %c0_i32_0 : i32, i32
  }
  func.func @transform_6(%arg0: i32) -> (i32, i32) {
    %c0_i32 = arith.constant 0 : i32
    %c0_i32_0 = arith.constant 0 : i32
    %c0_i32_1 = arith.constant 0 : i32
    return %c0_i32, %c0_i32_0 : i32, i32
  }
  func.func @transform_7(%arg0: i32) -> (i32, i32) {
    %c0_i32 = arith.constant 0 : i32
    %c0_i32_0 = arith.constant 0 : i32
    %c0_i32_1 = arith.constant 0 : i32
    return %c0_i32, %c0_i32_0 : i32, i32
  }
  func.func @transform_8(%arg0: i32) -> (i32, i32) {
    %c0_i32 = arith.constant 0 : i32
    %c0_i32_0 = arith.constant 0 : i32
    %c0_i32_1 = arith.constant 0 : i32
    return %c0_i32, %c0_i32_0 : i32, i32
  }
  func.func @transform_9(%arg0: i32) -> (i32, i32) {
    %c0_i32 = arith.constant 0 : i32
    %c0_i32_0 = arith.constant 0 : i32
    %c0_i32_1 = arith.constant 0 : i32
    return %c0_i32, %c0_i32_0 : i32, i32
  }
  func.func @transform_10(%arg0: i32) -> (i32, i32) {
    %c0_i32 = arith.constant 0 : i32
    %c0_i32_0 = arith.constant 0 : i32
    %c0_i32_1 = arith.constant 0 : i32
    return %c0_i32, %c0_i32_0 : i32, i32
  }
  func.func @transform_11(%arg0: i32) -> (i32, i32) {
    %c0_i32 = arith.constant 0 : i32
    %c0_i32_0 = arith.constant 0 : i32
    %c0_i32_1 = arith.constant 0 : i32
    return %c0_i32, %c0_i32_0 : i32, i32
  }
  func.func @transform_12(%arg0: i32) -> (i32, i32) {
    %c0_i32 = arith.constant 0 : i32
    %c0_i32_0 = arith.constant 0 : i32
    %c0_i32_1 = arith.constant 0 : i32
    return %c0_i32, %c0_i32_0 : i32, i32
  }
  func.func @transform_13(%arg0: i32) -> (i32, i32) {
    %c0_i32 = arith.constant 0 : i32
    %c0_i32_0 = arith.constant 0 : i32
    %c0_i32_1 = arith.constant 0 : i32
    return %c0_i32, %c0_i32_0 : i32, i32
  }
  func.func @transform_14(%arg0: i32) -> (i32, i32) {
    %c0_i32 = arith.constant 0 : i32
    %c0_i32_0 = arith.constant 0 : i32
    %c0_i32_1 = arith.constant 0 : i32
    return %c0_i32, %c0_i32_0 : i32, i32
  }
  func.func @transform_15(%arg0: i32) -> (i32, i32) {
    %c0_i32 = arith.constant 0 : i32
    %c0_i32_0 = arith.constant 0 : i32
    %c0_i32_1 = arith.constant 0 : i32
    return %c0_i32, %c0_i32_0 : i32, i32
  }
  func.func @transform_16(%arg0: i32) -> (i32, i32) {
    %c0_i32 = arith.constant 0 : i32
    %c0_i32_0 = arith.constant 0 : i32
    %c0_i32_1 = arith.constant 0 : i32
    return %c0_i32, %c0_i32_0 : i32, i32
  }
  func.func @transform_17(%arg0: i32) -> (i32, i32) {
    %c0_i32 = arith.constant 0 : i32
    %c0_i32_0 = arith.constant 0 : i32
    %c0_i32_1 = arith.constant 0 : i32
    return %c0_i32, %c0_i32_0 : i32, i32
  }
  func.func @transform_18(%arg0: i32) -> (i32, i32) {
    %c0_i32 = arith.constant 0 : i32
    %c0_i32_0 = arith.constant 0 : i32
    %c0_i32_1 = arith.constant 0 : i32
    return %c0_i32, %c0_i32_0 : i32, i32
  }
  func.func @transform_19(%arg0: i32) -> (i32, i32) {
    %c0_i32 = arith.constant 0 : i32
    %c0_i32_0 = arith.constant 0 : i32
    %c0_i32_1 = arith.constant 0 : i32
    return %c0_i32, %c0_i32_0 : i32, i32
  }
  func.func @transform_20(%arg0: i32) -> (i32, i32) {
    %c0_i32 = arith.constant 0 : i32
    %c0_i32_0 = arith.constant 0 : i32
    %c0_i32_1 = arith.constant 0 : i32
    return %c0_i32, %c0_i32_0 : i32, i32
  }
  func.func @transform_21(%arg0: i32) -> (i32, i32) {
    %c0_i32 = arith.constant 0 : i32
    %c0_i32_0 = arith.constant 0 : i32
    %c0_i32_1 = arith.constant 0 : i32
    return %c0_i32, %c0_i32_0 : i32, i32
  }
  func.func @transform_22(%arg0: i32) -> (i32, i32) {
    %c0_i32 = arith.constant 0 : i32
    %c0_i32_0 = arith.constant 0 : i32
    %c0_i32_1 = arith.constant 0 : i32
    return %c0_i32, %c0_i32_0 : i32, i32
  }
  func.func @transform_23(%arg0: i32) -> (i32, i32) {
    %c0_i32 = arith.constant 0 : i32
    %c0_i32_0 = arith.constant 0 : i32
    %c0_i32_1 = arith.constant 0 : i32
    return %c0_i32, %c0_i32_0 : i32, i32
  }
  func.func @transform_24(%arg0: i32) -> (i32, i32) {
    %c0_i32 = arith.constant 0 : i32
    %c0_i32_0 = arith.constant 0 : i32
    %c0_i32_1 = arith.constant 0 : i32
    return %c0_i32, %c0_i32_0 : i32, i32
  }
  func.func @transform_25(%arg0: i32) -> (i32, i32) {
    %c0_i32 = arith.constant 0 : i32
    %c0_i32_0 = arith.constant 0 : i32
    %c0_i32_1 = arith.constant 0 : i32
    return %c0_i32, %c0_i32_0 : i32, i32
  }
  func.func @transform_26(%arg0: i32) -> (i32, i32) {
    %c0_i32 = arith.constant 0 : i32
    %c0_i32_0 = arith.constant 0 : i32
    %c0_i32_1 = arith.constant 0 : i32
    return %c0_i32, %c0_i32_0 : i32, i32
  }
  func.func @transform_27(%arg0: i32) -> (i32, i32) {
    %c0_i32 = arith.constant 0 : i32
    %c0_i32_0 = arith.constant 0 : i32
    %c0_i32_1 = arith.constant 0 : i32
    return %c0_i32, %c0_i32_0 : i32, i32
  }
  func.func @transform_28(%arg0: i32) -> (i32, i32) {
    %c0_i32 = arith.constant 0 : i32
    %c0_i32_0 = arith.constant 0 : i32
    %c0_i32_1 = arith.constant 0 : i32
    return %c0_i32, %c0_i32_0 : i32, i32
  }
  func.func @transform_29(%arg0: i32) -> (i32, i32) {
    %c0_i32 = arith.constant 0 : i32
    %c0_i32_0 = arith.constant 0 : i32
    %c0_i32_1 = arith.constant 0 : i32
    return %c0_i32, %c0_i32_0 : i32, i32
  }
  func.func @transform_30(%arg0: i32) -> (i32, i32) {
    %c0_i32 = arith.constant 0 : i32
    %c0_i32_0 = arith.constant 0 : i32
    %c0_i32_1 = arith.constant 0 : i32
    return %c0_i32, %c0_i32_0 : i32, i32
  }
  func.func @transform_31(%arg0: i32) -> (i32, i32, i32) {
    %c0_i32 = arith.constant 0 : i32
    %c0_i32_0 = arith.constant 0 : i32
    %c0_i32_1 = arith.constant 0 : i32
    return %arg0, %c0_i32, %c0_i32_0 : i32, i32, i32
  }
}

</mosaic_0001>

<llo_original>
// kernel: alphanet_forward.1
$region0: #{alphanet_forward.1}
  #allocation0 [shape = 'u32[]', space=smem, size = 0x4, offset = 0x4, fixed_abs, tag = 'smem constant byte address 0x4 - core index']
  #allocation1 [shape = 'u32[72,128]{1,0:T(1,128)}', space=vmem, size = 0x9000, scoped, tag = 'internal scratch']
  #allocation2 [shape = 'f32[1,1]{1,0:T(1,128)S(1)}', space=vmem, size = 0x200, scoped, tag = 'scoped memory for alphanet_forward.1']
  %s0 = inlined_call_operand.smem [shape: u32[32], index: -1, kind: input, shape index: {}]
  %s1 = sld [smem:[%s0]]
  %s2 = scalar_lea.smem %s0, 1
  %s3 = sld [smem:[%s2]]
  %s4 = scalar_lea.smem %s0, 2
  %s5 = sld [smem:[%s4]]
  %s6 = scalar_lea.smem %s0, 3
  %s7 = sld [smem:[%s6]]
  %s8 = scalar_lea.smem %s0, 4
  %s9 = sld [smem:[%s8]]
  %s10 = scalar_lea.smem %s0, 5
  %s11 = sld [smem:[%s10]]
  %s12 = scalar_lea.smem %s0, 6
  %s13 = sld [smem:[%s12]]
  %s14 = scalar_lea.smem %s0, 7
  %s15 = sld [smem:[%s14]]
  %s16 = scalar_lea.smem %s0, 8
  %s17 = sld [smem:[%s16]]
  %s18 = scalar_lea.smem %s0, 9
  %s19 = sld [smem:[%s18]]
  %s20 = scalar_lea.smem %s0, 10
  %s21 = sld [smem:[%s20]]
  %s22 = scalar_lea.smem %s0, 11
  %s23 = sld [smem:[%s22]]
  %s24 = scalar_lea.smem %s0, 12
  %s25 = sld [smem:[%s24]]
  %s26 = scalar_lea.smem %s0, 13
  %s27 = sld [smem:[%s26]]
  %s28 = scalar_lea.smem %s0, 14
  %s29 = sld [smem:[%s28]]
  %s30 = scalar_lea.smem %s0, 15
  %s31 = sld [smem:[%s30]]
  %s32 = scalar_lea.smem %s0, 16
  %s33 = sld [smem:[%s32]]
  %s34 = scalar_lea.smem %s0, 17
  %s35 = sld [smem:[%s34]]
  %s36 = scalar_lea.smem %s0, 18
  %s37 = sld [smem:[%s36]]
  %s38 = scalar_lea.smem %s0, 19
  %s39 = sld [smem:[%s38]]
  %s40 = scalar_lea.smem %s0, 20
  %s41 = sld [smem:[%s40]]
  %s42 = scalar_lea.smem %s0, 21
  %s43 = sld [smem:[%s42]]
  %s44 = scalar_lea.smem %s0, 22
  %s45 = sld [smem:[%s44]]
  %s46 = scalar_lea.smem %s0, 23
  %s47 = sld [smem:[%s46]]
  %s48 = scalar_lea.smem %s0, 24
  %s49 = sld [smem:[%s48]]
  %s50 = scalar_lea.smem %s0, 25
  %s51 = sld [smem:[%s50]]
  %s52 = scalar_lea.smem %s0, 26
  %s53 = sld [smem:[%s52]]
  %s54 = scalar_lea.smem %s0, 27
  %s55 = sld [smem:[%s54]]
  %s56 = scalar_lea.smem %s0, 28
  %s57 = sld [smem:[%s56]]
  %s58 = scalar_lea.smem %s0, 29
  %s59 = sld [smem:[%s58]]
  %s60 = scalar_lea.smem %s0, 30
  %s61 = sld [smem:[%s60]]
  %s62 = scalar_lea.smem %s0, 31
  %s63 = sld [smem:[%s62]]
  %s64 = sld [smem:[#allocation0]]
  $region134: #{alphanet_forward.1} parent=0
    _
  %s66 = ssub.s32 1, %s64
  %s67 = scalar_select 0, %s66, %s64
  %v68 = vstv %s61
  %69 = vst [vmem:[#allocation2] sm:$0x1] %v68
  // Predicated region
  $region2: #{alphanet_forward.1} parent=0 // pred_check
    _
  $region3: #{alphanet_forward.1} parent=0 // pred_check_branch
    %71 = sbr.rel (0) target = $region5
  $region4: #{alphanet_forward.1} parent=0 // pred_region
    _
  $region5: #{alphanet_forward.1} parent=0 // pred_fallthru
    _
  // Predicated region
  $region6: #{alphanet_forward.1} parent=0 // pred_check
    _
  $region7: #{alphanet_forward.1} parent=0 // pred_check_branch
    %73 = sbr.rel (0) target = $region9
  $region8: #{alphanet_forward.1} parent=0 // pred_region
    _
  $region9: #{alphanet_forward.1} parent=0 // pred_fallthru
    _
  // Predicated region
  $region10: #{alphanet_forward.1} parent=0 // pred_check
    _
  $region11: #{alphanet_forward.1} parent=0 // pred_check_branch
    %75 = sbr.rel (0) target = $region13
  $region12: #{alphanet_forward.1} parent=0 // pred_region
    _
  $region13: #{alphanet_forward.1} parent=0 // pred_fallthru
    _
  // Predicated region
  $region14: #{alphanet_forward.1} parent=0 // pred_check
    _
  $region15: #{alphanet_forward.1} parent=0 // pred_check_branch
    %77 = sbr.rel (0) target = $region17
  $region16: #{alphanet_forward.1} parent=0 // pred_region
    _
  $region17: #{alphanet_forward.1} parent=0 // pred_fallthru
    _
  // Predicated region
  $region18: #{alphanet_forward.1} parent=0 // pred_check
    _
  $region19: #{alphanet_forward.1} parent=0 // pred_check_branch
    %79 = sbr.rel (0) target = $region21
  $region20: #{alphanet_forward.1} parent=0 // pred_region
    _
  $region21: #{alphanet_forward.1} parent=0 // pred_fallthru
    _
  // Predicated region
  $region22: #{alphanet_forward.1} parent=0 // pred_check
    _
  $region23: #{alphanet_forward.1} parent=0 // pred_check_branch
    %81 = sbr.rel (0) target = $region25
  $region24: #{alphanet_forward.1} parent=0 // pred_region
    _
  $region25: #{alphanet_forward.1} parent=0 // pred_fallthru
    _
  // Predicated region
  $region26: #{alphanet_forward.1} parent=0 // pred_check
    _
  $region27: #{alphanet_forward.1} parent=0 // pred_check_branch
    %83 = sbr.rel (0) target = $region29
  $region28: #{alphanet_forward.1} parent=0 // pred_region
    _
  $region29: #{alphanet_forward.1} parent=0 // pred_fallthru
    _
  // Predicated region
  $region30: #{alphanet_forward.1} parent=0 // pred_check
    _
  $region31: #{alphanet_forward.1} parent=0 // pred_check_branch
    %85 = sbr.rel (0) target = $region33
  $region32: #{alphanet_forward.1} parent=0 // pred_region
    _
  $region33: #{alphanet_forward.1} parent=0 // pred_fallthru
    _
  // Predicated region
  $region34: #{alphanet_forward.1} parent=0 // pred_check
    _
  $region35: #{alphanet_forward.1} parent=0 // pred_check_branch
    %87 = sbr.rel (0) target = $region37
  $region36: #{alphanet_forward.1} parent=0 // pred_region
    _
  $region37: #{alphanet_forward.1} parent=0 // pred_fallthru
    _
  // Predicated region
  $region38: #{alphanet_forward.1} parent=0 // pred_check
    _
  $region39: #{alphanet_forward.1} parent=0 // pred_check_branch
    %89 = sbr.rel (0) target = $region41
  $region40: #{alphanet_forward.1} parent=0 // pred_region
    _
  $region41: #{alphanet_forward.1} parent=0 // pred_fallthru
    _
  // Predicated region
  $region42: #{alphanet_forward.1} parent=0 // pred_check
    _
  $region43: #{alphanet_forward.1} parent=0 // pred_check_branch
    %91 = sbr.rel (0) target = $region45
  $region44: #{alphanet_forward.1} parent=0 // pred_region
    _
  $region45: #{alphanet_forward.1} parent=0 // pred_fallthru
    _
  // Predicated region
  $region46: #{alphanet_forward.1} parent=0 // pred_check
    _
  $region47: #{alphanet_forward.1} parent=0 // pred_check_branch
    %93 = sbr.rel (0) target = $region49
  $region48: #{alphanet_forward.1} parent=0 // pred_region
    _
  $region49: #{alphanet_forward.1} parent=0 // pred_fallthru
    _
  // Predicated region
  $region50: #{alphanet_forward.1} parent=0 // pred_check
    _
  $region51: #{alphanet_forward.1} parent=0 // pred_check_branch
    %95 = sbr.rel (0) target = $region53
  $region52: #{alphanet_forward.1} parent=0 // pred_region
    _
  $region53: #{alphanet_forward.1} parent=0 // pred_fallthru
    _
  // Predicated region
  $region54: #{alphanet_forward.1} parent=0 // pred_check
    _
  $region55: #{alphanet_forward.1} parent=0 // pred_check_branch
    %97 = sbr.rel (0) target = $region57
  $region56: #{alphanet_forward.1} parent=0 // pred_region
    _
  $region57: #{alphanet_forward.1} parent=0 // pred_fallthru
    _
  // Predicated region
  $region58: #{alphanet_forward.1} parent=0 // pred_check
    _
  $region59: #{alphanet_forward.1} parent=0 // pred_check_branch
    %99 = sbr.rel (0) target = $region61
  $region60: #{alphanet_forward.1} parent=0 // pred_region
    _
  $region61: #{alphanet_forward.1} parent=0 // pred_fallthru
    _
  // Predicated region
  $region62: #{alphanet_forward.1} parent=0 // pred_check
    _
  $region63: #{alphanet_forward.1} parent=0 // pred_check_branch
    %101 = sbr.rel (0) target = $region65
  $region64: #{alphanet_forward.1} parent=0 // pred_region
    _
  $region65: #{alphanet_forward.1} parent=0 // pred_fallthru
    _
  // Predicated region
  $region66: #{alphanet_forward.1} parent=0 // pred_check
    _
  $region67: #{alphanet_forward.1} parent=0 // pred_check_branch
    %103 = sbr.rel (0) target = $region69
  $region68: #{alphanet_forward.1} parent=0 // pred_region
    _
  $region69: #{alphanet_forward.1} parent=0 // pred_fallthru
    _
  // Predicated region
  $region70: #{alphanet_forward.1} parent=0 // pred_check
    _
  $region71: #{alphanet_forward.1} parent=0 // pred_check_branch
    %105 = sbr.rel (0) target = $region73
  $region72: #{alphanet_forward.1} parent=0 // pred_region
    _
  $region73: #{alphanet_forward.1} parent=0 // pred_fallthru
    _
  // Predicated region
  $region74: #{alphanet_forward.1} parent=0 // pred_check
    _
  $region75: #{alphanet_forward.1} parent=0 // pred_check_branch
    %107 = sbr.rel (0) target = $region77
  $region76: #{alphanet_forward.1} parent=0 // pred_region
    _
  $region77: #{alphanet_forward.1} parent=0 // pred_fallthru
    _
  // Predicated region
  $region78: #{alphanet_forward.1} parent=0 // pred_check
    _
  $region79: #{alphanet_forward.1} parent=0 // pred_check_branch
    %109 = sbr.rel (0) target = $region81
  $region80: #{alphanet_forward.1} parent=0 // pred_region
    _
  $region81: #{alphanet_forward.1} parent=0 // pred_fallthru
    _
  // Predicated region
  $region82: #{alphanet_forward.1} parent=0 // pred_check
    _
  $region83: #{alphanet_forward.1} parent=0 // pred_check_branch
    %111 = sbr.rel (0) target = $region85
  $region84: #{alphanet_forward.1} parent=0 // pred_region
    _
  $region85: #{alphanet_forward.1} parent=0 // pred_fallthru
    _
  // Predicated region
  $region86: #{alphanet_forward.1} parent=0 // pred_check
    _
  $region87: #{alphanet_forward.1} parent=0 // pred_check_branch
    %113 = sbr.rel (0) target = $region89
  $region88: #{alphanet_forward.1} parent=0 // pred_region
    _
  $region89: #{alphanet_forward.1} parent=0 // pred_fallthru
    _
  // Predicated region
  $region90: #{alphanet_forward.1} parent=0 // pred_check
    _
  $region91: #{alphanet_forward.1} parent=0 // pred_check_branch
    %115 = sbr.rel (0) target = $region93
  $region92: #{alphanet_forward.1} parent=0 // pred_region
    _
  $region93: #{alphanet_forward.1} parent=0 // pred_fallthru
    _
  // Predicated region
  $region94: #{alphanet_forward.1} parent=0 // pred_check
    _
  $region95: #{alphanet_forward.1} parent=0 // pred_check_branch
    %117 = sbr.rel (0) target = $region97
  $region96: #{alphanet_forward.1} parent=0 // pred_region
    _
  $region97: #{alphanet_forward.1} parent=0 // pred_fallthru
    _
  // Predicated region
  $region98: #{alphanet_forward.1} parent=0 // pred_check
    _
  $region99: #{alphanet_forward.1} parent=0 // pred_check_branch
    %119 = sbr.rel (0) target = $region101
  $region100: #{alphanet_forward.1} parent=0 // pred_region
    _
  $region101: #{alphanet_forward.1} parent=0 // pred_fallthru
    _
  // Predicated region
  $region102: #{alphanet_forward.1} parent=0 // pred_check
    _
  $region103: #{alphanet_forward.1} parent=0 // pred_check_branch
    %121 = sbr.rel (0) target = $region105
  $region104: #{alphanet_forward.1} parent=0 // pred_region
    _
  $region105: #{alphanet_forward.1} parent=0 // pred_fallthru
    _
  // Predicated region
  $region106: #{alphanet_forward.1} parent=0 // pred_check
    _
  $region107: #{alphanet_forward.1} parent=0 // pred_check_branch
    %123 = sbr.rel (0) target = $region109
  $region108: #{alphanet_forward.1} parent=0 // pred_region
    _
  $region109: #{alphanet_forward.1} parent=0 // pred_fallthru
    _
  // Predicated region
  $region110: #{alphanet_forward.1} parent=0 // pred_check
    _
  $region111: #{alphanet_forward.1} parent=0 // pred_check_branch
    %125 = sbr.rel (0) target = $region113
  $region112: #{alphanet_forward.1} parent=0 // pred_region
    _
  $region113: #{alphanet_forward.1} parent=0 // pred_fallthru
    _
  // Predicated region
  $region114: #{alphanet_forward.1} parent=0 // pred_check
    _
  $region115: #{alphanet_forward.1} parent=0 // pred_check_branch
    %127 = sbr.rel (0) target = $region117
  $region116: #{alphanet_forward.1} parent=0 // pred_region
    _
  $region117: #{alphanet_forward.1} parent=0 // pred_fallthru
    _
  // Predicated region
  $region118: #{alphanet_forward.1} parent=0 // pred_check
    _
  $region119: #{alphanet_forward.1} parent=0 // pred_check_branch
    %129 = sbr.rel (0) target = $region121
  $region120: #{alphanet_forward.1} parent=0 // pred_region
    _
  $region121: #{alphanet_forward.1} parent=0 // pred_fallthru
    _
  // Predicated region
  $region122: #{alphanet_forward.1} parent=0 // pred_check
    _
  $region123: #{alphanet_forward.1} parent=0 // pred_check_branch
    %131 = sbr.rel (0) target = $region125
  $region124: #{alphanet_forward.1} parent=0 // pred_region
    _
  $region125: #{alphanet_forward.1} parent=0 // pred_fallthru
    _
  %v132 = vld [vmem:[%s1] sm:$0xff]
  %v133 = vld [vmem:[%s1 + $0x8] sm:$0xff]
  %v134 = vld [vmem:[%s1 + $0x10] sm:$0xff]
  %v135 = vld [vmem:[%s1 + $0x18] sm:$0xff]
  %v136 = vld [vmem:[%s1 + $0x20] sm:$0xff]
  %v137 = vld [vmem:[%s1 + $0x28] sm:$0xff]
  %v138 = vld [vmem:[%s1 + $0x30] sm:$0xff]
  %v139 = vld [vmem:[%s1 + $0x38] sm:$0xff]
  %v140 = vld [vmem:[%s1 + $0x40] sm:$0xff]
  %v141 = vld [vmem:[%s1 + $0x48] sm:$0xff]
  %v142 = vld [vmem:[%s1 + $0x50] sm:$0xff]
  %v143 = vld [vmem:[%s1 + $0x58] sm:$0xff]
  %v144 = vld [vmem:[%s1 + $0x60] sm:$0xff]
  %v145 = vld [vmem:[%s1 + $0x68] sm:$0xff]
  %v146 = vld [vmem:[%s1 + $0x70] sm:$0xff]
  %v147 = vld [vmem:[%s1 + $0x78] sm:$0xff]
  %v148 = vld [vmem:[%s1 + $0x80] sm:$0xff]
  %v149 = vld [vmem:[%s1 + $0x88] sm:$0xff]
  %v150 = vld [vmem:[%s1 + $0x90] sm:$0xff]
  %v151 = vld [vmem:[%s1 + $0x98] sm:$0xff]
  %v152 = vld [vmem:[%s1 + $0xa0] sm:$0xff]
  %v153 = vld [vmem:[%s1 + $0xa8] sm:$0xff]
  %v154 = vld [vmem:[%s1 + $0xb0] sm:$0xff]
  %v155 = vld [vmem:[%s1 + $0xb8] sm:$0xff]
  %v156 = vld [vmem:[%s1 + $0xc0] sm:$0xff]
  %v157 = vld [vmem:[%s1 + $0xc8] sm:$0xff]
  %v158 = vld [vmem:[%s1 + $0xd0] sm:$0xff]
  %v159 = vld [vmem:[%s1 + $0xd8] sm:$0xff]
  %v160 = vld [vmem:[%s1 + $0xe0] sm:$0xff]
  %v161 = vld [vmem:[%s1 + $0xe8] sm:$0xff]
  %v162 = vld [vmem:[%s1 + $0xf0] sm:$0xff]
  %v163 = vld [vmem:[%s1 + $0xf8] sm:$0xff]
  %v164 = vld [vmem:[%s3] sm:$0xff]
  %v165 = vld [vmem:[%s3 + $0x8] sm:$0xff]
  %v166 = vld [vmem:[%s3 + $0x10] sm:$0xff]
  %v167 = vld [vmem:[%s3 + $0x18] sm:$0xff]
  %v168 = vld [vmem:[%s5] sm:$0xff]
  %v169 = vld [vmem:[%s5 + $0x8] sm:$0xff]
  %v170 = vld [vmem:[%s5 + $0x10] sm:$0xff]
  %v171 = vld [vmem:[%s5 + $0x18] sm:$0xff]
  %v172 = vld [vmem:[%s5 + $0x20] sm:$0xff]
  %v173 = vld [vmem:[%s5 + $0x28] sm:$0xff]
  %v174 = vld [vmem:[%s5 + $0x30] sm:$0xff]
  %v175 = vld [vmem:[%s5 + $0x38] sm:$0xff]
  %v176 = vld [vmem:[%s5 + $0x40] sm:$0xff]
  %v177 = vld [vmem:[%s5 + $0x48] sm:$0xff]
  %v178 = vld [vmem:[%s5 + $0x50] sm:$0xff]
  %v179 = vld [vmem:[%s5 + $0x58] sm:$0xff]
  %v180 = vld [vmem:[%s5 + $0x60] sm:$0xff]
  %v181 = vld [vmem:[%s5 + $0x68] sm:$0xff]
  %v182 = vld [vmem:[%s5 + $0x70] sm:$0xff]
  %v183 = vld [vmem:[%s5 + $0x78] sm:$0xff]
  %v184 = vld [vmem:[%s5 + $0x80] sm:$0xff]
  %v185 = vld [vmem:[%s5 + $0x88] sm:$0xff]
  %v186 = vld [vmem:[%s5 + $0x90] sm:$0xff]
  %v187 = vld [vmem:[%s5 + $0x98] sm:$0xff]
  %v188 = vld [vmem:[%s5 + $0xa0] sm:$0xff]
  %v189 = vld [vmem:[%s5 + $0xa8] sm:$0xff]
  %v190 = vld [vmem:[%s5 + $0xb0] sm:$0xff]
  %v191 = vld [vmem:[%s5 + $0xb8] sm:$0xff]
  %v192 = vld [vmem:[%s5 + $0xc0] sm:$0xff]
  %v193 = vld [vmem:[%s5 + $0xc8] sm:$0xff]
  %v194 = vld [vmem:[%s5 + $0xd0] sm:$0xff]
  %v195 = vld [vmem:[%s5 + $0xd8] sm:$0xff]
  %v196 = vld [vmem:[%s5 + $0xe0] sm:$0xff]
  %v197 = vld [vmem:[%s5 + $0xe8] sm:$0xff]
  %v198 = vld [vmem:[%s5 + $0xf0] sm:$0xff]
  %v199 = vld [vmem:[%s5 + $0xf8] sm:$0xff]
  %v200 = vld [vmem:[%s7] sm:$0xff]
  %v201 = vld [vmem:[%s7 + $0x8] sm:$0xff]
  %v202 = vld [vmem:[%s7 + $0x10] sm:$0xff]
  %v203 = vld [vmem:[%s7 + $0x18] sm:$0xff]
  %v204 = vld [vmem:[%s7 + $0x20] sm:$0xff]
  %v205 = vld [vmem:[%s7 + $0x28] sm:$0xff]
  %v206 = vld [vmem:[%s9] sm:$0xff]
  %v207 = vld [vmem:[%s9 + $0x8] sm:$0xff]
  %v208 = vld [vmem:[%s9 + $0x10] sm:$0xff]
  %v209 = vld [vmem:[%s9 + $0x18] sm:$0xff]
  %v210 = vld [vmem:[%s9 + $0x20] sm:$0xff]
  %v211 = vld [vmem:[%s9 + $0x28] sm:$0xff]
  %v212 = vld [vmem:[%s11] sm:$0xff]
  %v213 = vld [vmem:[%s11 + $0x8] sm:$0xff]
  %v214 = vld [vmem:[%s11 + $0x10] sm:$0xff]
  %v215 = vld [vmem:[%s11 + $0x18] sm:$0xff]
  %v216 = vld [vmem:[%s11 + $0x20] sm:$0xff]
  %v217 = vld [vmem:[%s11 + $0x28] sm:$0xff]
  %v218 = vld [vmem:[%s21] sm:$0xff]
  %v219 = vld [vmem:[%s21 + $0x8] sm:$0xff]
  %v220 = vld [vmem:[%s21 + $0x10] sm:$0xff]
  %v221 = vld [vmem:[%s21 + $0x18] sm:$0xff]
  %v222 = vld [vmem:[%s21 + $0x20] sm:$0xff]
  %v223 = vld [vmem:[%s21 + $0x28] sm:$0xff]
  %v224 = vld [vmem:[%s21 + $0x30] sm:$0xff]
  %v225 = vld [vmem:[%s21 + $0x38] sm:$0xff]
  %v226 = vld [vmem:[%s21 + $0x40] sm:$0xff]
  %v227 = vld [vmem:[%s21 + $0x48] sm:$0xff]
  %v228 = vld [vmem:[%s21 + $0x50] sm:$0xff]
  %v229 = vld [vmem:[%s21 + $0x58] sm:$0xff]
  %v230 = vld [vmem:[%s21 + $0x60] sm:$0xff]
  %v231 = vld [vmem:[%s21 + $0x68] sm:$0xff]
  %v232 = vld [vmem:[%s21 + $0x70] sm:$0xff]
  %v233 = vld [vmem:[%s21 + $0x78] sm:$0xff]
  %v234 = vld [vmem:[%s21 + $0x80] sm:$0xff]
  %v235 = vld [vmem:[%s21 + $0x88] sm:$0xff]
  %v236 = vld [vmem:[%s21 + $0x90] sm:$0xff]
  %v237 = vld [vmem:[%s21 + $0x98] sm:$0xff]
  %v238 = vld [vmem:[%s21 + $0xa0] sm:$0xff]
  %v239 = vld [vmem:[%s21 + $0xa8] sm:$0xff]
  %v240 = vld [vmem:[%s21 + $0xb0] sm:$0xff]
  %v241 = vld [vmem:[%s21 + $0xb8] sm:$0xff]
  %v242 = vld [vmem:[%s21 + $0xc0] sm:$0xff]
  %v243 = vld [vmem:[%s21 + $0xc8] sm:$0xff]
  %v244 = vld [vmem:[%s21 + $0xd0] sm:$0xff]
  %v245 = vld [vmem:[%s21 + $0xd8] sm:$0xff]
  %v246 = vld [vmem:[%s21 + $0xe0] sm:$0xff]
  %v247 = vld [vmem:[%s21 + $0xe8] sm:$0xff]
  %v248 = vld [vmem:[%s21 + $0xf0] sm:$0xff]
  %v249 = vld [vmem:[%s21 + $0xf8] sm:$0xff]
  %v250 = vld [vmem:[%s21 + $0x100] sm:$0xff]
  %v251 = vld [vmem:[%s21 + $0x108] sm:$0xff]
  %v252 = vld [vmem:[%s21 + $0x110] sm:$0xff]
  %v253 = vld [vmem:[%s21 + $0x118] sm:$0xff]
  %v254 = vld [vmem:[%s21 + $0x120] sm:$0xff]
  %v255 = vld [vmem:[%s21 + $0x128] sm:$0xff]
  %v256 = vld [vmem:[%s21 + $0x130] sm:$0xff]
  %v257 = vld [vmem:[%s21 + $0x138] sm:$0xff]
  %v258 = vld [vmem:[%s21 + $0x140] sm:$0xff]
  %v259 = vld [vmem:[%s21 + $0x148] sm:$0xff]
  %v260 = vld [vmem:[%s21 + $0x150] sm:$0xff]
  %v261 = vld [vmem:[%s21 + $0x158] sm:$0xff]
  %v262 = vld [vmem:[%s21 + $0x160] sm:$0xff]
  %v263 = vld [vmem:[%s21 + $0x168] sm:$0xff]
  %v264 = vld [vmem:[%s21 + $0x170] sm:$0xff]
  %v265 = vld [vmem:[%s21 + $0x178] sm:$0xff]
  %v266 = vld [vmem:[%s21 + $0x180] sm:$0xff]
  %v267 = vld [vmem:[%s21 + $0x188] sm:$0xff]
  %v268 = vld [vmem:[%s21 + $0x190] sm:$0xff]
  %v269 = vld [vmem:[%s21 + $0x198] sm:$0xff]
  %v270 = vld [vmem:[%s21 + $0x1a0] sm:$0xff]
  %v271 = vld [vmem:[%s21 + $0x1a8] sm:$0xff]
  %v272 = vld [vmem:[%s21 + $0x1b0] sm:$0xff]
  %v273 = vld [vmem:[%s21 + $0x1b8] sm:$0xff]
  %v274 = vld [vmem:[%s23] sm:$0x1]
  %275 = vmatpush.msra.mxu0 %v147
  %276 = vmatpush.msra.mxu0 %v146
  %277 = vmatpush.msra.mxu0 %v145
  %278 = vmatpush.msra.mxu0 %v144
  %279 = vmatpush.msra.mxu0 %v143
  %280 = vmatpush.msra.mxu0 %v142
  %281 = vmatpush.msra.mxu0 %v141
  %282 = vmatpush.msra.mxu0 %v140
  %283 = vmatpush.msra.mxu0 %v139
  %284 = vmatpush.msra.mxu0 %v138
  %285 = vmatpush.msra.mxu0 %v137
  %286 = vmatpush.msra.mxu0 %v136
  %287 = vmatpush.msra.mxu0 %v135
  %288 = vmatpush.msra.mxu0 %v134
  %289 = vmatpush.msra.mxu0 %v133
  %290 = vmatpush.msra.mxu0 %v132
  %291 = vmatmul.f32.gmra.mxu0 %v200
  %v292 = vpop.f32.mrf.mxu0
  %v293 = vadd.f32 0.0, %v292
  %294 = vmatmul.f32.gmra.mxu0 %v202
  %v295 = vpop.f32.mrf.mxu0
  %v296 = vadd.f32 0.0, %v295
  %297 = vmatmul.f32.gmra.mxu0 %v204
  %v298 = vpop.f32.mrf.mxu0
  %v299 = vadd.f32 0.0, %v298
  %300 = vdwg.mxu0
  %301 = vmatpush.msra.mxu0 %v163
  %302 = vmatpush.msra.mxu0 %v162
  %303 = vmatpush.msra.mxu0 %v161
  %304 = vmatpush.msra.mxu0 %v160
  %305 = vmatpush.msra.mxu0 %v159
  %306 = vmatpush.msra.mxu0 %v158
  %307 = vmatpush.msra.mxu0 %v157
  %308 = vmatpush.msra.mxu0 %v156
  %309 = vmatpush.msra.mxu0 %v155
  %310 = vmatpush.msra.mxu0 %v154
  %311 = vmatpush.msra.mxu0 %v153
  %312 = vmatpush.msra.mxu0 %v152
  %313 = vmatpush.msra.mxu0 %v151
  %314 = vmatpush.msra.mxu0 %v150
  %315 = vmatpush.msra.mxu0 %v149
  %316 = vmatpush.msra.mxu0 %v148
  %317 = vmatmul.f32.gmra.mxu0 %v201
  %v318 = vpop.f32.mrf.mxu0
  %v319 = vadd.f32 %v293, %v318
  %320 = vmatmul.f32.gmra.mxu0 %v203
  %v321 = vpop.f32.mrf.mxu0
  %v322 = vadd.f32 %v296, %v321
  %323 = vmatmul.f32.gmra.mxu0 %v205
  %v324 = vpop.f32.mrf.mxu0
  %v325 = vadd.f32 %v299, %v324
  %326 = vdwg.mxu0
  %vm327 = vcmask 195584
  %v329 = vsel %vm327, %v168, 0
  %v332 = vsel %vm327, %v169, 0
  %v335 = vsel %vm327, %v170, 0
  %v338 = vsel %vm327, %v171, 0
  %v341 = vsel %vm327, %v172, 0
  %v344 = vsel %vm327, %v173, 0
  %v347 = vsel %vm327, %v174, 0
  %v350 = vsel %vm327, %v175, 0
  %v353 = vsel %vm327, %v176, 0
  %v356 = vsel %vm327, %v177, 0
  %v359 = vsel %vm327, %v178, 0
  %v362 = vsel %vm327, %v179, 0
  %v365 = vsel %vm327, %v180, 0
  %v368 = vsel %vm327, %v181, 0
  %v371 = vsel %vm327, %v182, 0
  %v374 = vsel %vm327, %v183, 0
  %v377 = vsel %vm327, %v184, 0
  %v380 = vsel %vm327, %v185, 0
  %v383 = vsel %vm327, %v186, 0
  %v386 = vsel %vm327, %v187, 0
  %v389 = vsel %vm327, %v188, 0
  %v392 = vsel %vm327, %v189, 0
  %v395 = vsel %vm327, %v190, 0
  %v398 = vsel %vm327, %v191, 0
  %v401 = vsel %vm327, %v192, 0
  %v404 = vsel %vm327, %v193, 0
  %v407 = vsel %vm327, %v194, 0
  %v410 = vsel %vm327, %v195, 0
  %v413 = vsel %vm327, %v196, 0
  %v416 = vsel %vm327, %v197, 0
  %v419 = vsel %vm327, %v198, 0
  %v422 = vsel %vm327, %v199, 0
  %424 = vmatpush.msra.mxu0 0.0
  %425 = vmatpush.msra.mxu0 0.0
  %426 = vmatpush.msra.mxu0 0.0
  %427 = vmatpush.msra.mxu0 0.0
  %428 = vmatpush.msra.mxu0 0.0
  %429 = vmatpush.msra.mxu0 0.0
  %430 = vmatpush.msra.mxu0 0.0
  %431 = vmatpush.msra.mxu0 0.0
  %432 = vmatpush.msra.mxu0 0.0
  %433 = vmatpush.msra.mxu0 0.0
  %434 = vmatpush.msra.mxu0 0.0
  %435 = vmatpush.msra.mxu0 0.0
  %436 = vmatpush.msra.mxu0 0.0
  %437 = vmatpush.msra.mxu0 %v325
  %438 = vmatpush.msra.mxu0 %v322
  %439 = vmatpush.msra.mxu0 %v319
  %440 = vmatmul.f32.gmra.mxu0 %v329
  %v441 = vpop.f32.mrf.mxu0
  %v442 = vadd.f32 0.0, %v441
  %443 = vmatmul.f32.gmra.mxu0 %v332
  %v444 = vpop.f32.mrf.mxu0
  %v445 = vadd.f32 0.0, %v444
  %446 = vmatmul.f32.gmra.mxu0 %v335
  %v447 = vpop.f32.mrf.mxu0
  %v448 = vadd.f32 0.0, %v447
  %449 = vmatmul.f32.gmra.mxu0 %v338
  %v450 = vpop.f32.mrf.mxu0
  %v451 = vadd.f32 0.0, %v450
  %452 = vmatmul.f32.gmra.mxu0 %v341
  %v453 = vpop.f32.mrf.mxu0
  %v454 = vadd.f32 0.0, %v453
  %455 = vmatmul.f32.gmra.mxu0 %v344
  %v456 = vpop.f32.mrf.mxu0
  %v457 = vadd.f32 0.0, %v456
  %458 = vmatmul.f32.gmra.mxu0 %v347
  %v459 = vpop.f32.mrf.mxu0
  %v460 = vadd.f32 0.0, %v459
  %461 = vmatmul.f32.gmra.mxu0 %v350
  %v462 = vpop.f32.mrf.mxu0
  %v463 = vadd.f32 0.0, %v462
  %464 = vmatmul.f32.gmra.mxu0 %v353
  %v465 = vpop.f32.mrf.mxu0
  %v466 = vadd.f32 0.0, %v465
  %467 = vmatmul.f32.gmra.mxu0 %v356
  %v468 = vpop.f32.mrf.mxu0
  %v469 = vadd.f32 0.0, %v468
  %470 = vmatmul.f32.gmra.mxu0 %v359
  %v471 = vpop.f32.mrf.mxu0
  %v472 = vadd.f32 0.0, %v471
  %473 = vmatmul.f32.gmra.mxu0 %v362
  %v474 = vpop.f32.mrf.mxu0
  %v475 = vadd.f32 0.0, %v474
  %476 = vmatmul.f32.gmra.mxu0 %v365
  %v477 = vpop.f32.mrf.mxu0
  %v478 = vadd.f32 0.0, %v477
  %479 = vmatmul.f32.gmra.mxu0 %v368
  %v480 = vpop.f32.mrf.mxu0
  %v481 = vadd.f32 0.0, %v480
  %482 = vmatmul.f32.gmra.mxu0 %v371
  %v483 = vpop.f32.mrf.mxu0
  %v484 = vadd.f32 0.0, %v483
  %485 = vmatmul.f32.gmra.mxu0 %v374
  %v486 = vpop.f32.mrf.mxu0
  %v487 = vadd.f32 0.0, %v486
  %488 = vmatmul.f32.gmra.mxu0 %v377
  %v489 = vpop.f32.mrf.mxu0
  %v490 = vadd.f32 0.0, %v489
  %491 = vmatmul.f32.gmra.mxu0 %v380
  %v492 = vpop.f32.mrf.mxu0
  %v493 = vadd.f32 0.0, %v492
  %494 = vmatmul.f32.gmra.mxu0 %v383
  %v495 = vpop.f32.mrf.mxu0
  %v496 = vadd.f32 0.0, %v495
  %497 = vmatmul.f32.gmra.mxu0 %v386
  %v498 = vpop.f32.mrf.mxu0
  %v499 = vadd.f32 0.0, %v498
  %500 = vmatmul.f32.gmra.mxu0 %v389
  %v501 = vpop.f32.mrf.mxu0
  %v502 = vadd.f32 0.0, %v501
  %503 = vmatmul.f32.gmra.mxu0 %v392
  %v504 = vpop.f32.mrf.mxu0
  %v505 = vadd.f32 0.0, %v504
  %506 = vmatmul.f32.gmra.mxu0 %v395
  %v507 = vpop.f32.mrf.mxu0
  %v508 = vadd.f32 0.0, %v507
  %509 = vmatmul.f32.gmra.mxu0 %v398
  %v510 = vpop.f32.mrf.mxu0
  %v511 = vadd.f32 0.0, %v510
  %512 = vmatmul.f32.gmra.mxu0 %v401
  %v513 = vpop.f32.mrf.mxu0
  %v514 = vadd.f32 0.0, %v513
  %515 = vmatmul.f32.gmra.mxu0 %v404
  %v516 = vpop.f32.mrf.mxu0
  %v517 = vadd.f32 0.0, %v516
  %518 = vmatmul.f32.gmra.mxu0 %v407
  %v519 = vpop.f32.mrf.mxu0
  %v520 = vadd.f32 0.0, %v519
  %521 = vmatmul.f32.gmra.mxu0 %v410
  %v522 = vpop.f32.mrf.mxu0
  %v523 = vadd.f32 0.0, %v522
  %524 = vmatmul.f32.gmra.mxu0 %v413
  %v525 = vpop.f32.mrf.mxu0
  %v526 = vadd.f32 0.0, %v525
  %527 = vmatmul.f32.gmra.mxu0 %v416
  %v528 = vpop.f32.mrf.mxu0
  %v529 = vadd.f32 0.0, %v528
  %530 = vmatmul.f32.gmra.mxu0 %v419
  %v531 = vpop.f32.mrf.mxu0
  %v532 = vadd.f32 0.0, %v531
  %533 = vmatmul.f32.gmra.mxu0 %v422
  %v534 = vpop.f32.mrf.mxu0
  %v535 = vadd.f32 0.0, %v534
  %536 = vdwg.mxu0
  %v537 = vsub.f32 %v132, %v442
  %v538 = vsub.f32 %v133, %v445
  %v539 = vsub.f32 %v134, %v448
  %v540 = vsub.f32 %v135, %v451
  %v541 = vsub.f32 %v136, %v454
  %v542 = vsub.f32 %v137, %v457
  %v543 = vsub.f32 %v138, %v460
  %v544 = vsub.f32 %v139, %v463
  %v545 = vsub.f32 %v140, %v466
  %v546 = vsub.f32 %v141, %v469
  %v547 = vsub.f32 %v142, %v472
  %v548 = vsub.f32 %v143, %v475
  %v549 = vsub.f32 %v144, %v478
  %v550 = vsub.f32 %v145, %v481
  %v551 = vsub.f32 %v146, %v484
  %v552 = vsub.f32 %v147, %v487
  %v553 = vsub.f32 %v148, %v490
  %v554 = vsub.f32 %v149, %v493
  %v555 = vsub.f32 %v150, %v496
  %v556 = vsub.f32 %v151, %v499
  %v557 = vsub.f32 %v152, %v502
  %v558 = vsub.f32 %v153, %v505
  %v559 = vsub.f32 %v154, %v508
  %v560 = vsub.f32 %v155, %v511
  %v561 = vsub.f32 %v156, %v514
  %v562 = vsub.f32 %v157, %v517
  %v563 = vsub.f32 %v158, %v520
  %v564 = vsub.f32 %v159, %v523
  %v565 = vsub.f32 %v160, %v526
  %v566 = vsub.f32 %v161, %v529
  %v567 = vsub.f32 %v162, %v532
  %v568 = vsub.f32 %v163, %v535
  %v569 = vmul.f32 %v537, %v537
  %v570 = vmul.f32 %v538, %v538
  %v571 = vmul.f32 %v539, %v539
  %v572 = vmul.f32 %v540, %v540
  %v573 = vmul.f32 %v541, %v541
  %v574 = vmul.f32 %v542, %v542
  %v575 = vmul.f32 %v543, %v543
  %v576 = vmul.f32 %v544, %v544
  %v577 = vmul.f32 %v545, %v545
  %v578 = vmul.f32 %v546, %v546
  %v579 = vmul.f32 %v547, %v547
  %v580 = vmul.f32 %v548, %v548
  %v581 = vmul.f32 %v549, %v549
  %v582 = vmul.f32 %v550, %v550
  %v583 = vmul.f32 %v551, %v551
  %v584 = vmul.f32 %v552, %v552
  %v585 = vmul.f32 %v553, %v553
  %v586 = vmul.f32 %v554, %v554
  %v587 = vmul.f32 %v555, %v555
  %v588 = vmul.f32 %v556, %v556
  %v589 = vmul.f32 %v557, %v557
  %v590 = vmul.f32 %v558, %v558
  %v591 = vmul.f32 %v559, %v559
  %v592 = vmul.f32 %v560, %v560
  %v593 = vmul.f32 %v561, %v561
  %v594 = vmul.f32 %v562, %v562
  %v595 = vmul.f32 %v563, %v563
  %v596 = vmul.f32 %v564, %v564
  %v597 = vmul.f32 %v565, %v565
  %v598 = vmul.f32 %v566, %v566
  %v599 = vmul.f32 %v567, %v567
  %v600 = vmul.f32 %v568, %v568
  %601 = vmatpush.msra.mxu0 %v584
  %602 = vmatpush.msra.mxu0 %v583
  %603 = vmatpush.msra.mxu0 %v582
  %604 = vmatpush.msra.mxu0 %v581
  %605 = vmatpush.msra.mxu0 %v580
  %606 = vmatpush.msra.mxu0 %v579
  %607 = vmatpush.msra.mxu0 %v578
  %608 = vmatpush.msra.mxu0 %v577
  %609 = vmatpush.msra.mxu0 %v576
  %610 = vmatpush.msra.mxu0 %v575
  %611 = vmatpush.msra.mxu0 %v574
  %612 = vmatpush.msra.mxu0 %v573
  %613 = vmatpush.msra.mxu0 %v572
  %614 = vmatpush.msra.mxu0 %v571
  %615 = vmatpush.msra.mxu0 %v570
  %616 = vmatpush.msra.mxu0 %v569
  %617 = vmatmul.f32.gmra.mxu0 %v206
  %v618 = vpop.f32.mrf.mxu0
  %v619 = vadd.f32 0.0, %v618
  %620 = vmatmul.f32.gmra.mxu0 %v208
  %v621 = vpop.f32.mrf.mxu0
  %v622 = vadd.f32 0.0, %v621
  %623 = vmatmul.f32.gmra.mxu0 %v210
  %v624 = vpop.f32.mrf.mxu0
  %v625 = vadd.f32 0.0, %v624
  %626 = vdwg.mxu0
  %627 = vmatpush.msra.mxu0 %v600
  %628 = vmatpush.msra.mxu0 %v599
  %629 = vmatpush.msra.mxu0 %v598
  %630 = vmatpush.msra.mxu0 %v597
  %631 = vmatpush.msra.mxu0 %v596
  %632 = vmatpush.msra.mxu0 %v595
  %633 = vmatpush.msra.mxu0 %v594
  %634 = vmatpush.msra.mxu0 %v593
  %635 = vmatpush.msra.mxu0 %v592
  %636 = vmatpush.msra.mxu0 %v591
  %637 = vmatpush.msra.mxu0 %v590
  %638 = vmatpush.msra.mxu0 %v589
  %639 = vmatpush.msra.mxu0 %v588
  %640 = vmatpush.msra.mxu0 %v587
  %641 = vmatpush.msra.mxu0 %v586
  %642 = vmatpush.msra.mxu0 %v585
  %643 = vmatmul.f32.gmra.mxu0 %v207
  %v644 = vpop.f32.mrf.mxu0
  %v645 = vadd.f32 %v619, %v644
  %646 = vmatmul.f32.gmra.mxu0 %v209
  %v647 = vpop.f32.mrf.mxu0
  %v648 = vadd.f32 %v622, %v647
  %649 = vmatmul.f32.gmra.mxu0 %v211
  %v650 = vpop.f32.mrf.mxu0
  %v651 = vadd.f32 %v625, %v650
  %652 = vdwg.mxu0
  %v653 = vmax.f32 %v645, 0.0
  %v654 = vmax.f32 %v648, 0.0
  %v655 = vmax.f32 %v651, 0.0
  %v656 = vrsqrt.pop %v653
  %v657 = vmul.f32 %v656, %v653
  %v658 = vmul.f32 %v657, %v656
  %v659 = vmul.f32 0.5, %v658
  %v660 = vsub.f32 1.5, %v659
  %v661 = vmul.f32 %v656, %v660
  %v662 = vmul.f32 %v653, %v661
  %vm663 = vcmp.eq.f32.partialorder %v653, inf
  %v664 = vsel %vm663, %v653, %v662
  %vm665 = vcmp.eq.f32.partialorder %v653, 0.0
  %v666 = vand.u32 %v653, 2147483648
  %v667 = vsel %vm665, %v666, %v664
  %v668 = vrsqrt.pop %v654
  %v669 = vmul.f32 %v668, %v654
  %v670 = vmul.f32 %v669, %v668
  %v671 = vmul.f32 0.5, %v670
  %v672 = vsub.f32 1.5, %v671
  %v673 = vmul.f32 %v668, %v672
  %v674 = vmul.f32 %v654, %v673
  %vm675 = vcmp.eq.f32.partialorder %v654, inf
  %v676 = vsel %vm675, %v654, %v674
  %vm677 = vcmp.eq.f32.partialorder %v654, 0.0
  %v678 = vand.u32 %v654, 2147483648
  %v679 = vsel %vm677, %v678, %v676
  %v680 = vrsqrt.pop %v655
  %v681 = vmul.f32 %v680, %v655
  %v682 = vmul.f32 %v681, %v680
  %v683 = vmul.f32 0.5, %v682
  %v684 = vsub.f32 1.5, %v683
  %v685 = vmul.f32 %v680, %v684
  %v686 = vmul.f32 %v655, %v685
  %vm687 = vcmp.eq.f32.partialorder %v655, inf
  %v688 = vsel %vm687, %v655, %v686
  %vm689 = vcmp.eq.f32.partialorder %v655, 0.0
  %v690 = vand.u32 %v655, 2147483648
  %v691 = vsel %vm689, %v690, %v688
  %692 = vmatpush.msra.mxu0 %v147
  %693 = vmatpush.msra.mxu0 %v146
  %694 = vmatpush.msra.mxu0 %v145
  %695 = vmatpush.msra.mxu0 %v144
  %696 = vmatpush.msra.mxu0 %v143
  %697 = vmatpush.msra.mxu0 %v142
  %698 = vmatpush.msra.mxu0 %v141
  %699 = vmatpush.msra.mxu0 %v140
  %700 = vmatpush.msra.mxu0 %v139
  %701 = vmatpush.msra.mxu0 %v138
  %702 = vmatpush.msra.mxu0 %v137
  %703 = vmatpush.msra.mxu0 %v136
  %704 = vmatpush.msra.mxu0 %v135
  %705 = vmatpush.msra.mxu0 %v134
  %706 = vmatpush.msra.mxu0 %v133
  %707 = vmatpush.msra.mxu0 %v132
  %708 = vmatmul.f32.gmra.mxu0 %v212
  %v709 = vpop.f32.mrf.mxu0
  %v710 = vadd.f32 0.0, %v709
  %711 = vmatmul.f32.gmra.mxu0 %v214
  %v712 = vpop.f32.mrf.mxu0
  %v713 = vadd.f32 0.0, %v712
  %714 = vmatmul.f32.gmra.mxu0 %v216
  %v715 = vpop.f32.mrf.mxu0
  %v716 = vadd.f32 0.0, %v715
  %717 = vdwg.mxu0
  %718 = vmatpush.msra.mxu0 %v163
  %719 = vmatpush.msra.mxu0 %v162
  %720 = vmatpush.msra.mxu0 %v161
  %721 = vmatpush.msra.mxu0 %v160
  %722 = vmatpush.msra.mxu0 %v159
  %723 = vmatpush.msra.mxu0 %v158
  %724 = vmatpush.msra.mxu0 %v157
  %725 = vmatpush.msra.mxu0 %v156
  %726 = vmatpush.msra.mxu0 %v155
  %727 = vmatpush.msra.mxu0 %v154
  %728 = vmatpush.msra.mxu0 %v153
  %729 = vmatpush.msra.mxu0 %v152
  %730 = vmatpush.msra.mxu0 %v151
  %731 = vmatpush.msra.mxu0 %v150
  %732 = vmatpush.msra.mxu0 %v149
  %733 = vmatpush.msra.mxu0 %v148
  %734 = vmatmul.f32.gmra.mxu0 %v213
  %v735 = vpop.f32.mrf.mxu0
  %v736 = vadd.f32 %v710, %v735
  %737 = vmatmul.f32.gmra.mxu0 %v215
  %v738 = vpop.f32.mrf.mxu0
  %v739 = vadd.f32 %v713, %v738
  %740 = vmatmul.f32.gmra.mxu0 %v217
  %v741 = vpop.f32.mrf.mxu0
  %v742 = vadd.f32 %v716, %v741
  %743 = vdwg.mxu0
  %v744 = vadd.f32 %v667, 0.01
  %v745 = vadd.f32 %v679, 0.01
  %v746 = vadd.f32 %v691, 0.01
  %v747 = vrcp.pop %v744
  %v748 = vmul.f32 %v744, %v747
  %v749 = vsub.f32 1.0, %v748
  %v750 = vmul.f32 %v747, %v749
  %v751 = vadd.f32 %v747, %v750
  %vm752 = vweird.f32 %v744
  %vm753 = vweird.f32 %v747
  %vm754 = vmor %vm752, %vm753
  %v755 = vsel %vm754, %v747, %v751
  %v756 = vand.u32 2147483647, %v744
  %vm757 = vcmp.eq.f32.partialorder %v756, 8.507059e+37
  %v758 = vand.u32 %v744, 2147483648
  %v759 = vor.u32 1.1754944e-38, %v758
  %v760 = vsel %vm757, %v759, %v755
  %v761 = vrcp.pop %v745
  %v762 = vmul.f32 %v745, %v761
  %v763 = vsub.f32 1.0, %v762
  %v764 = vmul.f32 %v761, %v763
  %v765 = vadd.f32 %v761, %v764
  %vm766 = vweird.f32 %v745
  %vm767 = vweird.f32 %v761
  %vm768 = vmor %vm766, %vm767
  %v769 = vsel %vm768, %v761, %v765
  %v770 = vand.u32 2147483647, %v745
  %vm771 = vcmp.eq.f32.partialorder %v770, 8.507059e+37
  %v772 = vand.u32 %v745, 2147483648
  %v773 = vor.u32 1.1754944e-38, %v772
  %v774 = vsel %vm771, %v773, %v769
  %v775 = vrcp.pop %v746
  %v776 = vmul.f32 %v746, %v775
  %v777 = vsub.f32 1.0, %v776
  %v778 = vmul.f32 %v775, %v777
  %v779 = vadd.f32 %v775, %v778
  %vm780 = vweird.f32 %v746
  %vm781 = vweird.f32 %v775
  %vm782 = vmor %vm780, %vm781
  %v783 = vsel %vm782, %v775, %v779
  %v784 = vand.u32 2147483647, %v746
  %vm785 = vcmp.eq.f32.partialorder %v784, 8.507059e+37
  %v786 = vand.u32 %v746, 2147483648
  %v787 = vor.u32 1.1754944e-38, %v786
  %v788 = vsel %vm785, %v787, %v783
  %v789 = vmul.f32 %v319, %v760
  %v790 = vmul.f32 %v322, %v774
  %v791 = vmul.f32 %v325, %v788
  %vm792 = vcmask 130048
  %v794 = vsel %vm792, %v132, 0
  %v797 = vsel %vm792, %v133, 0
  %v800 = vsel %vm792, %v134, 0
  %v803 = vsel %vm792, %v135, 0
  %v806 = vsel %vm792, %v136, 0
  %v809 = vsel %vm792, %v137, 0
  %v812 = vsel %vm792, %v138, 0
  %v815 = vsel %vm792, %v139, 0
  %v818 = vsel %vm792, %v140, 0
  %v821 = vsel %vm792, %v141, 0
  %v824 = vsel %vm792, %v142, 0
  %v827 = vsel %vm792, %v143, 0
  %v830 = vsel %vm792, %v144, 0
  %v833 = vsel %vm792, %v145, 0
  %v836 = vsel %vm792, %v146, 0
  %v839 = vsel %vm792, %v147, 0
  %v842 = vsel %vm792, %v148, 0
  %v845 = vsel %vm792, %v149, 0
  %v848 = vsel %vm792, %v150, 0
  %v851 = vsel %vm792, %v151, 0
  %v854 = vsel %vm792, %v152, 0
  %v857 = vsel %vm792, %v153, 0
  %v860 = vsel %vm792, %v154, 0
  %v863 = vsel %vm792, %v155, 0
  %v866 = vsel %vm792, %v156, 0
  %v869 = vsel %vm792, %v157, 0
  %v872 = vsel %vm792, %v158, 0
  %v875 = vsel %vm792, %v159, 0
  %v878 = vsel %vm792, %v160, 0
  %v881 = vsel %vm792, %v161, 0
  %v884 = vsel %vm792, %v162, 0
  %v887 = vsel %vm792, %v163, 0
  %889 = vmatpush.msra.mxu0 0.0
  %890 = vmatpush.msra.mxu0 0.0
  %891 = vmatpush.msra.mxu0 0.0
  %892 = vmatpush.msra.mxu0 0.0
  %893 = vmatpush.msra.mxu0 0.0
  %894 = vmatpush.msra.mxu0 0.0
  %895 = vmatpush.msra.mxu0 0.0
  %896 = vmatpush.msra.mxu0 0.0
  %897 = vmatpush.msra.mxu0 0.0
  %898 = vmatpush.msra.mxu0 0.0
  %899 = vmatpush.msra.mxu0 0.0
  %900 = vmatpush.msra.mxu0 0.0
  %901 = vmatpush.msra.mxu0 0.0
  %902 = vmatpush.msra.mxu0 0.0
  %903 = vmatpush.msra.mxu0 %v166
  %904 = vmatpush.msra.mxu0 %v164
  %905 = vmatmul.f32.gmra.mxu0 %v794
  %v906 = vpop.f32.mrf.mxu0
  %v907 = vadd.f32 0.0, %v906
  %908 = vmatmul.f32.gmra.mxu0 %v797
  %v909 = vpop.f32.mrf.mxu0
  %v910 = vadd.f32 0.0, %v909
  %911 = vmatmul.f32.gmra.mxu0 %v800
  %v912 = vpop.f32.mrf.mxu0
  %v913 = vadd.f32 0.0, %v912
  %914 = vmatmul.f32.gmra.mxu0 %v803
  %v915 = vpop.f32.mrf.mxu0
  %v916 = vadd.f32 0.0, %v915
  %917 = vmatmul.f32.gmra.mxu0 %v806
  %v918 = vpop.f32.mrf.mxu0
  %v919 = vadd.f32 0.0, %v918
  %920 = vmatmul.f32.gmra.mxu0 %v809
  %v921 = vpop.f32.mrf.mxu0
  %v922 = vadd.f32 0.0, %v921
  %923 = vmatmul.f32.gmra.mxu0 %v812
  %v924 = vpop.f32.mrf.mxu0
  %v925 = vadd.f32 0.0, %v924
  %926 = vmatmul.f32.gmra.mxu0 %v815
  %v927 = vpop.f32.mrf.mxu0
  %v928 = vadd.f32 0.0, %v927
  %929 = vmatmul.f32.gmra.mxu0 %v818
  %v930 = vpop.f32.mrf.mxu0
  %v931 = vadd.f32 0.0, %v930
  %932 = vmatmul.f32.gmra.mxu0 %v821
  %v933 = vpop.f32.mrf.mxu0
  %v934 = vadd.f32 0.0, %v933
  %935 = vmatmul.f32.gmra.mxu0 %v824
  %v936 = vpop.f32.mrf.mxu0
  %v937 = vadd.f32 0.0, %v936
  %938 = vmatmul.f32.gmra.mxu0 %v827
  %v939 = vpop.f32.mrf.mxu0
  %v940 = vadd.f32 0.0, %v939
  %941 = vmatmul.f32.gmra.mxu0 %v830
  %v942 = vpop.f32.mrf.mxu0
  %v943 = vadd.f32 0.0, %v942
  %944 = vmatmul.f32.gmra.mxu0 %v833
  %v945 = vpop.f32.mrf.mxu0
  %v946 = vadd.f32 0.0, %v945
  %947 = vmatmul.f32.gmra.mxu0 %v836
  %v948 = vpop.f32.mrf.mxu0
  %v949 = vadd.f32 0.0, %v948
  %950 = vmatmul.f32.gmra.mxu0 %v839
  %v951 = vpop.f32.mrf.mxu0
  %v952 = vadd.f32 0.0, %v951
  %953 = vmatmul.f32.gmra.mxu0 %v842
  %v954 = vpop.f32.mrf.mxu0
  %v955 = vadd.f32 0.0, %v954
  %956 = vmatmul.f32.gmra.mxu0 %v845
  %v957 = vpop.f32.mrf.mxu0
  %v958 = vadd.f32 0.0, %v957
  %959 = vmatmul.f32.gmra.mxu0 %v848
  %v960 = vpop.f32.mrf.mxu0
  %v961 = vadd.f32 0.0, %v960
  %962 = vmatmul.f32.gmra.mxu0 %v851
  %v963 = vpop.f32.mrf.mxu0
  %v964 = vadd.f32 0.0, %v963
  %965 = vmatmul.f32.gmra.mxu0 %v854
  %v966 = vpop.f32.mrf.mxu0
  %v967 = vadd.f32 0.0, %v966
  %968 = vmatmul.f32.gmra.mxu0 %v857
  %v969 = vpop.f32.mrf.mxu0
  %v970 = vadd.f32 0.0, %v969
  %971 = vmatmul.f32.gmra.mxu0 %v860
  %v972 = vpop.f32.mrf.mxu0
  %v973 = vadd.f32 0.0, %v972
  %974 = vmatmul.f32.gmra.mxu0 %v863
  %v975 = vpop.f32.mrf.mxu0
  %v976 = vadd.f32 0.0, %v975
  %977 = vmatmul.f32.gmra.mxu0 %v866
  %v978 = vpop.f32.mrf.mxu0
  %v979 = vadd.f32 0.0, %v978
  %980 = vmatmul.f32.gmra.mxu0 %v869
  %v981 = vpop.f32.mrf.mxu0
  %v982 = vadd.f32 0.0, %v981
  %983 = vmatmul.f32.gmra.mxu0 %v872
  %v984 = vpop.f32.mrf.mxu0
  %v985 = vadd.f32 0.0, %v984
  %986 = vmatmul.f32.gmra.mxu0 %v875
  %v987 = vpop.f32.mrf.mxu0
  %v988 = vadd.f32 0.0, %v987
  %989 = vmatmul.f32.gmra.mxu0 %v878
  %v990 = vpop.f32.mrf.mxu0
  %v991 = vadd.f32 0.0, %v990
  %992 = vmatmul.f32.gmra.mxu0 %v881
  %v993 = vpop.f32.mrf.mxu0
  %v994 = vadd.f32 0.0, %v993
  %995 = vmatmul.f32.gmra.mxu0 %v884
  %v996 = vpop.f32.mrf.mxu0
  %v997 = vadd.f32 0.0, %v996
  %998 = vmatmul.f32.gmra.mxu0 %v887
  %v999 = vpop.f32.mrf.mxu0
  %v1000 = vadd.f32 0.0, %v999
  %1001 = vdwg.mxu0
  %1002 = vmatpush.msra.mxu0 0.0
  %1003 = vmatpush.msra.mxu0 0.0
  %1004 = vmatpush.msra.mxu0 0.0
  %1005 = vmatpush.msra.mxu0 0.0
  %1006 = vmatpush.msra.mxu0 0.0
  %1007 = vmatpush.msra.mxu0 0.0
  %1008 = vmatpush.msra.mxu0 0.0
  %1009 = vmatpush.msra.mxu0 0.0
  %1010 = vmatpush.msra.mxu0 0.0
  %1011 = vmatpush.msra.mxu0 0.0
  %1012 = vmatpush.msra.mxu0 0.0
  %1013 = vmatpush.msra.mxu0 0.0
  %1014 = vmatpush.msra.mxu0 0.0
  %1015 = vmatpush.msra.mxu0 0.0
  %1016 = vmatpush.msra.mxu0 %v167
  %1017 = vmatpush.msra.mxu0 %v165
  %1018 = vmatmul.f32.gmra.mxu0 %v794
  %v1019 = vpop.f32.mrf.mxu0
  %v1020 = vadd.f32 0.0, %v1019
  %1021 = vmatmul.f32.gmra.mxu0 %v797
  %v1022 = vpop.f32.mrf.mxu0
  %v1023 = vadd.f32 0.0, %v1022
  %1024 = vmatmul.f32.gmra.mxu0 %v800
  %v1025 = vpop.f32.mrf.mxu0
  %v1026 = vadd.f32 0.0, %v1025
  %1027 = vmatmul.f32.gmra.mxu0 %v803
  %v1028 = vpop.f32.mrf.mxu0
  %v1029 = vadd.f32 0.0, %v1028
  %1030 = vmatmul.f32.gmra.mxu0 %v806
  %v1031 = vpop.f32.mrf.mxu0
  %v1032 = vadd.f32 0.0, %v1031
  %1033 = vmatmul.f32.gmra.mxu0 %v809
  %v1034 = vpop.f32.mrf.mxu0
  %v1035 = vadd.f32 0.0, %v1034
  %1036 = vmatmul.f32.gmra.mxu0 %v812
  %v1037 = vpop.f32.mrf.mxu0
  %v1038 = vadd.f32 0.0, %v1037
  %1039 = vmatmul.f32.gmra.mxu0 %v815
  %v1040 = vpop.f32.mrf.mxu0
  %v1041 = vadd.f32 0.0, %v1040
  %1042 = vmatmul.f32.gmra.mxu0 %v818
  %v1043 = vpop.f32.mrf.mxu0
  %v1044 = vadd.f32 0.0, %v1043
  %1045 = vmatmul.f32.gmra.mxu0 %v821
  %v1046 = vpop.f32.mrf.mxu0
  %v1047 = vadd.f32 0.0, %v1046
  %1048 = vmatmul.f32.gmra.mxu0 %v824
  %v1049 = vpop.f32.mrf.mxu0
  %v1050 = vadd.f32 0.0, %v1049
  %1051 = vmatmul.f32.gmra.mxu0 %v827
  %v1052 = vpop.f32.mrf.mxu0
  %v1053 = vadd.f32 0.0, %v1052
  %1054 = vmatmul.f32.gmra.mxu0 %v830
  %v1055 = vpop.f32.mrf.mxu0
  %v1056 = vadd.f32 0.0, %v1055
  %1057 = vmatmul.f32.gmra.mxu0 %v833
  %v1058 = vpop.f32.mrf.mxu0
  %v1059 = vadd.f32 0.0, %v1058
  %1060 = vmatmul.f32.gmra.mxu0 %v836
  %v1061 = vpop.f32.mrf.mxu0
  %v1062 = vadd.f32 0.0, %v1061
  %1063 = vmatmul.f32.gmra.mxu0 %v839
  %v1064 = vpop.f32.mrf.mxu0
  %v1065 = vadd.f32 0.0, %v1064
  %1066 = vmatmul.f32.gmra.mxu0 %v842
  %v1067 = vpop.f32.mrf.mxu0
  %v1068 = vadd.f32 0.0, %v1067
  %1069 = vmatmul.f32.gmra.mxu0 %v845
  %v1070 = vpop.f32.mrf.mxu0
  %v1071 = vadd.f32 0.0, %v1070
  %1072 = vmatmul.f32.gmra.mxu0 %v848
  %v1073 = vpop.f32.mrf.mxu0
  %v1074 = vadd.f32 0.0, %v1073
  %1075 = vmatmul.f32.gmra.mxu0 %v851
  %v1076 = vpop.f32.mrf.mxu0
  %v1077 = vadd.f32 0.0, %v1076
  %1078 = vmatmul.f32.gmra.mxu0 %v854
  %v1079 = vpop.f32.mrf.mxu0
  %v1080 = vadd.f32 0.0, %v1079
  %1081 = vmatmul.f32.gmra.mxu0 %v857
  %v1082 = vpop.f32.mrf.mxu0
  %v1083 = vadd.f32 0.0, %v1082
  %1084 = vmatmul.f32.gmra.mxu0 %v860
  %v1085 = vpop.f32.mrf.mxu0
  %v1086 = vadd.f32 0.0, %v1085
  %1087 = vmatmul.f32.gmra.mxu0 %v863
  %v1088 = vpop.f32.mrf.mxu0
  %v1089 = vadd.f32 0.0, %v1088
  %1090 = vmatmul.f32.gmra.mxu0 %v866
  %v1091 = vpop.f32.mrf.mxu0
  %v1092 = vadd.f32 0.0, %v1091
  %1093 = vmatmul.f32.gmra.mxu0 %v869
  %v1094 = vpop.f32.mrf.mxu0
  %v1095 = vadd.f32 0.0, %v1094
  %1096 = vmatmul.f32.gmra.mxu0 %v872
  %v1097 = vpop.f32.mrf.mxu0
  %v1098 = vadd.f32 0.0, %v1097
  %1099 = vmatmul.f32.gmra.mxu0 %v875
  %v1100 = vpop.f32.mrf.mxu0
  %v1101 = vadd.f32 0.0, %v1100
  %1102 = vmatmul.f32.gmra.mxu0 %v878
  %v1103 = vpop.f32.mrf.mxu0
  %v1104 = vadd.f32 0.0, %v1103
  %1105 = vmatmul.f32.gmra.mxu0 %v881
  %v1106 = vpop.f32.mrf.mxu0
  %v1107 = vadd.f32 0.0, %v1106
  %1108 = vmatmul.f32.gmra.mxu0 %v884
  %v1109 = vpop.f32.mrf.mxu0
  %v1110 = vadd.f32 0.0, %v1109
  %1111 = vmatmul.f32.gmra.mxu0 %v887
  %v1112 = vpop.f32.mrf.mxu0
  %v1113 = vadd.f32 0.0, %v1112
  %1114 = vdwg.mxu0
  %v1116 = vsel %vm792, %v537, 0
  %v1119 = vsel %vm792, %v538, 0
  %v1122 = vsel %vm792, %v539, 0
  %v1125 = vsel %vm792, %v540, 0
  %v1128 = vsel %vm792, %v541, 0
  %v1131 = vsel %vm792, %v542, 0
  %v1134 = vsel %vm792, %v543, 0
  %v1137 = vsel %vm792, %v544, 0
  %v1140 = vsel %vm792, %v545, 0
  %v1143 = vsel %vm792, %v546, 0
  %v1146 = vsel %vm792, %v547, 0
  %v1149 = vsel %vm792, %v548, 0
  %v1152 = vsel %vm792, %v549, 0
  %v1155 = vsel %vm792, %v550, 0
  %v1158 = vsel %vm792, %v551, 0
  %v1161 = vsel %vm792, %v552, 0
  %v1164 = vsel %vm792, %v553, 0
  %v1167 = vsel %vm792, %v554, 0
  %v1170 = vsel %vm792, %v555, 0
  %v1173 = vsel %vm792, %v556, 0
  %v1176 = vsel %vm792, %v557, 0
  %v1179 = vsel %vm792, %v558, 0
  %v1182 = vsel %vm792, %v559, 0
  %v1185 = vsel %vm792, %v560, 0
  %v1188 = vsel %vm792, %v561, 0
  %v1191 = vsel %vm792, %v562, 0
  %v1194 = vsel %vm792, %v563, 0
  %v1197 = vsel %vm792, %v564, 0
  %v1200 = vsel %vm792, %v565, 0
  %v1203 = vsel %vm792, %v566, 0
  %v1206 = vsel %vm792, %v567, 0
  %v1209 = vsel %vm792, %v568, 0
  %1211 = vmatpush.msra.mxu0 0.0
  %1212 = vmatpush.msra.mxu0 0.0
  %1213 = vmatpush.msra.mxu0 0.0
  %1214 = vmatpush.msra.mxu0 0.0
  %1215 = vmatpush.msra.mxu0 0.0
  %1216 = vmatpush.msra.mxu0 0.0
  %1217 = vmatpush.msra.mxu0 0.0
  %1218 = vmatpush.msra.mxu0 0.0
  %1219 = vmatpush.msra.mxu0 0.0
  %1220 = vmatpush.msra.mxu0 0.0
  %1221 = vmatpush.msra.mxu0 0.0
  %1222 = vmatpush.msra.mxu0 0.0
  %1223 = vmatpush.msra.mxu0 0.0
  %1224 = vmatpush.msra.mxu0 0.0
  %1225 = vmatpush.msra.mxu0 %v166
  %1226 = vmatpush.msra.mxu0 %v164
  %1227 = vmatmul.f32.gmra.mxu0 %v1116
  %v1228 = vpop.f32.mrf.mxu0
  %v1229 = vadd.f32 0.0, %v1228
  %1230 = vmatmul.f32.gmra.mxu0 %v1119
  %v1231 = vpop.f32.mrf.mxu0
  %v1232 = vadd.f32 0.0, %v1231
  %1233 = vmatmul.f32.gmra.mxu0 %v1122
  %v1234 = vpop.f32.mrf.mxu0
  %v1235 = vadd.f32 0.0, %v1234
  %1236 = vmatmul.f32.gmra.mxu0 %v1125
  %v1237 = vpop.f32.mrf.mxu0
  %v1238 = vadd.f32 0.0, %v1237
  %1239 = vmatmul.f32.gmra.mxu0 %v1128
  %v1240 = vpop.f32.mrf.mxu0
  %v1241 = vadd.f32 0.0, %v1240
  %1242 = vmatmul.f32.gmra.mxu0 %v1131
  %v1243 = vpop.f32.mrf.mxu0
  %v1244 = vadd.f32 0.0, %v1243
  %1245 = vmatmul.f32.gmra.mxu0 %v1134
  %v1246 = vpop.f32.mrf.mxu0
  %v1247 = vadd.f32 0.0, %v1246
  %1248 = vmatmul.f32.gmra.mxu0 %v1137
  %v1249 = vpop.f32.mrf.mxu0
  %v1250 = vadd.f32 0.0, %v1249
  %1251 = vmatmul.f32.gmra.mxu0 %v1140
  %v1252 = vpop.f32.mrf.mxu0
  %v1253 = vadd.f32 0.0, %v1252
  %1254 = vmatmul.f32.gmra.mxu0 %v1143
  %v1255 = vpop.f32.mrf.mxu0
  %v1256 = vadd.f32 0.0, %v1255
  %1257 = vmatmul.f32.gmra.mxu0 %v1146
  %v1258 = vpop.f32.mrf.mxu0
  %v1259 = vadd.f32 0.0, %v1258
  %1260 = vmatmul.f32.gmra.mxu0 %v1149
  %v1261 = vpop.f32.mrf.mxu0
  %v1262 = vadd.f32 0.0, %v1261
  %1263 = vmatmul.f32.gmra.mxu0 %v1152
  %v1264 = vpop.f32.mrf.mxu0
  %v1265 = vadd.f32 0.0, %v1264
  %1266 = vmatmul.f32.gmra.mxu0 %v1155
  %v1267 = vpop.f32.mrf.mxu0
  %v1268 = vadd.f32 0.0, %v1267
  %1269 = vmatmul.f32.gmra.mxu0 %v1158
  %v1270 = vpop.f32.mrf.mxu0
  %v1271 = vadd.f32 0.0, %v1270
  %1272 = vmatmul.f32.gmra.mxu0 %v1161
  %v1273 = vpop.f32.mrf.mxu0
  %v1274 = vadd.f32 0.0, %v1273
  %1275 = vmatmul.f32.gmra.mxu0 %v1164
  %v1276 = vpop.f32.mrf.mxu0
  %v1277 = vadd.f32 0.0, %v1276
  %1278 = vmatmul.f32.gmra.mxu0 %v1167
  %v1279 = vpop.f32.mrf.mxu0
  %v1280 = vadd.f32 0.0, %v1279
  %1281 = vmatmul.f32.gmra.mxu0 %v1170
  %v1282 = vpop.f32.mrf.mxu0
  %v1283 = vadd.f32 0.0, %v1282
  %1284 = vmatmul.f32.gmra.mxu0 %v1173
  %v1285 = vpop.f32.mrf.mxu0
  %v1286 = vadd.f32 0.0, %v1285
  %1287 = vmatmul.f32.gmra.mxu0 %v1176
  %v1288 = vpop.f32.mrf.mxu0
  %v1289 = vadd.f32 0.0, %v1288
  %1290 = vmatmul.f32.gmra.mxu0 %v1179
  %v1291 = vpop.f32.mrf.mxu0
  %v1292 = vadd.f32 0.0, %v1291
  %1293 = vmatmul.f32.gmra.mxu0 %v1182
  %v1294 = vpop.f32.mrf.mxu0
  %v1295 = vadd.f32 0.0, %v1294
  %1296 = vmatmul.f32.gmra.mxu0 %v1185
  %v1297 = vpop.f32.mrf.mxu0
  %v1298 = vadd.f32 0.0, %v1297
  %1299 = vmatmul.f32.gmra.mxu0 %v1188
  %v1300 = vpop.f32.mrf.mxu0
  %v1301 = vadd.f32 0.0, %v1300
  %1302 = vmatmul.f32.gmra.mxu0 %v1191
  %v1303 = vpop.f32.mrf.mxu0
  %v1304 = vadd.f32 0.0, %v1303
  %1305 = vmatmul.f32.gmra.mxu0 %v1194
  %v1306 = vpop.f32.mrf.mxu0
  %v1307 = vadd.f32 0.0, %v1306
  %1308 = vmatmul.f32.gmra.mxu0 %v1197
  %v1309 = vpop.f32.mrf.mxu0
  %v1310 = vadd.f32 0.0, %v1309
  %1311 = vmatmul.f32.gmra.mxu0 %v1200
  %v1312 = vpop.f32.mrf.mxu0
  %v1313 = vadd.f32 0.0, %v1312
  %1314 = vmatmul.f32.gmra.mxu0 %v1203
  %v1315 = vpop.f32.mrf.mxu0
  %v1316 = vadd.f32 0.0, %v1315
  %1317 = vmatmul.f32.gmra.mxu0 %v1206
  %v1318 = vpop.f32.mrf.mxu0
  %v1319 = vadd.f32 0.0, %v1318
  %1320 = vmatmul.f32.gmra.mxu0 %v1209
  %v1321 = vpop.f32.mrf.mxu0
  %v1322 = vadd.f32 0.0, %v1321
  %1323 = vdwg.mxu0
  %1324 = vmatpush.msra.mxu0 0.0
  %1325 = vmatpush.msra.mxu0 0.0
  %1326 = vmatpush.msra.mxu0 0.0
  %1327 = vmatpush.msra.mxu0 0.0
  %1328 = vmatpush.msra.mxu0 0.0
  %1329 = vmatpush.msra.mxu0 0.0
  %1330 = vmatpush.msra.mxu0 0.0
  %1331 = vmatpush.msra.mxu0 0.0
  %1332 = vmatpush.msra.mxu0 0.0
  %1333 = vmatpush.msra.mxu0 0.0
  %1334 = vmatpush.msra.mxu0 0.0
  %1335 = vmatpush.msra.mxu0 0.0
  %1336 = vmatpush.msra.mxu0 0.0
  %1337 = vmatpush.msra.mxu0 0.0
  %1338 = vmatpush.msra.mxu0 %v167
  %1339 = vmatpush.msra.mxu0 %v165
  %1340 = vmatmul.f32.gmra.mxu0 %v1116
  %v1341 = vpop.f32.mrf.mxu0
  %v1342 = vadd.f32 0.0, %v1341
  %1343 = vmatmul.f32.gmra.mxu0 %v1119
  %v1344 = vpop.f32.mrf.mxu0
  %v1345 = vadd.f32 0.0, %v1344
  %1346 = vmatmul.f32.gmra.mxu0 %v1122
  %v1347 = vpop.f32.mrf.mxu0
  %v1348 = vadd.f32 0.0, %v1347
  %1349 = vmatmul.f32.gmra.mxu0 %v1125
  %v1350 = vpop.f32.mrf.mxu0
  %v1351 = vadd.f32 0.0, %v1350
  %1352 = vmatmul.f32.gmra.mxu0 %v1128
  %v1353 = vpop.f32.mrf.mxu0
  %v1354 = vadd.f32 0.0, %v1353
  %1355 = vmatmul.f32.gmra.mxu0 %v1131
  %v1356 = vpop.f32.mrf.mxu0
  %v1357 = vadd.f32 0.0, %v1356
  %1358 = vmatmul.f32.gmra.mxu0 %v1134
  %v1359 = vpop.f32.mrf.mxu0
  %v1360 = vadd.f32 0.0, %v1359
  %1361 = vmatmul.f32.gmra.mxu0 %v1137
  %v1362 = vpop.f32.mrf.mxu0
  %v1363 = vadd.f32 0.0, %v1362
  %1364 = vmatmul.f32.gmra.mxu0 %v1140
  %v1365 = vpop.f32.mrf.mxu0
  %v1366 = vadd.f32 0.0, %v1365
  %1367 = vmatmul.f32.gmra.mxu0 %v1143
  %v1368 = vpop.f32.mrf.mxu0
  %v1369 = vadd.f32 0.0, %v1368
  %1370 = vmatmul.f32.gmra.mxu0 %v1146
  %v1371 = vpop.f32.mrf.mxu0
  %v1372 = vadd.f32 0.0, %v1371
  %1373 = vmatmul.f32.gmra.mxu0 %v1149
  %v1374 = vpop.f32.mrf.mxu0
  %v1375 = vadd.f32 0.0, %v1374
  %1376 = vmatmul.f32.gmra.mxu0 %v1152
  %v1377 = vpop.f32.mrf.mxu0
  %v1378 = vadd.f32 0.0, %v1377
  %1379 = vmatmul.f32.gmra.mxu0 %v1155
  %v1380 = vpop.f32.mrf.mxu0
  %v1381 = vadd.f32 0.0, %v1380
  %1382 = vmatmul.f32.gmra.mxu0 %v1158
  %v1383 = vpop.f32.mrf.mxu0
  %v1384 = vadd.f32 0.0, %v1383
  %1385 = vmatmul.f32.gmra.mxu0 %v1161
  %v1386 = vpop.f32.mrf.mxu0
  %v1387 = vadd.f32 0.0, %v1386
  %1388 = vmatmul.f32.gmra.mxu0 %v1164
  %v1389 = vpop.f32.mrf.mxu0
  %v1390 = vadd.f32 0.0, %v1389
  %1391 = vmatmul.f32.gmra.mxu0 %v1167
  %v1392 = vpop.f32.mrf.mxu0
  %v1393 = vadd.f32 0.0, %v1392
  %1394 = vmatmul.f32.gmra.mxu0 %v1170
  %v1395 = vpop.f32.mrf.mxu0
  %v1396 = vadd.f32 0.0, %v1395
  %1397 = vmatmul.f32.gmra.mxu0 %v1173
  %v1398 = vpop.f32.mrf.mxu0
  %v1399 = vadd.f32 0.0, %v1398
  %1400 = vmatmul.f32.gmra.mxu0 %v1176
  %v1401 = vpop.f32.mrf.mxu0
  %v1402 = vadd.f32 0.0, %v1401
  %1403 = vmatmul.f32.gmra.mxu0 %v1179
  %v1404 = vpop.f32.mrf.mxu0
  %v1405 = vadd.f32 0.0, %v1404
  %1406 = vmatmul.f32.gmra.mxu0 %v1182
  %v1407 = vpop.f32.mrf.mxu0
  %v1408 = vadd.f32 0.0, %v1407
  %1409 = vmatmul.f32.gmra.mxu0 %v1185
  %v1410 = vpop.f32.mrf.mxu0
  %v1411 = vadd.f32 0.0, %v1410
  %1412 = vmatmul.f32.gmra.mxu0 %v1188
  %v1413 = vpop.f32.mrf.mxu0
  %v1414 = vadd.f32 0.0, %v1413
  %1415 = vmatmul.f32.gmra.mxu0 %v1191
  %v1416 = vpop.f32.mrf.mxu0
  %v1417 = vadd.f32 0.0, %v1416
  %1418 = vmatmul.f32.gmra.mxu0 %v1194
  %v1419 = vpop.f32.mrf.mxu0
  %v1420 = vadd.f32 0.0, %v1419
  %1421 = vmatmul.f32.gmra.mxu0 %v1197
  %v1422 = vpop.f32.mrf.mxu0
  %v1423 = vadd.f32 0.0, %v1422
  %1424 = vmatmul.f32.gmra.mxu0 %v1200
  %v1425 = vpop.f32.mrf.mxu0
  %v1426 = vadd.f32 0.0, %v1425
  %1427 = vmatmul.f32.gmra.mxu0 %v1203
  %v1428 = vpop.f32.mrf.mxu0
  %v1429 = vadd.f32 0.0, %v1428
  %1430 = vmatmul.f32.gmra.mxu0 %v1206
  %v1431 = vpop.f32.mrf.mxu0
  %v1432 = vadd.f32 0.0, %v1431
  %1433 = vmatmul.f32.gmra.mxu0 %v1209
  %v1434 = vpop.f32.mrf.mxu0
  %v1435 = vadd.f32 0.0, %v1434
  %1436 = vdwg.mxu0
  %v1437 = vmul.f32 %v1229, %v1342
  %v1438 = vmul.f32 %v1232, %v1345
  %v1439 = vmul.f32 %v1235, %v1348
  %v1440 = vmul.f32 %v1238, %v1351
  %v1441 = vmul.f32 %v1241, %v1354
  %v1442 = vmul.f32 %v1244, %v1357
  %v1443 = vmul.f32 %v1247, %v1360
  %v1444 = vmul.f32 %v1250, %v1363
  %v1445 = vmul.f32 %v1253, %v1366
  %v1446 = vmul.f32 %v1256, %v1369
  %v1447 = vmul.f32 %v1259, %v1372
  %v1448 = vmul.f32 %v1262, %v1375
  %v1449 = vmul.f32 %v1265, %v1378
  %v1450 = vmul.f32 %v1268, %v1381
  %v1451 = vmul.f32 %v1271, %v1384
  %v1452 = vmul.f32 %v1274, %v1387
  %v1453 = vmul.f32 %v1277, %v1390
  %v1454 = vmul.f32 %v1280, %v1393
  %v1455 = vmul.f32 %v1283, %v1396
  %v1456 = vmul.f32 %v1286, %v1399
  %v1457 = vmul.f32 %v1289, %v1402
  %v1458 = vmul.f32 %v1292, %v1405
  %v1459 = vmul.f32 %v1295, %v1408
  %v1460 = vmul.f32 %v1298, %v1411
  %v1461 = vmul.f32 %v1301, %v1414
  %v1462 = vmul.f32 %v1304, %v1417
  %v1463 = vmul.f32 %v1307, %v1420
  %v1464 = vmul.f32 %v1310, %v1423
  %v1465 = vmul.f32 %v1313, %v1426
  %v1466 = vmul.f32 %v1316, %v1429
  %v1467 = vmul.f32 %v1319, %v1432
  %v1468 = vmul.f32 %v1322, %v1435
  %1469 = vmatpush.msra.mxu0 %v1452
  %1470 = vmatpush.msra.mxu0 %v1451
  %1471 = vmatpush.msra.mxu0 %v1450
  %1472 = vmatpush.msra.mxu0 %v1449
  %1473 = vmatpush.msra.mxu0 %v1448
  %1474 = vmatpush.msra.mxu0 %v1447
  %1475 = vmatpush.msra.mxu0 %v1446
  %1476 = vmatpush.msra.mxu0 %v1445
  %1477 = vmatpush.msra.mxu0 %v1444
  %1478 = vmatpush.msra.mxu0 %v1443
  %1479 = vmatpush.msra.mxu0 %v1442
  %1480 = vmatpush.msra.mxu0 %v1441
  %1481 = vmatpush.msra.mxu0 %v1440
  %1482 = vmatpush.msra.mxu0 %v1439
  %1483 = vmatpush.msra.mxu0 %v1438
  %1484 = vmatpush.msra.mxu0 %v1437
  %1485 = vmatmul.f32.gmra.mxu0 %v206
  %v1486 = vpop.f32.mrf.mxu0
  %v1487 = vadd.f32 0.0, %v1486
  %1488 = vmatmul.f32.gmra.mxu0 %v208
  %v1489 = vpop.f32.mrf.mxu0
  %v1490 = vadd.f32 0.0, %v1489
  %1491 = vmatmul.f32.gmra.mxu0 %v210
  %v1492 = vpop.f32.mrf.mxu0
  %v1493 = vadd.f32 0.0, %v1492
  %1494 = vdwg.mxu0
  %1495 = vmatpush.msra.mxu0 %v1468
  %1496 = vmatpush.msra.mxu0 %v1467
  %1497 = vmatpush.msra.mxu0 %v1466
  %1498 = vmatpush.msra.mxu0 %v1465
  %1499 = vmatpush.msra.mxu0 %v1464
  %1500 = vmatpush.msra.mxu0 %v1463
  %1501 = vmatpush.msra.mxu0 %v1462
  %1502 = vmatpush.msra.mxu0 %v1461
  %1503 = vmatpush.msra.mxu0 %v1460
  %1504 = vmatpush.msra.mxu0 %v1459
  %1505 = vmatpush.msra.mxu0 %v1458
  %1506 = vmatpush.msra.mxu0 %v1457
  %1507 = vmatpush.msra.mxu0 %v1456
  %1508 = vmatpush.msra.mxu0 %v1455
  %1509 = vmatpush.msra.mxu0 %v1454
  %1510 = vmatpush.msra.mxu0 %v1453
  %1511 = vmatmul.f32.gmra.mxu0 %v207
  %v1512 = vpop.f32.mrf.mxu0
  %v1513 = vadd.f32 %v1487, %v1512
  %1514 = vmatmul.f32.gmra.mxu0 %v209
  %v1515 = vpop.f32.mrf.mxu0
  %v1516 = vadd.f32 %v1490, %v1515
  %1517 = vmatmul.f32.gmra.mxu0 %v211
  %v1518 = vpop.f32.mrf.mxu0
  %v1519 = vadd.f32 %v1493, %v1518
  %1520 = vdwg.mxu0
  %v1521 = vmul.f32 %v907, %v1020
  %v1522 = vmul.f32 %v910, %v1023
  %v1523 = vmul.f32 %v913, %v1026
  %v1524 = vmul.f32 %v916, %v1029
  %v1525 = vmul.f32 %v919, %v1032
  %v1526 = vmul.f32 %v922, %v1035
  %v1527 = vmul.f32 %v925, %v1038
  %v1528 = vmul.f32 %v928, %v1041
  %v1529 = vmul.f32 %v931, %v1044
  %v1530 = vmul.f32 %v934, %v1047
  %v1531 = vmul.f32 %v937, %v1050
  %v1532 = vmul.f32 %v940, %v1053
  %v1533 = vmul.f32 %v943, %v1056
  %v1534 = vmul.f32 %v946, %v1059
  %v1535 = vmul.f32 %v949, %v1062
  %v1536 = vmul.f32 %v952, %v1065
  %v1537 = vmul.f32 %v955, %v1068
  %v1538 = vmul.f32 %v958, %v1071
  %v1539 = vmul.f32 %v961, %v1074
  %v1540 = vmul.f32 %v964, %v1077
  %v1541 = vmul.f32 %v967, %v1080
  %v1542 = vmul.f32 %v970, %v1083
  %v1543 = vmul.f32 %v973, %v1086
  %v1544 = vmul.f32 %v976, %v1089
  %v1545 = vmul.f32 %v979, %v1092
  %v1546 = vmul.f32 %v982, %v1095
  %v1547 = vmul.f32 %v985, %v1098
  %v1548 = vmul.f32 %v988, %v1101
  %v1549 = vmul.f32 %v991, %v1104
  %v1550 = vmul.f32 %v994, %v1107
  %v1551 = vmul.f32 %v997, %v1110
  %v1552 = vmul.f32 %v1000, %v1113
  %1553 = vmatpush.msra.mxu0 %v1536
  %1554 = vmatpush.msra.mxu0 %v1535
  %1555 = vmatpush.msra.mxu0 %v1534
  %1556 = vmatpush.msra.mxu0 %v1533
  %1557 = vmatpush.msra.mxu0 %v1532
  %1558 = vmatpush.msra.mxu0 %v1531
  %1559 = vmatpush.msra.mxu0 %v1530
  %1560 = vmatpush.msra.mxu0 %v1529
  %1561 = vmatpush.msra.mxu0 %v1528
  %1562 = vmatpush.msra.mxu0 %v1527
  %1563 = vmatpush.msra.mxu0 %v1526
  %1564 = vmatpush.msra.mxu0 %v1525
  %1565 = vmatpush.msra.mxu0 %v1524
  %1566 = vmatpush.msra.mxu0 %v1523
  %1567 = vmatpush.msra.mxu0 %v1522
  %1568 = vmatpush.msra.mxu0 %v1521
  %1569 = vmatmul.f32.gmra.mxu0 %v200
  %v1570 = vpop.f32.mrf.mxu0
  %v1571 = vadd.f32 0.0, %v1570
  %1572 = vmatmul.f32.gmra.mxu0 %v202
  %v1573 = vpop.f32.mrf.mxu0
  %v1574 = vadd.f32 0.0, %v1573
  %1575 = vmatmul.f32.gmra.mxu0 %v204
  %v1576 = vpop.f32.mrf.mxu0
  %v1577 = vadd.f32 0.0, %v1576
  %1578 = vdwg.mxu0
  %1579 = vmatpush.msra.mxu0 %v1552
  %1580 = vmatpush.msra.mxu0 %v1551
  %1581 = vmatpush.msra.mxu0 %v1550
  %1582 = vmatpush.msra.mxu0 %v1549
  %1583 = vmatpush.msra.mxu0 %v1548
  %1584 = vmatpush.msra.mxu0 %v1547
  %1585 = vmatpush.msra.mxu0 %v1546
  %1586 = vmatpush.msra.mxu0 %v1545
  %1587 = vmatpush.msra.mxu0 %v1544
  %1588 = vmatpush.msra.mxu0 %v1543
  %1589 = vmatpush.msra.mxu0 %v1542
  %1590 = vmatpush.msra.mxu0 %v1541
  %1591 = vmatpush.msra.mxu0 %v1540
  %1592 = vmatpush.msra.mxu0 %v1539
  %1593 = vmatpush.msra.mxu0 %v1538
  %1594 = vmatpush.msra.mxu0 %v1537
  %1595 = vmatmul.f32.gmra.mxu0 %v201
  %v1596 = vpop.f32.mrf.mxu0
  %v1597 = vadd.f32 %v1571, %v1596
  %1598 = vmatmul.f32.gmra.mxu0 %v203
  %v1599 = vpop.f32.mrf.mxu0
  %v1600 = vadd.f32 %v1574, %v1599
  %1601 = vmatmul.f32.gmra.mxu0 %v205
  %v1602 = vpop.f32.mrf.mxu0
  %v1603 = vadd.f32 %v1577, %v1602
  %1604 = vdwg.mxu0
  %v1606 = vsel %vm792, %v667, 0
  %v1609 = vsel %vm792, %v679, 0
  %v1612 = vsel %vm792, %v691, 0
  %1614 = vmatpush.msra.mxu0 0.0
  %1615 = vmatpush.msra.mxu0 0.0
  %1616 = vmatpush.msra.mxu0 0.0
  %1617 = vmatpush.msra.mxu0 0.0
  %1618 = vmatpush.msra.mxu0 0.0
  %1619 = vmatpush.msra.mxu0 0.0
  %1620 = vmatpush.msra.mxu0 0.0
  %1621 = vmatpush.msra.mxu0 0.0
  %1622 = vmatpush.msra.mxu0 0.0
  %1623 = vmatpush.msra.mxu0 0.0
  %1624 = vmatpush.msra.mxu0 0.0
  %1625 = vmatpush.msra.mxu0 0.0
  %1626 = vmatpush.msra.mxu0 0.0
  %1627 = vmatpush.msra.mxu0 0.0
  %1628 = vmatpush.msra.mxu0 %v166
  %1629 = vmatpush.msra.mxu0 %v164
  %1630 = vmatmul.f32.gmra.mxu0 %v1606
  %v1631 = vpop.f32.mrf.mxu0
  %v1632 = vadd.f32 0.0, %v1631
  %1633 = vmatmul.f32.gmra.mxu0 %v1609
  %v1634 = vpop.f32.mrf.mxu0
  %v1635 = vadd.f32 0.0, %v1634
  %1636 = vmatmul.f32.gmra.mxu0 %v1612
  %v1637 = vpop.f32.mrf.mxu0
  %v1638 = vadd.f32 0.0, %v1637
  %1639 = vdwg.mxu0
  %1640 = vmatpush.msra.mxu0 0.0
  %1641 = vmatpush.msra.mxu0 0.0
  %1642 = vmatpush.msra.mxu0 0.0
  %1643 = vmatpush.msra.mxu0 0.0
  %1644 = vmatpush.msra.mxu0 0.0
  %1645 = vmatpush.msra.mxu0 0.0
  %1646 = vmatpush.msra.mxu0 0.0
  %1647 = vmatpush.msra.mxu0 0.0
  %1648 = vmatpush.msra.mxu0 0.0
  %1649 = vmatpush.msra.mxu0 0.0
  %1650 = vmatpush.msra.mxu0 0.0
  %1651 = vmatpush.msra.mxu0 0.0
  %1652 = vmatpush.msra.mxu0 0.0
  %1653 = vmatpush.msra.mxu0 0.0
  %1654 = vmatpush.msra.mxu0 %v167
  %1655 = vmatpush.msra.mxu0 %v165
  %1656 = vmatmul.f32.gmra.mxu0 %v1606
  %v1657 = vpop.f32.mrf.mxu0
  %v1658 = vadd.f32 0.0, %v1657
  %1659 = vmatmul.f32.gmra.mxu0 %v1609
  %v1660 = vpop.f32.mrf.mxu0
  %v1661 = vadd.f32 0.0, %v1660
  %1662 = vmatmul.f32.gmra.mxu0 %v1612
  %v1663 = vpop.f32.mrf.mxu0
  %v1664 = vadd.f32 0.0, %v1663
  %1665 = vdwg.mxu0
  %v1666 = vmul.f32 %v1632, %v1658
  %v1667 = vmul.f32 %v1635, %v1661
  %v1668 = vmul.f32 %v1638, %v1664
  %v1669 = vadd.f32 %v1666, 0.01
  %v1670 = vadd.f32 %v1667, 0.01
  %v1671 = vadd.f32 %v1668, 0.01
  %v1672 = vrcp.pop %v1669
  %v1673 = vmul.f32 %v1669, %v1672
  %v1674 = vsub.f32 1.0, %v1673
  %v1675 = vmul.f32 %v1672, %v1674
  %v1676 = vadd.f32 %v1672, %v1675
  %vm1677 = vweird.f32 %v1669
  %vm1678 = vweird.f32 %v1672
  %vm1679 = vmor %vm1677, %vm1678
  %v1680 = vsel %vm1679, %v1672, %v1676
  %v1681 = vand.u32 2147483647, %v1669
  %vm1682 = vcmp.eq.f32.partialorder %v1681, 8.507059e+37
  %v1683 = vand.u32 %v1669, 2147483648
  %v1684 = vor.u32 1.1754944e-38, %v1683
  %v1685 = vsel %vm1682, %v1684, %v1680
  %v1686 = vrcp.pop %v1670
  %v1687 = vmul.f32 %v1670, %v1686
  %v1688 = vsub.f32 1.0, %v1687
  %v1689 = vmul.f32 %v1686, %v1688
  %v1690 = vadd.f32 %v1686, %v1689
  %vm1691 = vweird.f32 %v1670
  %vm1692 = vweird.f32 %v1686
  %vm1693 = vmor %vm1691, %vm1692
  %v1694 = vsel %vm1693, %v1686, %v1690
  %v1695 = vand.u32 2147483647, %v1670
  %vm1696 = vcmp.eq.f32.partialorder %v1695, 8.507059e+37
  %v1697 = vand.u32 %v1670, 2147483648
  %v1698 = vor.u32 1.1754944e-38, %v1697
  %v1699 = vsel %vm1696, %v1698, %v1694
  %v1700 = vrcp.pop %v1671
  %v1701 = vmul.f32 %v1671, %v1700
  %v1702 = vsub.f32 1.0, %v1701
  %v1703 = vmul.f32 %v1700, %v1702
  %v1704 = vadd.f32 %v1700, %v1703
  %vm1705 = vweird.f32 %v1671
  %vm1706 = vweird.f32 %v1700
  %vm1707 = vmor %vm1705, %vm1706
  %v1708 = vsel %vm1707, %v1700, %v1704
  %v1709 = vand.u32 2147483647, %v1671
  %vm1710 = vcmp.eq.f32.partialorder %v1709, 8.507059e+37
  %v1711 = vand.u32 %v1671, 2147483648
  %v1712 = vor.u32 1.1754944e-38, %v1711
  %v1713 = vsel %vm1710, %v1712, %v1708
  %v1714 = vmul.f32 %v1513, %v1685
  %v1715 = vmul.f32 %v1516, %v1699
  %v1716 = vmul.f32 %v1519, %v1713
  %1717 = vrot.lane.b32.xlu0 %v667, 16
  %v1718 = vpop.permute.xlu0 %1717
  %1719 = vrot.lane.b32.xlu0 %v679, 16
  %v1720 = vpop.permute.xlu0 %1719
  %1721 = vrot.lane.b32.xlu0 %v691, 16
  %v1722 = vpop.permute.xlu0 %1721
  %1729 = vrot.lane.b32.xlu0 %v319, 32
  %v1730 = vpop.permute.xlu0 %1729
  %1731 = vrot.lane.b32.xlu0 %v322, 32
  %v1732 = vpop.permute.xlu0 %1731
  %1733 = vrot.lane.b32.xlu0 %v325, 32
  %v1734 = vpop.permute.xlu0 %1733
  %1741 = vrot.lane.b32.xlu0 %v789, 48
  %v1742 = vpop.permute.xlu0 %1741
  %1743 = vrot.lane.b32.xlu0 %v790, 48
  %v1744 = vpop.permute.xlu0 %1743
  %1745 = vrot.lane.b32.xlu0 %v791, 48
  %v1746 = vpop.permute.xlu0 %1745
  %v1750 = vsel %vm792, %v736, %v1718
  %v1751 = vsel %vm792, %v739, %v1720
  %v1752 = vsel %vm792, %v742, %v1722
  %vm1753 = vcmask 261120
  %v1754 = vsel %vm1753, %v1750, %v1730
  %v1755 = vsel %vm1753, %v1751, %v1732
  %v1756 = vsel %vm1753, %v1752, %v1734
  %vm1757 = vcmask 392192
  %v1758 = vsel %vm1757, %v1754, %v1742
  %v1759 = vsel %vm1757, %v1755, %v1744
  %v1760 = vsel %vm1757, %v1756, %v1746
  %v1762 = vperm.slane %v274, 0
  %vm1764 = vcmask 523264
  %v1766 = vsel %vm1764, %v1758, 0
  %v1769 = vsel %vm1764, %v1759, 0
  %v1772 = vsel %vm1764, %v1760, 0
  %1774 = vmatpush.msra.mxu0 %v233
  %1775 = vmatpush.msra.mxu0 %v232
  %1776 = vmatpush.msra.mxu0 %v231
  %1777 = vmatpush.msra.mxu0 %v230
  %1778 = vmatpush.msra.mxu0 %v229
  %1779 = vmatpush.msra.mxu0 %v228
  %1780 = vmatpush.msra.mxu0 %v227
  %1781 = vmatpush.msra.mxu0 %v226
  %1782 = vmatpush.msra.mxu0 %v225
  %1783 = vmatpush.msra.mxu0 %v224
  %1784 = vmatpush.msra.mxu0 %v223
  %1785 = vmatpush.msra.mxu0 %v222
  %1786 = vmatpush.msra.mxu0 %v221
  %1787 = vmatpush.msra.mxu0 %v220
  %1788 = vmatpush.msra.mxu0 %v219
  %1789 = vmatpush.msra.mxu0 %v218
  %1790 = vmatmul.f32.gmra.mxu0 %v1513
  %v1791 = vpop.f32.mrf.mxu0
  %v1792 = vadd.f32 %v1762, %v1791
  %1793 = vmatmul.f32.gmra.mxu0 %v1516
  %v1794 = vpop.f32.mrf.mxu0
  %v1795 = vadd.f32 %v1762, %v1794
  %1796 = vmatmul.f32.gmra.mxu0 %v1519
  %v1797 = vpop.f32.mrf.mxu0
  %v1798 = vadd.f32 %v1762, %v1797
  %1799 = vdwg.mxu0
  %1800 = vmatpush.msra.mxu0 %v249
  %1801 = vmatpush.msra.mxu0 %v248
  %1802 = vmatpush.msra.mxu0 %v247
  %1803 = vmatpush.msra.mxu0 %v246
  %1804 = vmatpush.msra.mxu0 %v245
  %1805 = vmatpush.msra.mxu0 %v244
  %1806 = vmatpush.msra.mxu0 %v243
  %1807 = vmatpush.msra.mxu0 %v242
  %1808 = vmatpush.msra.mxu0 %v241
  %1809 = vmatpush.msra.mxu0 %v240
  %1810 = vmatpush.msra.mxu0 %v239
  %1811 = vmatpush.msra.mxu0 %v238
  %1812 = vmatpush.msra.mxu0 %v237
  %1813 = vmatpush.msra.mxu0 %v236
  %1814 = vmatpush.msra.mxu0 %v235
  %1815 = vmatpush.msra.mxu0 %v234
  %1816 = vmatmul.f32.gmra.mxu0 %v1714
  %v1817 = vpop.f32.mrf.mxu0
  %v1818 = vadd.f32 %v1792, %v1817
  %1819 = vmatmul.f32.gmra.mxu0 %v1715
  %v1820 = vpop.f32.mrf.mxu0
  %v1821 = vadd.f32 %v1795, %v1820
  %1822 = vmatmul.f32.gmra.mxu0 %v1716
  %v1823 = vpop.f32.mrf.mxu0
  %v1824 = vadd.f32 %v1798, %v1823
  %1825 = vdwg.mxu0
  %1826 = vmatpush.msra.mxu0 %v265
  %1827 = vmatpush.msra.mxu0 %v264
  %1828 = vmatpush.msra.mxu0 %v263
  %1829 = vmatpush.msra.mxu0 %v262
  %1830 = vmatpush.msra.mxu0 %v261
  %1831 = vmatpush.msra.mxu0 %v260
  %1832 = vmatpush.msra.mxu0 %v259
  %1833 = vmatpush.msra.mxu0 %v258
  %1834 = vmatpush.msra.mxu0 %v257
  %1835 = vmatpush.msra.mxu0 %v256
  %1836 = vmatpush.msra.mxu0 %v255
  %1837 = vmatpush.msra.mxu0 %v254
  %1838 = vmatpush.msra.mxu0 %v253
  %1839 = vmatpush.msra.mxu0 %v252
  %1840 = vmatpush.msra.mxu0 %v251
  %1841 = vmatpush.msra.mxu0 %v250
  %1842 = vmatmul.f32.gmra.mxu0 %v1597
  %v1843 = vpop.f32.mrf.mxu0
  %v1844 = vadd.f32 %v1818, %v1843
  %1845 = vmatmul.f32.gmra.mxu0 %v1600
  %v1846 = vpop.f32.mrf.mxu0
  %v1847 = vadd.f32 %v1821, %v1846
  %1848 = vmatmul.f32.gmra.mxu0 %v1603
  %v1849 = vpop.f32.mrf.mxu0
  %v1850 = vadd.f32 %v1824, %v1849
  %1851 = vdwg.mxu0
  %1852 = vmatpush.msra.mxu0 0.0
  %1853 = vmatpush.msra.mxu0 0.0
  %1854 = vmatpush.msra.mxu0 0.0
  %1855 = vmatpush.msra.mxu0 0.0
  %1856 = vmatpush.msra.mxu0 0.0
  %1857 = vmatpush.msra.mxu0 0.0
  %1858 = vmatpush.msra.mxu0 0.0
  %1859 = vmatpush.msra.mxu0 0.0
  %1860 = vmatpush.msra.mxu0 %v273
  %1861 = vmatpush.msra.mxu0 %v272
  %1862 = vmatpush.msra.mxu0 %v271
  %1863 = vmatpush.msra.mxu0 %v270
  %1864 = vmatpush.msra.mxu0 %v269
  %1865 = vmatpush.msra.mxu0 %v268
  %1866 = vmatpush.msra.mxu0 %v267
  %1867 = vmatpush.msra.mxu0 %v266
  %1868 = vmatmul.f32.gmra.mxu0 %v1766
  %v1869 = vpop.f32.mrf.mxu0
  %v1870 = vadd.f32 %v1844, %v1869
  %1871 = vmatmul.f32.gmra.mxu0 %v1769
  %v1872 = vpop.f32.mrf.mxu0
  %v1873 = vadd.f32 %v1847, %v1872
  %1874 = vmatmul.f32.gmra.mxu0 %v1772
  %v1875 = vpop.f32.mrf.mxu0
  %v1876 = vadd.f32 %v1850, %v1875
  %1877 = vdwg.mxu0
  %v1878 = vld [vmem:[%s13] sm:$0xff]
  %v1879 = vld [vmem:[%s13 + $0x8] sm:$0xff]
  %v1880 = vld [vmem:[%s13 + $0x10] sm:$0xff]
  %v1881 = vld [vmem:[%s13 + $0x18] sm:$0xff]
  %v1882 = vld [vmem:[%s13 + $0x20] sm:$0xff]
  %v1883 = vld [vmem:[%s13 + $0x28] sm:$0xff]
  %v1884 = vld [vmem:[%s13 + $0x30] sm:$0xff]
  %v1885 = vld [vmem:[%s13 + $0x38] sm:$0xff]
  %v1886 = vld [vmem:[%s13 + $0x40] sm:$0xff]
  %v1887 = vld [vmem:[%s13 + $0x48] sm:$0xff]
  %v1888 = vld [vmem:[%s13 + $0x50] sm:$0xff]
  %v1889 = vld [vmem:[%s13 + $0x58] sm:$0xff]
  %v1890 = vld [vmem:[%s13 + $0x60] sm:$0xff]
  %v1891 = vld [vmem:[%s13 + $0x68] sm:$0xff]
  %v1892 = vld [vmem:[%s13 + $0x70] sm:$0xff]
  %v1893 = vld [vmem:[%s13 + $0x78] sm:$0xff]
  %v1894 = vld [vmem:[%s13 + $0x80] sm:$0xff]
  %v1895 = vld [vmem:[%s13 + $0x88] sm:$0xff]
  %v1896 = vld [vmem:[%s13 + $0x90] sm:$0xff]
  %v1897 = vld [vmem:[%s13 + $0x98] sm:$0xff]
  %v1898 = vld [vmem:[%s13 + $0xa0] sm:$0xff]
  %v1899 = vld [vmem:[%s13 + $0xa8] sm:$0xff]
  %v1900 = vld [vmem:[%s13 + $0xb0] sm:$0xff]
  %v1901 = vld [vmem:[%s13 + $0xb8] sm:$0xff]
  %v1902 = vld [vmem:[%s13 + $0xc0] sm:$0xff]
  %v1903 = vld [vmem:[%s13 + $0xc8] sm:$0xff]
  %v1904 = vld [vmem:[%s13 + $0xd0] sm:$0xff]
  %v1905 = vld [vmem:[%s13 + $0xd8] sm:$0xff]
  %v1906 = vld [vmem:[%s13 + $0xe0] sm:$0xff]
  %v1907 = vld [vmem:[%s13 + $0xe8] sm:$0xff]
  %v1908 = vld [vmem:[%s13 + $0xf0] sm:$0xff]
  %v1909 = vld [vmem:[%s13 + $0xf8] sm:$0xff]
  %v1910 = vld [vmem:[%s15] sm:$0xff]
  %v1911 = vld [vmem:[%s15 + $0x8] sm:$0xff]
  %v1912 = vld [vmem:[%s15 + $0x10] sm:$0xff]
  %v1913 = vld [vmem:[%s15 + $0x18] sm:$0xff]
  %v1914 = vld [vmem:[%s15 + $0x20] sm:$0xff]
  %v1915 = vld [vmem:[%s15 + $0x28] sm:$0xff]
  %v1916 = vld [vmem:[%s15 + $0x30] sm:$0xff]
  %v1917 = vld [vmem:[%s15 + $0x38] sm:$0xff]
  %v1918 = vld [vmem:[%s15 + $0x40] sm:$0xff]
  %v1919 = vld [vmem:[%s15 + $0x48] sm:$0xff]
  %v1920 = vld [vmem:[%s15 + $0x50] sm:$0xff]
  %v1921 = vld [vmem:[%s15 + $0x58] sm:$0xff]
  %v1922 = vld [vmem:[%s15 + $0x60] sm:$0xff]
  %v1923 = vld [vmem:[%s15 + $0x68] sm:$0xff]
  %v1924 = vld [vmem:[%s15 + $0x70] sm:$0xff]
  %v1925 = vld [vmem:[%s15 + $0x78] sm:$0xff]
  %v1926 = vld [vmem:[%s15 + $0x80] sm:$0xff]
  %v1927 = vld [vmem:[%s15 + $0x88] sm:$0xff]
  %v1928 = vld [vmem:[%s15 + $0x90] sm:$0xff]
  %v1929 = vld [vmem:[%s15 + $0x98] sm:$0xff]
  %v1930 = vld [vmem:[%s17] sm:$0xff]
  %v1931 = vld [vmem:[%s17 + $0x8] sm:$0xff]
  %v1932 = vld [vmem:[%s17 + $0x10] sm:$0xff]
  %v1933 = vld [vmem:[%s17 + $0x18] sm:$0xff]
  %v1934 = vld [vmem:[%s17 + $0x20] sm:$0xff]
  %v1935 = vld [vmem:[%s17 + $0x28] sm:$0xff]
  %v1936 = vld [vmem:[%s17 + $0x30] sm:$0xff]
  %v1937 = vld [vmem:[%s17 + $0x38] sm:$0xff]
  %v1938 = vld [vmem:[%s17 + $0x40] sm:$0xff]
  %v1939 = vld [vmem:[%s17 + $0x48] sm:$0xff]
  %v1940 = vld [vmem:[%s17 + $0x50] sm:$0xff]
  %v1941 = vld [vmem:[%s17 + $0x58] sm:$0xff]
  %v1942 = vld [vmem:[%s17 + $0x60] sm:$0xff]
  %v1943 = vld [vmem:[%s17 + $0x68] sm:$0xff]
  %v1944 = vld [vmem:[%s17 + $0x70] sm:$0xff]
  %v1945 = vld [vmem:[%s17 + $0x78] sm:$0xff]
  %v1946 = vld [vmem:[%s17 + $0x80] sm:$0xff]
  %v1947 = vld [vmem:[%s17 + $0x88] sm:$0xff]
  %v1948 = vld [vmem:[%s17 + $0x90] sm:$0xff]
  %v1949 = vld [vmem:[%s17 + $0x98] sm:$0xff]
  %v1950 = vld [vmem:[%s19] sm:$0xff]
  %v1951 = vld [vmem:[%s19 + $0x8] sm:$0xff]
  %v1952 = vld [vmem:[%s19 + $0x10] sm:$0xff]
  %v1953 = vld [vmem:[%s19 + $0x18] sm:$0xff]
  %v1954 = vld [vmem:[%s19 + $0x20] sm:$0xff]
  %v1955 = vld [vmem:[%s19 + $0x28] sm:$0xff]
  %v1956 = vld [vmem:[%s19 + $0x30] sm:$0xff]
  %v1957 = vld [vmem:[%s19 + $0x38] sm:$0xff]
  %v1958 = vld [vmem:[%s19 + $0x40] sm:$0xff]
  %v1959 = vld [vmem:[%s19 + $0x48] sm:$0xff]
  %v1960 = vld [vmem:[%s19 + $0x50] sm:$0xff]
  %v1961 = vld [vmem:[%s19 + $0x58] sm:$0xff]
  %v1962 = vld [vmem:[%s19 + $0x60] sm:$0xff]
  %v1963 = vld [vmem:[%s19 + $0x68] sm:$0xff]
  %v1964 = vld [vmem:[%s19 + $0x70] sm:$0xff]
  %v1965 = vld [vmem:[%s19 + $0x78] sm:$0xff]
  %v1966 = vld [vmem:[%s19 + $0x80] sm:$0xff]
  %v1967 = vld [vmem:[%s19 + $0x88] sm:$0xff]
  %v1968 = vld [vmem:[%s19 + $0x90] sm:$0xff]
  %v1969 = vld [vmem:[%s19 + $0x98] sm:$0xff]
  %v1970 = vld [vmem:[%s37] sm:$0xff]
  %v1971 = vld [vmem:[%s37 + $0x8] sm:$0xff]
  %v1972 = vld [vmem:[%s37 + $0x10] sm:$0xff]
  %v1973 = vld [vmem:[%s37 + $0x18] sm:$0xff]
  %v1974 = vld [vmem:[%s37 + $0x20] sm:$0xff]
  %v1975 = vld [vmem:[%s37 + $0x28] sm:$0xff]
  %v1976 = vld [vmem:[%s37 + $0x30] sm:$0xff]
  %v1977 = vld [vmem:[%s37 + $0x38] sm:$0xff]
  %v1978 = vld [vmem:[%s37 + $0x40] sm:$0xff]
  %v1979 = vld [vmem:[%s37 + $0x48] sm:$0xff]
  %v1980 = vld [vmem:[%s37 + $0x50] sm:$0xff]
  %v1981 = vld [vmem:[%s37 + $0x58] sm:$0xff]
  %v1982 = vld [vmem:[%s37 + $0x60] sm:$0xff]
  %v1983 = vld [vmem:[%s37 + $0x68] sm:$0xff]
  %v1984 = vld [vmem:[%s37 + $0x70] sm:$0xff]
  %v1985 = vld [vmem:[%s37 + $0x78] sm:$0xff]
  %v1986 = vld [vmem:[%s37 + $0x80] sm:$0xff]
  %v1987 = vld [vmem:[%s37 + $0x88] sm:$0xff]
  %v1988 = vld [vmem:[%s37 + $0x90] sm:$0xff]
  %v1989 = vld [vmem:[%s37 + $0x98] sm:$0xff]
  %v1990 = vld [vmem:[%s37 + $0xa0] sm:$0xff]
  %v1991 = vld [vmem:[%s37 + $0xa8] sm:$0xff]
  %v1992 = vld [vmem:[%s37 + $0xb0] sm:$0xff]
  %v1993 = vld [vmem:[%s37 + $0xb8] sm:$0xff]
  %v1994 = vld [vmem:[%s37 + $0xc0] sm:$0xff]
  %v1995 = vld [vmem:[%s37 + $0xc8] sm:$0xff]
  %v1996 = vld [vmem:[%s37 + $0xd0] sm:$0xff]
  %v1997 = vld [vmem:[%s37 + $0xd8] sm:$0xff]
  %v1998 = vld [vmem:[%s37 + $0xe0] sm:$0xff]
  %v1999 = vld [vmem:[%s37 + $0xe8] sm:$0xff]
  %v2000 = vld [vmem:[%s37 + $0xf0] sm:$0xff]
  %v2001 = vld [vmem:[%s37 + $0xf8] sm:$0xff]
  %v2002 = vld [vmem:[%s37 + $0x100] sm:$0xff]
  %v2003 = vld [vmem:[%s37 + $0x108] sm:$0xff]
  %v2004 = vld [vmem:[%s37 + $0x110] sm:$0xff]
  %v2005 = vld [vmem:[%s37 + $0x118] sm:$0xff]
  %v2006 = vld [vmem:[%s37 + $0x120] sm:$0xff]
  %v2007 = vld [vmem:[%s37 + $0x128] sm:$0xff]
  %v2008 = vld [vmem:[%s37 + $0x130] sm:$0xff]
  %v2009 = vld [vmem:[%s37 + $0x138] sm:$0xff]
  %v2010 = vld [vmem:[%s37 + $0x140] sm:$0xff]
  %v2011 = vld [vmem:[%s37 + $0x148] sm:$0xff]
  %v2012 = vld [vmem:[%s37 + $0x150] sm:$0xff]
  %v2013 = vld [vmem:[%s37 + $0x158] sm:$0xff]
  %v2014 = vld [vmem:[%s37 + $0x160] sm:$0xff]
  %v2015 = vld [vmem:[%s37 + $0x168] sm:$0xff]
  %v2016 = vld [vmem:[%s37 + $0x170] sm:$0xff]
  %v2017 = vld [vmem:[%s37 + $0x178] sm:$0xff]
  %v2018 = vld [vmem:[%s37 + $0x180] sm:$0xff]
  %v2019 = vld [vmem:[%s37 + $0x188] sm:$0xff]
  %v2020 = vld [vmem:[%s37 + $0x190] sm:$0xff]
  %v2021 = vld [vmem:[%s37 + $0x198] sm:$0xff]
  %v2022 = vld [vmem:[%s37 + $0x1a0] sm:$0xff]
  %v2023 = vld [vmem:[%s37 + $0x1a8] sm:$0xff]
  %v2024 = vld [vmem:[%s37 + $0x1b0] sm:$0xff]
  %v2025 = vld [vmem:[%s37 + $0x1b8] sm:$0xff]
  %v2026 = vld [vmem:[%s39] sm:$0x1]
  %2027 = vmatpush.msra.mxu0 %v147
  %2028 = vmatpush.msra.mxu0 %v146
  %2029 = vmatpush.msra.mxu0 %v145
  %2030 = vmatpush.msra.mxu0 %v144
  %2031 = vmatpush.msra.mxu0 %v143
  %2032 = vmatpush.msra.mxu0 %v142
  %2033 = vmatpush.msra.mxu0 %v141
  %2034 = vmatpush.msra.mxu0 %v140
  %2035 = vmatpush.msra.mxu0 %v139
  %2036 = vmatpush.msra.mxu0 %v138
  %2037 = vmatpush.msra.mxu0 %v137
  %2038 = vmatpush.msra.mxu0 %v136
  %2039 = vmatpush.msra.mxu0 %v135
  %2040 = vmatpush.msra.mxu0 %v134
  %2041 = vmatpush.msra.mxu0 %v133
  %2042 = vmatpush.msra.mxu0 %v132
  %2043 = vmatmul.f32.gmra.mxu0 %v1910
  %v2044 = vpop.f32.mrf.mxu0
  %v2045 = vadd.f32 0.0, %v2044
  %2046 = vmatmul.f32.gmra.mxu0 %v1912
  %v2047 = vpop.f32.mrf.mxu0
  %v2048 = vadd.f32 0.0, %v2047
  %2049 = vmatmul.f32.gmra.mxu0 %v1914
  %v2050 = vpop.f32.mrf.mxu0
  %v2051 = vadd.f32 0.0, %v2050
  %2052 = vmatmul.f32.gmra.mxu0 %v1916
  %v2053 = vpop.f32.mrf.mxu0
  %v2054 = vadd.f32 0.0, %v2053
  %2055 = vmatmul.f32.gmra.mxu0 %v1918
  %v2056 = vpop.f32.mrf.mxu0
  %v2057 = vadd.f32 0.0, %v2056
  %2058 = vmatmul.f32.gmra.mxu0 %v1920
  %v2059 = vpop.f32.mrf.mxu0
  %v2060 = vadd.f32 0.0, %v2059
  %2061 = vmatmul.f32.gmra.mxu0 %v1922
  %v2062 = vpop.f32.mrf.mxu0
  %v2063 = vadd.f32 0.0, %v2062
  %2064 = vmatmul.f32.gmra.mxu0 %v1924
  %v2065 = vpop.f32.mrf.mxu0
  %v2066 = vadd.f32 0.0, %v2065
  %2067 = vmatmul.f32.gmra.mxu0 %v1926
  %v2068 = vpop.f32.mrf.mxu0
  %v2069 = vadd.f32 0.0, %v2068
  %2070 = vmatmul.f32.gmra.mxu0 %v1928
  %v2071 = vpop.f32.mrf.mxu0
  %v2072 = vadd.f32 0.0, %v2071
  %2073 = vdwg.mxu0
  %2074 = vmatpush.msra.mxu0 %v163
  %2075 = vmatpush.msra.mxu0 %v162
  %2076 = vmatpush.msra.mxu0 %v161
  %2077 = vmatpush.msra.mxu0 %v160
  %2078 = vmatpush.msra.mxu0 %v159
  %2079 = vmatpush.msra.mxu0 %v158
  %2080 = vmatpush.msra.mxu0 %v157
  %2081 = vmatpush.msra.mxu0 %v156
  %2082 = vmatpush.msra.mxu0 %v155
  %2083 = vmatpush.msra.mxu0 %v154
  %2084 = vmatpush.msra.mxu0 %v153
  %2085 = vmatpush.msra.mxu0 %v152
  %2086 = vmatpush.msra.mxu0 %v151
  %2087 = vmatpush.msra.mxu0 %v150
  %2088 = vmatpush.msra.mxu0 %v149
  %2089 = vmatpush.msra.mxu0 %v148
  %2090 = vmatmul.f32.gmra.mxu0 %v1911
  %v2091 = vpop.f32.mrf.mxu0
  %v2092 = vadd.f32 %v2045, %v2091
  %2093 = vmatmul.f32.gmra.mxu0 %v1913
  %v2094 = vpop.f32.mrf.mxu0
  %v2095 = vadd.f32 %v2048, %v2094
  %2096 = vmatmul.f32.gmra.mxu0 %v1915
  %v2097 = vpop.f32.mrf.mxu0
  %v2098 = vadd.f32 %v2051, %v2097
  %2099 = vmatmul.f32.gmra.mxu0 %v1917
  %v2100 = vpop.f32.mrf.mxu0
  %v2101 = vadd.f32 %v2054, %v2100
  %2102 = vmatmul.f32.gmra.mxu0 %v1919
  %v2103 = vpop.f32.mrf.mxu0
  %v2104 = vadd.f32 %v2057, %v2103
  %2105 = vmatmul.f32.gmra.mxu0 %v1921
  %v2106 = vpop.f32.mrf.mxu0
  %v2107 = vadd.f32 %v2060, %v2106
  %2108 = vmatmul.f32.gmra.mxu0 %v1923
  %v2109 = vpop.f32.mrf.mxu0
  %v2110 = vadd.f32 %v2063, %v2109
  %2111 = vmatmul.f32.gmra.mxu0 %v1925
  %v2112 = vpop.f32.mrf.mxu0
  %v2113 = vadd.f32 %v2066, %v2112
  %2114 = vmatmul.f32.gmra.mxu0 %v1927
  %v2115 = vpop.f32.mrf.mxu0
  %v2116 = vadd.f32 %v2069, %v2115
  %2117 = vmatmul.f32.gmra.mxu0 %v1929
  %v2118 = vpop.f32.mrf.mxu0
  %v2119 = vadd.f32 %v2072, %v2118
  %2120 = vdwg.mxu0
  %vm2121 = vcmask 654336
  %v2123 = vsel %vm2121, %v1878, 0
  %v2126 = vsel %vm2121, %v1879, 0
  %v2129 = vsel %vm2121, %v1880, 0
  %v2132 = vsel %vm2121, %v1881, 0
  %v2135 = vsel %vm2121, %v1882, 0
  %v2138 = vsel %vm2121, %v1883, 0
  %v2141 = vsel %vm2121, %v1884, 0
  %v2144 = vsel %vm2121, %v1885, 0
  %v2147 = vsel %vm2121, %v1886, 0
  %v2150 = vsel %vm2121, %v1887, 0
  %v2153 = vsel %vm2121, %v1888, 0
  %v2156 = vsel %vm2121, %v1889, 0
  %v2159 = vsel %vm2121, %v1890, 0
  %v2162 = vsel %vm2121, %v1891, 0
  %v2165 = vsel %vm2121, %v1892, 0
  %v2168 = vsel %vm2121, %v1893, 0
  %v2171 = vsel %vm2121, %v1894, 0
  %v2174 = vsel %vm2121, %v1895, 0
  %v2177 = vsel %vm2121, %v1896, 0
  %v2180 = vsel %vm2121, %v1897, 0
  %v2183 = vsel %vm2121, %v1898, 0
  %v2186 = vsel %vm2121, %v1899, 0
  %v2189 = vsel %vm2121, %v1900, 0
  %v2192 = vsel %vm2121, %v1901, 0
  %v2195 = vsel %vm2121, %v1902, 0
  %v2198 = vsel %vm2121, %v1903, 0
  %v2201 = vsel %vm2121, %v1904, 0
  %v2204 = vsel %vm2121, %v1905, 0
  %v2207 = vsel %vm2121, %v1906, 0
  %v2210 = vsel %vm2121, %v1907, 0
  %v2213 = vsel %vm2121, %v1908, 0
  %v2216 = vsel %vm2121, %v1909, 0
  %2218 = vmatpush.msra.mxu0 0.0
  %2219 = vmatpush.msra.mxu0 0.0
  %2220 = vmatpush.msra.mxu0 0.0
  %2221 = vmatpush.msra.mxu0 0.0
  %2222 = vmatpush.msra.mxu0 0.0
  %2223 = vmatpush.msra.mxu0 0.0
  %2224 = vmatpush.msra.mxu0 %v2119
  %2225 = vmatpush.msra.mxu0 %v2116
  %2226 = vmatpush.msra.mxu0 %v2113
  %2227 = vmatpush.msra.mxu0 %v2110
  %2228 = vmatpush.msra.mxu0 %v2107
  %2229 = vmatpush.msra.mxu0 %v2104
  %2230 = vmatpush.msra.mxu0 %v2101
  %2231 = vmatpush.msra.mxu0 %v2098
  %2232 = vmatpush.msra.mxu0 %v2095
  %2233 = vmatpush.msra.mxu0 %v2092
  %2234 = vmatmul.f32.gmra.mxu0 %v2123
  %v2235 = vpop.f32.mrf.mxu0
  %v2236 = vadd.f32 0.0, %v2235
  %2237 = vmatmul.f32.gmra.mxu0 %v2126
  %v2238 = vpop.f32.mrf.mxu0
  %v2239 = vadd.f32 0.0, %v2238
  %2240 = vmatmul.f32.gmra.mxu0 %v2129
  %v2241 = vpop.f32.mrf.mxu0
  %v2242 = vadd.f32 0.0, %v2241
  %2243 = vmatmul.f32.gmra.mxu0 %v2132
  %v2244 = vpop.f32.mrf.mxu0
  %v2245 = vadd.f32 0.0, %v2244
  %2246 = vmatmul.f32.gmra.mxu0 %v2135
  %v2247 = vpop.f32.mrf.mxu0
  %v2248 = vadd.f32 0.0, %v2247
  %2249 = vmatmul.f32.gmra.mxu0 %v2138
  %v2250 = vpop.f32.mrf.mxu0
  %v2251 = vadd.f32 0.0, %v2250
  %2252 = vmatmul.f32.gmra.mxu0 %v2141
  %v2253 = vpop.f32.mrf.mxu0
  %v2254 = vadd.f32 0.0, %v2253
  %2255 = vmatmul.f32.gmra.mxu0 %v2144
  %v2256 = vpop.f32.mrf.mxu0
  %v2257 = vadd.f32 0.0, %v2256
  %2258 = vmatmul.f32.gmra.mxu0 %v2147
  %v2259 = vpop.f32.mrf.mxu0
  %v2260 = vadd.f32 0.0, %v2259
  %2261 = vmatmul.f32.gmra.mxu0 %v2150
  %v2262 = vpop.f32.mrf.mxu0
  %v2263 = vadd.f32 0.0, %v2262
  %2264 = vmatmul.f32.gmra.mxu0 %v2153
  %v2265 = vpop.f32.mrf.mxu0
  %v2266 = vadd.f32 0.0, %v2265
  %2267 = vmatmul.f32.gmra.mxu0 %v2156
  %v2268 = vpop.f32.mrf.mxu0
  %v2269 = vadd.f32 0.0, %v2268
  %2270 = vmatmul.f32.gmra.mxu0 %v2159
  %v2271 = vpop.f32.mrf.mxu0
  %v2272 = vadd.f32 0.0, %v2271
  %2273 = vmatmul.f32.gmra.mxu0 %v2162
  %v2274 = vpop.f32.mrf.mxu0
  %v2275 = vadd.f32 0.0, %v2274
  %2276 = vmatmul.f32.gmra.mxu0 %v2165
  %v2277 = vpop.f32.mrf.mxu0
  %v2278 = vadd.f32 0.0, %v2277
  %2279 = vmatmul.f32.gmra.mxu0 %v2168
  %v2280 = vpop.f32.mrf.mxu0
  %v2281 = vadd.f32 0.0, %v2280
  %2282 = vmatmul.f32.gmra.mxu0 %v2171
  %v2283 = vpop.f32.mrf.mxu0
  %v2284 = vadd.f32 0.0, %v2283
  %2285 = vmatmul.f32.gmra.mxu0 %v2174
  %v2286 = vpop.f32.mrf.mxu0
  %v2287 = vadd.f32 0.0, %v2286
  %2288 = vmatmul.f32.gmra.mxu0 %v2177
  %v2289 = vpop.f32.mrf.mxu0
  %v2290 = vadd.f32 0.0, %v2289
  %2291 = vmatmul.f32.gmra.mxu0 %v2180
  %v2292 = vpop.f32.mrf.mxu0
  %v2293 = vadd.f32 0.0, %v2292
  %2294 = vmatmul.f32.gmra.mxu0 %v2183
  %v2295 = vpop.f32.mrf.mxu0
  %v2296 = vadd.f32 0.0, %v2295
  %2297 = vmatmul.f32.gmra.mxu0 %v2186
  %v2298 = vpop.f32.mrf.mxu0
  %v2299 = vadd.f32 0.0, %v2298
  %2300 = vmatmul.f32.gmra.mxu0 %v2189
  %v2301 = vpop.f32.mrf.mxu0
  %v2302 = vadd.f32 0.0, %v2301
  %2303 = vmatmul.f32.gmra.mxu0 %v2192
  %v2304 = vpop.f32.mrf.mxu0
  %v2305 = vadd.f32 0.0, %v2304
  %2306 = vmatmul.f32.gmra.mxu0 %v2195
  %v2307 = vpop.f32.mrf.mxu0
  %v2308 = vadd.f32 0.0, %v2307
  %2309 = vmatmul.f32.gmra.mxu0 %v2198
  %v2310 = vpop.f32.mrf.mxu0
  %v2311 = vadd.f32 0.0, %v2310
  %2312 = vmatmul.f32.gmra.mxu0 %v2201
  %v2313 = vpop.f32.mrf.mxu0
  %v2314 = vadd.f32 0.0, %v2313
  %2315 = vmatmul.f32.gmra.mxu0 %v2204
  %v2316 = vpop.f32.mrf.mxu0
  %v2317 = vadd.f32 0.0, %v2316
  %2318 = vmatmul.f32.gmra.mxu0 %v2207
  %v2319 = vpop.f32.mrf.mxu0
  %v2320 = vadd.f32 0.0, %v2319
  %2321 = vmatmul.f32.gmra.mxu0 %v2210
  %v2322 = vpop.f32.mrf.mxu0
  %v2323 = vadd.f32 0.0, %v2322
  %2324 = vmatmul.f32.gmra.mxu0 %v2213
  %v2325 = vpop.f32.mrf.mxu0
  %v2326 = vadd.f32 0.0, %v2325
  %2327 = vmatmul.f32.gmra.mxu0 %v2216
  %v2328 = vpop.f32.mrf.mxu0
  %v2329 = vadd.f32 0.0, %v2328
  %2330 = vdwg.mxu0
  %v2331 = vsub.f32 %v132, %v2236
  %v2332 = vsub.f32 %v133, %v2239
  %v2333 = vsub.f32 %v134, %v2242
  %v2334 = vsub.f32 %v135, %v2245
  %v2335 = vsub.f32 %v136, %v2248
  %v2336 = vsub.f32 %v137, %v2251
  %v2337 = vsub.f32 %v138, %v2254
  %v2338 = vsub.f32 %v139, %v2257
  %v2339 = vsub.f32 %v140, %v2260
  %v2340 = vsub.f32 %v141, %v2263
  %v2341 = vsub.f32 %v142, %v2266
  %v2342 = vsub.f32 %v143, %v2269
  %v2343 = vsub.f32 %v144, %v2272
  %v2344 = vsub.f32 %v145, %v2275
  %v2345 = vsub.f32 %v146, %v2278
  %v2346 = vsub.f32 %v147, %v2281
  %v2347 = vsub.f32 %v148, %v2284
  %v2348 = vsub.f32 %v149, %v2287
  %v2349 = vsub.f32 %v150, %v2290
  %v2350 = vsub.f32 %v151, %v2293
  %v2351 = vsub.f32 %v152, %v2296
  %v2352 = vsub.f32 %v153, %v2299
  %v2353 = vsub.f32 %v154, %v2302
  %v2354 = vsub.f32 %v155, %v2305
  %v2355 = vsub.f32 %v156, %v2308
  %v2356 = vsub.f32 %v157, %v2311
  %v2357 = vsub.f32 %v158, %v2314
  %v2358 = vsub.f32 %v159, %v2317
  %v2359 = vsub.f32 %v160, %v2320
  %v2360 = vsub.f32 %v161, %v2323
  %v2361 = vsub.f32 %v162, %v2326
  %v2362 = vsub.f32 %v163, %v2329
  %v2363 = vmul.f32 %v2331, %v2331
  %v2364 = vmul.f32 %v2332, %v2332
  %v2365 = vmul.f32 %v2333, %v2333
  %v2366 = vmul.f32 %v2334, %v2334
  %v2367 = vmul.f32 %v2335, %v2335
  %v2368 = vmul.f32 %v2336, %v2336
  %v2369 = vmul.f32 %v2337, %v2337
  %v2370 = vmul.f32 %v2338, %v2338
  %v2371 = vmul.f32 %v2339, %v2339
  %v2372 = vmul.f32 %v2340, %v2340
  %v2373 = vmul.f32 %v2341, %v2341
  %v2374 = vmul.f32 %v2342, %v2342
  %v2375 = vmul.f32 %v2343, %v2343
  %v2376 = vmul.f32 %v2344, %v2344
  %v2377 = vmul.f32 %v2345, %v2345
  %v2378 = vmul.f32 %v2346, %v2346
  %v2379 = vmul.f32 %v2347, %v2347
  %v2380 = vmul.f32 %v2348, %v2348
  %v2381 = vmul.f32 %v2349, %v2349
  %v2382 = vmul.f32 %v2350, %v2350
  %v2383 = vmul.f32 %v2351, %v2351
  %v2384 = vmul.f32 %v2352, %v2352
  %v2385 = vmul.f32 %v2353, %v2353
  %v2386 = vmul.f32 %v2354, %v2354
  %v2387 = vmul.f32 %v2355, %v2355
  %v2388 = vmul.f32 %v2356, %v2356
  %v2389 = vmul.f32 %v2357, %v2357
  %v2390 = vmul.f32 %v2358, %v2358
  %v2391 = vmul.f32 %v2359, %v2359
  %v2392 = vmul.f32 %v2360, %v2360
  %v2393 = vmul.f32 %v2361, %v2361
  %v2394 = vmul.f32 %v2362, %v2362
  %2395 = vmatpush.msra.mxu0 %v2378
  %2396 = vmatpush.msra.mxu0 %v2377
  %2397 = vmatpush.msra.mxu0 %v2376
  %2398 = vmatpush.msra.mxu0 %v2375
  %2399 = vmatpush.msra.mxu0 %v2374
  %2400 = vmatpush.msra.mxu0 %v2373
  %2401 = vmatpush.msra.mxu0 %v2372
  %2402 = vmatpush.msra.mxu0 %v2371
  %2403 = vmatpush.msra.mxu0 %v2370
  %2404 = vmatpush.msra.mxu0 %v2369
  %2405 = vmatpush.msra.mxu0 %v2368
  %2406 = vmatpush.msra.mxu0 %v2367
  %2407 = vmatpush.msra.mxu0 %v2366
  %2408 = vmatpush.msra.mxu0 %v2365
  %2409 = vmatpush.msra.mxu0 %v2364
  %2410 = vmatpush.msra.mxu0 %v2363
  %2411 = vmatmul.f32.gmra.mxu0 %v1930
  %v2412 = vpop.f32.mrf.mxu0
  %v2413 = vadd.f32 0.0, %v2412
  %2414 = vmatmul.f32.gmra.mxu0 %v1932
  %v2415 = vpop.f32.mrf.mxu0
  %v2416 = vadd.f32 0.0, %v2415
  %2417 = vmatmul.f32.gmra.mxu0 %v1934
  %v2418 = vpop.f32.mrf.mxu0
  %v2419 = vadd.f32 0.0, %v2418
  %2420 = vmatmul.f32.gmra.mxu0 %v1936
  %v2421 = vpop.f32.mrf.mxu0
  %v2422 = vadd.f32 0.0, %v2421
  %2423 = vmatmul.f32.gmra.mxu0 %v1938
  %v2424 = vpop.f32.mrf.mxu0
  %v2425 = vadd.f32 0.0, %v2424
  %2426 = vmatmul.f32.gmra.mxu0 %v1940
  %v2427 = vpop.f32.mrf.mxu0
  %v2428 = vadd.f32 0.0, %v2427
  %2429 = vmatmul.f32.gmra.mxu0 %v1942
  %v2430 = vpop.f32.mrf.mxu0
  %v2431 = vadd.f32 0.0, %v2430
  %2432 = vmatmul.f32.gmra.mxu0 %v1944
  %v2433 = vpop.f32.mrf.mxu0
  %v2434 = vadd.f32 0.0, %v2433
  %2435 = vmatmul.f32.gmra.mxu0 %v1946
  %v2436 = vpop.f32.mrf.mxu0
  %v2437 = vadd.f32 0.0, %v2436
  %2438 = vmatmul.f32.gmra.mxu0 %v1948
  %v2439 = vpop.f32.mrf.mxu0
  %v2440 = vadd.f32 0.0, %v2439
  %2441 = vdwg.mxu0
  %2442 = vmatpush.msra.mxu0 %v2394
  %2443 = vmatpush.msra.mxu0 %v2393
  %2444 = vmatpush.msra.mxu0 %v2392
  %2445 = vmatpush.msra.mxu0 %v2391
  %2446 = vmatpush.msra.mxu0 %v2390
  %2447 = vmatpush.msra.mxu0 %v2389
  %2448 = vmatpush.msra.mxu0 %v2388
  %2449 = vmatpush.msra.mxu0 %v2387
  %2450 = vmatpush.msra.mxu0 %v2386
  %2451 = vmatpush.msra.mxu0 %v2385
  %2452 = vmatpush.msra.mxu0 %v2384
  %2453 = vmatpush.msra.mxu0 %v2383
  %2454 = vmatpush.msra.mxu0 %v2382
  %2455 = vmatpush.msra.mxu0 %v2381
  %2456 = vmatpush.msra.mxu0 %v2380
  %2457 = vmatpush.msra.mxu0 %v2379
  %2458 = vmatmul.f32.gmra.mxu0 %v1931
  %v2459 = vpop.f32.mrf.mxu0
  %v2460 = vadd.f32 %v2413, %v2459
  %2461 = vmatmul.f32.gmra.mxu0 %v1933
  %v2462 = vpop.f32.mrf.mxu0
  %v2463 = vadd.f32 %v2416, %v2462
  %2464 = vmatmul.f32.gmra.mxu0 %v1935
  %v2465 = vpop.f32.mrf.mxu0
  %v2466 = vadd.f32 %v2419, %v2465
  %2467 = vmatmul.f32.gmra.mxu0 %v1937
  %v2468 = vpop.f32.mrf.mxu0
  %v2469 = vadd.f32 %v2422, %v2468
  %2470 = vmatmul.f32.gmra.mxu0 %v1939
  %v2471 = vpop.f32.mrf.mxu0
  %v2472 = vadd.f32 %v2425, %v2471
  %2473 = vmatmul.f32.gmra.mxu0 %v1941
  %v2474 = vpop.f32.mrf.mxu0
  %v2475 = vadd.f32 %v2428, %v2474
  %2476 = vmatmul.f32.gmra.mxu0 %v1943
  %v2477 = vpop.f32.mrf.mxu0
  %v2478 = vadd.f32 %v2431, %v2477
  %2479 = vmatmul.f32.gmra.mxu0 %v1945
  %v2480 = vpop.f32.mrf.mxu0
  %v2481 = vadd.f32 %v2434, %v2480
  %2482 = vmatmul.f32.gmra.mxu0 %v1947
  %v2483 = vpop.f32.mrf.mxu0
  %v2484 = vadd.f32 %v2437, %v2483
  %2485 = vmatmul.f32.gmra.mxu0 %v1949
  %v2486 = vpop.f32.mrf.mxu0
  %v2487 = vadd.f32 %v2440, %v2486
  %2488 = vdwg.mxu0
  %v2489 = vmax.f32 %v2460, 0.0
  %v2490 = vmax.f32 %v2463, 0.0
  %v2491 = vmax.f32 %v2466, 0.0
  %v2492 = vmax.f32 %v2469, 0.0
  %v2493 = vmax.f32 %v2472, 0.0
  %v2494 = vmax.f32 %v2475, 0.0
  %v2495 = vmax.f32 %v2478, 0.0
  %v2496 = vmax.f32 %v2481, 0.0
  %v2497 = vmax.f32 %v2484, 0.0
  %v2498 = vmax.f32 %v2487, 0.0
  %v2499 = vrsqrt.pop %v2489
  %v2500 = vmul.f32 %v2499, %v2489
  %v2501 = vmul.f32 %v2500, %v2499
  %v2502 = vmul.f32 0.5, %v2501
  %v2503 = vsub.f32 1.5, %v2502
  %v2504 = vmul.f32 %v2499, %v2503
  %v2505 = vmul.f32 %v2489, %v2504
  %vm2506 = vcmp.eq.f32.partialorder %v2489, inf
  %v2507 = vsel %vm2506, %v2489, %v2505
  %vm2508 = vcmp.eq.f32.partialorder %v2489, 0.0
  %v2509 = vand.u32 %v2489, 2147483648
  %v2510 = vsel %vm2508, %v2509, %v2507
  %v2511 = vrsqrt.pop %v2490
  %v2512 = vmul.f32 %v2511, %v2490
  %v2513 = vmul.f32 %v2512, %v2511
  %v2514 = vmul.f32 0.5, %v2513
  %v2515 = vsub.f32 1.5, %v2514
  %v2516 = vmul.f32 %v2511, %v2515
  %v2517 = vmul.f32 %v2490, %v2516
  %vm2518 = vcmp.eq.f32.partialorder %v2490, inf
  %v2519 = vsel %vm2518, %v2490, %v2517
  %vm2520 = vcmp.eq.f32.partialorder %v2490, 0.0
  %v2521 = vand.u32 %v2490, 2147483648
  %v2522 = vsel %vm2520, %v2521, %v2519
  %v2523 = vrsqrt.pop %v2491
  %v2524 = vmul.f32 %v2523, %v2491
  %v2525 = vmul.f32 %v2524, %v2523
  %v2526 = vmul.f32 0.5, %v2525
  %v2527 = vsub.f32 1.5, %v2526
  %v2528 = vmul.f32 %v2523, %v2527
  %v2529 = vmul.f32 %v2491, %v2528
  %vm2530 = vcmp.eq.f32.partialorder %v2491, inf
  %v2531 = vsel %vm2530, %v2491, %v2529
  %vm2532 = vcmp.eq.f32.partialorder %v2491, 0.0
  %v2533 = vand.u32 %v2491, 2147483648
  %v2534 = vsel %vm2532, %v2533, %v2531
  %v2535 = vrsqrt.pop %v2492
  %v2536 = vmul.f32 %v2535, %v2492
  %v2537 = vmul.f32 %v2536, %v2535
  %v2538 = vmul.f32 0.5, %v2537
  %v2539 = vsub.f32 1.5, %v2538
  %v2540 = vmul.f32 %v2535, %v2539
  %v2541 = vmul.f32 %v2492, %v2540
  %vm2542 = vcmp.eq.f32.partialorder %v2492, inf
  %v2543 = vsel %vm2542, %v2492, %v2541
  %vm2544 = vcmp.eq.f32.partialorder %v2492, 0.0
  %v2545 = vand.u32 %v2492, 2147483648
  %v2546 = vsel %vm2544, %v2545, %v2543
  %v2547 = vrsqrt.pop %v2493
  %v2548 = vmul.f32 %v2547, %v2493
  %v2549 = vmul.f32 %v2548, %v2547
  %v2550 = vmul.f32 0.5, %v2549
  %v2551 = vsub.f32 1.5, %v2550
  %v2552 = vmul.f32 %v2547, %v2551
  %v2553 = vmul.f32 %v2493, %v2552
  %vm2554 = vcmp.eq.f32.partialorder %v2493, inf
  %v2555 = vsel %vm2554, %v2493, %v2553
  %vm2556 = vcmp.eq.f32.partialorder %v2493, 0.0
  %v2557 = vand.u32 %v2493, 2147483648
  %v2558 = vsel %vm2556, %v2557, %v2555
  %v2559 = vrsqrt.pop %v2494
  %v2560 = vmul.f32 %v2559, %v2494
  %v2561 = vmul.f32 %v2560, %v2559
  %v2562 = vmul.f32 0.5, %v2561
  %v2563 = vsub.f32 1.5, %v2562
  %v2564 = vmul.f32 %v2559, %v2563
  %v2565 = vmul.f32 %v2494, %v2564
  %vm2566 = vcmp.eq.f32.partialorder %v2494, inf
  %v2567 = vsel %vm2566, %v2494, %v2565
  %vm2568 = vcmp.eq.f32.partialorder %v2494, 0.0
  %v2569 = vand.u32 %v2494, 2147483648
  %v2570 = vsel %vm2568, %v2569, %v2567
  %v2571 = vrsqrt.pop %v2495
  %v2572 = vmul.f32 %v2571, %v2495
  %v2573 = vmul.f32 %v2572, %v2571
  %v2574 = vmul.f32 0.5, %v2573
  %v2575 = vsub.f32 1.5, %v2574
  %v2576 = vmul.f32 %v2571, %v2575
  %v2577 = vmul.f32 %v2495, %v2576
  %vm2578 = vcmp.eq.f32.partialorder %v2495, inf
  %v2579 = vsel %vm2578, %v2495, %v2577
  %vm2580 = vcmp.eq.f32.partialorder %v2495, 0.0
  %v2581 = vand.u32 %v2495, 2147483648
  %v2582 = vsel %vm2580, %v2581, %v2579
  %v2583 = vrsqrt.pop %v2496
  %v2584 = vmul.f32 %v2583, %v2496
  %v2585 = vmul.f32 %v2584, %v2583
  %v2586 = vmul.f32 0.5, %v2585
  %v2587 = vsub.f32 1.5, %v2586
  %v2588 = vmul.f32 %v2583, %v2587
  %v2589 = vmul.f32 %v2496, %v2588
  %vm2590 = vcmp.eq.f32.partialorder %v2496, inf
  %v2591 = vsel %vm2590, %v2496, %v2589
  %vm2592 = vcmp.eq.f32.partialorder %v2496, 0.0
  %v2593 = vand.u32 %v2496, 2147483648
  %v2594 = vsel %vm2592, %v2593, %v2591
  %v2595 = vrsqrt.pop %v2497
  %v2596 = vmul.f32 %v2595, %v2497
  %v2597 = vmul.f32 %v2596, %v2595
  %v2598 = vmul.f32 0.5, %v2597
  %v2599 = vsub.f32 1.5, %v2598
  %v2600 = vmul.f32 %v2595, %v2599
  %v2601 = vmul.f32 %v2497, %v2600
  %vm2602 = vcmp.eq.f32.partialorder %v2497, inf
  %v2603 = vsel %vm2602, %v2497, %v2601
  %vm2604 = vcmp.eq.f32.partialorder %v2497, 0.0
  %v2605 = vand.u32 %v2497, 2147483648
  %v2606 = vsel %vm2604, %v2605, %v2603
  %v2607 = vrsqrt.pop %v2498
  %v2608 = vmul.f32 %v2607, %v2498
  %v2609 = vmul.f32 %v2608, %v2607
  %v2610 = vmul.f32 0.5, %v2609
  %v2611 = vsub.f32 1.5, %v2610
  %v2612 = vmul.f32 %v2607, %v2611
  %v2613 = vmul.f32 %v2498, %v2612
  %vm2614 = vcmp.eq.f32.partialorder %v2498, inf
  %v2615 = vsel %vm2614, %v2498, %v2613
  %vm2616 = vcmp.eq.f32.partialorder %v2498, 0.0
  %v2617 = vand.u32 %v2498, 2147483648
  %v2618 = vsel %vm2616, %v2617, %v2615
  %2619 = vmatpush.msra.mxu0 %v147
  %2620 = vmatpush.msra.mxu0 %v146
  %2621 = vmatpush.msra.mxu0 %v145
  %2622 = vmatpush.msra.mxu0 %v144
  %2623 = vmatpush.msra.mxu0 %v143
  %2624 = vmatpush.msra.mxu0 %v142
  %2625 = vmatpush.msra.mxu0 %v141
  %2626 = vmatpush.msra.mxu0 %v140
  %2627 = vmatpush.msra.mxu0 %v139
  %2628 = vmatpush.msra.mxu0 %v138
  %2629 = vmatpush.msra.mxu0 %v137
  %2630 = vmatpush.msra.mxu0 %v136
  %2631 = vmatpush.msra.mxu0 %v135
  %2632 = vmatpush.msra.mxu0 %v134
  %2633 = vmatpush.msra.mxu0 %v133
  %2634 = vmatpush.msra.mxu0 %v132
  %2635 = vmatmul.f32.gmra.mxu0 %v1950
  %v2636 = vpop.f32.mrf.mxu0
  %v2637 = vadd.f32 0.0, %v2636
  %2638 = vmatmul.f32.gmra.mxu0 %v1952
  %v2639 = vpop.f32.mrf.mxu0
  %v2640 = vadd.f32 0.0, %v2639
  %2641 = vmatmul.f32.gmra.mxu0 %v1954
  %v2642 = vpop.f32.mrf.mxu0
  %v2643 = vadd.f32 0.0, %v2642
  %2644 = vmatmul.f32.gmra.mxu0 %v1956
  %v2645 = vpop.f32.mrf.mxu0
  %v2646 = vadd.f32 0.0, %v2645
  %2647 = vmatmul.f32.gmra.mxu0 %v1958
  %v2648 = vpop.f32.mrf.mxu0
  %v2649 = vadd.f32 0.0, %v2648
  %2650 = vmatmul.f32.gmra.mxu0 %v1960
  %v2651 = vpop.f32.mrf.mxu0
  %v2652 = vadd.f32 0.0, %v2651
  %2653 = vmatmul.f32.gmra.mxu0 %v1962
  %v2654 = vpop.f32.mrf.mxu0
  %v2655 = vadd.f32 0.0, %v2654
  %2656 = vmatmul.f32.gmra.mxu0 %v1964
  %v2657 = vpop.f32.mrf.mxu0
  %v2658 = vadd.f32 0.0, %v2657
  %2659 = vmatmul.f32.gmra.mxu0 %v1966
  %v2660 = vpop.f32.mrf.mxu0
  %v2661 = vadd.f32 0.0, %v2660
  %2662 = vmatmul.f32.gmra.mxu0 %v1968
  %v2663 = vpop.f32.mrf.mxu0
  %v2664 = vadd.f32 0.0, %v2663
  %2665 = vdwg.mxu0
  %2666 = vmatpush.msra.mxu0 %v163
  %2667 = vmatpush.msra.mxu0 %v162
  %2668 = vmatpush.msra.mxu0 %v161
  %2669 = vmatpush.msra.mxu0 %v160
  %2670 = vmatpush.msra.mxu0 %v159
  %2671 = vmatpush.msra.mxu0 %v158
  %2672 = vmatpush.msra.mxu0 %v157
  %2673 = vmatpush.msra.mxu0 %v156
  %2674 = vmatpush.msra.mxu0 %v155
  %2675 = vmatpush.msra.mxu0 %v154
  %2676 = vmatpush.msra.mxu0 %v153
  %2677 = vmatpush.msra.mxu0 %v152
  %2678 = vmatpush.msra.mxu0 %v151
  %2679 = vmatpush.msra.mxu0 %v150
  %2680 = vmatpush.msra.mxu0 %v149
  %2681 = vmatpush.msra.mxu0 %v148
  %2682 = vmatmul.f32.gmra.mxu0 %v1951
  %v2683 = vpop.f32.mrf.mxu0
  %v2684 = vadd.f32 %v2637, %v2683
  %2685 = vmatmul.f32.gmra.mxu0 %v1953
  %v2686 = vpop.f32.mrf.mxu0
  %v2687 = vadd.f32 %v2640, %v2686
  %2688 = vmatmul.f32.gmra.mxu0 %v1955
  %v2689 = vpop.f32.mrf.mxu0
  %v2690 = vadd.f32 %v2643, %v2689
  %2691 = vmatmul.f32.gmra.mxu0 %v1957
  %v2692 = vpop.f32.mrf.mxu0
  %v2693 = vadd.f32 %v2646, %v2692
  %2694 = vmatmul.f32.gmra.mxu0 %v1959
  %v2695 = vpop.f32.mrf.mxu0
  %v2696 = vadd.f32 %v2649, %v2695
  %2697 = vmatmul.f32.gmra.mxu0 %v1961
  %v2698 = vpop.f32.mrf.mxu0
  %v2699 = vadd.f32 %v2652, %v2698
  %2700 = vmatmul.f32.gmra.mxu0 %v1963
  %v2701 = vpop.f32.mrf.mxu0
  %v2702 = vadd.f32 %v2655, %v2701
  %2703 = vmatmul.f32.gmra.mxu0 %v1965
  %v2704 = vpop.f32.mrf.mxu0
  %v2705 = vadd.f32 %v2658, %v2704
  %2706 = vmatmul.f32.gmra.mxu0 %v1967
  %v2707 = vpop.f32.mrf.mxu0
  %v2708 = vadd.f32 %v2661, %v2707
  %2709 = vmatmul.f32.gmra.mxu0 %v1969
  %v2710 = vpop.f32.mrf.mxu0
  %v2711 = vadd.f32 %v2664, %v2710
  %2712 = vdwg.mxu0
  %v2713 = vadd.f32 %v2510, 0.01
  %v2714 = vadd.f32 %v2522, 0.01
  %v2715 = vadd.f32 %v2534, 0.01
  %v2716 = vadd.f32 %v2546, 0.01
  %v2717 = vadd.f32 %v2558, 0.01
  %v2718 = vadd.f32 %v2570, 0.01
  %v2719 = vadd.f32 %v2582, 0.01
  %v2720 = vadd.f32 %v2594, 0.01
  %v2721 = vadd.f32 %v2606, 0.01
  %v2722 = vadd.f32 %v2618, 0.01
  %v2723 = vrcp.pop %v2713
  %v2724 = vmul.f32 %v2713, %v2723
  %v2725 = vsub.f32 1.0, %v2724
  %v2726 = vmul.f32 %v2723, %v2725
  %v2727 = vadd.f32 %v2723, %v2726
  %vm2728 = vweird.f32 %v2713
  %vm2729 = vweird.f32 %v2723
  %vm2730 = vmor %vm2728, %vm2729
  %v2731 = vsel %vm2730, %v2723, %v2727
  %v2732 = vand.u32 2147483647, %v2713
  %vm2733 = vcmp.eq.f32.partialorder %v2732, 8.507059e+37
  %v2734 = vand.u32 %v2713, 2147483648
  %v2735 = vor.u32 1.1754944e-38, %v2734
  %v2736 = vsel %vm2733, %v2735, %v2731
  %v2737 = vrcp.pop %v2714
  %v2738 = vmul.f32 %v2714, %v2737
  %v2739 = vsub.f32 1.0, %v2738
  %v2740 = vmul.f32 %v2737, %v2739
  %v2741 = vadd.f32 %v2737, %v2740
  %vm2742 = vweird.f32 %v2714
  %vm2743 = vweird.f32 %v2737
  %vm2744 = vmor %vm2742, %vm2743
  %v2745 = vsel %vm2744, %v2737, %v2741
  %v2746 = vand.u32 2147483647, %v2714
  %vm2747 = vcmp.eq.f32.partialorder %v2746, 8.507059e+37
  %v2748 = vand.u32 %v2714, 2147483648
  %v2749 = vor.u32 1.1754944e-38, %v2748
  %v2750 = vsel %vm2747, %v2749, %v2745
  %v2751 = vrcp.pop %v2715
  %v2752 = vmul.f32 %v2715, %v2751
  %v2753 = vsub.f32 1.0, %v2752
  %v2754 = vmul.f32 %v2751, %v2753
  %v2755 = vadd.f32 %v2751, %v2754
  %vm2756 = vweird.f32 %v2715
  %vm2757 = vweird.f32 %v2751
  %vm2758 = vmor %vm2756, %vm2757
  %v2759 = vsel %vm2758, %v2751, %v2755
  %v2760 = vand.u32 2147483647, %v2715
  %vm2761 = vcmp.eq.f32.partialorder %v2760, 8.507059e+37
  %v2762 = vand.u32 %v2715, 2147483648
  %v2763 = vor.u32 1.1754944e-38, %v2762
  %v2764 = vsel %vm2761, %v2763, %v2759
  %v2765 = vrcp.pop %v2716
  %v2766 = vmul.f32 %v2716, %v2765
  %v2767 = vsub.f32 1.0, %v2766
  %v2768 = vmul.f32 %v2765, %v2767
  %v2769 = vadd.f32 %v2765, %v2768
  %vm2770 = vweird.f32 %v2716
  %vm2771 = vweird.f32 %v2765
  %vm2772 = vmor %vm2770, %vm2771
  %v2773 = vsel %vm2772, %v2765, %v2769
  %v2774 = vand.u32 2147483647, %v2716
  %vm2775 = vcmp.eq.f32.partialorder %v2774, 8.507059e+37
  %v2776 = vand.u32 %v2716, 2147483648
  %v2777 = vor.u32 1.1754944e-38, %v2776
  %v2778 = vsel %vm2775, %v2777, %v2773
  %v2779 = vrcp.pop %v2717
  %v2780 = vmul.f32 %v2717, %v2779
  %v2781 = vsub.f32 1.0, %v2780
  %v2782 = vmul.f32 %v2779, %v2781
  %v2783 = vadd.f32 %v2779, %v2782
  %vm2784 = vweird.f32 %v2717
  %vm2785 = vweird.f32 %v2779
  %vm2786 = vmor %vm2784, %vm2785
  %v2787 = vsel %vm2786, %v2779, %v2783
  %v2788 = vand.u32 2147483647, %v2717
  %vm2789 = vcmp.eq.f32.partialorder %v2788, 8.507059e+37
  %v2790 = vand.u32 %v2717, 2147483648
  %v2791 = vor.u32 1.1754944e-38, %v2790
  %v2792 = vsel %vm2789, %v2791, %v2787
  %v2793 = vrcp.pop %v2718
  %v2794 = vmul.f32 %v2718, %v2793
  %v2795 = vsub.f32 1.0, %v2794
  %v2796 = vmul.f32 %v2793, %v2795
  %v2797 = vadd.f32 %v2793, %v2796
  %vm2798 = vweird.f32 %v2718
  %vm2799 = vweird.f32 %v2793
  %vm2800 = vmor %vm2798, %vm2799
  %v2801 = vsel %vm2800, %v2793, %v2797
  %v2802 = vand.u32 2147483647, %v2718
  %vm2803 = vcmp.eq.f32.partialorder %v2802, 8.507059e+37
  %v2804 = vand.u32 %v2718, 2147483648
  %v2805 = vor.u32 1.1754944e-38, %v2804
  %v2806 = vsel %vm2803, %v2805, %v2801
  %v2807 = vrcp.pop %v2719
  %v2808 = vmul.f32 %v2719, %v2807
  %v2809 = vsub.f32 1.0, %v2808
  %v2810 = vmul.f32 %v2807, %v2809
  %v2811 = vadd.f32 %v2807, %v2810
  %vm2812 = vweird.f32 %v2719
  %vm2813 = vweird.f32 %v2807
  %vm2814 = vmor %vm2812, %vm2813
  %v2815 = vsel %vm2814, %v2807, %v2811
  %v2816 = vand.u32 2147483647, %v2719
  %vm2817 = vcmp.eq.f32.partialorder %v2816, 8.507059e+37
  %v2818 = vand.u32 %v2719, 2147483648
  %v2819 = vor.u32 1.1754944e-38, %v2818
  %v2820 = vsel %vm2817, %v2819, %v2815
  %v2821 = vrcp.pop %v2720
  %v2822 = vmul.f32 %v2720, %v2821
  %v2823 = vsub.f32 1.0, %v2822
  %v2824 = vmul.f32 %v2821, %v2823
  %v2825 = vadd.f32 %v2821, %v2824
  %vm2826 = vweird.f32 %v2720
  %vm2827 = vweird.f32 %v2821
  %vm2828 = vmor %vm2826, %vm2827
  %v2829 = vsel %vm2828, %v2821, %v2825
  %v2830 = vand.u32 2147483647, %v2720
  %vm2831 = vcmp.eq.f32.partialorder %v2830, 8.507059e+37
  %v2832 = vand.u32 %v2720, 2147483648
  %v2833 = vor.u32 1.1754944e-38, %v2832
  %v2834 = vsel %vm2831, %v2833, %v2829
  %v2835 = vrcp.pop %v2721
  %v2836 = vmul.f32 %v2721, %v2835
  %v2837 = vsub.f32 1.0, %v2836
  %v2838 = vmul.f32 %v2835, %v2837
  %v2839 = vadd.f32 %v2835, %v2838
  %vm2840 = vweird.f32 %v2721
  %vm2841 = vweird.f32 %v2835
  %vm2842 = vmor %vm2840, %vm2841
  %v2843 = vsel %vm2842, %v2835, %v2839
  %v2844 = vand.u32 2147483647, %v2721
  %vm2845 = vcmp.eq.f32.partialorder %v2844, 8.507059e+37
  %v2846 = vand.u32 %v2721, 2147483648
  %v2847 = vor.u32 1.1754944e-38, %v2846
  %v2848 = vsel %vm2845, %v2847, %v2843
  %v2849 = vrcp.pop %v2722
  %v2850 = vmul.f32 %v2722, %v2849
  %v2851 = vsub.f32 1.0, %v2850
  %v2852 = vmul.f32 %v2849, %v2851
  %v2853 = vadd.f32 %v2849, %v2852
  %vm2854 = vweird.f32 %v2722
  %vm2855 = vweird.f32 %v2849
  %vm2856 = vmor %vm2854, %vm2855
  %v2857 = vsel %vm2856, %v2849, %v2853
  %v2858 = vand.u32 2147483647, %v2722
  %vm2859 = vcmp.eq.f32.partialorder %v2858, 8.507059e+37
  %v2860 = vand.u32 %v2722, 2147483648
  %v2861 = vor.u32 1.1754944e-38, %v2860
  %v2862 = vsel %vm2859, %v2861, %v2857
  %v2863 = vmul.f32 %v2092, %v2736
  %v2864 = vmul.f32 %v2095, %v2750
  %v2865 = vmul.f32 %v2098, %v2764
  %v2866 = vmul.f32 %v2101, %v2778
  %v2867 = vmul.f32 %v2104, %v2792
  %v2868 = vmul.f32 %v2107, %v2806
  %v2869 = vmul.f32 %v2110, %v2820
  %v2870 = vmul.f32 %v2113, %v2834
  %v2871 = vmul.f32 %v2116, %v2848
  %v2872 = vmul.f32 %v2119, %v2862
  %v2874 = vsel %vm792, %v2331, 0
  %v2877 = vsel %vm792, %v2332, 0
  %v2880 = vsel %vm792, %v2333, 0
  %v2883 = vsel %vm792, %v2334, 0
  %v2886 = vsel %vm792, %v2335, 0
  %v2889 = vsel %vm792, %v2336, 0
  %v2892 = vsel %vm792, %v2337, 0
  %v2895 = vsel %vm792, %v2338, 0
  %v2898 = vsel %vm792, %v2339, 0
  %v2901 = vsel %vm792, %v2340, 0
  %v2904 = vsel %vm792, %v2341, 0
  %v2907 = vsel %vm792, %v2342, 0
  %v2910 = vsel %vm792, %v2343, 0
  %v2913 = vsel %vm792, %v2344, 0
  %v2916 = vsel %vm792, %v2345, 0
  %v2919 = vsel %vm792, %v2346, 0
  %v2922 = vsel %vm792, %v2347, 0
  %v2925 = vsel %vm792, %v2348, 0
  %v2928 = vsel %vm792, %v2349, 0
  %v2931 = vsel %vm792, %v2350, 0
  %v2934 = vsel %vm792, %v2351, 0
  %v2937 = vsel %vm792, %v2352, 0
  %v2940 = vsel %vm792, %v2353, 0
  %v2943 = vsel %vm792, %v2354, 0
  %v2946 = vsel %vm792, %v2355, 0
  %v2949 = vsel %vm792, %v2356, 0
  %v2952 = vsel %vm792, %v2357, 0
  %v2955 = vsel %vm792, %v2358, 0
  %v2958 = vsel %vm792, %v2359, 0
  %v2961 = vsel %vm792, %v2360, 0
  %v2964 = vsel %vm792, %v2361, 0
  %v2967 = vsel %vm792, %v2362, 0
  %2969 = vmatpush.msra.mxu0 0.0
  %2970 = vmatpush.msra.mxu0 0.0
  %2971 = vmatpush.msra.mxu0 0.0
  %2972 = vmatpush.msra.mxu0 0.0
  %2973 = vmatpush.msra.mxu0 0.0
  %2974 = vmatpush.msra.mxu0 0.0
  %2975 = vmatpush.msra.mxu0 0.0
  %2976 = vmatpush.msra.mxu0 0.0
  %2977 = vmatpush.msra.mxu0 0.0
  %2978 = vmatpush.msra.mxu0 0.0
  %2979 = vmatpush.msra.mxu0 0.0
  %2980 = vmatpush.msra.mxu0 0.0
  %2981 = vmatpush.msra.mxu0 0.0
  %2982 = vmatpush.msra.mxu0 0.0
  %2983 = vmatpush.msra.mxu0 %v166
  %2984 = vmatpush.msra.mxu0 %v164
  %2985 = vmatmul.f32.gmra.mxu0 %v2874
  %v2986 = vpop.f32.mrf.mxu0
  %v2987 = vadd.f32 0.0, %v2986
  %2988 = vmatmul.f32.gmra.mxu0 %v2877
  %v2989 = vpop.f32.mrf.mxu0
  %v2990 = vadd.f32 0.0, %v2989
  %2991 = vmatmul.f32.gmra.mxu0 %v2880
  %v2992 = vpop.f32.mrf.mxu0
  %v2993 = vadd.f32 0.0, %v2992
  %2994 = vmatmul.f32.gmra.mxu0 %v2883
  %v2995 = vpop.f32.mrf.mxu0
  %v2996 = vadd.f32 0.0, %v2995
  %2997 = vmatmul.f32.gmra.mxu0 %v2886
  %v2998 = vpop.f32.mrf.mxu0
  %v2999 = vadd.f32 0.0, %v2998
  %3000 = vmatmul.f32.gmra.mxu0 %v2889
  %v3001 = vpop.f32.mrf.mxu0
  %v3002 = vadd.f32 0.0, %v3001
  %3003 = vmatmul.f32.gmra.mxu0 %v2892
  %v3004 = vpop.f32.mrf.mxu0
  %v3005 = vadd.f32 0.0, %v3004
  %3006 = vmatmul.f32.gmra.mxu0 %v2895
  %v3007 = vpop.f32.mrf.mxu0
  %v3008 = vadd.f32 0.0, %v3007
  %3009 = vmatmul.f32.gmra.mxu0 %v2898
  %v3010 = vpop.f32.mrf.mxu0
  %v3011 = vadd.f32 0.0, %v3010
  %3012 = vmatmul.f32.gmra.mxu0 %v2901
  %v3013 = vpop.f32.mrf.mxu0
  %v3014 = vadd.f32 0.0, %v3013
  %3015 = vmatmul.f32.gmra.mxu0 %v2904
  %v3016 = vpop.f32.mrf.mxu0
  %v3017 = vadd.f32 0.0, %v3016
  %3018 = vmatmul.f32.gmra.mxu0 %v2907
  %v3019 = vpop.f32.mrf.mxu0
  %v3020 = vadd.f32 0.0, %v3019
  %3021 = vmatmul.f32.gmra.mxu0 %v2910
  %v3022 = vpop.f32.mrf.mxu0
  %v3023 = vadd.f32 0.0, %v3022
  %3024 = vmatmul.f32.gmra.mxu0 %v2913
  %v3025 = vpop.f32.mrf.mxu0
  %v3026 = vadd.f32 0.0, %v3025
  %3027 = vmatmul.f32.gmra.mxu0 %v2916
  %v3028 = vpop.f32.mrf.mxu0
  %v3029 = vadd.f32 0.0, %v3028
  %3030 = vmatmul.f32.gmra.mxu0 %v2919
  %v3031 = vpop.f32.mrf.mxu0
  %v3032 = vadd.f32 0.0, %v3031
  %3033 = vmatmul.f32.gmra.mxu0 %v2922
  %v3034 = vpop.f32.mrf.mxu0
  %v3035 = vadd.f32 0.0, %v3034
  %3036 = vmatmul.f32.gmra.mxu0 %v2925
  %v3037 = vpop.f32.mrf.mxu0
  %v3038 = vadd.f32 0.0, %v3037
  %3039 = vmatmul.f32.gmra.mxu0 %v2928
  %v3040 = vpop.f32.mrf.mxu0
  %v3041 = vadd.f32 0.0, %v3040
  %3042 = vmatmul.f32.gmra.mxu0 %v2931
  %v3043 = vpop.f32.mrf.mxu0
  %v3044 = vadd.f32 0.0, %v3043
  %3045 = vmatmul.f32.gmra.mxu0 %v2934
  %v3046 = vpop.f32.mrf.mxu0
  %v3047 = vadd.f32 0.0, %v3046
  %3048 = vmatmul.f32.gmra.mxu0 %v2937
  %v3049 = vpop.f32.mrf.mxu0
  %v3050 = vadd.f32 0.0, %v3049
  %3051 = vmatmul.f32.gmra.mxu0 %v2940
  %v3052 = vpop.f32.mrf.mxu0
  %v3053 = vadd.f32 0.0, %v3052
  %3054 = vmatmul.f32.gmra.mxu0 %v2943
  %v3055 = vpop.f32.mrf.mxu0
  %v3056 = vadd.f32 0.0, %v3055
  %3057 = vmatmul.f32.gmra.mxu0 %v2946
  %v3058 = vpop.f32.mrf.mxu0
  %v3059 = vadd.f32 0.0, %v3058
  %3060 = vmatmul.f32.gmra.mxu0 %v2949
  %v3061 = vpop.f32.mrf.mxu0
  %v3062 = vadd.f32 0.0, %v3061
  %3063 = vmatmul.f32.gmra.mxu0 %v2952
  %v3064 = vpop.f32.mrf.mxu0
  %v3065 = vadd.f32 0.0, %v3064
  %3066 = vmatmul.f32.gmra.mxu0 %v2955
  %v3067 = vpop.f32.mrf.mxu0
  %v3068 = vadd.f32 0.0, %v3067
  %3069 = vmatmul.f32.gmra.mxu0 %v2958
  %v3070 = vpop.f32.mrf.mxu0
  %v3071 = vadd.f32 0.0, %v3070
  %3072 = vmatmul.f32.gmra.mxu0 %v2961
  %v3073 = vpop.f32.mrf.mxu0
  %v3074 = vadd.f32 0.0, %v3073
  %3075 = vmatmul.f32.gmra.mxu0 %v2964
  %v3076 = vpop.f32.mrf.mxu0
  %v3077 = vadd.f32 0.0, %v3076
  %3078 = vmatmul.f32.gmra.mxu0 %v2967
  %v3079 = vpop.f32.mrf.mxu0
  %v3080 = vadd.f32 0.0, %v3079
  %3081 = vdwg.mxu0
  %3082 = vmatpush.msra.mxu0 0.0
  %3083 = vmatpush.msra.mxu0 0.0
  %3084 = vmatpush.msra.mxu0 0.0
  %3085 = vmatpush.msra.mxu0 0.0
  %3086 = vmatpush.msra.mxu0 0.0
  %3087 = vmatpush.msra.mxu0 0.0
  %3088 = vmatpush.msra.mxu0 0.0
  %3089 = vmatpush.msra.mxu0 0.0
  %3090 = vmatpush.msra.mxu0 0.0
  %3091 = vmatpush.msra.mxu0 0.0
  %3092 = vmatpush.msra.mxu0 0.0
  %3093 = vmatpush.msra.mxu0 0.0
  %3094 = vmatpush.msra.mxu0 0.0
  %3095 = vmatpush.msra.mxu0 0.0
  %3096 = vmatpush.msra.mxu0 %v167
  %3097 = vmatpush.msra.mxu0 %v165
  %3098 = vmatmul.f32.gmra.mxu0 %v2874
  %v3099 = vpop.f32.mrf.mxu0
  %v3100 = vadd.f32 0.0, %v3099
  %3101 = vmatmul.f32.gmra.mxu0 %v2877
  %v3102 = vpop.f32.mrf.mxu0
  %v3103 = vadd.f32 0.0, %v3102
  %3104 = vmatmul.f32.gmra.mxu0 %v2880
  %v3105 = vpop.f32.mrf.mxu0
  %v3106 = vadd.f32 0.0, %v3105
  %3107 = vmatmul.f32.gmra.mxu0 %v2883
  %v3108 = vpop.f32.mrf.mxu0
  %v3109 = vadd.f32 0.0, %v3108
  %3110 = vmatmul.f32.gmra.mxu0 %v2886
  %v3111 = vpop.f32.mrf.mxu0
  %v3112 = vadd.f32 0.0, %v3111
  %3113 = vmatmul.f32.gmra.mxu0 %v2889
  %v3114 = vpop.f32.mrf.mxu0
  %v3115 = vadd.f32 0.0, %v3114
  %3116 = vmatmul.f32.gmra.mxu0 %v2892
  %v3117 = vpop.f32.mrf.mxu0
  %v3118 = vadd.f32 0.0, %v3117
  %3119 = vmatmul.f32.gmra.mxu0 %v2895
  %v3120 = vpop.f32.mrf.mxu0
  %v3121 = vadd.f32 0.0, %v3120
  %3122 = vmatmul.f32.gmra.mxu0 %v2898
  %v3123 = vpop.f32.mrf.mxu0
  %v3124 = vadd.f32 0.0, %v3123
  %3125 = vmatmul.f32.gmra.mxu0 %v2901
  %v3126 = vpop.f32.mrf.mxu0
  %v3127 = vadd.f32 0.0, %v3126
  %3128 = vmatmul.f32.gmra.mxu0 %v2904
  %v3129 = vpop.f32.mrf.mxu0
  %v3130 = vadd.f32 0.0, %v3129
  %3131 = vmatmul.f32.gmra.mxu0 %v2907
  %v3132 = vpop.f32.mrf.mxu0
  %v3133 = vadd.f32 0.0, %v3132
  %3134 = vmatmul.f32.gmra.mxu0 %v2910
  %v3135 = vpop.f32.mrf.mxu0
  %v3136 = vadd.f32 0.0, %v3135
  %3137 = vmatmul.f32.gmra.mxu0 %v2913
  %v3138 = vpop.f32.mrf.mxu0
  %v3139 = vadd.f32 0.0, %v3138
  %3140 = vmatmul.f32.gmra.mxu0 %v2916
  %v3141 = vpop.f32.mrf.mxu0
  %v3142 = vadd.f32 0.0, %v3141
  %3143 = vmatmul.f32.gmra.mxu0 %v2919
  %v3144 = vpop.f32.mrf.mxu0
  %v3145 = vadd.f32 0.0, %v3144
  %3146 = vmatmul.f32.gmra.mxu0 %v2922
  %v3147 = vpop.f32.mrf.mxu0
  %v3148 = vadd.f32 0.0, %v3147
  %3149 = vmatmul.f32.gmra.mxu0 %v2925
  %v3150 = vpop.f32.mrf.mxu0
  %v3151 = vadd.f32 0.0, %v3150
  %3152 = vmatmul.f32.gmra.mxu0 %v2928
  %v3153 = vpop.f32.mrf.mxu0
  %v3154 = vadd.f32 0.0, %v3153
  %3155 = vmatmul.f32.gmra.mxu0 %v2931
  %v3156 = vpop.f32.mrf.mxu0
  %v3157 = vadd.f32 0.0, %v3156
  %3158 = vmatmul.f32.gmra.mxu0 %v2934
  %v3159 = vpop.f32.mrf.mxu0
  %v3160 = vadd.f32 0.0, %v3159
  %3161 = vmatmul.f32.gmra.mxu0 %v2937
  %v3162 = vpop.f32.mrf.mxu0
  %v3163 = vadd.f32 0.0, %v3162
  %3164 = vmatmul.f32.gmra.mxu0 %v2940
  %v3165 = vpop.f32.mrf.mxu0
  %v3166 = vadd.f32 0.0, %v3165
  %3167 = vmatmul.f32.gmra.mxu0 %v2943
  %v3168 = vpop.f32.mrf.mxu0
  %v3169 = vadd.f32 0.0, %v3168
  %3170 = vmatmul.f32.gmra.mxu0 %v2946
  %v3171 = vpop.f32.mrf.mxu0
  %v3172 = vadd.f32 0.0, %v3171
  %3173 = vmatmul.f32.gmra.mxu0 %v2949
  %v3174 = vpop.f32.mrf.mxu0
  %v3175 = vadd.f32 0.0, %v3174
  %3176 = vmatmul.f32.gmra.mxu0 %v2952
  %v3177 = vpop.f32.mrf.mxu0
  %v3178 = vadd.f32 0.0, %v3177
  %3179 = vmatmul.f32.gmra.mxu0 %v2955
  %v3180 = vpop.f32.mrf.mxu0
  %v3181 = vadd.f32 0.0, %v3180
  %3182 = vmatmul.f32.gmra.mxu0 %v2958
  %v3183 = vpop.f32.mrf.mxu0
  %v3184 = vadd.f32 0.0, %v3183
  %3185 = vmatmul.f32.gmra.mxu0 %v2961
  %v3186 = vpop.f32.mrf.mxu0
  %v3187 = vadd.f32 0.0, %v3186
  %3188 = vmatmul.f32.gmra.mxu0 %v2964
  %v3189 = vpop.f32.mrf.mxu0
  %v3190 = vadd.f32 0.0, %v3189
  %3191 = vmatmul.f32.gmra.mxu0 %v2967
  %v3192 = vpop.f32.mrf.mxu0
  %v3193 = vadd.f32 0.0, %v3192
  %3194 = vdwg.mxu0
  %v3195 = vmul.f32 %v2987, %v3100
  %v3196 = vmul.f32 %v2990, %v3103
  %v3197 = vmul.f32 %v2993, %v3106
  %v3198 = vmul.f32 %v2996, %v3109
  %v3199 = vmul.f32 %v2999, %v3112
  %v3200 = vmul.f32 %v3002, %v3115
  %v3201 = vmul.f32 %v3005, %v3118
  %v3202 = vmul.f32 %v3008, %v3121
  %v3203 = vmul.f32 %v3011, %v3124
  %v3204 = vmul.f32 %v3014, %v3127
  %v3205 = vmul.f32 %v3017, %v3130
  %v3206 = vmul.f32 %v3020, %v3133
  %v3207 = vmul.f32 %v3023, %v3136
  %v3208 = vmul.f32 %v3026, %v3139
  %v3209 = vmul.f32 %v3029, %v3142
  %v3210 = vmul.f32 %v3032, %v3145
  %v3211 = vmul.f32 %v3035, %v3148
  %v3212 = vmul.f32 %v3038, %v3151
  %v3213 = vmul.f32 %v3041, %v3154
  %v3214 = vmul.f32 %v3044, %v3157
  %v3215 = vmul.f32 %v3047, %v3160
  %v3216 = vmul.f32 %v3050, %v3163
  %v3217 = vmul.f32 %v3053, %v3166
  %v3218 = vmul.f32 %v3056, %v3169
  %v3219 = vmul.f32 %v3059, %v3172
  %v3220 = vmul.f32 %v3062, %v3175
  %v3221 = vmul.f32 %v3065, %v3178
  %v3222 = vmul.f32 %v3068, %v3181
  %v3223 = vmul.f32 %v3071, %v3184
  %v3224 = vmul.f32 %v3074, %v3187
  %v3225 = vmul.f32 %v3077, %v3190
  %v3226 = vmul.f32 %v3080, %v3193
  %3227 = vmatpush.msra.mxu0 %v3210
  %3228 = vmatpush.msra.mxu0 %v3209
  %3229 = vmatpush.msra.mxu0 %v3208
  %3230 = vmatpush.msra.mxu0 %v3207
  %3231 = vmatpush.msra.mxu0 %v3206
  %3232 = vmatpush.msra.mxu0 %v3205
  %3233 = vmatpush.msra.mxu0 %v3204
  %3234 = vmatpush.msra.mxu0 %v3203
  %3235 = vmatpush.msra.mxu0 %v3202
  %3236 = vmatpush.msra.mxu0 %v3201
  %3237 = vmatpush.msra.mxu0 %v3200
  %3238 = vmatpush.msra.mxu0 %v3199
  %3239 = vmatpush.msra.mxu0 %v3198
  %3240 = vmatpush.msra.mxu0 %v3197
  %3241 = vmatpush.msra.mxu0 %v3196
  %3242 = vmatpush.msra.mxu0 %v3195
  %3243 = vmatmul.f32.gmra.mxu0 %v1930
  %v3244 = vpop.f32.mrf.mxu0
  %v3245 = vadd.f32 0.0, %v3244
  %3246 = vmatmul.f32.gmra.mxu0 %v1932
  %v3247 = vpop.f32.mrf.mxu0
  %v3248 = vadd.f32 0.0, %v3247
  %3249 = vmatmul.f32.gmra.mxu0 %v1934
  %v3250 = vpop.f32.mrf.mxu0
  %v3251 = vadd.f32 0.0, %v3250
  %3252 = vmatmul.f32.gmra.mxu0 %v1936
  %v3253 = vpop.f32.mrf.mxu0
  %v3254 = vadd.f32 0.0, %v3253
  %3255 = vmatmul.f32.gmra.mxu0 %v1938
  %v3256 = vpop.f32.mrf.mxu0
  %v3257 = vadd.f32 0.0, %v3256
  %3258 = vmatmul.f32.gmra.mxu0 %v1940
  %v3259 = vpop.f32.mrf.mxu0
  %v3260 = vadd.f32 0.0, %v3259
  %3261 = vmatmul.f32.gmra.mxu0 %v1942
  %v3262 = vpop.f32.mrf.mxu0
  %v3263 = vadd.f32 0.0, %v3262
  %3264 = vmatmul.f32.gmra.mxu0 %v1944
  %v3265 = vpop.f32.mrf.mxu0
  %v3266 = vadd.f32 0.0, %v3265
  %3267 = vmatmul.f32.gmra.mxu0 %v1946
  %v3268 = vpop.f32.mrf.mxu0
  %v3269 = vadd.f32 0.0, %v3268
  %3270 = vmatmul.f32.gmra.mxu0 %v1948
  %v3271 = vpop.f32.mrf.mxu0
  %v3272 = vadd.f32 0.0, %v3271
  %3273 = vdwg.mxu0
  %3274 = vmatpush.msra.mxu0 %v3226
  %3275 = vmatpush.msra.mxu0 %v3225
  %3276 = vmatpush.msra.mxu0 %v3224
  %3277 = vmatpush.msra.mxu0 %v3223
  %3278 = vmatpush.msra.mxu0 %v3222
  %3279 = vmatpush.msra.mxu0 %v3221
  %3280 = vmatpush.msra.mxu0 %v3220
  %3281 = vmatpush.msra.mxu0 %v3219
  %3282 = vmatpush.msra.mxu0 %v3218
  %3283 = vmatpush.msra.mxu0 %v3217
  %3284 = vmatpush.msra.mxu0 %v3216
  %3285 = vmatpush.msra.mxu0 %v3215
  %3286 = vmatpush.msra.mxu0 %v3214
  %3287 = vmatpush.msra.mxu0 %v3213
  %3288 = vmatpush.msra.mxu0 %v3212
  %3289 = vmatpush.msra.mxu0 %v3211
  %3290 = vmatmul.f32.gmra.mxu0 %v1931
  %v3291 = vpop.f32.mrf.mxu0
  %v3292 = vadd.f32 %v3245, %v3291
  %3293 = vmatmul.f32.gmra.mxu0 %v1933
  %v3294 = vpop.f32.mrf.mxu0
  %v3295 = vadd.f32 %v3248, %v3294
  %3296 = vmatmul.f32.gmra.mxu0 %v1935
  %v3297 = vpop.f32.mrf.mxu0
  %v3298 = vadd.f32 %v3251, %v3297
  %3299 = vmatmul.f32.gmra.mxu0 %v1937
  %v3300 = vpop.f32.mrf.mxu0
  %v3301 = vadd.f32 %v3254, %v3300
  %3302 = vmatmul.f32.gmra.mxu0 %v1939
  %v3303 = vpop.f32.mrf.mxu0
  %v3304 = vadd.f32 %v3257, %v3303
  %3305 = vmatmul.f32.gmra.mxu0 %v1941
  %v3306 = vpop.f32.mrf.mxu0
  %v3307 = vadd.f32 %v3260, %v3306
  %3308 = vmatmul.f32.gmra.mxu0 %v1943
  %v3309 = vpop.f32.mrf.mxu0
  %v3310 = vadd.f32 %v3263, %v3309
  %3311 = vmatmul.f32.gmra.mxu0 %v1945
  %v3312 = vpop.f32.mrf.mxu0
  %v3313 = vadd.f32 %v3266, %v3312
  %3314 = vmatmul.f32.gmra.mxu0 %v1947
  %v3315 = vpop.f32.mrf.mxu0
  %v3316 = vadd.f32 %v3269, %v3315
  %3317 = vmatmul.f32.gmra.mxu0 %v1949
  %v3318 = vpop.f32.mrf.mxu0
  %v3319 = vadd.f32 %v3272, %v3318
  %3320 = vdwg.mxu0
  %3321 = vmatpush.msra.mxu0 %v1536
  %3322 = vmatpush.msra.mxu0 %v1535
  %3323 = vmatpush.msra.mxu0 %v1534
  %3324 = vmatpush.msra.mxu0 %v1533
  %3325 = vmatpush.msra.mxu0 %v1532
  %3326 = vmatpush.msra.mxu0 %v1531
  %3327 = vmatpush.msra.mxu0 %v1530
  %3328 = vmatpush.msra.mxu0 %v1529
  %3329 = vmatpush.msra.mxu0 %v1528
  %3330 = vmatpush.msra.mxu0 %v1527
  %3331 = vmatpush.msra.mxu0 %v1526
  %3332 = vmatpush.msra.mxu0 %v1525
  %3333 = vmatpush.msra.mxu0 %v1524
  %3334 = vmatpush.msra.mxu0 %v1523
  %3335 = vmatpush.msra.mxu0 %v1522
  %3336 = vmatpush.msra.mxu0 %v1521
  %3337 = vmatmul.f32.gmra.mxu0 %v1910
  %v3338 = vpop.f32.mrf.mxu0
  %v3339 = vadd.f32 0.0, %v3338
  %3340 = vmatmul.f32.gmra.mxu0 %v1912
  %v3341 = vpop.f32.mrf.mxu0
  %v3342 = vadd.f32 0.0, %v3341
  %3343 = vmatmul.f32.gmra.mxu0 %v1914
  %v3344 = vpop.f32.mrf.mxu0
  %v3345 = vadd.f32 0.0, %v3344
  %3346 = vmatmul.f32.gmra.mxu0 %v1916
  %v3347 = vpop.f32.mrf.mxu0
  %v3348 = vadd.f32 0.0, %v3347
  %3349 = vmatmul.f32.gmra.mxu0 %v1918
  %v3350 = vpop.f32.mrf.mxu0
  %v3351 = vadd.f32 0.0, %v3350
  %3352 = vmatmul.f32.gmra.mxu0 %v1920
  %v3353 = vpop.f32.mrf.mxu0
  %v3354 = vadd.f32 0.0, %v3353
  %3355 = vmatmul.f32.gmra.mxu0 %v1922
  %v3356 = vpop.f32.mrf.mxu0
  %v3357 = vadd.f32 0.0, %v3356
  %3358 = vmatmul.f32.gmra.mxu0 %v1924
  %v3359 = vpop.f32.mrf.mxu0
  %v3360 = vadd.f32 0.0, %v3359
  %3361 = vmatmul.f32.gmra.mxu0 %v1926
  %v3362 = vpop.f32.mrf.mxu0
  %v3363 = vadd.f32 0.0, %v3362
  %3364 = vmatmul.f32.gmra.mxu0 %v1928
  %v3365 = vpop.f32.mrf.mxu0
  %v3366 = vadd.f32 0.0, %v3365
  %3367 = vdwg.mxu0
  %3368 = vmatpush.msra.mxu0 %v1552
  %3369 = vmatpush.msra.mxu0 %v1551
  %3370 = vmatpush.msra.mxu0 %v1550
  %3371 = vmatpush.msra.mxu0 %v1549
  %3372 = vmatpush.msra.mxu0 %v1548
  %3373 = vmatpush.msra.mxu0 %v1547
  %3374 = vmatpush.msra.mxu0 %v1546
  %3375 = vmatpush.msra.mxu0 %v1545
  %3376 = vmatpush.msra.mxu0 %v1544
  %3377 = vmatpush.msra.mxu0 %v1543
  %3378 = vmatpush.msra.mxu0 %v1542
  %3379 = vmatpush.msra.mxu0 %v1541
  %3380 = vmatpush.msra.mxu0 %v1540
  %3381 = vmatpush.msra.mxu0 %v1539
  %3382 = vmatpush.msra.mxu0 %v1538
  %3383 = vmatpush.msra.mxu0 %v1537
  %3384 = vmatmul.f32.gmra.mxu0 %v1911
  %v3385 = vpop.f32.mrf.mxu0
  %v3386 = vadd.f32 %v3339, %v3385
  %3387 = vmatmul.f32.gmra.mxu0 %v1913
  %v3388 = vpop.f32.mrf.mxu0
  %v3389 = vadd.f32 %v3342, %v3388
  %3390 = vmatmul.f32.gmra.mxu0 %v1915
  %v3391 = vpop.f32.mrf.mxu0
  %v3392 = vadd.f32 %v3345, %v3391
  %3393 = vmatmul.f32.gmra.mxu0 %v1917
  %v3394 = vpop.f32.mrf.mxu0
  %v3395 = vadd.f32 %v3348, %v3394
  %3396 = vmatmul.f32.gmra.mxu0 %v1919
  %v3397 = vpop.f32.mrf.mxu0
  %v3398 = vadd.f32 %v3351, %v3397
  %3399 = vmatmul.f32.gmra.mxu0 %v1921
  %v3400 = vpop.f32.mrf.mxu0
  %v3401 = vadd.f32 %v3354, %v3400
  %3402 = vmatmul.f32.gmra.mxu0 %v1923
  %v3403 = vpop.f32.mrf.mxu0
  %v3404 = vadd.f32 %v3357, %v3403
  %3405 = vmatmul.f32.gmra.mxu0 %v1925
  %v3406 = vpop.f32.mrf.mxu0
  %v3407 = vadd.f32 %v3360, %v3406
  %3408 = vmatmul.f32.gmra.mxu0 %v1927
  %v3409 = vpop.f32.mrf.mxu0
  %v3410 = vadd.f32 %v3363, %v3409
  %3411 = vmatmul.f32.gmra.mxu0 %v1929
  %v3412 = vpop.f32.mrf.mxu0
  %v3413 = vadd.f32 %v3366, %v3412
  %3414 = vdwg.mxu0
  %v3416 = vsel %vm792, %v2510, 0
  %v3419 = vsel %vm792, %v2522, 0
  %v3422 = vsel %vm792, %v2534, 0
  %v3425 = vsel %vm792, %v2546, 0
  %v3428 = vsel %vm792, %v2558, 0
  %v3431 = vsel %vm792, %v2570, 0
  %v3434 = vsel %vm792, %v2582, 0
  %v3437 = vsel %vm792, %v2594, 0
  %v3440 = vsel %vm792, %v2606, 0
  %v3443 = vsel %vm792, %v2618, 0
  %3445 = vmatpush.msra.mxu0 0.0
  %3446 = vmatpush.msra.mxu0 0.0
  %3447 = vmatpush.msra.mxu0 0.0
  %3448 = vmatpush.msra.mxu0 0.0
  %3449 = vmatpush.msra.mxu0 0.0
  %3450 = vmatpush.msra.mxu0 0.0
  %3451 = vmatpush.msra.mxu0 0.0
  %3452 = vmatpush.msra.mxu0 0.0
  %3453 = vmatpush.msra.mxu0 0.0
  %3454 = vmatpush.msra.mxu0 0.0
  %3455 = vmatpush.msra.mxu0 0.0
  %3456 = vmatpush.msra.mxu0 0.0
  %3457 = vmatpush.msra.mxu0 0.0
  %3458 = vmatpush.msra.mxu0 0.0
  %3459 = vmatpush.msra.mxu0 %v166
  %3460 = vmatpush.msra.mxu0 %v164
  %3461 = vmatmul.f32.gmra.mxu0 %v3416
  %v3462 = vpop.f32.mrf.mxu0
  %v3463 = vadd.f32 0.0, %v3462
  %3464 = vmatmul.f32.gmra.mxu0 %v3419
  %v3465 = vpop.f32.mrf.mxu0
  %v3466 = vadd.f32 0.0, %v3465
  %3467 = vmatmul.f32.gmra.mxu0 %v3422
  %v3468 = vpop.f32.mrf.mxu0
  %v3469 = vadd.f32 0.0, %v3468
  %3470 = vmatmul.f32.gmra.mxu0 %v3425
  %v3471 = vpop.f32.mrf.mxu0
  %v3472 = vadd.f32 0.0, %v3471
  %3473 = vmatmul.f32.gmra.mxu0 %v3428
  %v3474 = vpop.f32.mrf.mxu0
  %v3475 = vadd.f32 0.0, %v3474
  %3476 = vmatmul.f32.gmra.mxu0 %v3431
  %v3477 = vpop.f32.mrf.mxu0
  %v3478 = vadd.f32 0.0, %v3477
  %3479 = vmatmul.f32.gmra.mxu0 %v3434
  %v3480 = vpop.f32.mrf.mxu0
  %v3481 = vadd.f32 0.0, %v3480
  %3482 = vmatmul.f32.gmra.mxu0 %v3437
  %v3483 = vpop.f32.mrf.mxu0
  %v3484 = vadd.f32 0.0, %v3483
  %3485 = vmatmul.f32.gmra.mxu0 %v3440
  %v3486 = vpop.f32.mrf.mxu0
  %v3487 = vadd.f32 0.0, %v3486
  %3488 = vmatmul.f32.gmra.mxu0 %v3443
  %v3489 = vpop.f32.mrf.mxu0
  %v3490 = vadd.f32 0.0, %v3489
  %3491 = vdwg.mxu0
  %3492 = vmatpush.msra.mxu0 0.0
  %3493 = vmatpush.msra.mxu0 0.0
  %3494 = vmatpush.msra.mxu0 0.0
  %3495 = vmatpush.msra.mxu0 0.0
  %3496 = vmatpush.msra.mxu0 0.0
  %3497 = vmatpush.msra.mxu0 0.0
  %3498 = vmatpush.msra.mxu0 0.0
  %3499 = vmatpush.msra.mxu0 0.0
  %3500 = vmatpush.msra.mxu0 0.0
  %3501 = vmatpush.msra.mxu0 0.0
  %3502 = vmatpush.msra.mxu0 0.0
  %3503 = vmatpush.msra.mxu0 0.0
  %3504 = vmatpush.msra.mxu0 0.0
  %3505 = vmatpush.msra.mxu0 0.0
  %3506 = vmatpush.msra.mxu0 %v167
  %3507 = vmatpush.msra.mxu0 %v165
  %3508 = vmatmul.f32.gmra.mxu0 %v3416
  %v3509 = vpop.f32.mrf.mxu0
  %v3510 = vadd.f32 0.0, %v3509
  %3511 = vmatmul.f32.gmra.mxu0 %v3419
  %v3512 = vpop.f32.mrf.mxu0
  %v3513 = vadd.f32 0.0, %v3512
  %3514 = vmatmul.f32.gmra.mxu0 %v3422
  %v3515 = vpop.f32.mrf.mxu0
  %v3516 = vadd.f32 0.0, %v3515
  %3517 = vmatmul.f32.gmra.mxu0 %v3425
  %v3518 = vpop.f32.mrf.mxu0
  %v3519 = vadd.f32 0.0, %v3518
  %3520 = vmatmul.f32.gmra.mxu0 %v3428
  %v3521 = vpop.f32.mrf.mxu0
  %v3522 = vadd.f32 0.0, %v3521
  %3523 = vmatmul.f32.gmra.mxu0 %v3431
  %v3524 = vpop.f32.mrf.mxu0
  %v3525 = vadd.f32 0.0, %v3524
  %3526 = vmatmul.f32.gmra.mxu0 %v3434
  %v3527 = vpop.f32.mrf.mxu0
  %v3528 = vadd.f32 0.0, %v3527
  %3529 = vmatmul.f32.gmra.mxu0 %v3437
  %v3530 = vpop.f32.mrf.mxu0
  %v3531 = vadd.f32 0.0, %v3530
  %3532 = vmatmul.f32.gmra.mxu0 %v3440
  %v3533 = vpop.f32.mrf.mxu0
  %v3534 = vadd.f32 0.0, %v3533
  %3535 = vmatmul.f32.gmra.mxu0 %v3443
  %v3536 = vpop.f32.mrf.mxu0
  %v3537 = vadd.f32 0.0, %v3536
  %3538 = vdwg.mxu0
  %v3539 = vmul.f32 %v3463, %v3510
  %v3540 = vmul.f32 %v3466, %v3513
  %v3541 = vmul.f32 %v3469, %v3516
  %v3542 = vmul.f32 %v3472, %v3519
  %v3543 = vmul.f32 %v3475, %v3522
  %v3544 = vmul.f32 %v3478, %v3525
  %v3545 = vmul.f32 %v3481, %v3528
  %v3546 = vmul.f32 %v3484, %v3531
  %v3547 = vmul.f32 %v3487, %v3534
  %v3548 = vmul.f32 %v3490, %v3537
  %v3549 = vadd.f32 %v3539, 0.01
  %v3550 = vadd.f32 %v3540, 0.01
  %v3551 = vadd.f32 %v3541, 0.01
  %v3552 = vadd.f32 %v3542, 0.01
  %v3553 = vadd.f32 %v3543, 0.01
  %v3554 = vadd.f32 %v3544, 0.01
  %v3555 = vadd.f32 %v3545, 0.01
  %v3556 = vadd.f32 %v3546, 0.01
  %v3557 = vadd.f32 %v3547, 0.01
  %v3558 = vadd.f32 %v3548, 0.01
  %v3559 = vrcp.pop %v3549
  %v3560 = vmul.f32 %v3549, %v3559
  %v3561 = vsub.f32 1.0, %v3560
  %v3562 = vmul.f32 %v3559, %v3561
  %v3563 = vadd.f32 %v3559, %v3562
  %vm3564 = vweird.f32 %v3549
  %vm3565 = vweird.f32 %v3559
  %vm3566 = vmor %vm3564, %vm3565
  %v3567 = vsel %vm3566, %v3559, %v3563
  %v3568 = vand.u32 2147483647, %v3549
  %vm3569 = vcmp.eq.f32.partialorder %v3568, 8.507059e+37
  %v3570 = vand.u32 %v3549, 2147483648
  %v3571 = vor.u32 1.1754944e-38, %v3570
  %v3572 = vsel %vm3569, %v3571, %v3567
  %v3573 = vrcp.pop %v3550
  %v3574 = vmul.f32 %v3550, %v3573
  %v3575 = vsub.f32 1.0, %v3574
  %v3576 = vmul.f32 %v3573, %v3575
  %v3577 = vadd.f32 %v3573, %v3576
  %vm3578 = vweird.f32 %v3550
  %vm3579 = vweird.f32 %v3573
  %vm3580 = vmor %vm3578, %vm3579
  %v3581 = vsel %vm3580, %v3573, %v3577
  %v3582 = vand.u32 2147483647, %v3550
  %vm3583 = vcmp.eq.f32.partialorder %v3582, 8.507059e+37
  %v3584 = vand.u32 %v3550, 2147483648
  %v3585 = vor.u32 1.1754944e-38, %v3584
  %v3586 = vsel %vm3583, %v3585, %v3581
  %v3587 = vrcp.pop %v3551
  %v3588 = vmul.f32 %v3551, %v3587
  %v3589 = vsub.f32 1.0, %v3588
  %v3590 = vmul.f32 %v3587, %v3589
  %v3591 = vadd.f32 %v3587, %v3590
  %vm3592 = vweird.f32 %v3551
  %vm3593 = vweird.f32 %v3587
  %vm3594 = vmor %vm3592, %vm3593
  %v3595 = vsel %vm3594, %v3587, %v3591
  %v3596 = vand.u32 2147483647, %v3551
  %vm3597 = vcmp.eq.f32.partialorder %v3596, 8.507059e+37
  %v3598 = vand.u32 %v3551, 2147483648
  %v3599 = vor.u32 1.1754944e-38, %v3598
  %v3600 = vsel %vm3597, %v3599, %v3595
  %v3601 = vrcp.pop %v3552
  %v3602 = vmul.f32 %v3552, %v3601
  %v3603 = vsub.f32 1.0, %v3602
  %v3604 = vmul.f32 %v3601, %v3603
  %v3605 = vadd.f32 %v3601, %v3604
  %vm3606 = vweird.f32 %v3552
  %vm3607 = vweird.f32 %v3601
  %vm3608 = vmor %vm3606, %vm3607
  %v3609 = vsel %vm3608, %v3601, %v3605
  %v3610 = vand.u32 2147483647, %v3552
  %vm3611 = vcmp.eq.f32.partialorder %v3610, 8.507059e+37
  %v3612 = vand.u32 %v3552, 2147483648
  %v3613 = vor.u32 1.1754944e-38, %v3612
  %v3614 = vsel %vm3611, %v3613, %v3609
  %v3615 = vrcp.pop %v3553
  %v3616 = vmul.f32 %v3553, %v3615
  %v3617 = vsub.f32 1.0, %v3616
  %v3618 = vmul.f32 %v3615, %v3617
  %v3619 = vadd.f32 %v3615, %v3618
  %vm3620 = vweird.f32 %v3553
  %vm3621 = vweird.f32 %v3615
  %vm3622 = vmor %vm3620, %vm3621
  %v3623 = vsel %vm3622, %v3615, %v3619
  %v3624 = vand.u32 2147483647, %v3553
  %vm3625 = vcmp.eq.f32.partialorder %v3624, 8.507059e+37
  %v3626 = vand.u32 %v3553, 2147483648
  %v3627 = vor.u32 1.1754944e-38, %v3626
  %v3628 = vsel %vm3625, %v3627, %v3623
  %v3629 = vrcp.pop %v3554
  %v3630 = vmul.f32 %v3554, %v3629
  %v3631 = vsub.f32 1.0, %v3630
  %v3632 = vmul.f32 %v3629, %v3631
  %v3633 = vadd.f32 %v3629, %v3632
  %vm3634 = vweird.f32 %v3554
  %vm3635 = vweird.f32 %v3629
  %vm3636 = vmor %vm3634, %vm3635
  %v3637 = vsel %vm3636, %v3629, %v3633
  %v3638 = vand.u32 2147483647, %v3554
  %vm3639 = vcmp.eq.f32.partialorder %v3638, 8.507059e+37
  %v3640 = vand.u32 %v3554, 2147483648
  %v3641 = vor.u32 1.1754944e-38, %v3640
  %v3642 = vsel %vm3639, %v3641, %v3637
  %v3643 = vrcp.pop %v3555
  %v3644 = vmul.f32 %v3555, %v3643
  %v3645 = vsub.f32 1.0, %v3644
  %v3646 = vmul.f32 %v3643, %v3645
  %v3647 = vadd.f32 %v3643, %v3646
  %vm3648 = vweird.f32 %v3555
  %vm3649 = vweird.f32 %v3643
  %vm3650 = vmor %vm3648, %vm3649
  %v3651 = vsel %vm3650, %v3643, %v3647
  %v3652 = vand.u32 2147483647, %v3555
  %vm3653 = vcmp.eq.f32.partialorder %v3652, 8.507059e+37
  %v3654 = vand.u32 %v3555, 2147483648
  %v3655 = vor.u32 1.1754944e-38, %v3654
  %v3656 = vsel %vm3653, %v3655, %v3651
  %v3657 = vrcp.pop %v3556
  %v3658 = vmul.f32 %v3556, %v3657
  %v3659 = vsub.f32 1.0, %v3658
  %v3660 = vmul.f32 %v3657, %v3659
  %v3661 = vadd.f32 %v3657, %v3660
  %vm3662 = vweird.f32 %v3556
  %vm3663 = vweird.f32 %v3657
  %vm3664 = vmor %vm3662, %vm3663
  %v3665 = vsel %vm3664, %v3657, %v3661
  %v3666 = vand.u32 2147483647, %v3556
  %vm3667 = vcmp.eq.f32.partialorder %v3666, 8.507059e+37
  %v3668 = vand.u32 %v3556, 2147483648
  %v3669 = vor.u32 1.1754944e-38, %v3668
  %v3670 = vsel %vm3667, %v3669, %v3665
  %v3671 = vrcp.pop %v3557
  %v3672 = vmul.f32 %v3557, %v3671
  %v3673 = vsub.f32 1.0, %v3672
  %v3674 = vmul.f32 %v3671, %v3673
  %v3675 = vadd.f32 %v3671, %v3674
  %vm3676 = vweird.f32 %v3557
  %vm3677 = vweird.f32 %v3671
  %vm3678 = vmor %vm3676, %vm3677
  %v3679 = vsel %vm3678, %v3671, %v3675
  %v3680 = vand.u32 2147483647, %v3557
  %vm3681 = vcmp.eq.f32.partialorder %v3680, 8.507059e+37
  %v3682 = vand.u32 %v3557, 2147483648
  %v3683 = vor.u32 1.1754944e-38, %v3682
  %v3684 = vsel %vm3681, %v3683, %v3679
  %v3685 = vrcp.pop %v3558
  %v3686 = vmul.f32 %v3558, %v3685
  %v3687 = vsub.f32 1.0, %v3686
  %v3688 = vmul.f32 %v3685, %v3687
  %v3689 = vadd.f32 %v3685, %v3688
  %vm3690 = vweird.f32 %v3558
  %vm3691 = vweird.f32 %v3685
  %vm3692 = vmor %vm3690, %vm3691
  %v3693 = vsel %vm3692, %v3685, %v3689
  %v3694 = vand.u32 2147483647, %v3558
  %vm3695 = vcmp.eq.f32.partialorder %v3694, 8.507059e+37
  %v3696 = vand.u32 %v3558, 2147483648
  %v3697 = vor.u32 1.1754944e-38, %v3696
  %v3698 = vsel %vm3695, %v3697, %v3693
  %v3699 = vmul.f32 %v3292, %v3572
  %v3700 = vmul.f32 %v3295, %v3586
  %v3701 = vmul.f32 %v3298, %v3600
  %v3702 = vmul.f32 %v3301, %v3614
  %v3703 = vmul.f32 %v3304, %v3628
  %v3704 = vmul.f32 %v3307, %v3642
  %v3705 = vmul.f32 %v3310, %v3656
  %v3706 = vmul.f32 %v3313, %v3670
  %v3707 = vmul.f32 %v3316, %v3684
  %v3708 = vmul.f32 %v3319, %v3698
  %3709 = vrot.lane.b32.xlu0 %v2510, 16
  %v3710 = vpop.permute.xlu0 %3709
  %3711 = vrot.lane.b32.xlu0 %v2522, 16
  %v3712 = vpop.permute.xlu0 %3711
  %3713 = vrot.lane.b32.xlu0 %v2534, 16
  %v3714 = vpop.permute.xlu0 %3713
  %3715 = vrot.lane.b32.xlu0 %v2546, 16
  %v3716 = vpop.permute.xlu0 %3715
  %3717 = vrot.lane.b32.xlu0 %v2558, 16
  %v3718 = vpop.permute.xlu0 %3717
  %3719 = vrot.lane.b32.xlu0 %v2570, 16
  %v3720 = vpop.permute.xlu0 %3719
  %3721 = vrot.lane.b32.xlu0 %v2582, 16
  %v3722 = vpop.permute.xlu0 %3721
  %3723 = vrot.lane.b32.xlu0 %v2594, 16
  %v3724 = vpop.permute.xlu0 %3723
  %3725 = vrot.lane.b32.xlu0 %v2606, 16
  %v3726 = vpop.permute.xlu0 %3725
  %3727 = vrot.lane.b32.xlu0 %v2618, 16
  %v3728 = vpop.permute.xlu0 %3727
  %3749 = vrot.lane.b32.xlu0 %v2092, 32
  %v3750 = vpop.permute.xlu0 %3749
  %3751 = vrot.lane.b32.xlu0 %v2095, 32
  %v3752 = vpop.permute.xlu0 %3751
  %3753 = vrot.lane.b32.xlu0 %v2098, 32
  %v3754 = vpop.permute.xlu0 %3753
  %3755 = vrot.lane.b32.xlu0 %v2101, 32
  %v3756 = vpop.permute.xlu0 %3755
  %3757 = vrot.lane.b32.xlu0 %v2104, 32
  %v3758 = vpop.permute.xlu0 %3757
  %3759 = vrot.lane.b32.xlu0 %v2107, 32
  %v3760 = vpop.permute.xlu0 %3759
  %3761 = vrot.lane.b32.xlu0 %v2110, 32
  %v3762 = vpop.permute.xlu0 %3761
  %3763 = vrot.lane.b32.xlu0 %v2113, 32
  %v3764 = vpop.permute.xlu0 %3763
  %3765 = vrot.lane.b32.xlu0 %v2116, 32
  %v3766 = vpop.permute.xlu0 %3765
  %3767 = vrot.lane.b32.xlu0 %v2119, 32
  %v3768 = vpop.permute.xlu0 %3767
  %3789 = vrot.lane.b32.xlu0 %v2863, 48
  %v3790 = vpop.permute.xlu0 %3789
  %3791 = vrot.lane.b32.xlu0 %v2864, 48
  %v3792 = vpop.permute.xlu0 %3791
  %3793 = vrot.lane.b32.xlu0 %v2865, 48
  %v3794 = vpop.permute.xlu0 %3793
  %3795 = vrot.lane.b32.xlu0 %v2866, 48
  %v3796 = vpop.permute.xlu0 %3795
  %3797 = vrot.lane.b32.xlu0 %v2867, 48
  %v3798 = vpop.permute.xlu0 %3797
  %3799 = vrot.lane.b32.xlu0 %v2868, 48
  %v3800 = vpop.permute.xlu0 %3799
  %3801 = vrot.lane.b32.xlu0 %v2869, 48
  %v3802 = vpop.permute.xlu0 %3801
  %3803 = vrot.lane.b32.xlu0 %v2870, 48
  %v3804 = vpop.permute.xlu0 %3803
  %3805 = vrot.lane.b32.xlu0 %v2871, 48
  %v3806 = vpop.permute.xlu0 %3805
  %3807 = vrot.lane.b32.xlu0 %v2872, 48
  %v3808 = vpop.permute.xlu0 %3807
  %v3819 = vsel %vm792, %v2684, %v3710
  %v3820 = vsel %vm792, %v2687, %v3712
  %v3821 = vsel %vm792, %v2690, %v3714
  %v3822 = vsel %vm792, %v2693, %v3716
  %v3823 = vsel %vm792, %v2696, %v3718
  %v3824 = vsel %vm792, %v2699, %v3720
  %v3825 = vsel %vm792, %v2702, %v3722
  %v3826 = vsel %vm792, %v2705, %v3724
  %v3827 = vsel %vm792, %v2708, %v3726
  %v3828 = vsel %vm792, %v2711, %v3728
  %v3829 = vsel %vm1753, %v3819, %v3750
  %v3830 = vsel %vm1753, %v3820, %v3752
  %v3831 = vsel %vm1753, %v3821, %v3754
  %v3832 = vsel %vm1753, %v3822, %v3756
  %v3833 = vsel %vm1753, %v3823, %v3758
  %v3834 = vsel %vm1753, %v3824, %v3760
  %v3835 = vsel %vm1753, %v3825, %v3762
  %v3836 = vsel %vm1753, %v3826, %v3764
  %v3837 = vsel %vm1753, %v3827, %v3766
  %v3838 = vsel %vm1753, %v3828, %v3768
  %v3839 = vsel %vm1757, %v3829, %v3790
  %v3840 = vsel %vm1757, %v3830, %v3792
  %v3841 = vsel %vm1757, %v3831, %v3794
  %v3842 = vsel %vm1757, %v3832, %v3796
  %v3843 = vsel %vm1757, %v3833, %v3798
  %v3844 = vsel %vm1757, %v3834, %v3800
  %v3845 = vsel %vm1757, %v3835, %v3802
  %v3846 = vsel %vm1757, %v3836, %v3804
  %v3847 = vsel %vm1757, %v3837, %v3806
  %v3848 = vsel %vm1757, %v3838, %v3808
  %v3850 = vperm.slane %v2026, 0
  %v3853 = vsel %vm1764, %v3839, 0
  %v3856 = vsel %vm1764, %v3840, 0
  %v3859 = vsel %vm1764, %v3841, 0
  %v3862 = vsel %vm1764, %v3842, 0
  %v3865 = vsel %vm1764, %v3843, 0
  %v3868 = vsel %vm1764, %v3844, 0
  %v3871 = vsel %vm1764, %v3845, 0
  %v3874 = vsel %vm1764, %v3846, 0
  %v3877 = vsel %vm1764, %v3847, 0
  %v3880 = vsel %vm1764, %v3848, 0
  %3882 = vmatpush.msra.mxu0 %v1985
  %3883 = vmatpush.msra.mxu0 %v1984
  %3884 = vmatpush.msra.mxu0 %v1983
  %3885 = vmatpush.msra.mxu0 %v1982
  %3886 = vmatpush.msra.mxu0 %v1981
  %3887 = vmatpush.msra.mxu0 %v1980
  %3888 = vmatpush.msra.mxu0 %v1979
  %3889 = vmatpush.msra.mxu0 %v1978
  %3890 = vmatpush.msra.mxu0 %v1977
  %3891 = vmatpush.msra.mxu0 %v1976
  %3892 = vmatpush.msra.mxu0 %v1975
  %3893 = vmatpush.msra.mxu0 %v1974
  %3894 = vmatpush.msra.mxu0 %v1973
  %3895 = vmatpush.msra.mxu0 %v1972
  %3896 = vmatpush.msra.mxu0 %v1971
  %3897 = vmatpush.msra.mxu0 %v1970
  %3898 = vmatmul.f32.gmra.mxu0 %v3292
  %v3899 = vpop.f32.mrf.mxu0
  %v3900 = vadd.f32 %v3850, %v3899
  %3901 = vmatmul.f32.gmra.mxu0 %v3295
  %v3902 = vpop.f32.mrf.mxu0
  %v3903 = vadd.f32 %v3850, %v3902
  %3904 = vmatmul.f32.gmra.mxu0 %v3298
  %v3905 = vpop.f32.mrf.mxu0
  %v3906 = vadd.f32 %v3850, %v3905
  %3907 = vmatmul.f32.gmra.mxu0 %v3301
  %v3908 = vpop.f32.mrf.mxu0
  %v3909 = vadd.f32 %v3850, %v3908
  %3910 = vmatmul.f32.gmra.mxu0 %v3304
  %v3911 = vpop.f32.mrf.mxu0
  %v3912 = vadd.f32 %v3850, %v3911
  %3913 = vmatmul.f32.gmra.mxu0 %v3307
  %v3914 = vpop.f32.mrf.mxu0
  %v3915 = vadd.f32 %v3850, %v3914
  %3916 = vmatmul.f32.gmra.mxu0 %v3310
  %v3917 = vpop.f32.mrf.mxu0
  %v3918 = vadd.f32 %v3850, %v3917
  %3919 = vmatmul.f32.gmra.mxu0 %v3313
  %v3920 = vpop.f32.mrf.mxu0
  %v3921 = vadd.f32 %v3850, %v3920
  %3922 = vmatmul.f32.gmra.mxu0 %v3316
  %v3923 = vpop.f32.mrf.mxu0
  %v3924 = vadd.f32 %v3850, %v3923
  %3925 = vmatmul.f32.gmra.mxu0 %v3319
  %v3926 = vpop.f32.mrf.mxu0
  %v3927 = vadd.f32 %v3850, %v3926
  %3928 = vdwg.mxu0
  %3929 = vmatpush.msra.mxu0 %v2001
  %3930 = vmatpush.msra.mxu0 %v2000
  %3931 = vmatpush.msra.mxu0 %v1999
  %3932 = vmatpush.msra.mxu0 %v1998
  %3933 = vmatpush.msra.mxu0 %v1997
  %3934 = vmatpush.msra.mxu0 %v1996
  %3935 = vmatpush.msra.mxu0 %v1995
  %3936 = vmatpush.msra.mxu0 %v1994
  %3937 = vmatpush.msra.mxu0 %v1993
  %3938 = vmatpush.msra.mxu0 %v1992
  %3939 = vmatpush.msra.mxu0 %v1991
  %3940 = vmatpush.msra.mxu0 %v1990
  %3941 = vmatpush.msra.mxu0 %v1989
  %3942 = vmatpush.msra.mxu0 %v1988
  %3943 = vmatpush.msra.mxu0 %v1987
  %3944 = vmatpush.msra.mxu0 %v1986
  %3945 = vmatmul.f32.gmra.mxu0 %v3699
  %v3946 = vpop.f32.mrf.mxu0
  %v3947 = vadd.f32 %v3900, %v3946
  %3948 = vmatmul.f32.gmra.mxu0 %v3700
  %v3949 = vpop.f32.mrf.mxu0
  %v3950 = vadd.f32 %v3903, %v3949
  %3951 = vmatmul.f32.gmra.mxu0 %v3701
  %v3952 = vpop.f32.mrf.mxu0
  %v3953 = vadd.f32 %v3906, %v3952
  %3954 = vmatmul.f32.gmra.mxu0 %v3702
  %v3955 = vpop.f32.mrf.mxu0
  %v3956 = vadd.f32 %v3909, %v3955
  %3957 = vmatmul.f32.gmra.mxu0 %v3703
  %v3958 = vpop.f32.mrf.mxu0
  %v3959 = vadd.f32 %v3912, %v3958
  %3960 = vmatmul.f32.gmra.mxu0 %v3704
  %v3961 = vpop.f32.mrf.mxu0
  %v3962 = vadd.f32 %v3915, %v3961
  %3963 = vmatmul.f32.gmra.mxu0 %v3705
  %v3964 = vpop.f32.mrf.mxu0
  %v3965 = vadd.f32 %v3918, %v3964
  %3966 = vmatmul.f32.gmra.mxu0 %v3706
  %v3967 = vpop.f32.mrf.mxu0
  %v3968 = vadd.f32 %v3921, %v3967
  %3969 = vmatmul.f32.gmra.mxu0 %v3707
  %v3970 = vpop.f32.mrf.mxu0
  %v3971 = vadd.f32 %v3924, %v3970
  %3972 = vmatmul.f32.gmra.mxu0 %v3708
  %v3973 = vpop.f32.mrf.mxu0
  %v3974 = vadd.f32 %v3927, %v3973
  %3975 = vdwg.mxu0
  %3976 = vmatpush.msra.mxu0 %v2017
  %3977 = vmatpush.msra.mxu0 %v2016
  %3978 = vmatpush.msra.mxu0 %v2015
  %3979 = vmatpush.msra.mxu0 %v2014
  %3980 = vmatpush.msra.mxu0 %v2013
  %3981 = vmatpush.msra.mxu0 %v2012
  %3982 = vmatpush.msra.mxu0 %v2011
  %3983 = vmatpush.msra.mxu0 %v2010
  %3984 = vmatpush.msra.mxu0 %v2009
  %3985 = vmatpush.msra.mxu0 %v2008
  %3986 = vmatpush.msra.mxu0 %v2007
  %3987 = vmatpush.msra.mxu0 %v2006
  %3988 = vmatpush.msra.mxu0 %v2005
  %3989 = vmatpush.msra.mxu0 %v2004
  %3990 = vmatpush.msra.mxu0 %v2003
  %3991 = vmatpush.msra.mxu0 %v2002
  %3992 = vmatmul.f32.gmra.mxu0 %v3386
  %v3993 = vpop.f32.mrf.mxu0
  %v3994 = vadd.f32 %v3947, %v3993
  %3995 = vmatmul.f32.gmra.mxu0 %v3389
  %v3996 = vpop.f32.mrf.mxu0
  %v3997 = vadd.f32 %v3950, %v3996
  %3998 = vmatmul.f32.gmra.mxu0 %v3392
  %v3999 = vpop.f32.mrf.mxu0
  %v4000 = vadd.f32 %v3953, %v3999
  %4001 = vmatmul.f32.gmra.mxu0 %v3395
  %v4002 = vpop.f32.mrf.mxu0
  %v4003 = vadd.f32 %v3956, %v4002
  %4004 = vmatmul.f32.gmra.mxu0 %v3398
  %v4005 = vpop.f32.mrf.mxu0
  %v4006 = vadd.f32 %v3959, %v4005
  %4007 = vmatmul.f32.gmra.mxu0 %v3401
  %v4008 = vpop.f32.mrf.mxu0
  %v4009 = vadd.f32 %v3962, %v4008
  %4010 = vmatmul.f32.gmra.mxu0 %v3404
  %v4011 = vpop.f32.mrf.mxu0
  %v4012 = vadd.f32 %v3965, %v4011
  %4013 = vmatmul.f32.gmra.mxu0 %v3407
  %v4014 = vpop.f32.mrf.mxu0
  %v4015 = vadd.f32 %v3968, %v4014
  %4016 = vmatmul.f32.gmra.mxu0 %v3410
  %v4017 = vpop.f32.mrf.mxu0
  %v4018 = vadd.f32 %v3971, %v4017
  %4019 = vmatmul.f32.gmra.mxu0 %v3413
  %v4020 = vpop.f32.mrf.mxu0
  %v4021 = vadd.f32 %v3974, %v4020
  %4022 = vdwg.mxu0
  %4023 = vmatpush.msra.mxu0 0.0
  %4024 = vmatpush.msra.mxu0 0.0
  %4025 = vmatpush.msra.mxu0 0.0
  %4026 = vmatpush.msra.mxu0 0.0
  %4027 = vmatpush.msra.mxu0 0.0
  %4028 = vmatpush.msra.mxu0 0.0
  %4029 = vmatpush.msra.mxu0 0.0
  %4030 = vmatpush.msra.mxu0 0.0
  %4031 = vmatpush.msra.mxu0 %v2025
  %4032 = vmatpush.msra.mxu0 %v2024
  %4033 = vmatpush.msra.mxu0 %v2023
  %4034 = vmatpush.msra.mxu0 %v2022
  %4035 = vmatpush.msra.mxu0 %v2021
  %4036 = vmatpush.msra.mxu0 %v2020
  %4037 = vmatpush.msra.mxu0 %v2019
  %4038 = vmatpush.msra.mxu0 %v2018
  %4039 = vmatmul.f32.gmra.mxu0 %v3853
  %v4040 = vpop.f32.mrf.mxu0
  %v4041 = vadd.f32 %v3994, %v4040
  %4042 = vmatmul.f32.gmra.mxu0 %v3856
  %v4043 = vpop.f32.mrf.mxu0
  %v4044 = vadd.f32 %v3997, %v4043
  %4045 = vmatmul.f32.gmra.mxu0 %v3859
  %v4046 = vpop.f32.mrf.mxu0
  %v4047 = vadd.f32 %v4000, %v4046
  %4048 = vmatmul.f32.gmra.mxu0 %v3862
  %v4049 = vpop.f32.mrf.mxu0
  %v4050 = vadd.f32 %v4003, %v4049
  %4051 = vmatmul.f32.gmra.mxu0 %v3865
  %v4052 = vpop.f32.mrf.mxu0
  %v4053 = vadd.f32 %v4006, %v4052
  %4054 = vmatmul.f32.gmra.mxu0 %v3868
  %v4055 = vpop.f32.mrf.mxu0
  %v4056 = vadd.f32 %v4009, %v4055
  %4057 = vmatmul.f32.gmra.mxu0 %v3871
  %v4058 = vpop.f32.mrf.mxu0
  %v4059 = vadd.f32 %v4012, %v4058
  %4060 = vmatmul.f32.gmra.mxu0 %v3874
  %v4061 = vpop.f32.mrf.mxu0
  %v4062 = vadd.f32 %v4015, %v4061
  %4063 = vmatmul.f32.gmra.mxu0 %v3877
  %v4064 = vpop.f32.mrf.mxu0
  %v4065 = vadd.f32 %v4018, %v4064
  %4066 = vmatmul.f32.gmra.mxu0 %v3880
  %v4067 = vpop.f32.mrf.mxu0
  %v4068 = vadd.f32 %v4021, %v4067
  %4069 = vdwg.mxu0
  %v4070 = vld [vmem:[%s27] sm:$0xff]
  %v4071 = vld [vmem:[%s27 + $0x8] sm:$0xff]
  %v4072 = vld [vmem:[%s27 + $0x10] sm:$0xff]
  %v4073 = vld [vmem:[%s27 + $0x18] sm:$0x3f]
  %v4074 = vld [vmem:[%s25] sm:$0x1]
  %v4075 = vld [vmem:[%s29] sm:$0xff]
  %v4076 = vld [vmem:[%s29 + $0x8] sm:$0xff]
  %v4077 = vld [vmem:[%s29 + $0x10] sm:$0xff]
  %v4078 = vld [vmem:[%s29 + $0x18] sm:$0x3f]
  %v4079 = vld [vmem:[%s31] sm:$0xff]
  %v4080 = vld [vmem:[%s31 + $0x8] sm:$0xff]
  %v4081 = vld [vmem:[%s31 + $0x10] sm:$0xff]
  %v4082 = vld [vmem:[%s31 + $0x18] sm:$0x3f]
  %v4083 = vld [vmem:[%s33] sm:$0x1]
  %v4084 = vld [vmem:[%s35] sm:$0x1]
  %v4085 = vld [vmem:[%s43] sm:$0xff]
  %v4086 = vld [vmem:[%s43 + $0x8] sm:$0xff]
  %v4087 = vld [vmem:[%s43 + $0x10] sm:$0xff]
  %v4088 = vld [vmem:[%s43 + $0x18] sm:$0x3f]
  %v4089 = vld [vmem:[%s41] sm:$0x1]
  %v4090 = vld [vmem:[%s45] sm:$0xff]
  %v4091 = vld [vmem:[%s45 + $0x8] sm:$0xff]
  %v4092 = vld [vmem:[%s45 + $0x10] sm:$0xff]
  %v4093 = vld [vmem:[%s45 + $0x18] sm:$0x3f]
  %v4094 = vld [vmem:[%s47] sm:$0xff]
  %v4095 = vld [vmem:[%s47 + $0x8] sm:$0xff]
  %v4096 = vld [vmem:[%s47 + $0x10] sm:$0xff]
  %v4097 = vld [vmem:[%s47 + $0x18] sm:$0x3f]
  %v4098 = vld [vmem:[%s49] sm:$0x1]
  %v4099 = vld [vmem:[%s51] sm:$0x1]
  %vm4100 = vcmask 244736
  %v4102 = vsel %vm4100, 0.0, 0
  %vm4104 = vcmask 1045504
  %v4106 = vsel %vm4104, %v4088, 0
  %4108 = vmatpush.msra.mxu0 0.0
  %4109 = vmatpush.msra.mxu0 0.0
  %4110 = vmatpush.msra.mxu0 0.0
  %4111 = vmatpush.msra.mxu0 0.0
  %4112 = vmatpush.msra.mxu0 0.0
  %4113 = vmatpush.msra.mxu0 0.0
  %4114 = vmatpush.msra.mxu0 0.0
  %4115 = vmatpush.msra.mxu0 0.0
  %4116 = vmatpush.msra.mxu0 0.0
  %4117 = vmatpush.msra.mxu0 0.0
  %4118 = vmatpush.msra.mxu0 0.0
  %4119 = vmatpush.msra.mxu0 0.0
  %4120 = vmatpush.msra.mxu0 %v4106
  %4121 = vmatpush.msra.mxu0 %v4087
  %4122 = vmatpush.msra.mxu0 %v4086
  %4123 = vmatpush.msra.mxu0 %v4085
  %4124 = vmatmul.f32.gmra.mxu0 %v4102
  %v4125 = vpop.f32.mrf.mxu0
  %v4126 = vadd.f32 0.0, %v4125
  %4127 = vdwg.mxu0
  %v4128 = vadd.f32 %v4041, %v4126
  %v4129 = vxor.u32 %v4128, 2147483648
  %v4130 = vmul.f32 %v4129, 1.442695
  %v4131 = vpow.pop %v4130
  %v4132 = vadd.f32 %v4131, 1.0
  %v4133 = vrcp.pop %v4132
  %v4134 = vmul.f32 %v4132, %v4133
  %v4135 = vsub.f32 1.0, %v4134
  %v4136 = vmul.f32 %v4133, %v4135
  %v4137 = vadd.f32 %v4133, %v4136
  %vm4138 = vweird.f32 %v4132
  %vm4139 = vweird.f32 %v4133
  %vm4140 = vmor %vm4138, %vm4139
  %v4141 = vsel %vm4140, %v4133, %v4137
  %v4142 = vand.u32 2147483647, %v4132
  %vm4143 = vcmp.eq.f32.partialorder %v4142, 8.507059e+37
  %v4144 = vand.u32 %v4132, 2147483648
  %v4145 = vor.u32 1.1754944e-38, %v4144
  %v4146 = vsel %vm4143, %v4145, %v4141
  %v4147 = vmul.f32 1.0, %v4146
  %v4149 = vperm.slane %v4089, 0
  %4150 = vrot.lane.b32.xlu0 %v4149, 60
  %v4151 = vpop.permute.xlu0 %4150
  %v4153 = vadd.f32 %v4126, %v4151
  %4155 = vrot.lane.b32.xlu0 %v4153, 68
  %v4156 = vpop.permute.xlu0 %4155
  %v4158 = vmul.f32 %v4147, %v4156
  %4160 = vrot.lane.b32.xlu0 %v4158, 60
  %v4161 = vpop.permute.xlu0 %4160
  %v4163 = vadd.f32 %v4041, %v4161
  %v4164 = vtanh.pop %v4163
  %v4165 = vsub.f32 1.0, %v4147
  %4167 = vrot.lane.b32.xlu0 %v4164, 98
  %v4168 = vpop.permute.xlu0 %4167
  %v4170 = vmul.f32 %v4165, %v4168
  %v4171 = vmul.f32 %v4147, 0.0
  %v4172 = vadd.f32 %v4170, %v4171
  %v4174 = vperm.slane %v4098, 0
  %4177 = vrot.lane.b32.xlu0 %v4172, 98
  %v4178 = vpop.permute.xlu0 %4177
  %v4179 = vsel %vm4100, %v4178, 0
  %v4182 = vsel %vm4104, %v4093, 0
  %4184 = vmatpush.msra.mxu0 0.0
  %4185 = vmatpush.msra.mxu0 0.0
  %4186 = vmatpush.msra.mxu0 0.0
  %4187 = vmatpush.msra.mxu0 0.0
  %4188 = vmatpush.msra.mxu0 0.0
  %4189 = vmatpush.msra.mxu0 0.0
  %4190 = vmatpush.msra.mxu0 0.0
  %4191 = vmatpush.msra.mxu0 0.0
  %4192 = vmatpush.msra.mxu0 0.0
  %4193 = vmatpush.msra.mxu0 0.0
  %4194 = vmatpush.msra.mxu0 0.0
  %4195 = vmatpush.msra.mxu0 0.0
  %4196 = vmatpush.msra.mxu0 %v4182
  %4197 = vmatpush.msra.mxu0 %v4092
  %4198 = vmatpush.msra.mxu0 %v4091
  %4199 = vmatpush.msra.mxu0 %v4090
  %4200 = vmatmul.f32.gmra.mxu0 %v4179
  %v4201 = vpop.f32.mrf.mxu0
  %v4202 = vadd.f32 %v4174, %v4201
  %4203 = vdwg.mxu0
  %v4205 = vsel %vm4104, %v4097, 0
  %4207 = vmatpush.msra.mxu0 0.0
  %4208 = vmatpush.msra.mxu0 0.0
  %4209 = vmatpush.msra.mxu0 0.0
  %4210 = vmatpush.msra.mxu0 0.0
  %4211 = vmatpush.msra.mxu0 0.0
  %4212 = vmatpush.msra.mxu0 0.0
  %4213 = vmatpush.msra.mxu0 0.0
  %4214 = vmatpush.msra.mxu0 0.0
  %4215 = vmatpush.msra.mxu0 0.0
  %4216 = vmatpush.msra.mxu0 0.0
  %4217 = vmatpush.msra.mxu0 0.0
  %4218 = vmatpush.msra.mxu0 0.0
  %4219 = vmatpush.msra.mxu0 %v4205
  %4220 = vmatpush.msra.mxu0 %v4096
  %4221 = vmatpush.msra.mxu0 %v4095
  %4222 = vmatpush.msra.mxu0 %v4094
  %4223 = vmatmul.f32.gmra.mxu0 %v4102
  %v4224 = vpop.f32.mrf.mxu0
  %v4225 = vadd.f32 0.0, %v4224
  %4226 = vdwg.mxu0
  %v4227 = vadd.f32 %v4202, %v4225
  %v4228 = vxor.u32 %v4227, 2147483648
  %v4229 = vmul.f32 %v4228, 1.442695
  %v4230 = vpow.pop %v4229
  %v4231 = vadd.f32 %v4230, 1.0
  %v4232 = vrcp.pop %v4231
  %v4233 = vmul.f32 %v4231, %v4232
  %v4234 = vsub.f32 1.0, %v4233
  %v4235 = vmul.f32 %v4232, %v4234
  %v4236 = vadd.f32 %v4232, %v4235
  %vm4237 = vweird.f32 %v4231
  %vm4238 = vweird.f32 %v4232
  %vm4239 = vmor %vm4237, %vm4238
  %v4240 = vsel %vm4239, %v4232, %v4236
  %v4241 = vand.u32 2147483647, %v4231
  %vm4242 = vcmp.eq.f32.partialorder %v4241, 8.507059e+37
  %v4243 = vand.u32 %v4231, 2147483648
  %v4244 = vor.u32 1.1754944e-38, %v4243
  %v4245 = vsel %vm4242, %v4244, %v4240
  %v4246 = vmul.f32 1.0, %v4245
  %v4248 = vperm.slane %v4099, 0
  %4249 = vrot.lane.b32.xlu0 %v4248, 60
  %v4250 = vpop.permute.xlu0 %4249
  %v4252 = vadd.f32 %v4225, %v4250
  %4254 = vrot.lane.b32.xlu0 %v4252, 68
  %v4255 = vpop.permute.xlu0 %4254
  %v4257 = vmul.f32 %v4246, %v4255
  %4259 = vrot.lane.b32.xlu0 %v4257, 60
  %v4260 = vpop.permute.xlu0 %4259
  %v4262 = vadd.f32 %v4202, %v4260
  %v4263 = vtanh.pop %v4262
  %v4264 = vsub.f32 1.0, %v4246
  %4266 = vrot.lane.b32.xlu0 %v4263, 98
  %v4267 = vpop.permute.xlu0 %4266
  %v4269 = vmul.f32 %v4264, %v4267
  %v4270 = vmul.f32 %v4246, 0.0
  %v4271 = vadd.f32 %v4269, %v4270
  %v4273 = vsel %vm4104, %v4073, 0
  %4275 = vmatpush.msra.mxu0 0.0
  %4276 = vmatpush.msra.mxu0 0.0
  %4277 = vmatpush.msra.mxu0 0.0
  %4278 = vmatpush.msra.mxu0 0.0
  %4279 = vmatpush.msra.mxu0 0.0
  %4280 = vmatpush.msra.mxu0 0.0
  %4281 = vmatpush.msra.mxu0 0.0
  %4282 = vmatpush.msra.mxu0 0.0
  %4283 = vmatpush.msra.mxu0 0.0
  %4284 = vmatpush.msra.mxu0 0.0
  %4285 = vmatpush.msra.mxu0 0.0
  %4286 = vmatpush.msra.mxu0 0.0
  %4287 = vmatpush.msra.mxu0 %v4273
  %4288 = vmatpush.msra.mxu0 %v4072
  %4289 = vmatpush.msra.mxu0 %v4071
  %4290 = vmatpush.msra.mxu0 %v4070
  %4291 = vmatmul.f32.gmra.mxu0 %v4102
  %v4292 = vpop.f32.mrf.mxu0
  %v4293 = vadd.f32 0.0, %v4292
  %4294 = vdwg.mxu0
  %v4295 = vadd.f32 %v1870, %v4293
  %v4296 = vxor.u32 %v4295, 2147483648
  %v4297 = vmul.f32 %v4296, 1.442695
  %v4298 = vpow.pop %v4297
  %v4299 = vadd.f32 %v4298, 1.0
  %v4300 = vrcp.pop %v4299
  %v4301 = vmul.f32 %v4299, %v4300
  %v4302 = vsub.f32 1.0, %v4301
  %v4303 = vmul.f32 %v4300, %v4302
  %v4304 = vadd.f32 %v4300, %v4303
  %vm4305 = vweird.f32 %v4299
  %vm4306 = vweird.f32 %v4300
  %vm4307 = vmor %vm4305, %vm4306
  %v4308 = vsel %vm4307, %v4300, %v4304
  %v4309 = vand.u32 2147483647, %v4299
  %vm4310 = vcmp.eq.f32.partialorder %v4309, 8.507059e+37
  %v4311 = vand.u32 %v4299, 2147483648
  %v4312 = vor.u32 1.1754944e-38, %v4311
  %v4313 = vsel %vm4310, %v4312, %v4308
  %v4314 = vmul.f32 1.0, %v4313
  %v4316 = vperm.slane %v4074, 0
  %4317 = vrot.lane.b32.xlu0 %v4316, 60
  %v4318 = vpop.permute.xlu0 %4317
  %v4320 = vadd.f32 %v4293, %v4318
  %4322 = vrot.lane.b32.xlu0 %v4320, 68
  %v4323 = vpop.permute.xlu0 %4322
  %v4325 = vmul.f32 %v4314, %v4323
  %4327 = vrot.lane.b32.xlu0 %v4325, 60
  %v4328 = vpop.permute.xlu0 %4327
  %v4330 = vadd.f32 %v1870, %v4328
  %v4331 = vtanh.pop %v4330
  %v4332 = vsub.f32 1.0, %v4314
  %4334 = vrot.lane.b32.xlu0 %v4331, 98
  %v4335 = vpop.permute.xlu0 %4334
  %v4337 = vmul.f32 %v4332, %v4335
  %v4338 = vmul.f32 %v4314, 0.0
  %v4339 = vadd.f32 %v4337, %v4338
  %v4341 = vperm.slane %v4083, 0
  %4344 = vrot.lane.b32.xlu0 %v4339, 98
  %v4345 = vpop.permute.xlu0 %4344
  %v4346 = vsel %vm4100, %v4345, 0
  %v4349 = vsel %vm4104, %v4078, 0
  %4351 = vmatpush.msra.mxu0 0.0
  %4352 = vmatpush.msra.mxu0 0.0
  %4353 = vmatpush.msra.mxu0 0.0
  %4354 = vmatpush.msra.mxu0 0.0
  %4355 = vmatpush.msra.mxu0 0.0
  %4356 = vmatpush.msra.mxu0 0.0
  %4357 = vmatpush.msra.mxu0 0.0
  %4358 = vmatpush.msra.mxu0 0.0
  %4359 = vmatpush.msra.mxu0 0.0
  %4360 = vmatpush.msra.mxu0 0.0
  %4361 = vmatpush.msra.mxu0 0.0
  %4362 = vmatpush.msra.mxu0 0.0
  %4363 = vmatpush.msra.mxu0 %v4349
  %4364 = vmatpush.msra.mxu0 %v4077
  %4365 = vmatpush.msra.mxu0 %v4076
  %4366 = vmatpush.msra.mxu0 %v4075
  %4367 = vmatmul.f32.gmra.mxu0 %v4346
  %v4368 = vpop.f32.mrf.mxu0
  %v4369 = vadd.f32 %v4341, %v4368
  %4370 = vdwg.mxu0
  %v4372 = vsel %vm4104, %v4082, 0
  %4374 = vmatpush.msra.mxu0 0.0
  %4375 = vmatpush.msra.mxu0 0.0
  %4376 = vmatpush.msra.mxu0 0.0
  %4377 = vmatpush.msra.mxu0 0.0
  %4378 = vmatpush.msra.mxu0 0.0
  %4379 = vmatpush.msra.mxu0 0.0
  %4380 = vmatpush.msra.mxu0 0.0
  %4381 = vmatpush.msra.mxu0 0.0
  %4382 = vmatpush.msra.mxu0 0.0
  %4383 = vmatpush.msra.mxu0 0.0
  %4384 = vmatpush.msra.mxu0 0.0
  %4385 = vmatpush.msra.mxu0 0.0
  %4386 = vmatpush.msra.mxu0 %v4372
  %4387 = vmatpush.msra.mxu0 %v4081
  %4388 = vmatpush.msra.mxu0 %v4080
  %4389 = vmatpush.msra.mxu0 %v4079
  %4390 = vmatmul.f32.gmra.mxu0 %v4102
  %v4391 = vpop.f32.mrf.mxu0
  %v4392 = vadd.f32 0.0, %v4391
  %4393 = vdwg.mxu0
  %v4394 = vadd.f32 %v4369, %v4392
  %v4395 = vxor.u32 %v4394, 2147483648
  %v4396 = vmul.f32 %v4395, 1.442695
  %v4397 = vpow.pop %v4396
  %v4398 = vadd.f32 %v4397, 1.0
  %v4399 = vrcp.pop %v4398
  %v4400 = vmul.f32 %v4398, %v4399
  %v4401 = vsub.f32 1.0, %v4400
  %v4402 = vmul.f32 %v4399, %v4401
  %v4403 = vadd.f32 %v4399, %v4402
  %vm4404 = vweird.f32 %v4398
  %vm4405 = vweird.f32 %v4399
  %vm4406 = vmor %vm4404, %vm4405
  %v4407 = vsel %vm4406, %v4399, %v4403
  %v4408 = vand.u32 2147483647, %v4398
  %vm4409 = vcmp.eq.f32.partialorder %v4408, 8.507059e+37
  %v4410 = vand.u32 %v4398, 2147483648
  %v4411 = vor.u32 1.1754944e-38, %v4410
  %v4412 = vsel %vm4409, %v4411, %v4407
  %v4413 = vmul.f32 1.0, %v4412
  %v4415 = vperm.slane %v4084, 0
  %4416 = vrot.lane.b32.xlu0 %v4415, 60
  %v4417 = vpop.permute.xlu0 %4416
  %v4419 = vadd.f32 %v4392, %v4417
  %4421 = vrot.lane.b32.xlu0 %v4419, 68
  %v4422 = vpop.permute.xlu0 %4421
  %v4424 = vmul.f32 %v4413, %v4422
  %4426 = vrot.lane.b32.xlu0 %v4424, 60
  %v4427 = vpop.permute.xlu0 %4426
  %v4429 = vadd.f32 %v4369, %v4427
  %v4430 = vtanh.pop %v4429
  %v4431 = vsub.f32 1.0, %v4413
  %4433 = vrot.lane.b32.xlu0 %v4430, 98
  %v4434 = vpop.permute.xlu0 %4433
  %v4436 = vmul.f32 %v4431, %v4434
  %v4437 = vmul.f32 %v4413, 0.0
  %v4438 = vadd.f32 %v4436, %v4437
  %4439 = vmatpush.msra.mxu0 0.0
  %4440 = vmatpush.msra.mxu0 0.0
  %4441 = vmatpush.msra.mxu0 0.0
  %4442 = vmatpush.msra.mxu0 0.0
  %4443 = vmatpush.msra.mxu0 0.0
  %4444 = vmatpush.msra.mxu0 0.0
  %4445 = vmatpush.msra.mxu0 0.0
  %4446 = vmatpush.msra.mxu0 0.0
  %4447 = vmatpush.msra.mxu0 0.0
  %4448 = vmatpush.msra.mxu0 0.0
  %4449 = vmatpush.msra.mxu0 0.0
  %4450 = vmatpush.msra.mxu0 0.0
  %4451 = vmatpush.msra.mxu0 %v4106
  %4452 = vmatpush.msra.mxu0 %v4087
  %4453 = vmatpush.msra.mxu0 %v4086
  %4454 = vmatpush.msra.mxu0 %v4085
  %4455 = vmatmul.f32.gmra.mxu0 %v4179
  %v4456 = vpop.f32.mrf.mxu0
  %v4457 = vadd.f32 0.0, %v4456
  %4458 = vdwg.mxu0
  %v4459 = vadd.f32 %v4044, %v4457
  %v4460 = vxor.u32 %v4459, 2147483648
  %v4461 = vmul.f32 %v4460, 1.442695
  %v4462 = vpow.pop %v4461
  %v4463 = vadd.f32 %v4462, 1.0
  %v4464 = vrcp.pop %v4463
  %v4465 = vmul.f32 %v4463, %v4464
  %v4466 = vsub.f32 1.0, %v4465
  %v4467 = vmul.f32 %v4464, %v4466
  %v4468 = vadd.f32 %v4464, %v4467
  %vm4469 = vweird.f32 %v4463
  %vm4470 = vweird.f32 %v4464
  %vm4471 = vmor %vm4469, %vm4470
  %v4472 = vsel %vm4471, %v4464, %v4468
  %v4473 = vand.u32 2147483647, %v4463
  %vm4474 = vcmp.eq.f32.partialorder %v4473, 8.507059e+37
  %v4475 = vand.u32 %v4463, 2147483648
  %v4476 = vor.u32 1.1754944e-38, %v4475
  %v4477 = vsel %vm4474, %v4476, %v4472
  %v4478 = vmul.f32 1.0, %v4477
  %v4479 = vadd.f32 %v4457, %v4151
  %4481 = vrot.lane.b32.xlu0 %v4479, 68
  %v4482 = vpop.permute.xlu0 %4481
  %v4484 = vmul.f32 %v4478, %v4482
  %4486 = vrot.lane.b32.xlu0 %v4484, 60
  %v4487 = vpop.permute.xlu0 %4486
  %v4489 = vadd.f32 %v4044, %v4487
  %v4490 = vtanh.pop %v4489
  %v4491 = vsub.f32 1.0, %v4478
  %4493 = vrot.lane.b32.xlu0 %v4490, 98
  %v4494 = vpop.permute.xlu0 %4493
  %v4496 = vmul.f32 %v4491, %v4494
  %v4497 = vmul.f32 %v4478, %v4172
  %v4498 = vadd.f32 %v4496, %v4497
  %4500 = vrot.lane.b32.xlu0 %v4498, 98
  %v4501 = vpop.permute.xlu0 %4500
  %v4502 = vsel %vm4100, %v4501, 0
  %4504 = vmatpush.msra.mxu0 0.0
  %4505 = vmatpush.msra.mxu0 0.0
  %4506 = vmatpush.msra.mxu0 0.0
  %4507 = vmatpush.msra.mxu0 0.0
  %4508 = vmatpush.msra.mxu0 0.0
  %4509 = vmatpush.msra.mxu0 0.0
  %4510 = vmatpush.msra.mxu0 0.0
  %4511 = vmatpush.msra.mxu0 0.0
  %4512 = vmatpush.msra.mxu0 0.0
  %4513 = vmatpush.msra.mxu0 0.0
  %4514 = vmatpush.msra.mxu0 0.0
  %4515 = vmatpush.msra.mxu0 0.0
  %4516 = vmatpush.msra.mxu0 %v4182
  %4517 = vmatpush.msra.mxu0 %v4092
  %4518 = vmatpush.msra.mxu0 %v4091
  %4519 = vmatpush.msra.mxu0 %v4090
  %4520 = vmatmul.f32.gmra.mxu0 %v4502
  %v4521 = vpop.f32.mrf.mxu0
  %v4522 = vadd.f32 %v4174, %v4521
  %4523 = vdwg.mxu0
  %4525 = vrot.lane.b32.xlu0 %v4271, 98
  %v4526 = vpop.permute.xlu0 %4525
  %v4527 = vsel %vm4100, %v4526, 0
  %4529 = vmatpush.msra.mxu0 0.0
  %4530 = vmatpush.msra.mxu0 0.0
  %4531 = vmatpush.msra.mxu0 0.0
  %4532 = vmatpush.msra.mxu0 0.0
  %4533 = vmatpush.msra.mxu0 0.0
  %4534 = vmatpush.msra.mxu0 0.0
  %4535 = vmatpush.msra.mxu0 0.0
  %4536 = vmatpush.msra.mxu0 0.0
  %4537 = vmatpush.msra.mxu0 0.0
  %4538 = vmatpush.msra.mxu0 0.0
  %4539 = vmatpush.msra.mxu0 0.0
  %4540 = vmatpush.msra.mxu0 0.0
  %4541 = vmatpush.msra.mxu0 %v4205
  %4542 = vmatpush.msra.mxu0 %v4096
  %4543 = vmatpush.msra.mxu0 %v4095
  %4544 = vmatpush.msra.mxu0 %v4094
  %4545 = vmatmul.f32.gmra.mxu0 %v4527
  %v4546 = vpop.f32.mrf.mxu0
  %v4547 = vadd.f32 0.0, %v4546
  %4548 = vdwg.mxu0
  %v4549 = vadd.f32 %v4522, %v4547
  %v4550 = vxor.u32 %v4549, 2147483648
  %v4551 = vmul.f32 %v4550, 1.442695
  %v4552 = vpow.pop %v4551
  %v4553 = vadd.f32 %v4552, 1.0
  %v4554 = vrcp.pop %v4553
  %v4555 = vmul.f32 %v4553, %v4554
  %v4556 = vsub.f32 1.0, %v4555
  %v4557 = vmul.f32 %v4554, %v4556
  %v4558 = vadd.f32 %v4554, %v4557
  %vm4559 = vweird.f32 %v4553
  %vm4560 = vweird.f32 %v4554
  %vm4561 = vmor %vm4559, %vm4560
  %v4562 = vsel %vm4561, %v4554, %v4558
  %v4563 = vand.u32 2147483647, %v4553
  %vm4564 = vcmp.eq.f32.partialorder %v4563, 8.507059e+37
  %v4565 = vand.u32 %v4553, 2147483648
  %v4566 = vor.u32 1.1754944e-38, %v4565
  %v4567 = vsel %vm4564, %v4566, %v4562
  %v4568 = vmul.f32 1.0, %v4567
  %v4569 = vadd.f32 %v4547, %v4250
  %4571 = vrot.lane.b32.xlu0 %v4569, 68
  %v4572 = vpop.permute.xlu0 %4571
  %v4574 = vmul.f32 %v4568, %v4572
  %4576 = vrot.lane.b32.xlu0 %v4574, 60
  %v4577 = vpop.permute.xlu0 %4576
  %v4579 = vadd.f32 %v4522, %v4577
  %v4580 = vtanh.pop %v4579
  %v4581 = vsub.f32 1.0, %v4568
  %4583 = vrot.lane.b32.xlu0 %v4580, 98
  %v4584 = vpop.permute.xlu0 %4583
  %v4586 = vmul.f32 %v4581, %v4584
  %v4587 = vmul.f32 %v4568, %v4271
  %v4588 = vadd.f32 %v4586, %v4587
  %4589 = vmatpush.msra.mxu0 0.0
  %4590 = vmatpush.msra.mxu0 0.0
  %4591 = vmatpush.msra.mxu0 0.0
  %4592 = vmatpush.msra.mxu0 0.0
  %4593 = vmatpush.msra.mxu0 0.0
  %4594 = vmatpush.msra.mxu0 0.0
  %4595 = vmatpush.msra.mxu0 0.0
  %4596 = vmatpush.msra.mxu0 0.0
  %4597 = vmatpush.msra.mxu0 0.0
  %4598 = vmatpush.msra.mxu0 0.0
  %4599 = vmatpush.msra.mxu0 0.0
  %4600 = vmatpush.msra.mxu0 0.0
  %4601 = vmatpush.msra.mxu0 %v4273
  %4602 = vmatpush.msra.mxu0 %v4072
  %4603 = vmatpush.msra.mxu0 %v4071
  %4604 = vmatpush.msra.mxu0 %v4070
  %4605 = vmatmul.f32.gmra.mxu0 %v4346
  %v4606 = vpop.f32.mrf.mxu0
  %v4607 = vadd.f32 0.0, %v4606
  %4608 = vdwg.mxu0
  %v4609 = vadd.f32 %v1873, %v4607
  %v4610 = vxor.u32 %v4609, 2147483648
  %v4611 = vmul.f32 %v4610, 1.442695
  %v4612 = vpow.pop %v4611
  %v4613 = vadd.f32 %v4612, 1.0
  %v4614 = vrcp.pop %v4613
  %v4615 = vmul.f32 %v4613, %v4614
  %v4616 = vsub.f32 1.0, %v4615
  %v4617 = vmul.f32 %v4614, %v4616
  %v4618 = vadd.f32 %v4614, %v4617
  %vm4619 = vweird.f32 %v4613
  %vm4620 = vweird.f32 %v4614
  %vm4621 = vmor %vm4619, %vm4620
  %v4622 = vsel %vm4621, %v4614, %v4618
  %v4623 = vand.u32 2147483647, %v4613
  %vm4624 = vcmp.eq.f32.partialorder %v4623, 8.507059e+37
  %v4625 = vand.u32 %v4613, 2147483648
  %v4626 = vor.u32 1.1754944e-38, %v4625
  %v4627 = vsel %vm4624, %v4626, %v4622
  %v4628 = vmul.f32 1.0, %v4627
  %v4629 = vadd.f32 %v4607, %v4318
  %4631 = vrot.lane.b32.xlu0 %v4629, 68
  %v4632 = vpop.permute.xlu0 %4631
  %v4634 = vmul.f32 %v4628, %v4632
  %4636 = vrot.lane.b32.xlu0 %v4634, 60
  %v4637 = vpop.permute.xlu0 %4636
  %v4639 = vadd.f32 %v1873, %v4637
  %v4640 = vtanh.pop %v4639
  %v4641 = vsub.f32 1.0, %v4628
  %4643 = vrot.lane.b32.xlu0 %v4640, 98
  %v4644 = vpop.permute.xlu0 %4643
  %v4646 = vmul.f32 %v4641, %v4644
  %v4647 = vmul.f32 %v4628, %v4339
  %v4648 = vadd.f32 %v4646, %v4647
  %4650 = vrot.lane.b32.xlu0 %v4648, 98
  %v4651 = vpop.permute.xlu0 %4650
  %v4652 = vsel %vm4100, %v4651, 0
  %4654 = vmatpush.msra.mxu0 0.0
  %4655 = vmatpush.msra.mxu0 0.0
  %4656 = vmatpush.msra.mxu0 0.0
  %4657 = vmatpush.msra.mxu0 0.0
  %4658 = vmatpush.msra.mxu0 0.0
  %4659 = vmatpush.msra.mxu0 0.0
  %4660 = vmatpush.msra.mxu0 0.0
  %4661 = vmatpush.msra.mxu0 0.0
  %4662 = vmatpush.msra.mxu0 0.0
  %4663 = vmatpush.msra.mxu0 0.0
  %4664 = vmatpush.msra.mxu0 0.0
  %4665 = vmatpush.msra.mxu0 0.0
  %4666 = vmatpush.msra.mxu0 %v4349
  %4667 = vmatpush.msra.mxu0 %v4077
  %4668 = vmatpush.msra.mxu0 %v4076
  %4669 = vmatpush.msra.mxu0 %v4075
  %4670 = vmatmul.f32.gmra.mxu0 %v4652
  %v4671 = vpop.f32.mrf.mxu0
  %v4672 = vadd.f32 %v4341, %v4671
  %4673 = vdwg.mxu0
  %4675 = vrot.lane.b32.xlu0 %v4438, 98
  %v4676 = vpop.permute.xlu0 %4675
  %v4677 = vsel %vm4100, %v4676, 0
  %4679 = vmatpush.msra.mxu0 0.0
  %4680 = vmatpush.msra.mxu0 0.0
  %4681 = vmatpush.msra.mxu0 0.0
  %4682 = vmatpush.msra.mxu0 0.0
  %4683 = vmatpush.msra.mxu0 0.0
  %4684 = vmatpush.msra.mxu0 0.0
  %4685 = vmatpush.msra.mxu0 0.0
  %4686 = vmatpush.msra.mxu0 0.0
  %4687 = vmatpush.msra.mxu0 0.0
  %4688 = vmatpush.msra.mxu0 0.0
  %4689 = vmatpush.msra.mxu0 0.0
  %4690 = vmatpush.msra.mxu0 0.0
  %4691 = vmatpush.msra.mxu0 %v4372
  %4692 = vmatpush.msra.mxu0 %v4081
  %4693 = vmatpush.msra.mxu0 %v4080
  %4694 = vmatpush.msra.mxu0 %v4079
  %4695 = vmatmul.f32.gmra.mxu0 %v4677
  %v4696 = vpop.f32.mrf.mxu0
  %v4697 = vadd.f32 0.0, %v4696
  %4698 = vdwg.mxu0
  %v4699 = vadd.f32 %v4672, %v4697
  %v4700 = vxor.u32 %v4699, 2147483648
  %v4701 = vmul.f32 %v4700, 1.442695
  %v4702 = vpow.pop %v4701
  %v4703 = vadd.f32 %v4702, 1.0
  %v4704 = vrcp.pop %v4703
  %v4705 = vmul.f32 %v4703, %v4704
  %v4706 = vsub.f32 1.0, %v4705
  %v4707 = vmul.f32 %v4704, %v4706
  %v4708 = vadd.f32 %v4704, %v4707
  %vm4709 = vweird.f32 %v4703
  %vm4710 = vweird.f32 %v4704
  %vm4711 = vmor %vm4709, %vm4710
  %v4712 = vsel %vm4711, %v4704, %v4708
  %v4713 = vand.u32 2147483647, %v4703
  %vm4714 = vcmp.eq.f32.partialorder %v4713, 8.507059e+37
  %v4715 = vand.u32 %v4703, 2147483648
  %v4716 = vor.u32 1.1754944e-38, %v4715
  %v4717 = vsel %vm4714, %v4716, %v4712
  %v4718 = vmul.f32 1.0, %v4717
  %v4719 = vadd.f32 %v4697, %v4417
  %4721 = vrot.lane.b32.xlu0 %v4719, 68
  %v4722 = vpop.permute.xlu0 %4721
  %v4724 = vmul.f32 %v4718, %v4722
  %4726 = vrot.lane.b32.xlu0 %v4724, 60
  %v4727 = vpop.permute.xlu0 %4726
  %v4729 = vadd.f32 %v4672, %v4727
  %v4730 = vtanh.pop %v4729
  %v4731 = vsub.f32 1.0, %v4718
  %4733 = vrot.lane.b32.xlu0 %v4730, 98
  %v4734 = vpop.permute.xlu0 %4733
  %v4736 = vmul.f32 %v4731, %v4734
  %v4737 = vmul.f32 %v4718, %v4438
  %v4738 = vadd.f32 %v4736, %v4737
  %4739 = vmatpush.msra.mxu0 0.0
  %4740 = vmatpush.msra.mxu0 0.0
  %4741 = vmatpush.msra.mxu0 0.0
  %4742 = vmatpush.msra.mxu0 0.0
  %4743 = vmatpush.msra.mxu0 0.0
  %4744 = vmatpush.msra.mxu0 0.0
  %4745 = vmatpush.msra.mxu0 0.0
  %4746 = vmatpush.msra.mxu0 0.0
  %4747 = vmatpush.msra.mxu0 0.0
  %4748 = vmatpush.msra.mxu0 0.0
  %4749 = vmatpush.msra.mxu0 0.0
  %4750 = vmatpush.msra.mxu0 0.0
  %4751 = vmatpush.msra.mxu0 %v4106
  %4752 = vmatpush.msra.mxu0 %v4087
  %4753 = vmatpush.msra.mxu0 %v4086
  %4754 = vmatpush.msra.mxu0 %v4085
  %4755 = vmatmul.f32.gmra.mxu0 %v4502
  %v4756 = vpop.f32.mrf.mxu0
  %v4757 = vadd.f32 0.0, %v4756
  %4758 = vdwg.mxu0
  %v4759 = vadd.f32 %v4047, %v4757
  %v4760 = vxor.u32 %v4759, 2147483648
  %v4761 = vmul.f32 %v4760, 1.442695
  %v4762 = vpow.pop %v4761
  %v4763 = vadd.f32 %v4762, 1.0
  %v4764 = vrcp.pop %v4763
  %v4765 = vmul.f32 %v4763, %v4764
  %v4766 = vsub.f32 1.0, %v4765
  %v4767 = vmul.f32 %v4764, %v4766
  %v4768 = vadd.f32 %v4764, %v4767
  %vm4769 = vweird.f32 %v4763
  %vm4770 = vweird.f32 %v4764
  %vm4771 = vmor %vm4769, %vm4770
  %v4772 = vsel %vm4771, %v4764, %v4768
  %v4773 = vand.u32 2147483647, %v4763
  %vm4774 = vcmp.eq.f32.partialorder %v4773, 8.507059e+37
  %v4775 = vand.u32 %v4763, 2147483648
  %v4776 = vor.u32 1.1754944e-38, %v4775
  %v4777 = vsel %vm4774, %v4776, %v4772
  %v4778 = vmul.f32 1.0, %v4777
  %v4779 = vadd.f32 %v4757, %v4151
  %4781 = vrot.lane.b32.xlu0 %v4779, 68
  %v4782 = vpop.permute.xlu0 %4781
  %v4784 = vmul.f32 %v4778, %v4782
  %4786 = vrot.lane.b32.xlu0 %v4784, 60
  %v4787 = vpop.permute.xlu0 %4786
  %v4789 = vadd.f32 %v4047, %v4787
  %v4790 = vtanh.pop %v4789
  %v4791 = vsub.f32 1.0, %v4778
  %4793 = vrot.lane.b32.xlu0 %v4790, 98
  %v4794 = vpop.permute.xlu0 %4793
  %v4796 = vmul.f32 %v4791, %v4794
  %v4797 = vmul.f32 %v4778, %v4498
  %v4798 = vadd.f32 %v4796, %v4797
  %4800 = vrot.lane.b32.xlu0 %v4798, 98
  %v4801 = vpop.permute.xlu0 %4800
  %v4802 = vsel %vm4100, %v4801, 0
  %4804 = vmatpush.msra.mxu0 0.0
  %4805 = vmatpush.msra.mxu0 0.0
  %4806 = vmatpush.msra.mxu0 0.0
  %4807 = vmatpush.msra.mxu0 0.0
  %4808 = vmatpush.msra.mxu0 0.0
  %4809 = vmatpush.msra.mxu0 0.0
  %4810 = vmatpush.msra.mxu0 0.0
  %4811 = vmatpush.msra.mxu0 0.0
  %4812 = vmatpush.msra.mxu0 0.0
  %4813 = vmatpush.msra.mxu0 0.0
  %4814 = vmatpush.msra.mxu0 0.0
  %4815 = vmatpush.msra.mxu0 0.0
  %4816 = vmatpush.msra.mxu0 %v4182
  %4817 = vmatpush.msra.mxu0 %v4092
  %4818 = vmatpush.msra.mxu0 %v4091
  %4819 = vmatpush.msra.mxu0 %v4090
  %4820 = vmatmul.f32.gmra.mxu0 %v4802
  %v4821 = vpop.f32.mrf.mxu0
  %v4822 = vadd.f32 %v4174, %v4821
  %4823 = vdwg.mxu0
  %4825 = vrot.lane.b32.xlu0 %v4588, 98
  %v4826 = vpop.permute.xlu0 %4825
  %v4827 = vsel %vm4100, %v4826, 0
  %4829 = vmatpush.msra.mxu0 0.0
  %4830 = vmatpush.msra.mxu0 0.0
  %4831 = vmatpush.msra.mxu0 0.0
  %4832 = vmatpush.msra.mxu0 0.0
  %4833 = vmatpush.msra.mxu0 0.0
  %4834 = vmatpush.msra.mxu0 0.0
  %4835 = vmatpush.msra.mxu0 0.0
  %4836 = vmatpush.msra.mxu0 0.0
  %4837 = vmatpush.msra.mxu0 0.0
  %4838 = vmatpush.msra.mxu0 0.0
  %4839 = vmatpush.msra.mxu0 0.0
  %4840 = vmatpush.msra.mxu0 0.0
  %4841 = vmatpush.msra.mxu0 %v4205
  %4842 = vmatpush.msra.mxu0 %v4096
  %4843 = vmatpush.msra.mxu0 %v4095
  %4844 = vmatpush.msra.mxu0 %v4094
  %4845 = vmatmul.f32.gmra.mxu0 %v4827
  %v4846 = vpop.f32.mrf.mxu0
  %v4847 = vadd.f32 0.0, %v4846
  %4848 = vdwg.mxu0
  %v4849 = vadd.f32 %v4822, %v4847
  %v4850 = vxor.u32 %v4849, 2147483648
  %v4851 = vmul.f32 %v4850, 1.442695
  %v4852 = vpow.pop %v4851
  %v4853 = vadd.f32 %v4852, 1.0
  %v4854 = vrcp.pop %v4853
  %v4855 = vmul.f32 %v4853, %v4854
  %v4856 = vsub.f32 1.0, %v4855
  %v4857 = vmul.f32 %v4854, %v4856
  %v4858 = vadd.f32 %v4854, %v4857
  %vm4859 = vweird.f32 %v4853
  %vm4860 = vweird.f32 %v4854
  %vm4861 = vmor %vm4859, %vm4860
  %v4862 = vsel %vm4861, %v4854, %v4858
  %v4863 = vand.u32 2147483647, %v4853
  %vm4864 = vcmp.eq.f32.partialorder %v4863, 8.507059e+37
  %v4865 = vand.u32 %v4853, 2147483648
  %v4866 = vor.u32 1.1754944e-38, %v4865
  %v4867 = vsel %vm4864, %v4866, %v4862
  %v4868 = vmul.f32 1.0, %v4867
  %v4869 = vadd.f32 %v4847, %v4250
  %4871 = vrot.lane.b32.xlu0 %v4869, 68
  %v4872 = vpop.permute.xlu0 %4871
  %v4874 = vmul.f32 %v4868, %v4872
  %4876 = vrot.lane.b32.xlu0 %v4874, 60
  %v4877 = vpop.permute.xlu0 %4876
  %v4879 = vadd.f32 %v4822, %v4877
  %v4880 = vtanh.pop %v4879
  %v4881 = vsub.f32 1.0, %v4868
  %4883 = vrot.lane.b32.xlu0 %v4880, 98
  %v4884 = vpop.permute.xlu0 %4883
  %v4886 = vmul.f32 %v4881, %v4884
  %v4887 = vmul.f32 %v4868, %v4588
  %v4888 = vadd.f32 %v4886, %v4887
  %4889 = vmatpush.msra.mxu0 0.0
  %4890 = vmatpush.msra.mxu0 0.0
  %4891 = vmatpush.msra.mxu0 0.0
  %4892 = vmatpush.msra.mxu0 0.0
  %4893 = vmatpush.msra.mxu0 0.0
  %4894 = vmatpush.msra.mxu0 0.0
  %4895 = vmatpush.msra.mxu0 0.0
  %4896 = vmatpush.msra.mxu0 0.0
  %4897 = vmatpush.msra.mxu0 0.0
  %4898 = vmatpush.msra.mxu0 0.0
  %4899 = vmatpush.msra.mxu0 0.0
  %4900 = vmatpush.msra.mxu0 0.0
  %4901 = vmatpush.msra.mxu0 %v4273
  %4902 = vmatpush.msra.mxu0 %v4072
  %4903 = vmatpush.msra.mxu0 %v4071
  %4904 = vmatpush.msra.mxu0 %v4070
  %4905 = vmatmul.f32.gmra.mxu0 %v4652
  %v4906 = vpop.f32.mrf.mxu0
  %v4907 = vadd.f32 0.0, %v4906
  %4908 = vdwg.mxu0
  %v4909 = vadd.f32 %v1876, %v4907
  %v4910 = vxor.u32 %v4909, 2147483648
  %v4911 = vmul.f32 %v4910, 1.442695
  %v4912 = vpow.pop %v4911
  %v4913 = vadd.f32 %v4912, 1.0
  %v4914 = vrcp.pop %v4913
  %v4915 = vmul.f32 %v4913, %v4914
  %v4916 = vsub.f32 1.0, %v4915
  %v4917 = vmul.f32 %v4914, %v4916
  %v4918 = vadd.f32 %v4914, %v4917
  %vm4919 = vweird.f32 %v4913
  %vm4920 = vweird.f32 %v4914
  %vm4921 = vmor %vm4919, %vm4920
  %v4922 = vsel %vm4921, %v4914, %v4918
  %v4923 = vand.u32 2147483647, %v4913
  %vm4924 = vcmp.eq.f32.partialorder %v4923, 8.507059e+37
  %v4925 = vand.u32 %v4913, 2147483648
  %v4926 = vor.u32 1.1754944e-38, %v4925
  %v4927 = vsel %vm4924, %v4926, %v4922
  %v4928 = vmul.f32 1.0, %v4927
  %v4929 = vadd.f32 %v4907, %v4318
  %4931 = vrot.lane.b32.xlu0 %v4929, 68
  %v4932 = vpop.permute.xlu0 %4931
  %v4934 = vmul.f32 %v4928, %v4932
  %4936 = vrot.lane.b32.xlu0 %v4934, 60
  %v4937 = vpop.permute.xlu0 %4936
  %v4939 = vadd.f32 %v1876, %v4937
  %v4940 = vtanh.pop %v4939
  %v4941 = vsub.f32 1.0, %v4928
  %4943 = vrot.lane.b32.xlu0 %v4940, 98
  %v4944 = vpop.permute.xlu0 %4943
  %v4946 = vmul.f32 %v4941, %v4944
  %v4947 = vmul.f32 %v4928, %v4648
  %v4948 = vadd.f32 %v4946, %v4947
  %4950 = vrot.lane.b32.xlu0 %v4948, 98
  %v4951 = vpop.permute.xlu0 %4950
  %v4952 = vsel %vm4100, %v4951, 0
  %4954 = vmatpush.msra.mxu0 0.0
  %4955 = vmatpush.msra.mxu0 0.0
  %4956 = vmatpush.msra.mxu0 0.0
  %4957 = vmatpush.msra.mxu0 0.0
  %4958 = vmatpush.msra.mxu0 0.0
  %4959 = vmatpush.msra.mxu0 0.0
  %4960 = vmatpush.msra.mxu0 0.0
  %4961 = vmatpush.msra.mxu0 0.0
  %4962 = vmatpush.msra.mxu0 0.0
  %4963 = vmatpush.msra.mxu0 0.0
  %4964 = vmatpush.msra.mxu0 0.0
  %4965 = vmatpush.msra.mxu0 0.0
  %4966 = vmatpush.msra.mxu0 %v4349
  %4967 = vmatpush.msra.mxu0 %v4077
  %4968 = vmatpush.msra.mxu0 %v4076
  %4969 = vmatpush.msra.mxu0 %v4075
  %4970 = vmatmul.f32.gmra.mxu0 %v4952
  %v4971 = vpop.f32.mrf.mxu0
  %v4972 = vadd.f32 %v4341, %v4971
  %4973 = vdwg.mxu0
  %4975 = vrot.lane.b32.xlu0 %v4738, 98
  %v4976 = vpop.permute.xlu0 %4975
  %v4977 = vsel %vm4100, %v4976, 0
  %4979 = vmatpush.msra.mxu0 0.0
  %4980 = vmatpush.msra.mxu0 0.0
  %4981 = vmatpush.msra.mxu0 0.0
  %4982 = vmatpush.msra.mxu0 0.0
  %4983 = vmatpush.msra.mxu0 0.0
  %4984 = vmatpush.msra.mxu0 0.0
  %4985 = vmatpush.msra.mxu0 0.0
  %4986 = vmatpush.msra.mxu0 0.0
  %4987 = vmatpush.msra.mxu0 0.0
  %4988 = vmatpush.msra.mxu0 0.0
  %4989 = vmatpush.msra.mxu0 0.0
  %4990 = vmatpush.msra.mxu0 0.0
  %4991 = vmatpush.msra.mxu0 %v4372
  %4992 = vmatpush.msra.mxu0 %v4081
  %4993 = vmatpush.msra.mxu0 %v4080
  %4994 = vmatpush.msra.mxu0 %v4079
  %4995 = vmatmul.f32.gmra.mxu0 %v4977
  %v4996 = vpop.f32.mrf.mxu0
  %v4997 = vadd.f32 0.0, %v4996
  %4998 = vdwg.mxu0
  %v4999 = vadd.f32 %v4972, %v4997
  %v5000 = vxor.u32 %v4999, 2147483648
  %v5001 = vmul.f32 %v5000, 1.442695
  %v5002 = vpow.pop %v5001
  %v5003 = vadd.f32 %v5002, 1.0
  %v5004 = vrcp.pop %v5003
  %v5005 = vmul.f32 %v5003, %v5004
  %v5006 = vsub.f32 1.0, %v5005
  %v5007 = vmul.f32 %v5004, %v5006
  %v5008 = vadd.f32 %v5004, %v5007
  %vm5009 = vweird.f32 %v5003
  %vm5010 = vweird.f32 %v5004
  %vm5011 = vmor %vm5009, %vm5010
  %v5012 = vsel %vm5011, %v5004, %v5008
  %v5013 = vand.u32 2147483647, %v5003
  %vm5014 = vcmp.eq.f32.partialorder %v5013, 8.507059e+37
  %v5015 = vand.u32 %v5003, 2147483648
  %v5016 = vor.u32 1.1754944e-38, %v5015
  %v5017 = vsel %vm5014, %v5016, %v5012
  %v5018 = vmul.f32 1.0, %v5017
  %v5019 = vadd.f32 %v4997, %v4417
  %5021 = vrot.lane.b32.xlu0 %v5019, 68
  %v5022 = vpop.permute.xlu0 %5021
  %v5024 = vmul.f32 %v5018, %v5022
  %5026 = vrot.lane.b32.xlu0 %v5024, 60
  %v5027 = vpop.permute.xlu0 %5026
  %v5029 = vadd.f32 %v4972, %v5027
  %v5030 = vtanh.pop %v5029
  %v5031 = vsub.f32 1.0, %v5018
  %5033 = vrot.lane.b32.xlu0 %v5030, 98
  %v5034 = vpop.permute.xlu0 %5033
  %v5036 = vmul.f32 %v5031, %v5034
  %v5037 = vmul.f32 %v5018, %v4738
  %v5038 = vadd.f32 %v5036, %v5037
  %5039 = vmatpush.msra.mxu0 0.0
  %5040 = vmatpush.msra.mxu0 0.0
  %5041 = vmatpush.msra.mxu0 0.0
  %5042 = vmatpush.msra.mxu0 0.0
  %5043 = vmatpush.msra.mxu0 0.0
  %5044 = vmatpush.msra.mxu0 0.0
  %5045 = vmatpush.msra.mxu0 0.0
  %5046 = vmatpush.msra.mxu0 0.0
  %5047 = vmatpush.msra.mxu0 0.0
  %5048 = vmatpush.msra.mxu0 0.0
  %5049 = vmatpush.msra.mxu0 0.0
  %5050 = vmatpush.msra.mxu0 0.0
  %5051 = vmatpush.msra.mxu0 %v4106
  %5052 = vmatpush.msra.mxu0 %v4087
  %5053 = vmatpush.msra.mxu0 %v4086
  %5054 = vmatpush.msra.mxu0 %v4085
  %5055 = vmatmul.f32.gmra.mxu0 %v4802
  %v5056 = vpop.f32.mrf.mxu0
  %v5057 = vadd.f32 0.0, %v5056
  %5058 = vdwg.mxu0
  %v5059 = vadd.f32 %v4050, %v5057
  %v5060 = vxor.u32 %v5059, 2147483648
  %v5061 = vmul.f32 %v5060, 1.442695
  %v5062 = vpow.pop %v5061
  %v5063 = vadd.f32 %v5062, 1.0
  %v5064 = vrcp.pop %v5063
  %v5065 = vmul.f32 %v5063, %v5064
  %v5066 = vsub.f32 1.0, %v5065
  %v5067 = vmul.f32 %v5064, %v5066
  %v5068 = vadd.f32 %v5064, %v5067
  %vm5069 = vweird.f32 %v5063
  %vm5070 = vweird.f32 %v5064
  %vm5071 = vmor %vm5069, %vm5070
  %v5072 = vsel %vm5071, %v5064, %v5068
  %v5073 = vand.u32 2147483647, %v5063
  %vm5074 = vcmp.eq.f32.partialorder %v5073, 8.507059e+37
  %v5075 = vand.u32 %v5063, 2147483648
  %v5076 = vor.u32 1.1754944e-38, %v5075
  %v5077 = vsel %vm5074, %v5076, %v5072
  %v5078 = vmul.f32 1.0, %v5077
  %v5079 = vadd.f32 %v5057, %v4151
  %5081 = vrot.lane.b32.xlu0 %v5079, 68
  %v5082 = vpop.permute.xlu0 %5081
  %v5084 = vmul.f32 %v5078, %v5082
  %5086 = vrot.lane.b32.xlu0 %v5084, 60
  %v5087 = vpop.permute.xlu0 %5086
  %v5089 = vadd.f32 %v4050, %v5087
  %v5090 = vtanh.pop %v5089
  %v5091 = vsub.f32 1.0, %v5078
  %5093 = vrot.lane.b32.xlu0 %v5090, 98
  %v5094 = vpop.permute.xlu0 %5093
  %v5096 = vmul.f32 %v5091, %v5094
  %v5097 = vmul.f32 %v5078, %v4798
  %v5098 = vadd.f32 %v5096, %v5097
  %5100 = vrot.lane.b32.xlu0 %v5098, 98
  %v5101 = vpop.permute.xlu0 %5100
  %v5102 = vsel %vm4100, %v5101, 0
  %5104 = vmatpush.msra.mxu0 0.0
  %5105 = vmatpush.msra.mxu0 0.0
  %5106 = vmatpush.msra.mxu0 0.0
  %5107 = vmatpush.msra.mxu0 0.0
  %5108 = vmatpush.msra.mxu0 0.0
  %5109 = vmatpush.msra.mxu0 0.0
  %5110 = vmatpush.msra.mxu0 0.0
  %5111 = vmatpush.msra.mxu0 0.0
  %5112 = vmatpush.msra.mxu0 0.0
  %5113 = vmatpush.msra.mxu0 0.0
  %5114 = vmatpush.msra.mxu0 0.0
  %5115 = vmatpush.msra.mxu0 0.0
  %5116 = vmatpush.msra.mxu0 %v4182
  %5117 = vmatpush.msra.mxu0 %v4092
  %5118 = vmatpush.msra.mxu0 %v4091
  %5119 = vmatpush.msra.mxu0 %v4090
  %5120 = vmatmul.f32.gmra.mxu0 %v5102
  %v5121 = vpop.f32.mrf.mxu0
  %v5122 = vadd.f32 %v4174, %v5121
  %5123 = vdwg.mxu0
  %5125 = vrot.lane.b32.xlu0 %v4888, 98
  %v5126 = vpop.permute.xlu0 %5125
  %v5127 = vsel %vm4100, %v5126, 0
  %5129 = vmatpush.msra.mxu0 0.0
  %5130 = vmatpush.msra.mxu0 0.0
  %5131 = vmatpush.msra.mxu0 0.0
  %5132 = vmatpush.msra.mxu0 0.0
  %5133 = vmatpush.msra.mxu0 0.0
  %5134 = vmatpush.msra.mxu0 0.0
  %5135 = vmatpush.msra.mxu0 0.0
  %5136 = vmatpush.msra.mxu0 0.0
  %5137 = vmatpush.msra.mxu0 0.0
  %5138 = vmatpush.msra.mxu0 0.0
  %5139 = vmatpush.msra.mxu0 0.0
  %5140 = vmatpush.msra.mxu0 0.0
  %5141 = vmatpush.msra.mxu0 %v4205
  %5142 = vmatpush.msra.mxu0 %v4096
  %5143 = vmatpush.msra.mxu0 %v4095
  %5144 = vmatpush.msra.mxu0 %v4094
  %5145 = vmatmul.f32.gmra.mxu0 %v5127
  %v5146 = vpop.f32.mrf.mxu0
  %v5147 = vadd.f32 0.0, %v5146
  %5148 = vdwg.mxu0
  %v5149 = vadd.f32 %v5122, %v5147
  %v5150 = vxor.u32 %v5149, 2147483648
  %v5151 = vmul.f32 %v5150, 1.442695
  %v5152 = vpow.pop %v5151
  %v5153 = vadd.f32 %v5152, 1.0
  %v5154 = vrcp.pop %v5153
  %v5155 = vmul.f32 %v5153, %v5154
  %v5156 = vsub.f32 1.0, %v5155
  %v5157 = vmul.f32 %v5154, %v5156
  %v5158 = vadd.f32 %v5154, %v5157
  %vm5159 = vweird.f32 %v5153
  %vm5160 = vweird.f32 %v5154
  %vm5161 = vmor %vm5159, %vm5160
  %v5162 = vsel %vm5161, %v5154, %v5158
  %v5163 = vand.u32 2147483647, %v5153
  %vm5164 = vcmp.eq.f32.partialorder %v5163, 8.507059e+37
  %v5165 = vand.u32 %v5153, 2147483648
  %v5166 = vor.u32 1.1754944e-38, %v5165
  %v5167 = vsel %vm5164, %v5166, %v5162
  %v5168 = vmul.f32 1.0, %v5167
  %v5169 = vadd.f32 %v5147, %v4250
  %5171 = vrot.lane.b32.xlu0 %v5169, 68
  %v5172 = vpop.permute.xlu0 %5171
  %v5174 = vmul.f32 %v5168, %v5172
  %5176 = vrot.lane.b32.xlu0 %v5174, 60
  %v5177 = vpop.permute.xlu0 %5176
  %v5179 = vadd.f32 %v5122, %v5177
  %v5180 = vtanh.pop %v5179
  %v5181 = vsub.f32 1.0, %v5168
  %5183 = vrot.lane.b32.xlu0 %v5180, 98
  %v5184 = vpop.permute.xlu0 %5183
  %v5186 = vmul.f32 %v5181, %v5184
  %v5187 = vmul.f32 %v5168, %v4888
  %v5188 = vadd.f32 %v5186, %v5187
  %5189 = vmatpush.msra.mxu0 0.0
  %5190 = vmatpush.msra.mxu0 0.0
  %5191 = vmatpush.msra.mxu0 0.0
  %5192 = vmatpush.msra.mxu0 0.0
  %5193 = vmatpush.msra.mxu0 0.0
  %5194 = vmatpush.msra.mxu0 0.0
  %5195 = vmatpush.msra.mxu0 0.0
  %5196 = vmatpush.msra.mxu0 0.0
  %5197 = vmatpush.msra.mxu0 0.0
  %5198 = vmatpush.msra.mxu0 0.0
  %5199 = vmatpush.msra.mxu0 0.0
  %5200 = vmatpush.msra.mxu0 0.0
  %5201 = vmatpush.msra.mxu0 %v4106
  %5202 = vmatpush.msra.mxu0 %v4087
  %5203 = vmatpush.msra.mxu0 %v4086
  %5204 = vmatpush.msra.mxu0 %v4085
  %5205 = vmatmul.f32.gmra.mxu0 %v5102
  %v5206 = vpop.f32.mrf.mxu0
  %v5207 = vadd.f32 0.0, %v5206
  %5208 = vdwg.mxu0
  %v5209 = vadd.f32 %v4053, %v5207
  %v5210 = vxor.u32 %v5209, 2147483648
  %v5211 = vmul.f32 %v5210, 1.442695
  %v5212 = vpow.pop %v5211
  %v5213 = vadd.f32 %v5212, 1.0
  %v5214 = vrcp.pop %v5213
  %v5215 = vmul.f32 %v5213, %v5214
  %v5216 = vsub.f32 1.0, %v5215
  %v5217 = vmul.f32 %v5214, %v5216
  %v5218 = vadd.f32 %v5214, %v5217
  %vm5219 = vweird.f32 %v5213
  %vm5220 = vweird.f32 %v5214
  %vm5221 = vmor %vm5219, %vm5220
  %v5222 = vsel %vm5221, %v5214, %v5218
  %v5223 = vand.u32 2147483647, %v5213
  %vm5224 = vcmp.eq.f32.partialorder %v5223, 8.507059e+37
  %v5225 = vand.u32 %v5213, 2147483648
  %v5226 = vor.u32 1.1754944e-38, %v5225
  %v5227 = vsel %vm5224, %v5226, %v5222
  %v5228 = vmul.f32 1.0, %v5227
  %v5229 = vadd.f32 %v5207, %v4151
  %5231 = vrot.lane.b32.xlu0 %v5229, 68
  %v5232 = vpop.permute.xlu0 %5231
  %v5234 = vmul.f32 %v5228, %v5232
  %5236 = vrot.lane.b32.xlu0 %v5234, 60
  %v5237 = vpop.permute.xlu0 %5236
  %v5239 = vadd.f32 %v4053, %v5237
  %v5240 = vtanh.pop %v5239
  %v5241 = vsub.f32 1.0, %v5228
  %5243 = vrot.lane.b32.xlu0 %v5240, 98
  %v5244 = vpop.permute.xlu0 %5243
  %v5246 = vmul.f32 %v5241, %v5244
  %v5247 = vmul.f32 %v5228, %v5098
  %v5248 = vadd.f32 %v5246, %v5247
  %5250 = vrot.lane.b32.xlu0 %v5248, 98
  %v5251 = vpop.permute.xlu0 %5250
  %v5252 = vsel %vm4100, %v5251, 0
  %5254 = vmatpush.msra.mxu0 0.0
  %5255 = vmatpush.msra.mxu0 0.0
  %5256 = vmatpush.msra.mxu0 0.0
  %5257 = vmatpush.msra.mxu0 0.0
  %5258 = vmatpush.msra.mxu0 0.0
  %5259 = vmatpush.msra.mxu0 0.0
  %5260 = vmatpush.msra.mxu0 0.0
  %5261 = vmatpush.msra.mxu0 0.0
  %5262 = vmatpush.msra.mxu0 0.0
  %5263 = vmatpush.msra.mxu0 0.0
  %5264 = vmatpush.msra.mxu0 0.0
  %5265 = vmatpush.msra.mxu0 0.0
  %5266 = vmatpush.msra.mxu0 %v4182
  %5267 = vmatpush.msra.mxu0 %v4092
  %5268 = vmatpush.msra.mxu0 %v4091
  %5269 = vmatpush.msra.mxu0 %v4090
  %5270 = vmatmul.f32.gmra.mxu0 %v5252
  %v5271 = vpop.f32.mrf.mxu0
  %v5272 = vadd.f32 %v4174, %v5271
  %5273 = vdwg.mxu0
  %5275 = vrot.lane.b32.xlu0 %v5188, 98
  %v5276 = vpop.permute.xlu0 %5275
  %v5277 = vsel %vm4100, %v5276, 0
  %5279 = vmatpush.msra.mxu0 0.0
  %5280 = vmatpush.msra.mxu0 0.0
  %5281 = vmatpush.msra.mxu0 0.0
  %5282 = vmatpush.msra.mxu0 0.0
  %5283 = vmatpush.msra.mxu0 0.0
  %5284 = vmatpush.msra.mxu0 0.0
  %5285 = vmatpush.msra.mxu0 0.0
  %5286 = vmatpush.msra.mxu0 0.0
  %5287 = vmatpush.msra.mxu0 0.0
  %5288 = vmatpush.msra.mxu0 0.0
  %5289 = vmatpush.msra.mxu0 0.0
  %5290 = vmatpush.msra.mxu0 0.0
  %5291 = vmatpush.msra.mxu0 %v4205
  %5292 = vmatpush.msra.mxu0 %v4096
  %5293 = vmatpush.msra.mxu0 %v4095
  %5294 = vmatpush.msra.mxu0 %v4094
  %5295 = vmatmul.f32.gmra.mxu0 %v5277
  %v5296 = vpop.f32.mrf.mxu0
  %v5297 = vadd.f32 0.0, %v5296
  %5298 = vdwg.mxu0
  %v5299 = vadd.f32 %v5272, %v5297
  %v5300 = vxor.u32 %v5299, 2147483648
  %v5301 = vmul.f32 %v5300, 1.442695
  %v5302 = vpow.pop %v5301
  %v5303 = vadd.f32 %v5302, 1.0
  %v5304 = vrcp.pop %v5303
  %v5305 = vmul.f32 %v5303, %v5304
  %v5306 = vsub.f32 1.0, %v5305
  %v5307 = vmul.f32 %v5304, %v5306
  %v5308 = vadd.f32 %v5304, %v5307
  %vm5309 = vweird.f32 %v5303
  %vm5310 = vweird.f32 %v5304
  %vm5311 = vmor %vm5309, %vm5310
  %v5312 = vsel %vm5311, %v5304, %v5308
  %v5313 = vand.u32 2147483647, %v5303
  %vm5314 = vcmp.eq.f32.partialorder %v5313, 8.507059e+37
  %v5315 = vand.u32 %v5303, 2147483648
  %v5316 = vor.u32 1.1754944e-38, %v5315
  %v5317 = vsel %vm5314, %v5316, %v5312
  %v5318 = vmul.f32 1.0, %v5317
  %v5319 = vadd.f32 %v5297, %v4250
  %5321 = vrot.lane.b32.xlu0 %v5319, 68
  %v5322 = vpop.permute.xlu0 %5321
  %v5324 = vmul.f32 %v5318, %v5322
  %5326 = vrot.lane.b32.xlu0 %v5324, 60
  %v5327 = vpop.permute.xlu0 %5326
  %v5329 = vadd.f32 %v5272, %v5327
  %v5330 = vtanh.pop %v5329
  %v5331 = vsub.f32 1.0, %v5318
  %5333 = vrot.lane.b32.xlu0 %v5330, 98
  %v5334 = vpop.permute.xlu0 %5333
  %v5336 = vmul.f32 %v5331, %v5334
  %v5337 = vmul.f32 %v5318, %v5188
  %v5338 = vadd.f32 %v5336, %v5337
  %5339 = vmatpush.msra.mxu0 0.0
  %5340 = vmatpush.msra.mxu0 0.0
  %5341 = vmatpush.msra.mxu0 0.0
  %5342 = vmatpush.msra.mxu0 0.0
  %5343 = vmatpush.msra.mxu0 0.0
  %5344 = vmatpush.msra.mxu0 0.0
  %5345 = vmatpush.msra.mxu0 0.0
  %5346 = vmatpush.msra.mxu0 0.0
  %5347 = vmatpush.msra.mxu0 0.0
  %5348 = vmatpush.msra.mxu0 0.0
  %5349 = vmatpush.msra.mxu0 0.0
  %5350 = vmatpush.msra.mxu0 0.0
  %5351 = vmatpush.msra.mxu0 %v4106
  %5352 = vmatpush.msra.mxu0 %v4087
  %5353 = vmatpush.msra.mxu0 %v4086
  %5354 = vmatpush.msra.mxu0 %v4085
  %5355 = vmatmul.f32.gmra.mxu0 %v5252
  %v5356 = vpop.f32.mrf.mxu0
  %v5357 = vadd.f32 0.0, %v5356
  %5358 = vdwg.mxu0
  %v5359 = vadd.f32 %v4056, %v5357
  %v5360 = vxor.u32 %v5359, 2147483648
  %v5361 = vmul.f32 %v5360, 1.442695
  %v5362 = vpow.pop %v5361
  %v5363 = vadd.f32 %v5362, 1.0
  %v5364 = vrcp.pop %v5363
  %v5365 = vmul.f32 %v5363, %v5364
  %v5366 = vsub.f32 1.0, %v5365
  %v5367 = vmul.f32 %v5364, %v5366
  %v5368 = vadd.f32 %v5364, %v5367
  %vm5369 = vweird.f32 %v5363
  %vm5370 = vweird.f32 %v5364
  %vm5371 = vmor %vm5369, %vm5370
  %v5372 = vsel %vm5371, %v5364, %v5368
  %v5373 = vand.u32 2147483647, %v5363
  %vm5374 = vcmp.eq.f32.partialorder %v5373, 8.507059e+37
  %v5375 = vand.u32 %v5363, 2147483648
  %v5376 = vor.u32 1.1754944e-38, %v5375
  %v5377 = vsel %vm5374, %v5376, %v5372
  %v5378 = vmul.f32 1.0, %v5377
  %v5379 = vadd.f32 %v5357, %v4151
  %5381 = vrot.lane.b32.xlu0 %v5379, 68
  %v5382 = vpop.permute.xlu0 %5381
  %v5384 = vmul.f32 %v5378, %v5382
  %5386 = vrot.lane.b32.xlu0 %v5384, 60
  %v5387 = vpop.permute.xlu0 %5386
  %v5389 = vadd.f32 %v4056, %v5387
  %v5390 = vtanh.pop %v5389
  %v5391 = vsub.f32 1.0, %v5378
  %5393 = vrot.lane.b32.xlu0 %v5390, 98
  %v5394 = vpop.permute.xlu0 %5393
  %v5396 = vmul.f32 %v5391, %v5394
  %v5397 = vmul.f32 %v5378, %v5248
  %v5398 = vadd.f32 %v5396, %v5397
  %5400 = vrot.lane.b32.xlu0 %v5398, 98
  %v5401 = vpop.permute.xlu0 %5400
  %v5402 = vsel %vm4100, %v5401, 0
  %5404 = vmatpush.msra.mxu0 0.0
  %5405 = vmatpush.msra.mxu0 0.0
  %5406 = vmatpush.msra.mxu0 0.0
  %5407 = vmatpush.msra.mxu0 0.0
  %5408 = vmatpush.msra.mxu0 0.0
  %5409 = vmatpush.msra.mxu0 0.0
  %5410 = vmatpush.msra.mxu0 0.0
  %5411 = vmatpush.msra.mxu0 0.0
  %5412 = vmatpush.msra.mxu0 0.0
  %5413 = vmatpush.msra.mxu0 0.0
  %5414 = vmatpush.msra.mxu0 0.0
  %5415 = vmatpush.msra.mxu0 0.0
  %5416 = vmatpush.msra.mxu0 %v4182
  %5417 = vmatpush.msra.mxu0 %v4092
  %5418 = vmatpush.msra.mxu0 %v4091
  %5419 = vmatpush.msra.mxu0 %v4090
  %5420 = vmatmul.f32.gmra.mxu0 %v5402
  %v5421 = vpop.f32.mrf.mxu0
  %v5422 = vadd.f32 %v4174, %v5421
  %5423 = vdwg.mxu0
  %5425 = vrot.lane.b32.xlu0 %v5338, 98
  %v5426 = vpop.permute.xlu0 %5425
  %v5427 = vsel %vm4100, %v5426, 0
  %5429 = vmatpush.msra.mxu0 0.0
  %5430 = vmatpush.msra.mxu0 0.0
  %5431 = vmatpush.msra.mxu0 0.0
  %5432 = vmatpush.msra.mxu0 0.0
  %5433 = vmatpush.msra.mxu0 0.0
  %5434 = vmatpush.msra.mxu0 0.0
  %5435 = vmatpush.msra.mxu0 0.0
  %5436 = vmatpush.msra.mxu0 0.0
  %5437 = vmatpush.msra.mxu0 0.0
  %5438 = vmatpush.msra.mxu0 0.0
  %5439 = vmatpush.msra.mxu0 0.0
  %5440 = vmatpush.msra.mxu0 0.0
  %5441 = vmatpush.msra.mxu0 %v4205
  %5442 = vmatpush.msra.mxu0 %v4096
  %5443 = vmatpush.msra.mxu0 %v4095
  %5444 = vmatpush.msra.mxu0 %v4094
  %5445 = vmatmul.f32.gmra.mxu0 %v5427
  %v5446 = vpop.f32.mrf.mxu0
  %v5447 = vadd.f32 0.0, %v5446
  %5448 = vdwg.mxu0
  %v5449 = vadd.f32 %v5422, %v5447
  %v5450 = vxor.u32 %v5449, 2147483648
  %v5451 = vmul.f32 %v5450, 1.442695
  %v5452 = vpow.pop %v5451
  %v5453 = vadd.f32 %v5452, 1.0
  %v5454 = vrcp.pop %v5453
  %v5455 = vmul.f32 %v5453, %v5454
  %v5456 = vsub.f32 1.0, %v5455
  %v5457 = vmul.f32 %v5454, %v5456
  %v5458 = vadd.f32 %v5454, %v5457
  %vm5459 = vweird.f32 %v5453
  %vm5460 = vweird.f32 %v5454
  %vm5461 = vmor %vm5459, %vm5460
  %v5462 = vsel %vm5461, %v5454, %v5458
  %v5463 = vand.u32 2147483647, %v5453
  %vm5464 = vcmp.eq.f32.partialorder %v5463, 8.507059e+37
  %v5465 = vand.u32 %v5453, 2147483648
  %v5466 = vor.u32 1.1754944e-38, %v5465
  %v5467 = vsel %vm5464, %v5466, %v5462
  %v5468 = vmul.f32 1.0, %v5467
  %v5469 = vadd.f32 %v5447, %v4250
  %5471 = vrot.lane.b32.xlu0 %v5469, 68
  %v5472 = vpop.permute.xlu0 %5471
  %v5474 = vmul.f32 %v5468, %v5472
  %5476 = vrot.lane.b32.xlu0 %v5474, 60
  %v5477 = vpop.permute.xlu0 %5476
  %v5479 = vadd.f32 %v5422, %v5477
  %v5480 = vtanh.pop %v5479
  %v5481 = vsub.f32 1.0, %v5468
  %5483 = vrot.lane.b32.xlu0 %v5480, 98
  %v5484 = vpop.permute.xlu0 %5483
  %v5486 = vmul.f32 %v5481, %v5484
  %v5487 = vmul.f32 %v5468, %v5338
  %v5488 = vadd.f32 %v5486, %v5487
  %5489 = vmatpush.msra.mxu0 0.0
  %5490 = vmatpush.msra.mxu0 0.0
  %5491 = vmatpush.msra.mxu0 0.0
  %5492 = vmatpush.msra.mxu0 0.0
  %5493 = vmatpush.msra.mxu0 0.0
  %5494 = vmatpush.msra.mxu0 0.0
  %5495 = vmatpush.msra.mxu0 0.0
  %5496 = vmatpush.msra.mxu0 0.0
  %5497 = vmatpush.msra.mxu0 0.0
  %5498 = vmatpush.msra.mxu0 0.0
  %5499 = vmatpush.msra.mxu0 0.0
  %5500 = vmatpush.msra.mxu0 0.0
  %5501 = vmatpush.msra.mxu0 %v4106
  %5502 = vmatpush.msra.mxu0 %v4087
  %5503 = vmatpush.msra.mxu0 %v4086
  %5504 = vmatpush.msra.mxu0 %v4085
  %5505 = vmatmul.f32.gmra.mxu0 %v5402
  %v5506 = vpop.f32.mrf.mxu0
  %v5507 = vadd.f32 0.0, %v5506
  %5508 = vdwg.mxu0
  %v5509 = vadd.f32 %v4059, %v5507
  %v5510 = vxor.u32 %v5509, 2147483648
  %v5511 = vmul.f32 %v5510, 1.442695
  %v5512 = vpow.pop %v5511
  %v5513 = vadd.f32 %v5512, 1.0
  %v5514 = vrcp.pop %v5513
  %v5515 = vmul.f32 %v5513, %v5514
  %v5516 = vsub.f32 1.0, %v5515
  %v5517 = vmul.f32 %v5514, %v5516
  %v5518 = vadd.f32 %v5514, %v5517
  %vm5519 = vweird.f32 %v5513
  %vm5520 = vweird.f32 %v5514
  %vm5521 = vmor %vm5519, %vm5520
  %v5522 = vsel %vm5521, %v5514, %v5518
  %v5523 = vand.u32 2147483647, %v5513
  %vm5524 = vcmp.eq.f32.partialorder %v5523, 8.507059e+37
  %v5525 = vand.u32 %v5513, 2147483648
  %v5526 = vor.u32 1.1754944e-38, %v5525
  %v5527 = vsel %vm5524, %v5526, %v5522
  %v5528 = vmul.f32 1.0, %v5527
  %v5529 = vadd.f32 %v5507, %v4151
  %5531 = vrot.lane.b32.xlu0 %v5529, 68
  %v5532 = vpop.permute.xlu0 %5531
  %v5534 = vmul.f32 %v5528, %v5532
  %5536 = vrot.lane.b32.xlu0 %v5534, 60
  %v5537 = vpop.permute.xlu0 %5536
  %v5539 = vadd.f32 %v4059, %v5537
  %v5540 = vtanh.pop %v5539
  %v5541 = vsub.f32 1.0, %v5528
  %5543 = vrot.lane.b32.xlu0 %v5540, 98
  %v5544 = vpop.permute.xlu0 %5543
  %v5546 = vmul.f32 %v5541, %v5544
  %v5547 = vmul.f32 %v5528, %v5398
  %v5548 = vadd.f32 %v5546, %v5547
  %5550 = vrot.lane.b32.xlu0 %v5548, 98
  %v5551 = vpop.permute.xlu0 %5550
  %v5552 = vsel %vm4100, %v5551, 0
  %5554 = vmatpush.msra.mxu0 0.0
  %5555 = vmatpush.msra.mxu0 0.0
  %5556 = vmatpush.msra.mxu0 0.0
  %5557 = vmatpush.msra.mxu0 0.0
  %5558 = vmatpush.msra.mxu0 0.0
  %5559 = vmatpush.msra.mxu0 0.0
  %5560 = vmatpush.msra.mxu0 0.0
  %5561 = vmatpush.msra.mxu0 0.0
  %5562 = vmatpush.msra.mxu0 0.0
  %5563 = vmatpush.msra.mxu0 0.0
  %5564 = vmatpush.msra.mxu0 0.0
  %5565 = vmatpush.msra.mxu0 0.0
  %5566 = vmatpush.msra.mxu0 %v4182
  %5567 = vmatpush.msra.mxu0 %v4092
  %5568 = vmatpush.msra.mxu0 %v4091
  %5569 = vmatpush.msra.mxu0 %v4090
  %5570 = vmatmul.f32.gmra.mxu0 %v5552
  %v5571 = vpop.f32.mrf.mxu0
  %v5572 = vadd.f32 %v4174, %v5571
  %5573 = vdwg.mxu0
  %5575 = vrot.lane.b32.xlu0 %v5488, 98
  %v5576 = vpop.permute.xlu0 %5575
  %v5577 = vsel %vm4100, %v5576, 0
  %5579 = vmatpush.msra.mxu0 0.0
  %5580 = vmatpush.msra.mxu0 0.0
  %5581 = vmatpush.msra.mxu0 0.0
  %5582 = vmatpush.msra.mxu0 0.0
  %5583 = vmatpush.msra.mxu0 0.0
  %5584 = vmatpush.msra.mxu0 0.0
  %5585 = vmatpush.msra.mxu0 0.0
  %5586 = vmatpush.msra.mxu0 0.0
  %5587 = vmatpush.msra.mxu0 0.0
  %5588 = vmatpush.msra.mxu0 0.0
  %5589 = vmatpush.msra.mxu0 0.0
  %5590 = vmatpush.msra.mxu0 0.0
  %5591 = vmatpush.msra.mxu0 %v4205
  %5592 = vmatpush.msra.mxu0 %v4096
  %5593 = vmatpush.msra.mxu0 %v4095
  %5594 = vmatpush.msra.mxu0 %v4094
  %5595 = vmatmul.f32.gmra.mxu0 %v5577
  %v5596 = vpop.f32.mrf.mxu0
  %v5597 = vadd.f32 0.0, %v5596
  %5598 = vdwg.mxu0
  %v5599 = vadd.f32 %v5572, %v5597
  %v5600 = vxor.u32 %v5599, 2147483648
  %v5601 = vmul.f32 %v5600, 1.442695
  %v5602 = vpow.pop %v5601
  %v5603 = vadd.f32 %v5602, 1.0
  %v5604 = vrcp.pop %v5603
  %v5605 = vmul.f32 %v5603, %v5604
  %v5606 = vsub.f32 1.0, %v5605
  %v5607 = vmul.f32 %v5604, %v5606
  %v5608 = vadd.f32 %v5604, %v5607
  %vm5609 = vweird.f32 %v5603
  %vm5610 = vweird.f32 %v5604
  %vm5611 = vmor %vm5609, %vm5610
  %v5612 = vsel %vm5611, %v5604, %v5608
  %v5613 = vand.u32 2147483647, %v5603
  %vm5614 = vcmp.eq.f32.partialorder %v5613, 8.507059e+37
  %v5615 = vand.u32 %v5603, 2147483648
  %v5616 = vor.u32 1.1754944e-38, %v5615
  %v5617 = vsel %vm5614, %v5616, %v5612
  %v5618 = vmul.f32 1.0, %v5617
  %v5619 = vadd.f32 %v5597, %v4250
  %5621 = vrot.lane.b32.xlu0 %v5619, 68
  %v5622 = vpop.permute.xlu0 %5621
  %v5624 = vmul.f32 %v5618, %v5622
  %5626 = vrot.lane.b32.xlu0 %v5624, 60
  %v5627 = vpop.permute.xlu0 %5626
  %v5629 = vadd.f32 %v5572, %v5627
  %v5630 = vtanh.pop %v5629
  %v5631 = vsub.f32 1.0, %v5618
  %5633 = vrot.lane.b32.xlu0 %v5630, 98
  %v5634 = vpop.permute.xlu0 %5633
  %v5636 = vmul.f32 %v5631, %v5634
  %v5637 = vmul.f32 %v5618, %v5488
  %v5638 = vadd.f32 %v5636, %v5637
  %5639 = vmatpush.msra.mxu0 0.0
  %5640 = vmatpush.msra.mxu0 0.0
  %5641 = vmatpush.msra.mxu0 0.0
  %5642 = vmatpush.msra.mxu0 0.0
  %5643 = vmatpush.msra.mxu0 0.0
  %5644 = vmatpush.msra.mxu0 0.0
  %5645 = vmatpush.msra.mxu0 0.0
  %5646 = vmatpush.msra.mxu0 0.0
  %5647 = vmatpush.msra.mxu0 0.0
  %5648 = vmatpush.msra.mxu0 0.0
  %5649 = vmatpush.msra.mxu0 0.0
  %5650 = vmatpush.msra.mxu0 0.0
  %5651 = vmatpush.msra.mxu0 %v4106
  %5652 = vmatpush.msra.mxu0 %v4087
  %5653 = vmatpush.msra.mxu0 %v4086
  %5654 = vmatpush.msra.mxu0 %v4085
  %5655 = vmatmul.f32.gmra.mxu0 %v5552
  %v5656 = vpop.f32.mrf.mxu0
  %v5657 = vadd.f32 0.0, %v5656
  %5658 = vdwg.mxu0
  %v5659 = vadd.f32 %v4062, %v5657
  %v5660 = vxor.u32 %v5659, 2147483648
  %v5661 = vmul.f32 %v5660, 1.442695
  %v5662 = vpow.pop %v5661
  %v5663 = vadd.f32 %v5662, 1.0
  %v5664 = vrcp.pop %v5663
  %v5665 = vmul.f32 %v5663, %v5664
  %v5666 = vsub.f32 1.0, %v5665
  %v5667 = vmul.f32 %v5664, %v5666
  %v5668 = vadd.f32 %v5664, %v5667
  %vm5669 = vweird.f32 %v5663
  %vm5670 = vweird.f32 %v5664
  %vm5671 = vmor %vm5669, %vm5670
  %v5672 = vsel %vm5671, %v5664, %v5668
  %v5673 = vand.u32 2147483647, %v5663
  %vm5674 = vcmp.eq.f32.partialorder %v5673, 8.507059e+37
  %v5675 = vand.u32 %v5663, 2147483648
  %v5676 = vor.u32 1.1754944e-38, %v5675
  %v5677 = vsel %vm5674, %v5676, %v5672
  %v5678 = vmul.f32 1.0, %v5677
  %v5679 = vadd.f32 %v5657, %v4151
  %5681 = vrot.lane.b32.xlu0 %v5679, 68
  %v5682 = vpop.permute.xlu0 %5681
  %v5684 = vmul.f32 %v5678, %v5682
  %5686 = vrot.lane.b32.xlu0 %v5684, 60
  %v5687 = vpop.permute.xlu0 %5686
  %v5689 = vadd.f32 %v4062, %v5687
  %v5690 = vtanh.pop %v5689
  %v5691 = vsub.f32 1.0, %v5678
  %5693 = vrot.lane.b32.xlu0 %v5690, 98
  %v5694 = vpop.permute.xlu0 %5693
  %v5696 = vmul.f32 %v5691, %v5694
  %v5697 = vmul.f32 %v5678, %v5548
  %v5698 = vadd.f32 %v5696, %v5697
  %5700 = vrot.lane.b32.xlu0 %v5698, 98
  %v5701 = vpop.permute.xlu0 %5700
  %v5702 = vsel %vm4100, %v5701, 0
  %5704 = vmatpush.msra.mxu0 0.0
  %5705 = vmatpush.msra.mxu0 0.0
  %5706 = vmatpush.msra.mxu0 0.0
  %5707 = vmatpush.msra.mxu0 0.0
  %5708 = vmatpush.msra.mxu0 0.0
  %5709 = vmatpush.msra.mxu0 0.0
  %5710 = vmatpush.msra.mxu0 0.0
  %5711 = vmatpush.msra.mxu0 0.0
  %5712 = vmatpush.msra.mxu0 0.0
  %5713 = vmatpush.msra.mxu0 0.0
  %5714 = vmatpush.msra.mxu0 0.0
  %5715 = vmatpush.msra.mxu0 0.0
  %5716 = vmatpush.msra.mxu0 %v4182
  %5717 = vmatpush.msra.mxu0 %v4092
  %5718 = vmatpush.msra.mxu0 %v4091
  %5719 = vmatpush.msra.mxu0 %v4090
  %5720 = vmatmul.f32.gmra.mxu0 %v5702
  %v5721 = vpop.f32.mrf.mxu0
  %v5722 = vadd.f32 %v4174, %v5721
  %5723 = vdwg.mxu0
  %5725 = vrot.lane.b32.xlu0 %v5638, 98
  %v5726 = vpop.permute.xlu0 %5725
  %v5727 = vsel %vm4100, %v5726, 0
  %5729 = vmatpush.msra.mxu0 0.0
  %5730 = vmatpush.msra.mxu0 0.0
  %5731 = vmatpush.msra.mxu0 0.0
  %5732 = vmatpush.msra.mxu0 0.0
  %5733 = vmatpush.msra.mxu0 0.0
  %5734 = vmatpush.msra.mxu0 0.0
  %5735 = vmatpush.msra.mxu0 0.0
  %5736 = vmatpush.msra.mxu0 0.0
  %5737 = vmatpush.msra.mxu0 0.0
  %5738 = vmatpush.msra.mxu0 0.0
  %5739 = vmatpush.msra.mxu0 0.0
  %5740 = vmatpush.msra.mxu0 0.0
  %5741 = vmatpush.msra.mxu0 %v4205
  %5742 = vmatpush.msra.mxu0 %v4096
  %5743 = vmatpush.msra.mxu0 %v4095
  %5744 = vmatpush.msra.mxu0 %v4094
  %5745 = vmatmul.f32.gmra.mxu0 %v5727
  %v5746 = vpop.f32.mrf.mxu0
  %v5747 = vadd.f32 0.0, %v5746
  %5748 = vdwg.mxu0
  %v5749 = vadd.f32 %v5722, %v5747
  %v5750 = vxor.u32 %v5749, 2147483648
  %v5751 = vmul.f32 %v5750, 1.442695
  %v5752 = vpow.pop %v5751
  %v5753 = vadd.f32 %v5752, 1.0
  %v5754 = vrcp.pop %v5753
  %v5755 = vmul.f32 %v5753, %v5754
  %v5756 = vsub.f32 1.0, %v5755
  %v5757 = vmul.f32 %v5754, %v5756
  %v5758 = vadd.f32 %v5754, %v5757
  %vm5759 = vweird.f32 %v5753
  %vm5760 = vweird.f32 %v5754
  %vm5761 = vmor %vm5759, %vm5760
  %v5762 = vsel %vm5761, %v5754, %v5758
  %v5763 = vand.u32 2147483647, %v5753
  %vm5764 = vcmp.eq.f32.partialorder %v5763, 8.507059e+37
  %v5765 = vand.u32 %v5753, 2147483648
  %v5766 = vor.u32 1.1754944e-38, %v5765
  %v5767 = vsel %vm5764, %v5766, %v5762
  %v5768 = vmul.f32 1.0, %v5767
  %v5769 = vadd.f32 %v5747, %v4250
  %5771 = vrot.lane.b32.xlu0 %v5769, 68
  %v5772 = vpop.permute.xlu0 %5771
  %v5774 = vmul.f32 %v5768, %v5772
  %5776 = vrot.lane.b32.xlu0 %v5774, 60
  %v5777 = vpop.permute.xlu0 %5776
  %v5779 = vadd.f32 %v5722, %v5777
  %v5780 = vtanh.pop %v5779
  %v5781 = vsub.f32 1.0, %v5768
  %5783 = vrot.lane.b32.xlu0 %v5780, 98
  %v5784 = vpop.permute.xlu0 %5783
  %v5786 = vmul.f32 %v5781, %v5784
  %v5787 = vmul.f32 %v5768, %v5638
  %v5788 = vadd.f32 %v5786, %v5787
  %5789 = vmatpush.msra.mxu0 0.0
  %5790 = vmatpush.msra.mxu0 0.0
  %5791 = vmatpush.msra.mxu0 0.0
  %5792 = vmatpush.msra.mxu0 0.0
  %5793 = vmatpush.msra.mxu0 0.0
  %5794 = vmatpush.msra.mxu0 0.0
  %5795 = vmatpush.msra.mxu0 0.0
  %5796 = vmatpush.msra.mxu0 0.0
  %5797 = vmatpush.msra.mxu0 0.0
  %5798 = vmatpush.msra.mxu0 0.0
  %5799 = vmatpush.msra.mxu0 0.0
  %5800 = vmatpush.msra.mxu0 0.0
  %5801 = vmatpush.msra.mxu0 %v4106
  %5802 = vmatpush.msra.mxu0 %v4087
  %5803 = vmatpush.msra.mxu0 %v4086
  %5804 = vmatpush.msra.mxu0 %v4085
  %5805 = vmatmul.f32.gmra.mxu0 %v5702
  %v5806 = vpop.f32.mrf.mxu0
  %v5807 = vadd.f32 0.0, %v5806
  %5808 = vdwg.mxu0
  %v5809 = vadd.f32 %v4065, %v5807
  %v5810 = vxor.u32 %v5809, 2147483648
  %v5811 = vmul.f32 %v5810, 1.442695
  %v5812 = vpow.pop %v5811
  %v5813 = vadd.f32 %v5812, 1.0
  %v5814 = vrcp.pop %v5813
  %v5815 = vmul.f32 %v5813, %v5814
  %v5816 = vsub.f32 1.0, %v5815
  %v5817 = vmul.f32 %v5814, %v5816
  %v5818 = vadd.f32 %v5814, %v5817
  %vm5819 = vweird.f32 %v5813
  %vm5820 = vweird.f32 %v5814
  %vm5821 = vmor %vm5819, %vm5820
  %v5822 = vsel %vm5821, %v5814, %v5818
  %v5823 = vand.u32 2147483647, %v5813
  %vm5824 = vcmp.eq.f32.partialorder %v5823, 8.507059e+37
  %v5825 = vand.u32 %v5813, 2147483648
  %v5826 = vor.u32 1.1754944e-38, %v5825
  %v5827 = vsel %vm5824, %v5826, %v5822
  %v5828 = vmul.f32 1.0, %v5827
  %v5829 = vadd.f32 %v5807, %v4151
  %5831 = vrot.lane.b32.xlu0 %v5829, 68
  %v5832 = vpop.permute.xlu0 %5831
  %v5834 = vmul.f32 %v5828, %v5832
  %5836 = vrot.lane.b32.xlu0 %v5834, 60
  %v5837 = vpop.permute.xlu0 %5836
  %v5839 = vadd.f32 %v4065, %v5837
  %v5840 = vtanh.pop %v5839
  %v5841 = vsub.f32 1.0, %v5828
  %5843 = vrot.lane.b32.xlu0 %v5840, 98
  %v5844 = vpop.permute.xlu0 %5843
  %v5846 = vmul.f32 %v5841, %v5844
  %v5847 = vmul.f32 %v5828, %v5698
  %v5848 = vadd.f32 %v5846, %v5847
  %5850 = vrot.lane.b32.xlu0 %v5848, 98
  %v5851 = vpop.permute.xlu0 %5850
  %v5852 = vsel %vm4100, %v5851, 0
  %5854 = vmatpush.msra.mxu0 0.0
  %5855 = vmatpush.msra.mxu0 0.0
  %5856 = vmatpush.msra.mxu0 0.0
  %5857 = vmatpush.msra.mxu0 0.0
  %5858 = vmatpush.msra.mxu0 0.0
  %5859 = vmatpush.msra.mxu0 0.0
  %5860 = vmatpush.msra.mxu0 0.0
  %5861 = vmatpush.msra.mxu0 0.0
  %5862 = vmatpush.msra.mxu0 0.0
  %5863 = vmatpush.msra.mxu0 0.0
  %5864 = vmatpush.msra.mxu0 0.0
  %5865 = vmatpush.msra.mxu0 0.0
  %5866 = vmatpush.msra.mxu0 %v4182
  %5867 = vmatpush.msra.mxu0 %v4092
  %5868 = vmatpush.msra.mxu0 %v4091
  %5869 = vmatpush.msra.mxu0 %v4090
  %5870 = vmatmul.f32.gmra.mxu0 %v5852
  %v5871 = vpop.f32.mrf.mxu0
  %v5872 = vadd.f32 %v4174, %v5871
  %5873 = vdwg.mxu0
  %5875 = vrot.lane.b32.xlu0 %v5788, 98
  %v5876 = vpop.permute.xlu0 %5875
  %v5877 = vsel %vm4100, %v5876, 0
  %5879 = vmatpush.msra.mxu0 0.0
  %5880 = vmatpush.msra.mxu0 0.0
  %5881 = vmatpush.msra.mxu0 0.0
  %5882 = vmatpush.msra.mxu0 0.0
  %5883 = vmatpush.msra.mxu0 0.0
  %5884 = vmatpush.msra.mxu0 0.0
  %5885 = vmatpush.msra.mxu0 0.0
  %5886 = vmatpush.msra.mxu0 0.0
  %5887 = vmatpush.msra.mxu0 0.0
  %5888 = vmatpush.msra.mxu0 0.0
  %5889 = vmatpush.msra.mxu0 0.0
  %5890 = vmatpush.msra.mxu0 0.0
  %5891 = vmatpush.msra.mxu0 %v4205
  %5892 = vmatpush.msra.mxu0 %v4096
  %5893 = vmatpush.msra.mxu0 %v4095
  %5894 = vmatpush.msra.mxu0 %v4094
  %5895 = vmatmul.f32.gmra.mxu0 %v5877
  %v5896 = vpop.f32.mrf.mxu0
  %v5897 = vadd.f32 0.0, %v5896
  %5898 = vdwg.mxu0
  %v5899 = vadd.f32 %v5872, %v5897
  %v5900 = vxor.u32 %v5899, 2147483648
  %v5901 = vmul.f32 %v5900, 1.442695
  %v5902 = vpow.pop %v5901
  %v5903 = vadd.f32 %v5902, 1.0
  %v5904 = vrcp.pop %v5903
  %v5905 = vmul.f32 %v5903, %v5904
  %v5906 = vsub.f32 1.0, %v5905
  %v5907 = vmul.f32 %v5904, %v5906
  %v5908 = vadd.f32 %v5904, %v5907
  %vm5909 = vweird.f32 %v5903
  %vm5910 = vweird.f32 %v5904
  %vm5911 = vmor %vm5909, %vm5910
  %v5912 = vsel %vm5911, %v5904, %v5908
  %v5913 = vand.u32 2147483647, %v5903
  %vm5914 = vcmp.eq.f32.partialorder %v5913, 8.507059e+37
  %v5915 = vand.u32 %v5903, 2147483648
  %v5916 = vor.u32 1.1754944e-38, %v5915
  %v5917 = vsel %vm5914, %v5916, %v5912
  %v5918 = vmul.f32 1.0, %v5917
  %v5919 = vadd.f32 %v5897, %v4250
  %5921 = vrot.lane.b32.xlu0 %v5919, 68
  %v5922 = vpop.permute.xlu0 %5921
  %v5924 = vmul.f32 %v5918, %v5922
  %5926 = vrot.lane.b32.xlu0 %v5924, 60
  %v5927 = vpop.permute.xlu0 %5926
  %v5929 = vadd.f32 %v5872, %v5927
  %v5930 = vtanh.pop %v5929
  %v5931 = vsub.f32 1.0, %v5918
  %5933 = vrot.lane.b32.xlu0 %v5930, 98
  %v5934 = vpop.permute.xlu0 %5933
  %v5936 = vmul.f32 %v5931, %v5934
  %v5937 = vmul.f32 %v5918, %v5788
  %v5938 = vadd.f32 %v5936, %v5937
  %5939 = vmatpush.msra.mxu0 0.0
  %5940 = vmatpush.msra.mxu0 0.0
  %5941 = vmatpush.msra.mxu0 0.0
  %5942 = vmatpush.msra.mxu0 0.0
  %5943 = vmatpush.msra.mxu0 0.0
  %5944 = vmatpush.msra.mxu0 0.0
  %5945 = vmatpush.msra.mxu0 0.0
  %5946 = vmatpush.msra.mxu0 0.0
  %5947 = vmatpush.msra.mxu0 0.0
  %5948 = vmatpush.msra.mxu0 0.0
  %5949 = vmatpush.msra.mxu0 0.0
  %5950 = vmatpush.msra.mxu0 0.0
  %5951 = vmatpush.msra.mxu0 %v4106
  %5952 = vmatpush.msra.mxu0 %v4087
  %5953 = vmatpush.msra.mxu0 %v4086
  %5954 = vmatpush.msra.mxu0 %v4085
  %5955 = vmatmul.f32.gmra.mxu0 %v5852
  %v5956 = vpop.f32.mrf.mxu0
  %v5957 = vadd.f32 0.0, %v5956
  %5958 = vdwg.mxu0
  %v5959 = vadd.f32 %v4068, %v5957
  %v5960 = vxor.u32 %v5959, 2147483648
  %v5961 = vmul.f32 %v5960, 1.442695
  %v5962 = vpow.pop %v5961
  %v5963 = vadd.f32 %v5962, 1.0
  %v5964 = vrcp.pop %v5963
  %v5965 = vmul.f32 %v5963, %v5964
  %v5966 = vsub.f32 1.0, %v5965
  %v5967 = vmul.f32 %v5964, %v5966
  %v5968 = vadd.f32 %v5964, %v5967
  %vm5969 = vweird.f32 %v5963
  %vm5970 = vweird.f32 %v5964
  %vm5971 = vmor %vm5969, %vm5970
  %v5972 = vsel %vm5971, %v5964, %v5968
  %v5973 = vand.u32 2147483647, %v5963
  %vm5974 = vcmp.eq.f32.partialorder %v5973, 8.507059e+37
  %v5975 = vand.u32 %v5963, 2147483648
  %v5976 = vor.u32 1.1754944e-38, %v5975
  %v5977 = vsel %vm5974, %v5976, %v5972
  %v5978 = vmul.f32 1.0, %v5977
  %v5979 = vadd.f32 %v5957, %v4151
  %5981 = vrot.lane.b32.xlu0 %v5979, 68
  %v5982 = vpop.permute.xlu0 %5981
  %v5984 = vmul.f32 %v5978, %v5982
  %5986 = vrot.lane.b32.xlu0 %v5984, 60
  %v5987 = vpop.permute.xlu0 %5986
  %v5989 = vadd.f32 %v4068, %v5987
  %v5990 = vtanh.pop %v5989
  %v5991 = vsub.f32 1.0, %v5978
  %5993 = vrot.lane.b32.xlu0 %v5990, 98
  %v5994 = vpop.permute.xlu0 %5993
  %v5996 = vmul.f32 %v5991, %v5994
  %v5997 = vmul.f32 %v5978, %v5848
  %v5998 = vadd.f32 %v5996, %v5997
  %6000 = vrot.lane.b32.xlu0 %v5998, 98
  %v6001 = vpop.permute.xlu0 %6000
  %v6002 = vsel %vm4100, %v6001, 0
  %6004 = vmatpush.msra.mxu0 0.0
  %6005 = vmatpush.msra.mxu0 0.0
  %6006 = vmatpush.msra.mxu0 0.0
  %6007 = vmatpush.msra.mxu0 0.0
  %6008 = vmatpush.msra.mxu0 0.0
  %6009 = vmatpush.msra.mxu0 0.0
  %6010 = vmatpush.msra.mxu0 0.0
  %6011 = vmatpush.msra.mxu0 0.0
  %6012 = vmatpush.msra.mxu0 0.0
  %6013 = vmatpush.msra.mxu0 0.0
  %6014 = vmatpush.msra.mxu0 0.0
  %6015 = vmatpush.msra.mxu0 0.0
  %6016 = vmatpush.msra.mxu0 %v4182
  %6017 = vmatpush.msra.mxu0 %v4092
  %6018 = vmatpush.msra.mxu0 %v4091
  %6019 = vmatpush.msra.mxu0 %v4090
  %6020 = vmatmul.f32.gmra.mxu0 %v6002
  %v6021 = vpop.f32.mrf.mxu0
  %v6022 = vadd.f32 %v4174, %v6021
  %6023 = vdwg.mxu0
  %6025 = vrot.lane.b32.xlu0 %v5938, 98
  %v6026 = vpop.permute.xlu0 %6025
  %v6027 = vsel %vm4100, %v6026, 0
  %6029 = vmatpush.msra.mxu0 0.0
  %6030 = vmatpush.msra.mxu0 0.0
  %6031 = vmatpush.msra.mxu0 0.0
  %6032 = vmatpush.msra.mxu0 0.0
  %6033 = vmatpush.msra.mxu0 0.0
  %6034 = vmatpush.msra.mxu0 0.0
  %6035 = vmatpush.msra.mxu0 0.0
  %6036 = vmatpush.msra.mxu0 0.0
  %6037 = vmatpush.msra.mxu0 0.0
  %6038 = vmatpush.msra.mxu0 0.0
  %6039 = vmatpush.msra.mxu0 0.0
  %6040 = vmatpush.msra.mxu0 0.0
  %6041 = vmatpush.msra.mxu0 %v4205
  %6042 = vmatpush.msra.mxu0 %v4096
  %6043 = vmatpush.msra.mxu0 %v4095
  %6044 = vmatpush.msra.mxu0 %v4094
  %6045 = vmatmul.f32.gmra.mxu0 %v6027
  %v6046 = vpop.f32.mrf.mxu0
  %v6047 = vadd.f32 0.0, %v6046
  %6048 = vdwg.mxu0
  %v6049 = vadd.f32 %v6022, %v6047
  %v6050 = vxor.u32 %v6049, 2147483648
  %v6051 = vmul.f32 %v6050, 1.442695
  %v6052 = vpow.pop %v6051
  %v6053 = vadd.f32 %v6052, 1.0
  %v6054 = vrcp.pop %v6053
  %v6055 = vmul.f32 %v6053, %v6054
  %v6056 = vsub.f32 1.0, %v6055
  %v6057 = vmul.f32 %v6054, %v6056
  %v6058 = vadd.f32 %v6054, %v6057
  %vm6059 = vweird.f32 %v6053
  %vm6060 = vweird.f32 %v6054
  %vm6061 = vmor %vm6059, %vm6060
  %v6062 = vsel %vm6061, %v6054, %v6058
  %v6063 = vand.u32 2147483647, %v6053
  %vm6064 = vcmp.eq.f32.partialorder %v6063, 8.507059e+37
  %v6065 = vand.u32 %v6053, 2147483648
  %v6066 = vor.u32 1.1754944e-38, %v6065
  %v6067 = vsel %vm6064, %v6066, %v6062
  %v6068 = vmul.f32 1.0, %v6067
  %v6069 = vadd.f32 %v6047, %v4250
  %6071 = vrot.lane.b32.xlu0 %v6069, 68
  %v6072 = vpop.permute.xlu0 %6071
  %v6074 = vmul.f32 %v6068, %v6072
  %6076 = vrot.lane.b32.xlu0 %v6074, 60
  %v6077 = vpop.permute.xlu0 %6076
  %v6079 = vadd.f32 %v6022, %v6077
  %v6080 = vtanh.pop %v6079
  %v6081 = vsub.f32 1.0, %v6068
  %6083 = vrot.lane.b32.xlu0 %v6080, 98
  %v6084 = vpop.permute.xlu0 %6083
  %v6086 = vmul.f32 %v6081, %v6084
  %v6087 = vmul.f32 %v6068, %v5938
  %v6088 = vadd.f32 %v6086, %v6087
  %v6089 = vld [vmem:[%s53] sm:$0xff]
  %v6090 = vld [vmem:[%s53 + $0x8] sm:$0xff]
  %v6091 = vld [vmem:[%s53 + $0x10] sm:$0xff]
  %v6092 = vld [vmem:[%s53 + $0x18] sm:$0x3f]
  %v6093 = vld [vmem:[%s55] sm:$0xff]
  %v6094 = vld [vmem:[%s55 + $0x8] sm:$0xff]
  %v6095 = vld [vmem:[%s55 + $0x10] sm:$0xff]
  %v6096 = vld [vmem:[%s55 + $0x18] sm:$0x3f]
  %6098 = vrot.lane.b32.xlu0 %v6088, 98
  %v6099 = vpop.permute.xlu0 %6098
  %v6100 = vsel %vm4100, %v6099, 0
  %v6103 = vsel %vm4104, %v6096, 0
  %6105 = vmatpush.msra.mxu0 0.0
  %6106 = vmatpush.msra.mxu0 0.0
  %6107 = vmatpush.msra.mxu0 0.0
  %6108 = vmatpush.msra.mxu0 0.0
  %6109 = vmatpush.msra.mxu0 0.0
  %6110 = vmatpush.msra.mxu0 0.0
  %6111 = vmatpush.msra.mxu0 0.0
  %6112 = vmatpush.msra.mxu0 0.0
  %6113 = vmatpush.msra.mxu0 0.0
  %6114 = vmatpush.msra.mxu0 0.0
  %6115 = vmatpush.msra.mxu0 0.0
  %6116 = vmatpush.msra.mxu0 0.0
  %6117 = vmatpush.msra.mxu0 %v6103
  %6118 = vmatpush.msra.mxu0 %v6095
  %6119 = vmatpush.msra.mxu0 %v6094
  %6120 = vmatpush.msra.mxu0 %v6093
  %6121 = vmatmul.f32.gmra.mxu0 %v6100
  %v6122 = vpop.f32.mrf.mxu0
  %v6123 = vadd.f32 0.0, %v6122
  %6124 = vdwg.mxu0
  %6126 = vrot.lane.b32.xlu0 %v5038, 98
  %v6127 = vpop.permute.xlu0 %6126
  %v6128 = vsel %vm4100, %v6127, 0
  %v6131 = vsel %vm4104, %v6092, 0
  %6133 = vmatpush.msra.mxu0 0.0
  %6134 = vmatpush.msra.mxu0 0.0
  %6135 = vmatpush.msra.mxu0 0.0
  %6136 = vmatpush.msra.mxu0 0.0
  %6137 = vmatpush.msra.mxu0 0.0
  %6138 = vmatpush.msra.mxu0 0.0
  %6139 = vmatpush.msra.mxu0 0.0
  %6140 = vmatpush.msra.mxu0 0.0
  %6141 = vmatpush.msra.mxu0 0.0
  %6142 = vmatpush.msra.mxu0 0.0
  %6143 = vmatpush.msra.mxu0 0.0
  %6144 = vmatpush.msra.mxu0 0.0
  %6145 = vmatpush.msra.mxu0 %v6131
  %6146 = vmatpush.msra.mxu0 %v6091
  %6147 = vmatpush.msra.mxu0 %v6090
  %6148 = vmatpush.msra.mxu0 %v6089
  %6149 = vmatmul.f32.gmra.mxu0 %v6128
  %v6150 = vpop.f32.mrf.mxu0
  %v6151 = vadd.f32 %v6123, %v6150
  %6152 = vdwg.mxu0
  %v6153 = vld [vmem:[%s57] sm:$0x1]
  %v6155 = vperm.slane %v6153, 0
  %v6157 = vadd.f32 %v6151, %v6155
  %v6158 = vmax.f32 %v6157, 0.0
  %v6159 = vld [vmem:[%s59] sm:$0xff]
  %v6160 = vld [vmem:[%s59 + $0x8] sm:$0xff]
  %v6161 = vld [vmem:[%s59 + $0x10] sm:$0xff]
  %v6162 = vld [vmem:[%s59 + $0x18] sm:$0xff]
  %v6163 = vld [vmem:[#allocation2] sm:$0x1]
  %v6165 = vperm.slane %v6163, 0
  %v6168 = vsel %vm1753, %v6158, 0
  %6170 = vmatpush.msra.mxu0 0.0
  %6171 = vmatpush.msra.mxu0 0.0
  %6172 = vmatpush.msra.mxu0 0.0
  %6173 = vmatpush.msra.mxu0 0.0
  %6174 = vmatpush.msra.mxu0 0.0
  %6175 = vmatpush.msra.mxu0 0.0
  %6176 = vmatpush.msra.mxu0 0.0
  %6177 = vmatpush.msra.mxu0 0.0
  %6178 = vmatpush.msra.mxu0 0.0
  %6179 = vmatpush.msra.mxu0 0.0
  %6180 = vmatpush.msra.mxu0 0.0
  %6181 = vmatpush.msra.mxu0 0.0
  %6182 = vmatpush.msra.mxu0 %v6162
  %6183 = vmatpush.msra.mxu0 %v6161
  %6184 = vmatpush.msra.mxu0 %v6160
  %6185 = vmatpush.msra.mxu0 %v6159
  %6186 = vmatmul.f32.gmra.mxu0 %v6168
  %v6187 = vpop.f32.mrf.mxu0
  %v6188 = vadd.f32 %v6165, %v6187
  %6189 = vdwg.mxu0
  %vm6190 = vcmask 7168
  %6191 = vst.msk [vmem:[%s63] sm:$0xff] %vm6190, %v6188
  // Predicated region
  $region126: #{alphanet_forward.1} parent=0 // pred_check
    _
  $region127: #{alphanet_forward.1} parent=0 // pred_check_branch
    %6193 = sbr.rel (0) target = $region129
  $region128: #{alphanet_forward.1} parent=0 // pred_region
    _
  $region129: #{alphanet_forward.1} parent=0 // pred_fallthru
    _
  // Predicated region
  $region130: #{alphanet_forward.1} parent=0 // pred_check
    _
  $region131: #{alphanet_forward.1} parent=0 // pred_check_branch
    %6195 = sbr.rel (0) target = $region133
  $region132: #{alphanet_forward.1} parent=0 // pred_region
    _
  $region133: #{alphanet_forward.1} parent=0 // pred_fallthru
    _

</llo_original>
